<compile_context>
chip_gen: v7x
topology: tpu7x:2x2x1
jax: 0.10.0
libtpu: 0.0.40
codegen_flags: <defaults>
</compile_context>

<pallas_src>
import functools
import math

import jax
import jax.numpy as jnp
from jax.experimental import pallas as pl
from jax.experimental.pallas import tpu as pltpu

SELU_ALPHA = 1.6732632423543772848170429916717
SELU_SCALE = 1.0507009873554804934193349852946
BN_EPS = 1e-5
LANE = 128

# Conservative, chip-agnostic VMEM budgets (v7x has only 64 MiB per TensorCore).
_VMEM_BUDGET_BYTES = 26 * 1024 * 1024
_VMEM_LIMIT_BYTES = 48 * 1024 * 1024
# TODO(synk): on v5e/v6e (128 MiB VMEM) raise the budget and keep A resident across a
# fused multi-layer kernel once the chip generation can be queried safely at trace time.


def _round_up(x, m):
    return (x + m - 1) // m * m


def _row_tile_candidates(npad):
    cands = [t for t in (512, 256, 128) if npad % t == 0]
    multi = [t for t in cands if npad // t >= 2]   # prefer >=2 row blocks (megacore)
    return multi if multi else cands


def _conv_vmem_budget(tm, tk, din, dtot, hpad, num_stats, num_gfc_layers):
    acc = tm * num_stats * din * 4                 # f32 accumulator scratch
    a_buf = 2 * tm * tk * 2                        # A tile double buffer (bf16)
    x_buf = 2 * tk * dtot * 2                      # feature tile double buffer (bf16)
    y_buf = 2 * tm * hpad * 2                      # output tile double buffer (bf16)
    stats = 4 * 8 * hpad * 4                       # BN partial-stat tiles
    w = num_stats * (din * hpad + (num_gfc_layers - 1) * hpad * hpad) * 2
    w += num_stats * num_gfc_layers * hpad * 4 + 2 * din * 4
    return acc + a_buf + x_buf + y_buf + stats + w


def _pick_conv_tiles(npad, din, dtot, hpad, num_stats, num_gfc_layers):
    tk_cands = [t for t in (512, 256, 128) if npad % t == 0]
    for tm in _row_tile_candidates(npad):
        for tk in tk_cands:
            if _conv_vmem_budget(tm, tk, din, dtot, hpad,
                                 num_stats, num_gfc_layers) <= _VMEM_BUDGET_BYTES:
                return tm, tk
    return 128, 128


# ------------------------------------------------------------------ kernels


def make_conv_selu_kernel(num_stats, num_gfc_layers, din, num_k_blocks, n_real, tm):
    """GraphCapsuleConv + SELU, fused input-BatchNorm, masked BN partial statistics."""

    def kernel(a_ref, x_ref, scale_ref, shift_ref, *rest):
        fc_refs = rest[:2 * num_gfc_layers]                   # W0, b0, W1, b1, ...
        y_ref, sum_ref, ssq_ref, acc_ref = rest[2 * num_gfc_layers:]

        # NOTE: pl.program_id must stay at the top level of the kernel body; calling it
        # inside a pl.when body breaks the cond lowering (interpret mode).
        m = pl.program_id(0)
        k = pl.program_id(1)
        is_first = k == 0
        is_rest = k > 0
        is_last = k == num_k_blocks - 1
        row_start = m * tm

        a = a_ref[...]                                        # (tm, tk) bf16

        # Slice off the columns valid for this layer (buffer is read full-width so every
        # BlockSpec evenly divides its array) and fuse the producing layers' BatchNorm
        # (identity on the raw-x segment) -- cheap VPU work hidden under the MXU matmuls.
        x = x_ref[:, :din].astype(jnp.float32) * scale_ref[...] + shift_ref[...]

        # One MXU dot per statistical moment, streamed straight into a lane-aligned slice
        # of the f32 accumulator: no stacked-moment temp, k==0 stores directly (no
        # zero-init + read-modify-write).
        xp = x
        for s in range(num_stats):
            if s:
                xp = xp * x                                   # incremental power
            contrib = jnp.dot(a, xp.astype(jnp.bfloat16),
                              preferred_element_type=jnp.float32)
            sl = slice(s * din, (s + 1) * din)

            @pl.when(is_first)
            def _(contrib=contrib, sl=sl):
                acc_ref[:, sl] = contrib

            @pl.when(is_rest)
            def _(contrib=contrib, sl=sl):
                acc_ref[:, sl] += contrib

        @pl.when(is_last)
        def _():
            out = None
            for s in range(num_stats):                        # per-moment graph-FC stack
                h = acc_ref[:, s * din:(s + 1) * din]         # slice-wise scratch read
                for j in range(num_gfc_layers):
                    w = fc_refs[2 * j][s]                     # (din|hpad, hpad) bf16
                    b = fc_refs[2 * j + 1][s]                 # (1, hpad) f32
                    h = jnp.maximum(
                        jnp.dot(h.astype(jnp.bfloat16), w,
                                preferred_element_type=jnp.float32) + b, 0.0)
                out = h if out is None else out + h           # sum over moments

            # SELU (clamp the exp argument so the discarded branch cannot overflow).
            y = SELU_SCALE * jnp.where(
                out > 0.0, out,
                SELU_ALPHA * (jnp.exp(jnp.minimum(out, 0.0)) - 1.0))

            # Zero padded rows so they do not pollute the batch statistics.
            rows = jax.lax.broadcasted_iota(jnp.int32, y.shape, 0) + row_start
            y = jnp.where(rows < n_real, y, 0.0)

            y_ref[...] = y.astype(y_ref.dtype)                # bf16 segment, in place
            s1 = jnp.sum(y, axis=0, keepdims=True)
            s2 = jnp.sum(y * y, axis=0, keepdims=True)
            # (8, hpad) sublane-aligned partial-stat tiles (all 8 rows identical).
            sum_ref[...] = jnp.broadcast_to(s1, sum_ref.shape)
            ssq_ref[...] = jnp.broadcast_to(s2, ssq_ref.shape)

    return kernel


def bn_apply_kernel(y_ref, scale_ref, shift_ref, o_ref):
    # BatchNorm folded into y * scale + shift (scale/shift from global batch statistics).
    o_ref[...] = y_ref[...].astype(jnp.float32) * scale_ref[...] + shift_ref[...]


# ------------------------------------------------------------------ per-layer wrappers


def gcaps_conv_layer(a_pad, feat, in_scale, in_shift, layer_params, *,
                     num_stats, num_gfc_layers, hpad, n_real):
    npad, dtot = feat.shape
    din = in_scale.shape[1]
    tm, tk = _pick_conv_tiles(npad, din, dtot, hpad, num_stats, num_gfc_layers)
    mb, kb = npad // tm, npad // tk
    col_out = din // hpad                         # column block this layer writes

    inputs = [a_pad, feat, in_scale, in_shift]
    in_specs = [
        pl.BlockSpec((tm, tk), lambda m, k: (m, k)),          # A tile
        pl.BlockSpec((tk, dtot), lambda m, k: (k, 0)),        # feature tile (reduction k)
        pl.BlockSpec((1, din), lambda m, k: (0, 0)),          # fused-BN scale (resident)
        pl.BlockSpec((1, din), lambda m, k: (0, 0)),          # fused-BN shift (resident)
    ]
    for (w, b) in layer_params["fc"]:
        inputs += [w, b]
        in_specs += [
            pl.BlockSpec(w.shape, lambda m, k: (0, 0, 0)),    # weights stay resident
            pl.BlockSpec(b.shape, lambda m, k: (0, 0, 0)),
        ]

    kernel = make_conv_selu_kernel(num_stats, num_gfc_layers, din, kb, n_real, tm)
    feat_new, psum, pssq = pl.pallas_call(
        kernel,
        grid=(mb, kb),
        in_specs=in_specs,
        out_specs=[
            pl.BlockSpec((tm, hpad), lambda m, k: (m, col_out)),   # in-place segment write
            pl.BlockSpec((8, hpad), lambda m, k: (m, 0)),
            pl.BlockSpec((8, hpad), lambda m, k: (m, 0)),
        ],
        out_shape=[
            jax.ShapeDtypeStruct((npad, dtot), jnp.bfloat16),
            jax.ShapeDtypeStruct((mb * 8, hpad), jnp.float32),
            jax.ShapeDtypeStruct((mb * 8, hpad), jnp.float32),
        ],
        scratch_shapes=[pltpu.VMEM((tm, num_stats * din), jnp.float32)],
        input_output_aliases={1: 0},              # feature buffer updated in place
        compiler_params=pltpu.CompilerParams(
            dimension_semantics=("parallel", "arbitrary"),
            vmem_limit_bytes=_VMEM_LIMIT_BYTES),
    )(*inputs)

    # Global BatchNorm1d batch statistics from the per-row-block partials (tiny glue).
    total = jnp.sum(psum.reshape(mb, 8, hpad)[:, 0, :], axis=0)
    total_sq = jnp.sum(pssq.reshape(mb, 8, hpad)[:, 0, :], axis=0)
    mean = total / n_real
    var = jnp.maximum(total_sq / n_real - mean * mean, 0.0)  # biased var (training mode)
    inv = jax.lax.rsqrt(var + BN_EPS)
    scale = layer_params["gamma"] * inv
    shift = layer_params["beta"] - mean * scale
    return feat_new, scale, shift


def bn_apply_all(feat, scales, shifts, *, dpad0, hpad):
    """Materialise BatchNorm for every hidden segment in one lane-dense pass."""
    npad = feat.shape[0]
    num_layers = len(scales)
    tm = _row_tile_candidates(npad)[0]
    mb = npad // tm
    col0 = dpad0 // hpad
    scale_cat = jnp.concatenate(scales, axis=-1)
    shift_cat = jnp.concatenate(shifts, axis=-1)
    return pl.pallas_call(
        bn_apply_kernel,
        grid=(mb, num_layers),
        in_specs=[
            pl.BlockSpec((tm, hpad), lambda m, j: (m, col0 + j)),
            pl.BlockSpec((1, hpad), lambda m, j: (0, j)),
            pl.BlockSpec((1, hpad), lambda m, j: (0, j)),
        ],
        out_specs=pl.BlockSpec((tm, hpad), lambda m, j: (m, j)),
        out_shape=jax.ShapeDtypeStruct((npad, num_layers * hpad), jnp.float32),
        compiler_params=pltpu.CompilerParams(
            dimension_semantics=("parallel", "parallel")),
    )(feat, scale_cat, shift_cat)


# ------------------------------------------------------------------ params + forward


def init_params(key, input_dim, hidden_dim, num_gconv_layers, num_gfc_layers,
                num_stats, dpad0, hpad):
    """PyTorch-Linear-style uniform init, zero-padded to lane-dense shapes.

    Padded weight rows follow the padded feature layout [dpad0 | hpad | hpad | ...]
    so the padded compute equals the unpadded module (up to bf16 matmul casts).
    """
    params = []
    for i in range(num_gconv_layers):
        seg_real = [input_dim] + [hidden_dim] * i
        seg_pad = [dpad0] + [hpad] * i
        layer = {"fc": []}
        for j in range(num_gfc_layers):
            if j == 0:
                fan_in, sr, sp = sum(seg_real), seg_real, seg_pad
            else:
                fan_in, sr, sp = hidden_dim, [hidden_dim], [hpad]
            key, kw, kb = jax.random.split(key, 3)
            bound = 1.0 / math.sqrt(fan_in)
            w = jax.random.uniform(kw, (num_stats, fan_in, hidden_dim),
                                   jnp.float32, -bound, bound)
            b = jax.random.uniform(kb, (num_stats, 1, hidden_dim),
                                   jnp.float32, -bound, bound)
            wp = jnp.zeros((num_stats, sum(sp), hpad), jnp.float32)
            r_off = p_off = 0
            for r, p in zip(sr, sp):
                wp = wp.at[:, p_off:p_off + r, :hidden_dim].set(w[:, r_off:r_off + r, :])
                r_off += r
                p_off += p
            bp = jnp.zeros((num_stats, 1, hpad), jnp.float32)
            bp = bp.at[:, :, :hidden_dim].set(b)
            layer["fc"].append((wp.astype(jnp.bfloat16), bp))
        layer["gamma"] = jnp.zeros((1, hpad), jnp.float32).at[:, :hidden_dim].set(1.0)
        layer["beta"] = jnp.zeros((1, hpad), jnp.float32)
        params.append(layer)
    return params


def graph_encoder_forward(x, edge_index, params, *, input_dim, hidden_dim,
                          num_gconv_layers, num_gfc_layers, num_stats):
    n = x.shape[0]
    npad = max(_round_up(n, LANE), LANE)
    hpad = max(_round_up(hidden_dim, LANE), LANE)
    # dpad0 is rounded to a multiple of hpad so every segment offset is a whole number of
    # (tm, hpad) output blocks (needed for the in-place column write).
    dpad0 = max(_round_up(input_dim, hpad), hpad)
    dtot = dpad0 + num_gconv_layers * hpad

    # Dense padded adjacency (glue): A[dst, src] = edge multiplicity, exact in bf16 for
    # multiplicities <= 256.
    src, dst = edge_index[0], edge_index[1]
    a_pad = (jnp.zeros((npad, npad), jnp.float32)
             .at[dst, src].add(1.0).astype(jnp.bfloat16))
    # TODO(synk): for large sparse graphs replace the dense A@X with a scalar-prefetch
    # CSR gather kernel instead of densifying edge_index.

    # Single preallocated bf16 feature buffer [x | y_1 | ... | y_L]; each layer fills its
    # segment in place with its PRE-BatchNorm activations (BN is fused downstream).
    feat = (jnp.zeros((npad, dtot), jnp.bfloat16)
            .at[:n, :input_dim].set(x.astype(jnp.bfloat16)))

    ones0 = jnp.ones((1, dpad0), jnp.float32)      # identity "BN" for the raw-x segment
    zeros0 = jnp.zeros((1, dpad0), jnp.float32)
    scales, shifts = [], []
    for i in range(num_gconv_layers):
        in_scale = jnp.concatenate([ones0] + scales, axis=-1)
        in_shift = jnp.concatenate([zeros0] + shifts, axis=-1)
        feat, sc, sh = gcaps_conv_layer(
            a_pad, feat, in_scale, in_shift, params[i],
            num_stats=num_stats, num_gfc_layers=num_gfc_layers,
            hpad=hpad, n_real=n)
        scales.append(sc)
        shifts.append(sh)

    # Materialise the BatchNorm-ed hidden segments once and strip padding back to the
    # reference layout [x | y_1 | ... | y_L].
    y_bn = bn_apply_all(feat, scales, shifts, dpad0=dpad0, hpad=hpad)
    segs = [x.astype(jnp.float32)]
    for i in range(num_gconv_layers):
        segs.append(y_bn[:n, i * hpad:i * hpad + hidden_dim])
    return jnp.concatenate(segs, axis=-1)


if __name__ == "__main__":
    # Small deterministic example consistent with the module's forward: (N, D) + (2, E).
    N, input_dim = 16, 8
    hidden_dim = 16
    num_gconv_layers = 2
    num_gfc_layers = 2
    num_stats = 3
    E = 32

    key = jax.random.PRNGKey(0)
    key, kx, ke, kp = jax.random.split(key, 4)
    x = jax.random.normal(kx, (N, input_dim), jnp.float32)
    edge_index = jax.random.randint(ke, (2, E), 0, N, dtype=jnp.int32)

    hpad = max(_round_up(hidden_dim, LANE), LANE)
    dpad0 = max(_round_up(input_dim, hpad), hpad)
    params = init_params(kp, input_dim, hidden_dim, num_gconv_layers,
                         num_gfc_layers, num_stats, dpad0, hpad)

    fwd = jax.jit(functools.partial(
        graph_encoder_forward,
        input_dim=input_dim, hidden_dim=hidden_dim,
        num_gconv_layers=num_gconv_layers,
        num_gfc_layers=num_gfc_layers, num_stats=num_stats))
    out = jax.block_until_ready(fwd(x, edge_index, params))

    expected_dim = input_dim + num_gconv_layers * hidden_dim
    assert out.shape == (N, expected_dim), out.shape
    assert bool(jnp.all(jnp.isfinite(out)))
    print("KERNEL_OK")
</pallas_src>

<mosaic_0001>
module attributes {stable_mosaic.version = 11 : i64} {
  func.func private @main(%arg0: i32) attributes {dimension_semantics = [#tpu.dimension_semantics<core_parallel>], iteration_bounds = array<i64: 2>, tpu.core_type = #tpu.core_type<sc_scalar_subcore>, window_params = []} {
    return
  }
}

module attributes {stable_mosaic.version = 11 : i64} {
  func.func private @main(%arg0: i32) attributes {dimension_semantics = [#tpu.dimension_semantics<core_parallel>], iteration_bounds = array<i64: 2>, tpu.core_type = #tpu.core_type<sc_scalar_subcore>, window_params = []} {
    return
  }
}

module attributes {stable_mosaic.version = 11 : i64} {
  func.func @bn_apply_kernel(%arg0: i32, %arg1: i32, %arg2: memref<128x128xbf16, #tpu.memory_space<vmem>>, %arg3: memref<1x128xf32, #tpu.memory_space<vmem>>, %arg4: memref<1x128xf32, #tpu.memory_space<vmem>>, %arg5: memref<128x128xf32, #tpu.memory_space<vmem>>) attributes {dimension_semantics = [#tpu.dimension_semantics<parallel>, #tpu.dimension_semantics<parallel>], iteration_bounds = array<i64: 1, 2>, scalar_prefetch = 0 : i64, scratch_operands = 0 : i64, tpu.core_type = #tpu.core_type<tc>, window_params = [{transform_indices = @transform_0, window_bounds = array<i64: 128, 128>}, {transform_indices = @transform_1, window_bounds = array<i64: 1, 128>}, {transform_indices = @transform_2, window_bounds = array<i64: 1, 128>}, {transform_indices = @transform_3, window_bounds = array<i64: 128, 128>}]} {
    %c0 = arith.constant 0 : index
    %c0_0 = arith.constant 0 : index
    %0 = vector.load %arg2[%c0, %c0_0] : memref<128x128xbf16, #tpu.memory_space<vmem>>, vector<128x128xbf16>
    %1 = arith.extf %0 : vector<128x128xbf16> to vector<128x128xf32>
    %c0_1 = arith.constant 0 : index
    %c0_2 = arith.constant 0 : index
    %2 = vector.load %arg3[%c0_1, %c0_2] : memref<1x128xf32, #tpu.memory_space<vmem>>, vector<1x128xf32>
    %3 = vector.broadcast %2 : vector<1x128xf32> to vector<128x128xf32>
    %4 = arith.mulf %1, %3 : vector<128x128xf32>
    %c0_3 = arith.constant 0 : index
    %c0_4 = arith.constant 0 : index
    %5 = vector.load %arg4[%c0_3, %c0_4] : memref<1x128xf32, #tpu.memory_space<vmem>>, vector<1x128xf32>
    %6 = vector.broadcast %5 : vector<1x128xf32> to vector<128x128xf32>
    %7 = arith.addf %4, %6 : vector<128x128xf32>
    %c0_5 = arith.constant 0 : index
    %c0_6 = arith.constant 0 : index
    %8 = vector.load %arg5[%c0_5, %c0_6] : memref<128x128xf32, #tpu.memory_space<vmem>>, vector<128x128xf32>
    tpu.vector_store %arg5[%c0_5, %c0_6], %7 {strides = array<i32>} : memref<128x128xf32, #tpu.memory_space<vmem>>, vector<128x128xf32>,
    return
  }
  func.func @transform_0(%arg0: i32, %arg1: i32) -> (i32, i32) {
    %c1_i32 = arith.constant 1 : i32
    %0 = arith.addi %c1_i32, %arg1 : i32
    %c0_i32 = arith.constant 0 : i32
    return %arg0, %0 : i32, i32
  }
  func.func @transform_1(%arg0: i32, %arg1: i32) -> (i32, i32) {
    %c0_i32 = arith.constant 0 : i32
    %c0_i32_0 = arith.constant 0 : i32
    return %c0_i32, %arg1 : i32, i32
  }
  func.func @transform_2(%arg0: i32, %arg1: i32) -> (i32, i32) {
    %c0_i32 = arith.constant 0 : i32
    %c0_i32_0 = arith.constant 0 : i32
    return %c0_i32, %arg1 : i32, i32
  }
  func.func @transform_3(%arg0: i32, %arg1: i32) -> (i32, i32) {
    %c0_i32 = arith.constant 0 : i32
    return %arg0, %arg1 : i32, i32
  }
}

module attributes {stable_mosaic.version = 11 : i64} {
  func.func @kernel(%arg0: i32, %arg1: i32, %arg2: memref<128x128xbf16, #tpu.memory_space<vmem>>, %arg3: memref<128x384xbf16, #tpu.memory_space<vmem>>, %arg4: memref<1x128xf32, #tpu.memory_space<vmem>>, %arg5: memref<1x128xf32, #tpu.memory_space<vmem>>, %arg6: memref<3x128x128xbf16, #tpu.memory_space<vmem>>, %arg7: memref<3x1x128xf32, #tpu.memory_space<vmem>>, %arg8: memref<3x128x128xbf16, #tpu.memory_space<vmem>>, %arg9: memref<3x1x128xf32, #tpu.memory_space<vmem>>, %arg10: memref<128x128xbf16, #tpu.memory_space<vmem>>, %arg11: memref<8x128xf32, #tpu.memory_space<vmem>>, %arg12: memref<8x128xf32, #tpu.memory_space<vmem>>, %arg13: memref<128x384xf32, #tpu.memory_space<vmem>>) attributes {dimension_semantics = [#tpu.dimension_semantics<parallel>, #tpu.dimension_semantics<arbitrary>], iteration_bounds = array<i64: 1, 1>, scalar_prefetch = 0 : i64, scratch_operands = 1 : i64, tpu.core_type = #tpu.core_type<tc>, window_params = [{transform_indices = @transform_0, window_bounds = array<i64: 128, 128>}, {transform_indices = @transform_1, window_bounds = array<i64: 128, 384>}, {pipeline_mode = #tpu.pipeline_mode<synchronous>, transform_indices = @transform_2, window_bounds = array<i64: 1, 128>}, {pipeline_mode = #tpu.pipeline_mode<synchronous>, transform_indices = @transform_3, window_bounds = array<i64: 1, 128>}, {pipeline_mode = #tpu.pipeline_mode<synchronous>, transform_indices = @transform_4, window_bounds = array<i64: 3, 128, 128>}, {pipeline_mode = #tpu.pipeline_mode<synchronous>, transform_indices = @transform_5, window_bounds = array<i64: 3, 1, 128>}, {pipeline_mode = #tpu.pipeline_mode<synchronous>, transform_indices = @transform_6, window_bounds = array<i64: 3, 128, 128>}, {pipeline_mode = #tpu.pipeline_mode<synchronous>, transform_indices = @transform_7, window_bounds = array<i64: 3, 1, 128>}, {transform_indices = @transform_8, window_bounds = array<i64: 128, 128>}, {transform_indices = @transform_9, window_bounds = array<i64: 8, 128>}, {transform_indices = @transform_10, window_bounds = array<i64: 8, 128>}]} {
    %c0_i32 = arith.constant 0 : i32
    %0 = arith.cmpi eq, %arg1, %c0_i32 : i32
    %c0_i32_0 = arith.constant 0 : i32
    %1 = arith.cmpi sgt, %arg1, %c0_i32_0 : i32
    %c0_i32_1 = arith.constant 0 : i32
    %2 = arith.cmpi eq, %arg1, %c0_i32_1 : i32
    %c128_i32 = arith.constant 128 : i32
    %3 = arith.muli %arg0, %c128_i32 : i32
    %c0 = arith.constant 0 : index
    %c0_2 = arith.constant 0 : index
    %4 = vector.load %arg2[%c0, %c0_2] : memref<128x128xbf16, #tpu.memory_space<vmem>>, vector<128x128xbf16>
    %c0_3 = arith.constant 0 : index
    %c0_4 = arith.constant 0 : index
    %5 = vector.load %arg3[%c0_3, %c0_4] : memref<128x384xbf16, #tpu.memory_space<vmem>>, vector<128x128xbf16>
    %6 = arith.extf %5 : vector<128x128xbf16> to vector<128x128xf32>
    %c0_5 = arith.constant 0 : index
    %c0_6 = arith.constant 0 : index
    %7 = vector.load %arg4[%c0_5, %c0_6] : memref<1x128xf32, #tpu.memory_space<vmem>>, vector<1x128xf32>
    %8 = vector.broadcast %7 : vector<1x128xf32> to vector<128x128xf32>
    %9 = arith.mulf %6, %8 : vector<128x128xf32>
    %c0_7 = arith.constant 0 : index
    %c0_8 = arith.constant 0 : index
    %10 = vector.load %arg5[%c0_7, %c0_8] : memref<1x128xf32, #tpu.memory_space<vmem>>, vector<1x128xf32>
    %11 = vector.broadcast %10 : vector<1x128xf32> to vector<128x128xf32>
    %12 = arith.addf %9, %11 : vector<128x128xf32>
    %13 = arith.truncf %12 : vector<128x128xf32> to vector<128x128xbf16>
    %cst = arith.constant dense<0.000000e+00> : vector<128x128xf32>
    %14 = tpu.matmul %4, %13, %cst {dimension_numbers = #tpu.dot_dimension_numbers<[1], [0], [0], [1], [0, 0, 1, 1], [], []>} : vector<128x128xbf16>, vector<128x128xbf16>, vector<128x128xf32> -> vector<128x128xf32>
    %15 = arith.extui %0 : i1 to i32
    %c0_i32_9 = arith.constant 0 : i32
    %16 = arith.cmpi ne, %15, %c0_i32_9 : i32
    scf.if %16 {
      %c0_18 = arith.constant 0 : index
      %c0_19 = arith.constant 0 : index
      %35 = vector.load %arg13[%c0_18, %c0_19] : memref<128x384xf32, #tpu.memory_space<vmem>>, vector<128x128xf32>
      tpu.vector_store %arg13[%c0_18, %c0_19], %14 {strides = array<i32>} : memref<128x384xf32, #tpu.memory_space<vmem>>, vector<128x128xf32>,
    } else {
    }
    %17 = arith.extui %1 : i1 to i32
    %c0_i32_10 = arith.constant 0 : i32
    %18 = arith.cmpi ne, %17, %c0_i32_10 : i32
    scf.if %18 {
      %c0_18 = arith.constant 0 : index
      %c0_19 = arith.constant 0 : index
      %35 = vector.load %arg13[%c0_18, %c0_19] : memref<128x384xf32, #tpu.memory_space<vmem>>, vector<128x128xf32>
      %36 = arith.addf %35, %14 : vector<128x128xf32>
      %c0_20 = arith.constant 0 : index
      %c0_21 = arith.constant 0 : index
      %37 = vector.load %arg13[%c0_20, %c0_21] : memref<128x384xf32, #tpu.memory_space<vmem>>, vector<128x128xf32>
      tpu.vector_store %arg13[%c0_20, %c0_21], %36 {strides = array<i32>} : memref<128x384xf32, #tpu.memory_space<vmem>>, vector<128x128xf32>,
    } else {
    }
    %19 = arith.mulf %12, %12 : vector<128x128xf32>
    %20 = arith.truncf %19 : vector<128x128xf32> to vector<128x128xbf16>
    %cst_11 = arith.constant dense<0.000000e+00> : vector<128x128xf32>
    %21 = tpu.matmul %4, %20, %cst_11 {dimension_numbers = #tpu.dot_dimension_numbers<[1], [0], [0], [1], [0, 0, 1, 1], [], []>} : vector<128x128xbf16>, vector<128x128xbf16>, vector<128x128xf32> -> vector<128x128xf32>
    %22 = arith.extui %0 : i1 to i32
    %c0_i32_12 = arith.constant 0 : i32
    %23 = arith.cmpi ne, %22, %c0_i32_12 : i32
    scf.if %23 {
      %c0_18 = arith.constant 0 : index
      %c128 = arith.constant 128 : index
      %35 = vector.load %arg13[%c0_18, %c128] : memref<128x384xf32, #tpu.memory_space<vmem>>, vector<128x128xf32>
      tpu.vector_store %arg13[%c0_18, %c128], %21 {strides = array<i32>} : memref<128x384xf32, #tpu.memory_space<vmem>>, vector<128x128xf32>,
    } else {
    }
    %24 = arith.extui %1 : i1 to i32
    %c0_i32_13 = arith.constant 0 : i32
    %25 = arith.cmpi ne, %24, %c0_i32_13 : i32
    scf.if %25 {
      %c0_18 = arith.constant 0 : index
      %c128 = arith.constant 128 : index
      %35 = vector.load %arg13[%c0_18, %c128] : memref<128x384xf32, #tpu.memory_space<vmem>>, vector<128x128xf32>
      %36 = arith.addf %35, %21 : vector<128x128xf32>
      %c0_19 = arith.constant 0 : index
      %c128_20 = arith.constant 128 : index
      %37 = vector.load %arg13[%c0_19, %c128_20] : memref<128x384xf32, #tpu.memory_space<vmem>>, vector<128x128xf32>
      tpu.vector_store %arg13[%c0_19, %c128_20], %36 {strides = array<i32>} : memref<128x384xf32, #tpu.memory_space<vmem>>, vector<128x128xf32>,
    } else {
    }
    %26 = arith.mulf %19, %12 : vector<128x128xf32>
    %27 = arith.truncf %26 : vector<128x128xf32> to vector<128x128xbf16>
    %cst_14 = arith.constant dense<0.000000e+00> : vector<128x128xf32>
    %28 = tpu.matmul %4, %27, %cst_14 {dimension_numbers = #tpu.dot_dimension_numbers<[1], [0], [0], [1], [0, 0, 1, 1], [], []>} : vector<128x128xbf16>, vector<128x128xbf16>, vector<128x128xf32> -> vector<128x128xf32>
    %29 = arith.extui %0 : i1 to i32
    %c0_i32_15 = arith.constant 0 : i32
    %30 = arith.cmpi ne, %29, %c0_i32_15 : i32
    scf.if %30 {
      %c0_18 = arith.constant 0 : index
      %c256 = arith.constant 256 : index
      %35 = vector.load %arg13[%c0_18, %c256] : memref<128x384xf32, #tpu.memory_space<vmem>>, vector<128x128xf32>
      tpu.vector_store %arg13[%c0_18, %c256], %28 {strides = array<i32>} : memref<128x384xf32, #tpu.memory_space<vmem>>, vector<128x128xf32>,
    } else {
    }
    %31 = arith.extui %1 : i1 to i32
    %c0_i32_16 = arith.constant 0 : i32
    %32 = arith.cmpi ne, %31, %c0_i32_16 : i32
    scf.if %32 {
      %c0_18 = arith.constant 0 : index
      %c256 = arith.constant 256 : index
      %35 = vector.load %arg13[%c0_18, %c256] : memref<128x384xf32, #tpu.memory_space<vmem>>, vector<128x128xf32>
      %36 = arith.addf %35, %28 : vector<128x128xf32>
      %c0_19 = arith.constant 0 : index
      %c256_20 = arith.constant 256 : index
      %37 = vector.load %arg13[%c0_19, %c256_20] : memref<128x384xf32, #tpu.memory_space<vmem>>, vector<128x128xf32>
      tpu.vector_store %arg13[%c0_19, %c256_20], %36 {strides = array<i32>} : memref<128x384xf32, #tpu.memory_space<vmem>>, vector<128x128xf32>,
    } else {
    }
    %33 = arith.extui %2 : i1 to i32
    %c0_i32_17 = arith.constant 0 : i32
    %34 = arith.cmpi ne, %33, %c0_i32_17 : i32
    scf.if %34 {
      %c0_18 = arith.constant 0 : index
      %c0_19 = arith.constant 0 : index
      %35 = vector.load %arg13[%c0_18, %c0_19] : memref<128x384xf32, #tpu.memory_space<vmem>>, vector<128x128xf32>
      %c0_20 = arith.constant 0 : index
      %c0_21 = arith.constant 0 : index
      %c0_22 = arith.constant 0 : index
      %36 = vector.load %arg6[%c0_20, %c0_21, %c0_22] : memref<3x128x128xbf16, #tpu.memory_space<vmem>>, vector<1x128x128xbf16>
      %37 = vector.shape_cast %36 : vector<1x128x128xbf16> to vector<128x128xbf16>
      %c0_23 = arith.constant 0 : index
      %c0_24 = arith.constant 0 : index
      %c0_25 = arith.constant 0 : index
      %38 = vector.load %arg7[%c0_23, %c0_24, %c0_25] : memref<3x1x128xf32, #tpu.memory_space<vmem>>, vector<1x1x128xf32>
      %39 = vector.shape_cast %38 : vector<1x1x128xf32> to vector<1x128xf32>
      %40 = arith.truncf %35 : vector<128x128xf32> to vector<128x128xbf16>
      %cst_26 = arith.constant dense<0.000000e+00> : vector<128x128xf32>
      %41 = tpu.matmul %40, %37, %cst_26 {dimension_numbers = #tpu.dot_dimension_numbers<[1], [0], [0], [1], [0, 0, 1, 1], [], []>} : vector<128x128xbf16>, vector<128x128xbf16>, vector<128x128xf32> -> vector<128x128xf32>
      %42 = vector.broadcast %39 : vector<1x128xf32> to vector<128x128xf32>
      %43 = arith.addf %41, %42 : vector<128x128xf32>
      %cst_27 = arith.constant 0.000000e+00 : f32
      %44 = vector.broadcast %cst_27 : f32 to vector<128x128xf32>
      %45 = arith.maximumf %43, %44 : vector<128x128xf32>
      %c0_28 = arith.constant 0 : index
      %c0_29 = arith.constant 0 : index
      %c0_30 = arith.constant 0 : index
      %46 = vector.load %arg8[%c0_28, %c0_29, %c0_30] : memref<3x128x128xbf16, #tpu.memory_space<vmem>>, vector<1x128x128xbf16>
      %47 = vector.shape_cast %46 : vector<1x128x128xbf16> to vector<128x128xbf16>
      %c0_31 = arith.constant 0 : index
      %c0_32 = arith.constant 0 : index
      %c0_33 = arith.constant 0 : index
      %48 = vector.load %arg9[%c0_31, %c0_32, %c0_33] : memref<3x1x128xf32, #tpu.memory_space<vmem>>, vector<1x1x128xf32>
      %49 = vector.shape_cast %48 : vector<1x1x128xf32> to vector<1x128xf32>
      %50 = arith.truncf %45 : vector<128x128xf32> to vector<128x128xbf16>
      %cst_34 = arith.constant dense<0.000000e+00> : vector<128x128xf32>
      %51 = tpu.matmul %50, %47, %cst_34 {dimension_numbers = #tpu.dot_dimension_numbers<[1], [0], [0], [1], [0, 0, 1, 1], [], []>} : vector<128x128xbf16>, vector<128x128xbf16>, vector<128x128xf32> -> vector<128x128xf32>
      %52 = vector.broadcast %49 : vector<1x128xf32> to vector<128x128xf32>
      %53 = arith.addf %51, %52 : vector<128x128xf32>
      %cst_35 = arith.constant 0.000000e+00 : f32
      %54 = vector.broadcast %cst_35 : f32 to vector<128x128xf32>
      %55 = arith.maximumf %53, %54 : vector<128x128xf32>
      %c0_36 = arith.constant 0 : index
      %c128 = arith.constant 128 : index
      %56 = vector.load %arg13[%c0_36, %c128] : memref<128x384xf32, #tpu.memory_space<vmem>>, vector<128x128xf32>
      %c1 = arith.constant 1 : index
      %c0_37 = arith.constant 0 : index
      %c0_38 = arith.constant 0 : index
      %57 = vector.load %arg6[%c1, %c0_37, %c0_38] : memref<3x128x128xbf16, #tpu.memory_space<vmem>>, vector<1x128x128xbf16>
      %58 = vector.shape_cast %57 : vector<1x128x128xbf16> to vector<128x128xbf16>
      %c1_39 = arith.constant 1 : index
      %c0_40 = arith.constant 0 : index
      %c0_41 = arith.constant 0 : index
      %59 = vector.load %arg7[%c1_39, %c0_40, %c0_41] : memref<3x1x128xf32, #tpu.memory_space<vmem>>, vector<1x1x128xf32>
      %60 = vector.shape_cast %59 : vector<1x1x128xf32> to vector<1x128xf32>
      %61 = arith.truncf %56 : vector<128x128xf32> to vector<128x128xbf16>
      %cst_42 = arith.constant dense<0.000000e+00> : vector<128x128xf32>
      %62 = tpu.matmul %61, %58, %cst_42 {dimension_numbers = #tpu.dot_dimension_numbers<[1], [0], [0], [1], [0, 0, 1, 1], [], []>} : vector<128x128xbf16>, vector<128x128xbf16>, vector<128x128xf32> -> vector<128x128xf32>
      %63 = vector.broadcast %60 : vector<1x128xf32> to vector<128x128xf32>
      %64 = arith.addf %62, %63 : vector<128x128xf32>
      %cst_43 = arith.constant 0.000000e+00 : f32
      %65 = vector.broadcast %cst_43 : f32 to vector<128x128xf32>
      %66 = arith.maximumf %64, %65 : vector<128x128xf32>
      %c1_44 = arith.constant 1 : index
      %c0_45 = arith.constant 0 : index
      %c0_46 = arith.constant 0 : index
      %67 = vector.load %arg8[%c1_44, %c0_45, %c0_46] : memref<3x128x128xbf16, #tpu.memory_space<vmem>>, vector<1x128x128xbf16>
      %68 = vector.shape_cast %67 : vector<1x128x128xbf16> to vector<128x128xbf16>
      %c1_47 = arith.constant 1 : index
      %c0_48 = arith.constant 0 : index
      %c0_49 = arith.constant 0 : index
      %69 = vector.load %arg9[%c1_47, %c0_48, %c0_49] : memref<3x1x128xf32, #tpu.memory_space<vmem>>, vector<1x1x128xf32>
      %70 = vector.shape_cast %69 : vector<1x1x128xf32> to vector<1x128xf32>
      %71 = arith.truncf %66 : vector<128x128xf32> to vector<128x128xbf16>
      %cst_50 = arith.constant dense<0.000000e+00> : vector<128x128xf32>
      %72 = tpu.matmul %71, %68, %cst_50 {dimension_numbers = #tpu.dot_dimension_numbers<[1], [0], [0], [1], [0, 0, 1, 1], [], []>} : vector<128x128xbf16>, vector<128x128xbf16>, vector<128x128xf32> -> vector<128x128xf32>
      %73 = vector.broadcast %70 : vector<1x128xf32> to vector<128x128xf32>
      %74 = arith.addf %72, %73 : vector<128x128xf32>
      %cst_51 = arith.constant 0.000000e+00 : f32
      %75 = vector.broadcast %cst_51 : f32 to vector<128x128xf32>
      %76 = arith.maximumf %74, %75 : vector<128x128xf32>
      %77 = arith.addf %55, %76 : vector<128x128xf32>
      %c0_52 = arith.constant 0 : index
      %c256 = arith.constant 256 : index
      %78 = vector.load %arg13[%c0_52, %c256] : memref<128x384xf32, #tpu.memory_space<vmem>>, vector<128x128xf32>
      %c2 = arith.constant 2 : index
      %c0_53 = arith.constant 0 : index
      %c0_54 = arith.constant 0 : index
      %79 = vector.load %arg6[%c2, %c0_53, %c0_54] : memref<3x128x128xbf16, #tpu.memory_space<vmem>>, vector<1x128x128xbf16>
      %80 = vector.shape_cast %79 : vector<1x128x128xbf16> to vector<128x128xbf16>
      %c2_55 = arith.constant 2 : index
      %c0_56 = arith.constant 0 : index
      %c0_57 = arith.constant 0 : index
      %81 = vector.load %arg7[%c2_55, %c0_56, %c0_57] : memref<3x1x128xf32, #tpu.memory_space<vmem>>, vector<1x1x128xf32>
      %82 = vector.shape_cast %81 : vector<1x1x128xf32> to vector<1x128xf32>
      %83 = arith.truncf %78 : vector<128x128xf32> to vector<128x128xbf16>
      %cst_58 = arith.constant dense<0.000000e+00> : vector<128x128xf32>
      %84 = tpu.matmul %83, %80, %cst_58 {dimension_numbers = #tpu.dot_dimension_numbers<[1], [0], [0], [1], [0, 0, 1, 1], [], []>} : vector<128x128xbf16>, vector<128x128xbf16>, vector<128x128xf32> -> vector<128x128xf32>
      %85 = vector.broadcast %82 : vector<1x128xf32> to vector<128x128xf32>
      %86 = arith.addf %84, %85 : vector<128x128xf32>
      %cst_59 = arith.constant 0.000000e+00 : f32
      %87 = vector.broadcast %cst_59 : f32 to vector<128x128xf32>
      %88 = arith.maximumf %86, %87 : vector<128x128xf32>
      %c2_60 = arith.constant 2 : index
      %c0_61 = arith.constant 0 : index
      %c0_62 = arith.constant 0 : index
      %89 = vector.load %arg8[%c2_60, %c0_61, %c0_62] : memref<3x128x128xbf16, #tpu.memory_space<vmem>>, vector<1x128x128xbf16>
      %90 = vector.shape_cast %89 : vector<1x128x128xbf16> to vector<128x128xbf16>
      %c2_63 = arith.constant 2 : index
      %c0_64 = arith.constant 0 : index
      %c0_65 = arith.constant 0 : index
      %91 = vector.load %arg9[%c2_63, %c0_64, %c0_65] : memref<3x1x128xf32, #tpu.memory_space<vmem>>, vector<1x1x128xf32>
      %92 = vector.shape_cast %91 : vector<1x1x128xf32> to vector<1x128xf32>
      %93 = arith.truncf %88 : vector<128x128xf32> to vector<128x128xbf16>
      %cst_66 = arith.constant dense<0.000000e+00> : vector<128x128xf32>
      %94 = tpu.matmul %93, %90, %cst_66 {dimension_numbers = #tpu.dot_dimension_numbers<[1], [0], [0], [1], [0, 0, 1, 1], [], []>} : vector<128x128xbf16>, vector<128x128xbf16>, vector<128x128xf32> -> vector<128x128xf32>
      %95 = vector.broadcast %92 : vector<1x128xf32> to vector<128x128xf32>
      %96 = arith.addf %94, %95 : vector<128x128xf32>
      %cst_67 = arith.constant 0.000000e+00 : f32
      %97 = vector.broadcast %cst_67 : f32 to vector<128x128xf32>
      %98 = arith.maximumf %96, %97 : vector<128x128xf32>
      %99 = arith.addf %77, %98 : vector<128x128xf32>
      %cst_68 = arith.constant 0.000000e+00 : f32
      %100 = vector.broadcast %cst_68 : f32 to vector<128x128xf32>
      %101 = arith.cmpf ogt, %99, %100 : vector<128x128xf32>
      %cst_69 = arith.constant 0.000000e+00 : f32
      %102 = vector.broadcast %cst_69 : f32 to vector<128x128xf32>
      %103 = arith.minimumf %99, %102 : vector<128x128xf32>
      %104 = math.exp %103 : vector<128x128xf32>
      %cst_70 = arith.constant 1.000000e+00 : f32
      %105 = vector.broadcast %cst_70 : f32 to vector<128x128xf32>
      %106 = arith.subf %104, %105 : vector<128x128xf32>
      %cst_71 = arith.constant 1.67326319 : f32
      %107 = vector.broadcast %cst_71 : f32 to vector<128x128xf32>
      %108 = arith.mulf %107, %106 : vector<128x128xf32>
      %109 = arith.select %101, %99, %108 : vector<128x128xi1>, vector<128x128xf32>
      %cst_72 = arith.constant 1.05070102 : f32
      %110 = vector.broadcast %cst_72 : f32 to vector<128x128xf32>
      %111 = arith.mulf %110, %109 : vector<128x128xf32>
      %112 = tpu.iota {dimensions = array<i32: 0>} : vector<128x128xi32>
      %113 = vector.broadcast %3 : i32 to vector<128x128xi32>
      %114 = arith.addi %112, %113 : vector<128x128xi32>
      %c16_i32 = arith.constant 16 : i32
      %115 = vector.broadcast %c16_i32 : i32 to vector<128x128xi32>
      %116 = arith.cmpi slt, %114, %115 : vector<128x128xi32>
      %cst_73 = arith.constant 0.000000e+00 : f32
      %117 = vector.broadcast %cst_73 : f32 to vector<128x128xf32>
      %118 = arith.select %116, %111, %117 : vector<128x128xi1>, vector<128x128xf32>
      %119 = arith.truncf %118 : vector<128x128xf32> to vector<128x128xbf16>
      %c0_74 = arith.constant 0 : index
      %c0_75 = arith.constant 0 : index
      %120 = vector.load %arg10[%c0_74, %c0_75] : memref<128x128xbf16, #tpu.memory_space<vmem>>, vector<128x128xbf16>
      tpu.vector_store %arg10[%c0_74, %c0_75], %119 {strides = array<i32>} : memref<128x128xbf16, #tpu.memory_space<vmem>>, vector<128x128xbf16>,
      %cst_76 = arith.constant dense<0.000000e+00> : vector<128xf32>
      %121 = vector.multi_reduction <add>, %118, %cst_76 [0] : vector<128x128xf32> to vector<128xf32>
      %122 = vector.shape_cast %121 : vector<128xf32> to vector<1x128xf32>
      %123 = arith.mulf %118, %118 : vector<128x128xf32>
      %cst_77 = arith.constant dense<0.000000e+00> : vector<128xf32>
      %124 = vector.multi_reduction <add>, %123, %cst_77 [0] : vector<128x128xf32> to vector<128xf32>
      %125 = vector.shape_cast %124 : vector<128xf32> to vector<1x128xf32>
      %126 = vector.shape_cast %122 : vector<1x128xf32> to vector<1x128xf32>
      %127 = vector.broadcast %126 : vector<1x128xf32> to vector<8x128xf32>
      %c0_78 = arith.constant 0 : index
      %c0_79 = arith.constant 0 : index
      %128 = vector.load %arg11[%c0_78, %c0_79] : memref<8x128xf32, #tpu.memory_space<vmem>>, vector<8x128xf32>
      tpu.vector_store %arg11[%c0_78, %c0_79], %127 {strides = array<i32>} : memref<8x128xf32, #tpu.memory_space<vmem>>, vector<8x128xf32>,
      %129 = vector.shape_cast %125 : vector<1x128xf32> to vector<1x128xf32>
      %130 = vector.broadcast %129 : vector<1x128xf32> to vector<8x128xf32>
      %c0_80 = arith.constant 0 : index
      %c0_81 = arith.constant 0 : index
      %131 = vector.load %arg12[%c0_80, %c0_81] : memref<8x128xf32, #tpu.memory_space<vmem>>, vector<8x128xf32>
      tpu.vector_store %arg12[%c0_80, %c0_81], %130 {strides = array<i32>} : memref<8x128xf32, #tpu.memory_space<vmem>>, vector<8x128xf32>,
    } else {
    }
    return
  }
  func.func @transform_0(%arg0: i32, %arg1: i32) -> (i32, i32) {
    %c0_i32 = arith.constant 0 : i32
    return %arg0, %arg1 : i32, i32
  }
  func.func @transform_1(%arg0: i32, %arg1: i32) -> (i32, i32) {
    %c0_i32 = arith.constant 0 : i32
    %c0_i32_0 = arith.constant 0 : i32
    return %arg1, %c0_i32 : i32, i32
  }
  func.func @transform_2(%arg0: i32, %arg1: i32) -> (i32, i32) {
    %c0_i32 = arith.constant 0 : i32
    %c0_i32_0 = arith.constant 0 : i32
    %c0_i32_1 = arith.constant 0 : i32
    return %c0_i32, %c0_i32_0 : i32, i32
  }
  func.func @transform_3(%arg0: i32, %arg1: i32) -> (i32, i32) {
    %c0_i32 = arith.constant 0 : i32
    %c0_i32_0 = arith.constant 0 : i32
    %c0_i32_1 = arith.constant 0 : i32
    return %c0_i32, %c0_i32_0 : i32, i32
  }
  func.func @transform_4(%arg0: i32, %arg1: i32) -> (i32, i32, i32) {
    %c0_i32 = arith.constant 0 : i32
    %c0_i32_0 = arith.constant 0 : i32
    %c0_i32_1 = arith.constant 0 : i32
    %c0_i32_2 = arith.constant 0 : i32
    return %c0_i32, %c0_i32_0, %c0_i32_1 : i32, i32, i32
  }
  func.func @transform_5(%arg0: i32, %arg1: i32) -> (i32, i32, i32) {
    %c0_i32 = arith.constant 0 : i32
    %c0_i32_0 = arith.constant 0 : i32
    %c0_i32_1 = arith.constant 0 : i32
    %c0_i32_2 = arith.constant 0 : i32
    return %c0_i32, %c0_i32_0, %c0_i32_1 : i32, i32, i32
  }
  func.func @transform_6(%arg0: i32, %arg1: i32) -> (i32, i32, i32) {
    %c0_i32 = arith.constant 0 : i32
    %c0_i32_0 = arith.constant 0 : i32
    %c0_i32_1 = arith.constant 0 : i32
    %c0_i32_2 = arith.constant 0 : i32
    return %c0_i32, %c0_i32_0, %c0_i32_1 : i32, i32, i32
  }
  func.func @transform_7(%arg0: i32, %arg1: i32) -> (i32, i32, i32) {
    %c0_i32 = arith.constant 0 : i32
    %c0_i32_0 = arith.constant 0 : i32
    %c0_i32_1 = arith.constant 0 : i32
    %c0_i32_2 = arith.constant 0 : i32
    return %c0_i32, %c0_i32_0, %c0_i32_1 : i32, i32, i32
  }
  func.func @transform_8(%arg0: i32, %arg1: i32) -> (i32, i32) {
    %c1_i32 = arith.constant 1 : i32
    %c0_i32 = arith.constant 0 : i32
    return %arg0, %c1_i32 : i32, i32
  }
  func.func @transform_9(%arg0: i32, %arg1: i32) -> (i32, i32) {
    %c0_i32 = arith.constant 0 : i32
    %c0_i32_0 = arith.constant 0 : i32
    return %arg0, %c0_i32 : i32, i32
  }
  func.func @transform_10(%arg0: i32, %arg1: i32) -> (i32, i32) {
    %c0_i32 = arith.constant 0 : i32
    %c0_i32_0 = arith.constant 0 : i32
    return %arg0, %c0_i32 : i32, i32
  }
}

module attributes {stable_mosaic.version = 11 : i64} {
  func.func @kernel(%arg0: i32, %arg1: i32, %arg2: memref<128x128xbf16, #tpu.memory_space<vmem>>, %arg3: memref<128x384xbf16, #tpu.memory_space<vmem>>, %arg4: memref<1x256xf32, #tpu.memory_space<vmem>>, %arg5: memref<1x256xf32, #tpu.memory_space<vmem>>, %arg6: memref<3x256x128xbf16, #tpu.memory_space<vmem>>, %arg7: memref<3x1x128xf32, #tpu.memory_space<vmem>>, %arg8: memref<3x128x128xbf16, #tpu.memory_space<vmem>>, %arg9: memref<3x1x128xf32, #tpu.memory_space<vmem>>, %arg10: memref<128x128xbf16, #tpu.memory_space<vmem>>, %arg11: memref<8x128xf32, #tpu.memory_space<vmem>>, %arg12: memref<8x128xf32, #tpu.memory_space<vmem>>, %arg13: memref<128x768xf32, #tpu.memory_space<vmem>>) attributes {dimension_semantics = [#tpu.dimension_semantics<parallel>, #tpu.dimension_semantics<arbitrary>], iteration_bounds = array<i64: 1, 1>, scalar_prefetch = 0 : i64, scratch_operands = 1 : i64, tpu.core_type = #tpu.core_type<tc>, window_params = [{transform_indices = @transform_0, window_bounds = array<i64: 128, 128>}, {transform_indices = @transform_1, window_bounds = array<i64: 128, 384>}, {pipeline_mode = #tpu.pipeline_mode<synchronous>, transform_indices = @transform_2, window_bounds = array<i64: 1, 256>}, {pipeline_mode = #tpu.pipeline_mode<synchronous>, transform_indices = @transform_3, window_bounds = array<i64: 1, 256>}, {pipeline_mode = #tpu.pipeline_mode<synchronous>, transform_indices = @transform_4, window_bounds = array<i64: 3, 256, 128>}, {pipeline_mode = #tpu.pipeline_mode<synchronous>, transform_indices = @transform_5, window_bounds = array<i64: 3, 1, 128>}, {pipeline_mode = #tpu.pipeline_mode<synchronous>, transform_indices = @transform_6, window_bounds = array<i64: 3, 128, 128>}, {pipeline_mode = #tpu.pipeline_mode<synchronous>, transform_indices = @transform_7, window_bounds = array<i64: 3, 1, 128>}, {transform_indices = @transform_8, window_bounds = array<i64: 128, 128>}, {transform_indices = @transform_9, window_bounds = array<i64: 8, 128>}, {transform_indices = @transform_10, window_bounds = array<i64: 8, 128>}]} {
    %c0_i32 = arith.constant 0 : i32
    %0 = arith.cmpi eq, %arg1, %c0_i32 : i32
    %c0_i32_0 = arith.constant 0 : i32
    %1 = arith.cmpi sgt, %arg1, %c0_i32_0 : i32
    %c0_i32_1 = arith.constant 0 : i32
    %2 = arith.cmpi eq, %arg1, %c0_i32_1 : i32
    %c128_i32 = arith.constant 128 : i32
    %3 = arith.muli %arg0, %c128_i32 : i32
    %c0 = arith.constant 0 : index
    %c0_2 = arith.constant 0 : index
    %4 = vector.load %arg2[%c0, %c0_2] : memref<128x128xbf16, #tpu.memory_space<vmem>>, vector<128x128xbf16>
    %c0_3 = arith.constant 0 : index
    %c0_4 = arith.constant 0 : index
    %5 = vector.load %arg3[%c0_3, %c0_4] : memref<128x384xbf16, #tpu.memory_space<vmem>>, vector<128x256xbf16>
    %6 = arith.extf %5 : vector<128x256xbf16> to vector<128x256xf32>
    %c0_5 = arith.constant 0 : index
    %c0_6 = arith.constant 0 : index
    %7 = vector.load %arg4[%c0_5, %c0_6] : memref<1x256xf32, #tpu.memory_space<vmem>>, vector<1x256xf32>
    %8 = vector.broadcast %7 : vector<1x256xf32> to vector<128x256xf32>
    %9 = arith.mulf %6, %8 : vector<128x256xf32>
    %c0_7 = arith.constant 0 : index
    %c0_8 = arith.constant 0 : index
    %10 = vector.load %arg5[%c0_7, %c0_8] : memref<1x256xf32, #tpu.memory_space<vmem>>, vector<1x256xf32>
    %11 = vector.broadcast %10 : vector<1x256xf32> to vector<128x256xf32>
    %12 = arith.addf %9, %11 : vector<128x256xf32>
    %13 = arith.truncf %12 : vector<128x256xf32> to vector<128x256xbf16>
    %cst = arith.constant dense<0.000000e+00> : vector<128x256xf32>
    %14 = tpu.matmul %4, %13, %cst {dimension_numbers = #tpu.dot_dimension_numbers<[1], [0], [0], [1], [0, 0, 1, 1], [], []>} : vector<128x128xbf16>, vector<128x256xbf16>, vector<128x256xf32> -> vector<128x256xf32>
    %15 = arith.extui %0 : i1 to i32
    %c0_i32_9 = arith.constant 0 : i32
    %16 = arith.cmpi ne, %15, %c0_i32_9 : i32
    scf.if %16 {
      %c0_18 = arith.constant 0 : index
      %c0_19 = arith.constant 0 : index
      %35 = vector.load %arg13[%c0_18, %c0_19] : memref<128x768xf32, #tpu.memory_space<vmem>>, vector<128x256xf32>
      tpu.vector_store %arg13[%c0_18, %c0_19], %14 {strides = array<i32>} : memref<128x768xf32, #tpu.memory_space<vmem>>, vector<128x256xf32>,
    } else {
    }
    %17 = arith.extui %1 : i1 to i32
    %c0_i32_10 = arith.constant 0 : i32
    %18 = arith.cmpi ne, %17, %c0_i32_10 : i32
    scf.if %18 {
      %c0_18 = arith.constant 0 : index
      %c0_19 = arith.constant 0 : index
      %35 = vector.load %arg13[%c0_18, %c0_19] : memref<128x768xf32, #tpu.memory_space<vmem>>, vector<128x256xf32>
      %36 = arith.addf %35, %14 : vector<128x256xf32>
      %c0_20 = arith.constant 0 : index
      %c0_21 = arith.constant 0 : index
      %37 = vector.load %arg13[%c0_20, %c0_21] : memref<128x768xf32, #tpu.memory_space<vmem>>, vector<128x256xf32>
      tpu.vector_store %arg13[%c0_20, %c0_21], %36 {strides = array<i32>} : memref<128x768xf32, #tpu.memory_space<vmem>>, vector<128x256xf32>,
    } else {
    }
    %19 = arith.mulf %12, %12 : vector<128x256xf32>
    %20 = arith.truncf %19 : vector<128x256xf32> to vector<128x256xbf16>
    %cst_11 = arith.constant dense<0.000000e+00> : vector<128x256xf32>
    %21 = tpu.matmul %4, %20, %cst_11 {dimension_numbers = #tpu.dot_dimension_numbers<[1], [0], [0], [1], [0, 0, 1, 1], [], []>} : vector<128x128xbf16>, vector<128x256xbf16>, vector<128x256xf32> -> vector<128x256xf32>
    %22 = arith.extui %0 : i1 to i32
    %c0_i32_12 = arith.constant 0 : i32
    %23 = arith.cmpi ne, %22, %c0_i32_12 : i32
    scf.if %23 {
      %c0_18 = arith.constant 0 : index
      %c256 = arith.constant 256 : index
      %35 = vector.load %arg13[%c0_18, %c256] : memref<128x768xf32, #tpu.memory_space<vmem>>, vector<128x256xf32>
      tpu.vector_store %arg13[%c0_18, %c256], %21 {strides = array<i32>} : memref<128x768xf32, #tpu.memory_space<vmem>>, vector<128x256xf32>,
    } else {
    }
    %24 = arith.extui %1 : i1 to i32
    %c0_i32_13 = arith.constant 0 : i32
    %25 = arith.cmpi ne, %24, %c0_i32_13 : i32
    scf.if %25 {
      %c0_18 = arith.constant 0 : index
      %c256 = arith.constant 256 : index
      %35 = vector.load %arg13[%c0_18, %c256] : memref<128x768xf32, #tpu.memory_space<vmem>>, vector<128x256xf32>
      %36 = arith.addf %35, %21 : vector<128x256xf32>
      %c0_19 = arith.constant 0 : index
      %c256_20 = arith.constant 256 : index
      %37 = vector.load %arg13[%c0_19, %c256_20] : memref<128x768xf32, #tpu.memory_space<vmem>>, vector<128x256xf32>
      tpu.vector_store %arg13[%c0_19, %c256_20], %36 {strides = array<i32>} : memref<128x768xf32, #tpu.memory_space<vmem>>, vector<128x256xf32>,
    } else {
    }
    %26 = arith.mulf %19, %12 : vector<128x256xf32>
    %27 = arith.truncf %26 : vector<128x256xf32> to vector<128x256xbf16>
    %cst_14 = arith.constant dense<0.000000e+00> : vector<128x256xf32>
    %28 = tpu.matmul %4, %27, %cst_14 {dimension_numbers = #tpu.dot_dimension_numbers<[1], [0], [0], [1], [0, 0, 1, 1], [], []>} : vector<128x128xbf16>, vector<128x256xbf16>, vector<128x256xf32> -> vector<128x256xf32>
    %29 = arith.extui %0 : i1 to i32
    %c0_i32_15 = arith.constant 0 : i32
    %30 = arith.cmpi ne, %29, %c0_i32_15 : i32
    scf.if %30 {
      %c0_18 = arith.constant 0 : index
      %c512 = arith.constant 512 : index
      %35 = vector.load %arg13[%c0_18, %c512] : memref<128x768xf32, #tpu.memory_space<vmem>>, vector<128x256xf32>
      tpu.vector_store %arg13[%c0_18, %c512], %28 {strides = array<i32>} : memref<128x768xf32, #tpu.memory_space<vmem>>, vector<128x256xf32>,
    } else {
    }
    %31 = arith.extui %1 : i1 to i32
    %c0_i32_16 = arith.constant 0 : i32
    %32 = arith.cmpi ne, %31, %c0_i32_16 : i32
    scf.if %32 {
      %c0_18 = arith.constant 0 : index
      %c512 = arith.constant 512 : index
      %35 = vector.load %arg13[%c0_18, %c512] : memref<128x768xf32, #tpu.memory_space<vmem>>, vector<128x256xf32>
      %36 = arith.addf %35, %28 : vector<128x256xf32>
      %c0_19 = arith.constant 0 : index
      %c512_20 = arith.constant 512 : index
      %37 = vector.load %arg13[%c0_19, %c512_20] : memref<128x768xf32, #tpu.memory_space<vmem>>, vector<128x256xf32>
      tpu.vector_store %arg13[%c0_19, %c512_20], %36 {strides = array<i32>} : memref<128x768xf32, #tpu.memory_space<vmem>>, vector<128x256xf32>,
    } else {
    }
    %33 = arith.extui %2 : i1 to i32
    %c0_i32_17 = arith.constant 0 : i32
    %34 = arith.cmpi ne, %33, %c0_i32_17 : i32
    scf.if %34 {
      %c0_18 = arith.constant 0 : index
      %c0_19 = arith.constant 0 : index
      %35 = vector.load %arg13[%c0_18, %c0_19] : memref<128x768xf32, #tpu.memory_space<vmem>>, vector<128x256xf32>
      %c0_20 = arith.constant 0 : index
      %c0_21 = arith.constant 0 : index
      %c0_22 = arith.constant 0 : index
      %36 = vector.load %arg6[%c0_20, %c0_21, %c0_22] : memref<3x256x128xbf16, #tpu.memory_space<vmem>>, vector<1x256x128xbf16>
      %37 = vector.shape_cast %36 : vector<1x256x128xbf16> to vector<256x128xbf16>
      %c0_23 = arith.constant 0 : index
      %c0_24 = arith.constant 0 : index
      %c0_25 = arith.constant 0 : index
      %38 = vector.load %arg7[%c0_23, %c0_24, %c0_25] : memref<3x1x128xf32, #tpu.memory_space<vmem>>, vector<1x1x128xf32>
      %39 = vector.shape_cast %38 : vector<1x1x128xf32> to vector<1x128xf32>
      %40 = arith.truncf %35 : vector<128x256xf32> to vector<128x256xbf16>
      %cst_26 = arith.constant dense<0.000000e+00> : vector<128x128xf32>
      %41 = tpu.matmul %40, %37, %cst_26 {dimension_numbers = #tpu.dot_dimension_numbers<[1], [0], [0], [1], [0, 0, 1, 1], [], []>} : vector<128x256xbf16>, vector<256x128xbf16>, vector<128x128xf32> -> vector<128x128xf32>
      %42 = vector.broadcast %39 : vector<1x128xf32> to vector<128x128xf32>
      %43 = arith.addf %41, %42 : vector<128x128xf32>
      %cst_27 = arith.constant 0.000000e+00 : f32
      %44 = vector.broadcast %cst_27 : f32 to vector<128x128xf32>
      %45 = arith.maximumf %43, %44 : vector<128x128xf32>
      %c0_28 = arith.constant 0 : index
      %c0_29 = arith.constant 0 : index
      %c0_30 = arith.constant 0 : index
      %46 = vector.load %arg8[%c0_28, %c0_29, %c0_30] : memref<3x128x128xbf16, #tpu.memory_space<vmem>>, vector<1x128x128xbf16>
      %47 = vector.shape_cast %46 : vector<1x128x128xbf16> to vector<128x128xbf16>
      %c0_31 = arith.constant 0 : index
      %c0_32 = arith.constant 0 : index
      %c0_33 = arith.constant 0 : index
      %48 = vector.load %arg9[%c0_31, %c0_32, %c0_33] : memref<3x1x128xf32, #tpu.memory_space<vmem>>, vector<1x1x128xf32>
      %49 = vector.shape_cast %48 : vector<1x1x128xf32> to vector<1x128xf32>
      %50 = arith.truncf %45 : vector<128x128xf32> to vector<128x128xbf16>
      %cst_34 = arith.constant dense<0.000000e+00> : vector<128x128xf32>
      %51 = tpu.matmul %50, %47, %cst_34 {dimension_numbers = #tpu.dot_dimension_numbers<[1], [0], [0], [1], [0, 0, 1, 1], [], []>} : vector<128x128xbf16>, vector<128x128xbf16>, vector<128x128xf32> -> vector<128x128xf32>
      %52 = vector.broadcast %49 : vector<1x128xf32> to vector<128x128xf32>
      %53 = arith.addf %51, %52 : vector<128x128xf32>
      %cst_35 = arith.constant 0.000000e+00 : f32
      %54 = vector.broadcast %cst_35 : f32 to vector<128x128xf32>
      %55 = arith.maximumf %53, %54 : vector<128x128xf32>
      %c0_36 = arith.constant 0 : index
      %c256 = arith.constant 256 : index
      %56 = vector.load %arg13[%c0_36, %c256] : memref<128x768xf32, #tpu.memory_space<vmem>>, vector<128x256xf32>
      %c1 = arith.constant 1 : index
      %c0_37 = arith.constant 0 : index
      %c0_38 = arith.constant 0 : index
      %57 = vector.load %arg6[%c1, %c0_37, %c0_38] : memref<3x256x128xbf16, #tpu.memory_space<vmem>>, vector<1x256x128xbf16>
      %58 = vector.shape_cast %57 : vector<1x256x128xbf16> to vector<256x128xbf16>
      %c1_39 = arith.constant 1 : index
      %c0_40 = arith.constant 0 : index
      %c0_41 = arith.constant 0 : index
      %59 = vector.load %arg7[%c1_39, %c0_40, %c0_41] : memref<3x1x128xf32, #tpu.memory_space<vmem>>, vector<1x1x128xf32>
      %60 = vector.shape_cast %59 : vector<1x1x128xf32> to vector<1x128xf32>
      %61 = arith.truncf %56 : vector<128x256xf32> to vector<128x256xbf16>
      %cst_42 = arith.constant dense<0.000000e+00> : vector<128x128xf32>
      %62 = tpu.matmul %61, %58, %cst_42 {dimension_numbers = #tpu.dot_dimension_numbers<[1], [0], [0], [1], [0, 0, 1, 1], [], []>} : vector<128x256xbf16>, vector<256x128xbf16>, vector<128x128xf32> -> vector<128x128xf32>
      %63 = vector.broadcast %60 : vector<1x128xf32> to vector<128x128xf32>
      %64 = arith.addf %62, %63 : vector<128x128xf32>
      %cst_43 = arith.constant 0.000000e+00 : f32
      %65 = vector.broadcast %cst_43 : f32 to vector<128x128xf32>
      %66 = arith.maximumf %64, %65 : vector<128x128xf32>
      %c1_44 = arith.constant 1 : index
      %c0_45 = arith.constant 0 : index
      %c0_46 = arith.constant 0 : index
      %67 = vector.load %arg8[%c1_44, %c0_45, %c0_46] : memref<3x128x128xbf16, #tpu.memory_space<vmem>>, vector<1x128x128xbf16>
      %68 = vector.shape_cast %67 : vector<1x128x128xbf16> to vector<128x128xbf16>
      %c1_47 = arith.constant 1 : index
      %c0_48 = arith.constant 0 : index
      %c0_49 = arith.constant 0 : index
      %69 = vector.load %arg9[%c1_47, %c0_48, %c0_49] : memref<3x1x128xf32, #tpu.memory_space<vmem>>, vector<1x1x128xf32>
      %70 = vector.shape_cast %69 : vector<1x1x128xf32> to vector<1x128xf32>
      %71 = arith.truncf %66 : vector<128x128xf32> to vector<128x128xbf16>
      %cst_50 = arith.constant dense<0.000000e+00> : vector<128x128xf32>
      %72 = tpu.matmul %71, %68, %cst_50 {dimension_numbers = #tpu.dot_dimension_numbers<[1], [0], [0], [1], [0, 0, 1, 1], [], []>} : vector<128x128xbf16>, vector<128x128xbf16>, vector<128x128xf32> -> vector<128x128xf32>
      %73 = vector.broadcast %70 : vector<1x128xf32> to vector<128x128xf32>
      %74 = arith.addf %72, %73 : vector<128x128xf32>
      %cst_51 = arith.constant 0.000000e+00 : f32
      %75 = vector.broadcast %cst_51 : f32 to vector<128x128xf32>
      %76 = arith.maximumf %74, %75 : vector<128x128xf32>
      %77 = arith.addf %55, %76 : vector<128x128xf32>
      %c0_52 = arith.constant 0 : index
      %c512 = arith.constant 512 : index
      %78 = vector.load %arg13[%c0_52, %c512] : memref<128x768xf32, #tpu.memory_space<vmem>>, vector<128x256xf32>
      %c2 = arith.constant 2 : index
      %c0_53 = arith.constant 0 : index
      %c0_54 = arith.constant 0 : index
      %79 = vector.load %arg6[%c2, %c0_53, %c0_54] : memref<3x256x128xbf16, #tpu.memory_space<vmem>>, vector<1x256x128xbf16>
      %80 = vector.shape_cast %79 : vector<1x256x128xbf16> to vector<256x128xbf16>
      %c2_55 = arith.constant 2 : index
      %c0_56 = arith.constant 0 : index
      %c0_57 = arith.constant 0 : index
      %81 = vector.load %arg7[%c2_55, %c0_56, %c0_57] : memref<3x1x128xf32, #tpu.memory_space<vmem>>, vector<1x1x128xf32>
      %82 = vector.shape_cast %81 : vector<1x1x128xf32> to vector<1x128xf32>
      %83 = arith.truncf %78 : vector<128x256xf32> to vector<128x256xbf16>
      %cst_58 = arith.constant dense<0.000000e+00> : vector<128x128xf32>
      %84 = tpu.matmul %83, %80, %cst_58 {dimension_numbers = #tpu.dot_dimension_numbers<[1], [0], [0], [1], [0, 0, 1, 1], [], []>} : vector<128x256xbf16>, vector<256x128xbf16>, vector<128x128xf32> -> vector<128x128xf32>
      %85 = vector.broadcast %82 : vector<1x128xf32> to vector<128x128xf32>
      %86 = arith.addf %84, %85 : vector<128x128xf32>
      %cst_59 = arith.constant 0.000000e+00 : f32
      %87 = vector.broadcast %cst_59 : f32 to vector<128x128xf32>
      %88 = arith.maximumf %86, %87 : vector<128x128xf32>
      %c2_60 = arith.constant 2 : index
      %c0_61 = arith.constant 0 : index
      %c0_62 = arith.constant 0 : index
      %89 = vector.load %arg8[%c2_60, %c0_61, %c0_62] : memref<3x128x128xbf16, #tpu.memory_space<vmem>>, vector<1x128x128xbf16>
      %90 = vector.shape_cast %89 : vector<1x128x128xbf16> to vector<128x128xbf16>
      %c2_63 = arith.constant 2 : index
      %c0_64 = arith.constant 0 : index
      %c0_65 = arith.constant 0 : index
      %91 = vector.load %arg9[%c2_63, %c0_64, %c0_65] : memref<3x1x128xf32, #tpu.memory_space<vmem>>, vector<1x1x128xf32>
      %92 = vector.shape_cast %91 : vector<1x1x128xf32> to vector<1x128xf32>
      %93 = arith.truncf %88 : vector<128x128xf32> to vector<128x128xbf16>
      %cst_66 = arith.constant dense<0.000000e+00> : vector<128x128xf32>
      %94 = tpu.matmul %93, %90, %cst_66 {dimension_numbers = #tpu.dot_dimension_numbers<[1], [0], [0], [1], [0, 0, 1, 1], [], []>} : vector<128x128xbf16>, vector<128x128xbf16>, vector<128x128xf32> -> vector<128x128xf32>
      %95 = vector.broadcast %92 : vector<1x128xf32> to vector<128x128xf32>
      %96 = arith.addf %94, %95 : vector<128x128xf32>
      %cst_67 = arith.constant 0.000000e+00 : f32
      %97 = vector.broadcast %cst_67 : f32 to vector<128x128xf32>
      %98 = arith.maximumf %96, %97 : vector<128x128xf32>
      %99 = arith.addf %77, %98 : vector<128x128xf32>
      %cst_68 = arith.constant 0.000000e+00 : f32
      %100 = vector.broadcast %cst_68 : f32 to vector<128x128xf32>
      %101 = arith.cmpf ogt, %99, %100 : vector<128x128xf32>
      %cst_69 = arith.constant 0.000000e+00 : f32
      %102 = vector.broadcast %cst_69 : f32 to vector<128x128xf32>
      %103 = arith.minimumf %99, %102 : vector<128x128xf32>
      %104 = math.exp %103 : vector<128x128xf32>
      %cst_70 = arith.constant 1.000000e+00 : f32
      %105 = vector.broadcast %cst_70 : f32 to vector<128x128xf32>
      %106 = arith.subf %104, %105 : vector<128x128xf32>
      %cst_71 = arith.constant 1.67326319 : f32
      %107 = vector.broadcast %cst_71 : f32 to vector<128x128xf32>
      %108 = arith.mulf %107, %106 : vector<128x128xf32>
      %109 = arith.select %101, %99, %108 : vector<128x128xi1>, vector<128x128xf32>
      %cst_72 = arith.constant 1.05070102 : f32
      %110 = vector.broadcast %cst_72 : f32 to vector<128x128xf32>
      %111 = arith.mulf %110, %109 : vector<128x128xf32>
      %112 = tpu.iota {dimensions = array<i32: 0>} : vector<128x128xi32>
      %113 = vector.broadcast %3 : i32 to vector<128x128xi32>
      %114 = arith.addi %112, %113 : vector<128x128xi32>
      %c16_i32 = arith.constant 16 : i32
      %115 = vector.broadcast %c16_i32 : i32 to vector<128x128xi32>
      %116 = arith.cmpi slt, %114, %115 : vector<128x128xi32>
      %cst_73 = arith.constant 0.000000e+00 : f32
      %117 = vector.broadcast %cst_73 : f32 to vector<128x128xf32>
      %118 = arith.select %116, %111, %117 : vector<128x128xi1>, vector<128x128xf32>
      %119 = arith.truncf %118 : vector<128x128xf32> to vector<128x128xbf16>
      %c0_74 = arith.constant 0 : index
      %c0_75 = arith.constant 0 : index
      %120 = vector.load %arg10[%c0_74, %c0_75] : memref<128x128xbf16, #tpu.memory_space<vmem>>, vector<128x128xbf16>
      tpu.vector_store %arg10[%c0_74, %c0_75], %119 {strides = array<i32>} : memref<128x128xbf16, #tpu.memory_space<vmem>>, vector<128x128xbf16>,
      %cst_76 = arith.constant dense<0.000000e+00> : vector<128xf32>
      %121 = vector.multi_reduction <add>, %118, %cst_76 [0] : vector<128x128xf32> to vector<128xf32>
      %122 = vector.shape_cast %121 : vector<128xf32> to vector<1x128xf32>
      %123 = arith.mulf %118, %118 : vector<128x128xf32>
      %cst_77 = arith.constant dense<0.000000e+00> : vector<128xf32>
      %124 = vector.multi_reduction <add>, %123, %cst_77 [0] : vector<128x128xf32> to vector<128xf32>
      %125 = vector.shape_cast %124 : vector<128xf32> to vector<1x128xf32>
      %126 = vector.shape_cast %122 : vector<1x128xf32> to vector<1x128xf32>
      %127 = vector.broadcast %126 : vector<1x128xf32> to vector<8x128xf32>
      %c0_78 = arith.constant 0 : index
      %c0_79 = arith.constant 0 : index
      %128 = vector.load %arg11[%c0_78, %c0_79] : memref<8x128xf32, #tpu.memory_space<vmem>>, vector<8x128xf32>
      tpu.vector_store %arg11[%c0_78, %c0_79], %127 {strides = array<i32>} : memref<8x128xf32, #tpu.memory_space<vmem>>, vector<8x128xf32>,
      %129 = vector.shape_cast %125 : vector<1x128xf32> to vector<1x128xf32>
      %130 = vector.broadcast %129 : vector<1x128xf32> to vector<8x128xf32>
      %c0_80 = arith.constant 0 : index
      %c0_81 = arith.constant 0 : index
      %131 = vector.load %arg12[%c0_80, %c0_81] : memref<8x128xf32, #tpu.memory_space<vmem>>, vector<8x128xf32>
      tpu.vector_store %arg12[%c0_80, %c0_81], %130 {strides = array<i32>} : memref<8x128xf32, #tpu.memory_space<vmem>>, vector<8x128xf32>,
    } else {
    }
    return
  }
  func.func @transform_0(%arg0: i32, %arg1: i32) -> (i32, i32) {
    %c0_i32 = arith.constant 0 : i32
    return %arg0, %arg1 : i32, i32
  }
  func.func @transform_1(%arg0: i32, %arg1: i32) -> (i32, i32) {
    %c0_i32 = arith.constant 0 : i32
    %c0_i32_0 = arith.constant 0 : i32
    return %arg1, %c0_i32 : i32, i32
  }
  func.func @transform_2(%arg0: i32, %arg1: i32) -> (i32, i32) {
    %c0_i32 = arith.constant 0 : i32
    %c0_i32_0 = arith.constant 0 : i32
    %c0_i32_1 = arith.constant 0 : i32
    return %c0_i32, %c0_i32_0 : i32, i32
  }
  func.func @transform_3(%arg0: i32, %arg1: i32) -> (i32, i32) {
    %c0_i32 = arith.constant 0 : i32
    %c0_i32_0 = arith.constant 0 : i32
    %c0_i32_1 = arith.constant 0 : i32
    return %c0_i32, %c0_i32_0 : i32, i32
  }
  func.func @transform_4(%arg0: i32, %arg1: i32) -> (i32, i32, i32) {
    %c0_i32 = arith.constant 0 : i32
    %c0_i32_0 = arith.constant 0 : i32
    %c0_i32_1 = arith.constant 0 : i32
    %c0_i32_2 = arith.constant 0 : i32
    return %c0_i32, %c0_i32_0, %c0_i32_1 : i32, i32, i32
  }
  func.func @transform_5(%arg0: i32, %arg1: i32) -> (i32, i32, i32) {
    %c0_i32 = arith.constant 0 : i32
    %c0_i32_0 = arith.constant 0 : i32
    %c0_i32_1 = arith.constant 0 : i32
    %c0_i32_2 = arith.constant 0 : i32
    return %c0_i32, %c0_i32_0, %c0_i32_1 : i32, i32, i32
  }
  func.func @transform_6(%arg0: i32, %arg1: i32) -> (i32, i32, i32) {
    %c0_i32 = arith.constant 0 : i32
    %c0_i32_0 = arith.constant 0 : i32
    %c0_i32_1 = arith.constant 0 : i32
    %c0_i32_2 = arith.constant 0 : i32
    return %c0_i32, %c0_i32_0, %c0_i32_1 : i32, i32, i32
  }
  func.func @transform_7(%arg0: i32, %arg1: i32) -> (i32, i32, i32) {
    %c0_i32 = arith.constant 0 : i32
    %c0_i32_0 = arith.constant 0 : i32
    %c0_i32_1 = arith.constant 0 : i32
    %c0_i32_2 = arith.constant 0 : i32
    return %c0_i32, %c0_i32_0, %c0_i32_1 : i32, i32, i32
  }
  func.func @transform_8(%arg0: i32, %arg1: i32) -> (i32, i32) {
    %c2_i32 = arith.constant 2 : i32
    %c0_i32 = arith.constant 0 : i32
    return %arg0, %c2_i32 : i32, i32
  }
  func.func @transform_9(%arg0: i32, %arg1: i32) -> (i32, i32) {
    %c0_i32 = arith.constant 0 : i32
    %c0_i32_0 = arith.constant 0 : i32
    return %arg0, %c0_i32 : i32, i32
  }
  func.func @transform_10(%arg0: i32, %arg1: i32) -> (i32, i32) {
    %c0_i32 = arith.constant 0 : i32
    %c0_i32_0 = arith.constant 0 : i32
    return %arg0, %c0_i32 : i32, i32
  }
}

</mosaic_0001>

<llo_original>
// kernel: graph_encoder_forward.5
$region0: #{graph_encoder_forward.5}
  #allocation0 [shape = 'u32[]', space=smem, size = 0x4, offset = 0x4, fixed_abs, tag = 'smem constant byte address 0x4 - core index']
  #allocation1 [shape = 'u32[144,128]{1,0:T(1,128)}', space=vmem, size = 0x12000, scoped, tag = 'internal scratch']
  %s0 = inlined_call_operand.vmem [shape: bf16[128,384], index: 0, kind: input, shape index: {}]
  %s1 = inlined_call_operand.vmem [shape: f32[1,256], index: 1, kind: input, shape index: {}]
  %s2 = inlined_call_operand.vmem [shape: f32[1,256], index: 2, kind: input, shape index: {}]
  %s3 = inlined_call_operand.vmem [shape: f32[128,256], index: 3, kind: output, shape index: {}]
  %s4 = sld [smem:[#allocation0]]
  $region120: #{graph_encoder_forward.5} parent=0
    _
  %s6 = ssub.s32 1, %s4
  %s7 = scalar_select 0, %s6, %s4
  $region1: #{graph_encoder_forward.5} parent=0
    #allocation2 [shape = 'u8[65536]{0}', space=vmem, size = 0x10000, scoped, tag = 'input window, operand 0']
    #allocation3 [shape = 'u8[131072]{0}', space=vmem, size = 0x20000, scoped, tag = 'output window, operand 0']
    loop: start=0, step=1, limit=4
    $region2: #{graph_encoder_forward.5} parent=1 // loop_pre_header
      _
    $region3: #{graph_encoder_forward.5} parent=1 // loop_header
      %s9 = sphi 0, %s13
      %p10 = scmp.ge.s32.totalorder %s9, 4
      %s16 = sphi 0, %s28
      %s17 = sphi 0, %s24
      %s18 = sphi 0, %s16
      %s19 = sphi 0, %s17
      %s20 = sphi 0, %s18
      %s21 = sphi 0, %s19
      %s35 = sphi 0, %s37
      %s38 = sphi 0, %s35
      %s39 = sphi 0, %s38
      %s55 = sphi 0, %s39
      %s61 = sphi 0, %s63
      %s64 = sphi 0, %s61
      %s65 = sphi 0, %s64
      %s81 = sphi 0, %s65
      %s87 = sphi 0, %s89
      %s90 = sphi 0, %s87
      %s91 = sphi 0, %s90
      %s107 = sphi 0, %s91
      %s115 = sphi 0, %s117
      %s118 = sphi 0, %s115
      %s119 = sphi 0, %s118
      %s135 = sphi 0, %s119
    $region4: #{graph_encoder_forward.5} parent=1 // loop_header_branch
      %12 = sbr.rel (%p10) target = $region8
    $region5: #{graph_encoder_forward.5} parent=1 // loop_body
      %s14 = ssub.s32 %s9, 1
      %s15 = ssub.s32 %s9, 2
      %s22 = sadd.s32 1, %s17
      %p23 = scmp.ge.s32.totalorder %s22, 2
      %s24 = scalar_select %p23, 0, %s22
      %s25 = sadd.s32 1, %s16
      %s26 = scalar_select %p23, %s25, %s16
      %p27 = scmp.ge.s32.totalorder %s26, 1
      %s28 = scalar_select %p27, 0, %s26
      %s29 = sadd.s32 %s17, 1
      %s30 = sadd.s32 %s24, 1
      %s31 = ssub.s32 %s16, %s28
      %s32 = ssub.s32 %s29, %s30
      %s33 = sor.u32 %s31, %s32
      %p34 = scmp.eq.s32.totalorder %s33, 0
      %s36 = sadd.s32 %s35, 1
      %s37 = scalar_select %p34, %s35, %s36
      %p40 = pneg %p34
      %p41 = scmp.eq.s32.totalorder %s9, 1
      %p42 = por %p40, %p41
      %p43 = scmp.ne.s32.totalorder %s35, %s38
      %p44 = scmp.eq.s32.totalorder %s9, 0
      %p45 = por %p43, %p44
      %p46 = scmp.ne.s32.totalorder %s35, %s38
      %p47 = scmp.eq.s32.totalorder %s14, 1
      %p48 = por %p46, %p47
      %p49 = scmp.ne.s32.totalorder %s38, %s39
      %p50 = scmp.eq.s32.totalorder %s14, 0
      %p51 = por %p49, %p50
      %p52 = scmp.ne.s32.totalorder %s38, %s39
      %p53 = scmp.eq.s32.totalorder %s15, 1
      %p54 = por %p52, %p53
      %p56 = scmp.ne.s32.totalorder %s39, %s55
      %p57 = scmp.eq.s32.totalorder %s15, 0
      %p58 = por %p56, %p57
      %s59 = ssub.s32 %s17, %s24
      %p60 = scmp.eq.s32.totalorder %s59, 0
      %s62 = sadd.s32 %s61, 1
      %s63 = scalar_select %p60, %s61, %s62
      %p66 = pneg %p60
      %p67 = scmp.eq.s32.totalorder %s9, 1
      %p68 = por %p66, %p67
      %p69 = scmp.ne.s32.totalorder %s61, %s64
      %p70 = scmp.eq.s32.totalorder %s9, 0
      %p71 = por %p69, %p70
      %p72 = scmp.ne.s32.totalorder %s61, %s64
      %p73 = scmp.eq.s32.totalorder %s14, 1
      %p74 = por %p72, %p73
      %p75 = scmp.ne.s32.totalorder %s64, %s65
      %p76 = scmp.eq.s32.totalorder %s14, 0
      %p77 = por %p75, %p76
      %p78 = scmp.ne.s32.totalorder %s64, %s65
      %p79 = scmp.eq.s32.totalorder %s15, 1
      %p80 = por %p78, %p79
      %p82 = scmp.ne.s32.totalorder %s65, %s81
      %p83 = scmp.eq.s32.totalorder %s15, 0
      %p84 = por %p82, %p83
      %s85 = ssub.s32 %s17, %s24
      %p86 = scmp.eq.s32.totalorder %s85, 0
      %s88 = sadd.s32 %s87, 1
      %s89 = scalar_select %p86, %s87, %s88
      %p92 = pneg %p86
      %p93 = scmp.eq.s32.totalorder %s9, 1
      %p94 = por %p92, %p93
      %p95 = scmp.ne.s32.totalorder %s87, %s90
      %p96 = scmp.eq.s32.totalorder %s9, 0
      %p97 = por %p95, %p96
      %p98 = scmp.ne.s32.totalorder %s87, %s90
      %p99 = scmp.eq.s32.totalorder %s14, 1
      %p100 = por %p98, %p99
      %p101 = scmp.ne.s32.totalorder %s90, %s91
      %p102 = scmp.eq.s32.totalorder %s14, 0
      %p103 = por %p101, %p102
      %p104 = scmp.ne.s32.totalorder %s90, %s91
      %p105 = scmp.eq.s32.totalorder %s15, 1
      %p106 = por %p104, %p105
      %p108 = scmp.ne.s32.totalorder %s91, %s107
      %p109 = scmp.eq.s32.totalorder %s15, 0
      %p110 = por %p108, %p109
      %s111 = ssub.s32 %s16, %s28
      %s112 = ssub.s32 %s17, %s24
      %s113 = sor.u32 %s111, %s112
      %p114 = scmp.eq.s32.totalorder %s113, 0
      %s116 = sadd.s32 %s115, 1
      %s117 = scalar_select %p114, %s115, %s116
      %p120 = pneg %p114
      %p121 = scmp.eq.s32.totalorder %s9, 1
      %p122 = por %p120, %p121
      %p123 = scmp.ne.s32.totalorder %s115, %s118
      %p124 = scmp.eq.s32.totalorder %s9, 0
      %p125 = por %p123, %p124
      %p126 = scmp.ne.s32.totalorder %s115, %s118
      %p127 = scmp.eq.s32.totalorder %s14, 1
      %p128 = por %p126, %p127
      %p129 = scmp.ne.s32.totalorder %s118, %s119
      %p130 = scmp.eq.s32.totalorder %s14, 0
      %p131 = por %p129, %p130
      %p132 = scmp.ne.s32.totalorder %s118, %s119
      %p133 = scmp.eq.s32.totalorder %s15, 1
      %p134 = por %p132, %p133
      %p136 = scmp.ne.s32.totalorder %s119, %s135
      %p137 = scmp.eq.s32.totalorder %s15, 0
      %p138 = por %p136, %p137
      %p139 = scmp.le.s32.totalorder 1, %s9
      %p140 = scmp.lt.s32.totalorder %s9, 3
      %p141 = pnand %p139, %p140
      %p142 = pneg %p141
      // Predicated region
      $region9: #{graph_encoder_forward.5} parent=5 // pred_check
        _
      $region10: #{graph_encoder_forward.5} parent=5 // pred_check_branch
        %144 = sbr.rel (%p141) target = $region12
      $region11: #{graph_encoder_forward.5} parent=5 // pred_region
        %s145 = ssub.s32 %s9, 1
      $region12: #{graph_encoder_forward.5} parent=5 // pred_fallthru
        _
      %p146 = scmp.lt.s32.totalorder %s9, 2
      // Predicated region
      $region13: #{graph_encoder_forward.5} parent=5 // pred_check
        %p147 = pneg %p146
      $region14: #{graph_encoder_forward.5} parent=5 // pred_check_branch
        %149 = sbr.rel (%p147) target = $region16
      $region15: #{graph_encoder_forward.5} parent=5 // pred_region
        // Predicated region
        $region17: #{graph_encoder_forward.5} parent=15 // pred_check
          %p150 = pneg %p45
        $region18: #{graph_encoder_forward.5} parent=15 // pred_check_branch
          %152 = sbr.rel (%p150) target = $region20
        $region19: #{graph_encoder_forward.5} parent=15 // pred_region
          %s153 = sand.u32 %s35, 1
          %s154 = sand.u32 %s35, 1
          %s155 = smul.addr %s154, 64
          %s156 = scalar_lea.vmem [#allocation2], %s155
          %s157 = sadd.s32 %s17, 1
          %s158 = smul.u32 16, %s16
          %s159 = smul.addr %s158, 3
          %s160 = sadd.s32 %s157, %s159
          %s161 = smul.addr %s160, 4
          %s162 = scalar_lea.vmem %s0, %s161
          // Predicated region
          $region21: #{graph_encoder_forward.5} parent=19 // pred_check
            _
          $region22: #{graph_encoder_forward.5} parent=19 // pred_check_branch
            %164 = sbr.rel (0) target = $region24
          $region23: #{graph_encoder_forward.5} parent=19 // pred_region
            // Predicated region
            $region25: #{graph_encoder_forward.5} parent=23 // pred_check
              _
            $region26: #{graph_encoder_forward.5} parent=23 // pred_check_branch
              %166 = sbr.rel target = $region28
            $region27: #{graph_encoder_forward.5} parent=23 // pred_region
              // Predicated region
              $region40: #{graph_encoder_forward.5} parent=27 // pred_check
                _
              $region41: #{graph_encoder_forward.5} parent=27 // pred_check_branch
                %211 = sbr.rel (0) target = $region43
              $region42: #{graph_encoder_forward.5} parent=27 // pred_region
                loop: start=0, step=1, limit=1
                $region44: #{graph_encoder_forward.5} parent=42 // loop_pre_header
                  _
                $region45: #{graph_encoder_forward.5} parent=42 // loop_header
                  %s213 = sphi 0, %s217
                  %p214 = scmp.ge.s32.totalorder %s213, 1
                  %s218 = sphi %s162, %s162
                  %s219 = sphi %s156, %s156
                $region46: #{graph_encoder_forward.5} parent=42 // loop_header_branch
                  %216 = sbr.rel (%p214) target = $region50
                $region47: #{graph_encoder_forward.5} parent=42 // loop_body
                  _
                $region48: #{graph_encoder_forward.5} parent=42 // loop_footer
                  %s217 = sadd.s32 1, %s213
                $region49: #{graph_encoder_forward.5} parent=42 // loop_footer_branch
                  %212 = sbr.rel target = $region45
                $region50: #{graph_encoder_forward.5} parent=42 // loop_exit
                  _
                loop: start=0, step=1, limit=1
                $region51: #{graph_encoder_forward.5} parent=42 // loop_pre_header
                  _
                $region52: #{graph_encoder_forward.5} parent=42 // loop_header
                  %s222 = sphi 0, %s226
                  %p223 = scmp.ge.s32.totalorder %s222, 1
                  %s227 = sphi %s162, %s162
                  %s228 = sphi %s156, %s156
                $region53: #{graph_encoder_forward.5} parent=42 // loop_header_branch
                  %225 = sbr.rel (%p223) target = $region57
                $region54: #{graph_encoder_forward.5} parent=42 // loop_body
                  %v229 = vld [vmem:[%s227] sm:$0xf]
                  %230 = vst [vmem:[%s228] sm:$0xf] %v229
                  %v231 = vld [vmem:[%s227 + $0xc] sm:$0xf]
                  %232 = vst [vmem:[%s228 + $0x4] sm:$0xf] %v231
                  %v233 = vld [vmem:[%s227 + $0x18] sm:$0xf]
                  %234 = vst [vmem:[%s228 + $0x8] sm:$0xf] %v233
                  %v235 = vld [vmem:[%s227 + $0x24] sm:$0xf]
                  %236 = vst [vmem:[%s228 + $0xc] sm:$0xf] %v235
                  %v237 = vld [vmem:[%s227 + $0x30] sm:$0xf]
                  %238 = vst [vmem:[%s228 + $0x10] sm:$0xf] %v237
                  %v239 = vld [vmem:[%s227 + $0x3c] sm:$0xf]
                  %240 = vst [vmem:[%s228 + $0x14] sm:$0xf] %v239
                  %v241 = vld [vmem:[%s227 + $0x48] sm:$0xf]
                  %242 = vst [vmem:[%s228 + $0x18] sm:$0xf] %v241
                  %v243 = vld [vmem:[%s227 + $0x54] sm:$0xf]
                  %244 = vst [vmem:[%s228 + $0x1c] sm:$0xf] %v243
                  %v245 = vld [vmem:[%s227 + $0x60] sm:$0xf]
                  %246 = vst [vmem:[%s228 + $0x20] sm:$0xf] %v245
                  %v247 = vld [vmem:[%s227 + $0x6c] sm:$0xf]
                  %248 = vst [vmem:[%s228 + $0x24] sm:$0xf] %v247
                  %v249 = vld [vmem:[%s227 + $0x78] sm:$0xf]
                  %250 = vst [vmem:[%s228 + $0x28] sm:$0xf] %v249
                  %v251 = vld [vmem:[%s227 + $0x84] sm:$0xf]
                  %252 = vst [vmem:[%s228 + $0x2c] sm:$0xf] %v251
                  %v253 = vld [vmem:[%s227 + $0x90] sm:$0xf]
                  %254 = vst [vmem:[%s228 + $0x30] sm:$0xf] %v253
                  %v255 = vld [vmem:[%s227 + $0x9c] sm:$0xf]
                  %256 = vst [vmem:[%s228 + $0x34] sm:$0xf] %v255
                  %v257 = vld [vmem:[%s227 + $0xa8] sm:$0xf]
                  %258 = vst [vmem:[%s228 + $0x38] sm:$0xf] %v257
                  %v259 = vld [vmem:[%s227 + $0xb4] sm:$0xf]
                  %260 = vst [vmem:[%s228 + $0x3c] sm:$0xf] %v259
                $region55: #{graph_encoder_forward.5} parent=42 // loop_footer
                  %s226 = sadd.s32 1, %s222
                $region56: #{graph_encoder_forward.5} parent=42 // loop_footer_branch
                  %221 = sbr.rel target = $region52
                $region57: #{graph_encoder_forward.5} parent=42 // loop_exit
                  _
              $region43: #{graph_encoder_forward.5} parent=27 // pred_fallthru
                _
            $region28: #{graph_encoder_forward.5} parent=23 // pred_fallthru
              _
            // Predicated region
            $region29: #{graph_encoder_forward.5} parent=23 // pred_check
              _
            $region30: #{graph_encoder_forward.5} parent=23 // pred_check_branch
              %168 = sbr.rel (0) target = $region32
            $region31: #{graph_encoder_forward.5} parent=23 // pred_region
              loop: start=0, step=1, limit=1
              $region33: #{graph_encoder_forward.5} parent=31 // loop_pre_header
                _
              $region34: #{graph_encoder_forward.5} parent=31 // loop_header
                %s171 = sphi 0, %s175
                %p172 = scmp.ge.s32.totalorder %s171, 1
                %s176 = sphi %s162, %s162
                %s177 = sphi %s156, %s156
              $region35: #{graph_encoder_forward.5} parent=31 // loop_header_branch
                %174 = sbr.rel (%p172) target = $region39
              $region36: #{graph_encoder_forward.5} parent=31 // loop_body
                %v178 = vld [vmem:[%s176] sm:$0xf]
                %179 = vst [vmem:[%s177] sm:$0xf] %v178
                %v180 = vld [vmem:[%s176 + $0xc] sm:$0xf]
                %181 = vst [vmem:[%s177 + $0x4] sm:$0xf] %v180
                %v182 = vld [vmem:[%s176 + $0x18] sm:$0xf]
                %183 = vst [vmem:[%s177 + $0x8] sm:$0xf] %v182
                %v184 = vld [vmem:[%s176 + $0x24] sm:$0xf]
                %185 = vst [vmem:[%s177 + $0xc] sm:$0xf] %v184
                %v186 = vld [vmem:[%s176 + $0x30] sm:$0xf]
                %187 = vst [vmem:[%s177 + $0x10] sm:$0xf] %v186
                %v188 = vld [vmem:[%s176 + $0x3c] sm:$0xf]
                %189 = vst [vmem:[%s177 + $0x14] sm:$0xf] %v188
                %v190 = vld [vmem:[%s176 + $0x48] sm:$0xf]
                %191 = vst [vmem:[%s177 + $0x18] sm:$0xf] %v190
                %v192 = vld [vmem:[%s176 + $0x54] sm:$0xf]
                %193 = vst [vmem:[%s177 + $0x1c] sm:$0xf] %v192
                %v194 = vld [vmem:[%s176 + $0x60] sm:$0xf]
                %195 = vst [vmem:[%s177 + $0x20] sm:$0xf] %v194
                %v196 = vld [vmem:[%s176 + $0x6c] sm:$0xf]
                %197 = vst [vmem:[%s177 + $0x24] sm:$0xf] %v196
                %v198 = vld [vmem:[%s176 + $0x78] sm:$0xf]
                %199 = vst [vmem:[%s177 + $0x28] sm:$0xf] %v198
                %v200 = vld [vmem:[%s176 + $0x84] sm:$0xf]
                %201 = vst [vmem:[%s177 + $0x2c] sm:$0xf] %v200
                %v202 = vld [vmem:[%s176 + $0x90] sm:$0xf]
                %203 = vst [vmem:[%s177 + $0x30] sm:$0xf] %v202
                %v204 = vld [vmem:[%s176 + $0x9c] sm:$0xf]
                %205 = vst [vmem:[%s177 + $0x34] sm:$0xf] %v204
                %v206 = vld [vmem:[%s176 + $0xa8] sm:$0xf]
                %207 = vst [vmem:[%s177 + $0x38] sm:$0xf] %v206
                %v208 = vld [vmem:[%s176 + $0xb4] sm:$0xf]
                %209 = vst [vmem:[%s177 + $0x3c] sm:$0xf] %v208
              $region37: #{graph_encoder_forward.5} parent=31 // loop_footer
                %s175 = sadd.s32 1, %s171
              $region38: #{graph_encoder_forward.5} parent=31 // loop_footer_branch
                %170 = sbr.rel target = $region34
              $region39: #{graph_encoder_forward.5} parent=31 // loop_exit
                _
            $region32: #{graph_encoder_forward.5} parent=23 // pred_fallthru
              _
          $region24: #{graph_encoder_forward.5} parent=19 // pred_fallthru
            _
          %261 = vnop
        $region20: #{graph_encoder_forward.5} parent=15 // pred_fallthru
          _
        // Predicated region
        $region58: #{graph_encoder_forward.5} parent=15 // pred_check
          %p262 = pneg %p71
        $region59: #{graph_encoder_forward.5} parent=15 // pred_check_branch
          %264 = sbr.rel (%p262) target = $region61
        $region60: #{graph_encoder_forward.5} parent=15 // pred_region
          %p265 = scmp.lt.s32.totalorder %s17, 1
          %s266 = scalar_select %p265, %s17, 1
          %s267 = scalar_lea.vmem %s1, %s266
        $region61: #{graph_encoder_forward.5} parent=15 // pred_fallthru
          _
        // Predicated region
        $region62: #{graph_encoder_forward.5} parent=15 // pred_check
          %p268 = pneg %p97
        $region63: #{graph_encoder_forward.5} parent=15 // pred_check_branch
          %270 = sbr.rel (%p268) target = $region65
        $region64: #{graph_encoder_forward.5} parent=15 // pred_region
          %p271 = scmp.lt.s32.totalorder %s17, 1
          %s272 = scalar_select %p271, %s17, 1
          %s273 = scalar_lea.vmem %s2, %s272
        $region65: #{graph_encoder_forward.5} parent=15 // pred_fallthru
          _
      $region16: #{graph_encoder_forward.5} parent=5 // pred_fallthru
        _
      %p274 = scmp.le.s32.totalorder 1, %s9
      %p275 = scmp.lt.s32.totalorder %s9, 3
      %p276 = pnand %p274, %p275
      %p277 = pneg %p276
      // Predicated region
      $region66: #{graph_encoder_forward.5} parent=5 // pred_check
        _
      $region67: #{graph_encoder_forward.5} parent=5 // pred_check_branch
        %279 = sbr.rel (%p276) target = $region69
      $region68: #{graph_encoder_forward.5} parent=5 // pred_region
        %s280 = ssub.s32 %s9, 1
        %s281 = sand.u32 %s38, 1
        %s282 = sand.u32 %s38, 1
        %s283 = smul.addr %s282, 64
        %s284 = scalar_lea.vmem [#allocation2], %s283
        // Predicated region
        $region70: #{graph_encoder_forward.5} parent=68 // pred_check
          %p285 = pneg %p51
        $region71: #{graph_encoder_forward.5} parent=68 // pred_check_branch
          %287 = sbr.rel (%p285) target = $region73
        $region72: #{graph_encoder_forward.5} parent=68 // pred_region
          _
        $region73: #{graph_encoder_forward.5} parent=68 // pred_fallthru
          _
        %s288 = sand.u32 %s38, 1
        %s289 = sand.u32 %s38, 1
        %s290 = smul.addr %s289, 64
        %s291 = scalar_lea.vmem [#allocation2], %s290
        %p292 = pneg %p51
        %p293 = pneg %p48
        %p294 = scmp.lt.s32.totalorder %s19, 1
        %s295 = scalar_select %p294, %s19, 1
        %s296 = scalar_lea.vmem %s1, %s295
        %p297 = pneg %p77
        %p298 = pneg %p74
        %p299 = scmp.lt.s32.totalorder %s19, 1
        %s300 = scalar_select %p299, %s19, 1
        %s301 = scalar_lea.vmem %s2, %s300
        %p302 = pneg %p103
        %p303 = pneg %p100
        %p304 = pneg %p131
        %p305 = pneg %p128
        %s306 = sand.u32 %s118, 1
        %s307 = sand.u32 %s118, 1
        %s308 = smul.addr %s307, 128
        %s309 = scalar_lea.vmem [#allocation3], %s308
        %s310 = sadd.s32 %s19, 1
        %s311 = smul.u32 16, %s18
        %p312 = scmp.lt.s32.totalorder %s19, 1
        %s313 = scalar_select %p312, %s19, 1
        %s314 = scalar_lea.vmem %s1, %s313
        %p315 = scmp.lt.s32.totalorder %s19, 1
        %s316 = scalar_select %p315, %s19, 1
        %s317 = scalar_lea.vmem %s2, %s316
        %s318 = smul.u32 16, %s18
        %v319 = vld [vmem:[%s284] sm:$0xf]
        %v320 = vld [vmem:[%s284 + $0x4] sm:$0xf]
        %v321 = vld [vmem:[%s284 + $0x8] sm:$0xf]
        %v322 = vld [vmem:[%s284 + $0xc] sm:$0xf]
        %v323 = vld [vmem:[%s284 + $0x10] sm:$0xf]
        %v324 = vld [vmem:[%s284 + $0x14] sm:$0xf]
        %v325 = vld [vmem:[%s284 + $0x18] sm:$0xf]
        %v326 = vld [vmem:[%s284 + $0x1c] sm:$0xf]
        %v327 = vld [vmem:[%s284 + $0x20] sm:$0xf]
        %v328 = vld [vmem:[%s284 + $0x24] sm:$0xf]
        %v329 = vld [vmem:[%s284 + $0x28] sm:$0xf]
        %v330 = vld [vmem:[%s284 + $0x2c] sm:$0xf]
        %v331 = vld [vmem:[%s284 + $0x30] sm:$0xf]
        %v332 = vld [vmem:[%s284 + $0x34] sm:$0xf]
        %v333 = vld [vmem:[%s284 + $0x38] sm:$0xf]
        %v334 = vld [vmem:[%s284 + $0x3c] sm:$0xf]
        %v335 = vunpack.c.l.bf16 %v319
        %v336 = vunpack.c.l.bf16 %v320
        %v337 = vunpack.c.l.bf16 %v321
        %v338 = vunpack.c.l.bf16 %v322
        %v339 = vunpack.c.l.bf16 %v323
        %v340 = vunpack.c.l.bf16 %v324
        %v341 = vunpack.c.l.bf16 %v325
        %v342 = vunpack.c.l.bf16 %v326
        %v343 = vunpack.c.l.bf16 %v327
        %v344 = vunpack.c.l.bf16 %v328
        %v345 = vunpack.c.l.bf16 %v329
        %v346 = vunpack.c.l.bf16 %v330
        %v347 = vunpack.c.l.bf16 %v331
        %v348 = vunpack.c.l.bf16 %v332
        %v349 = vunpack.c.l.bf16 %v333
        %v350 = vunpack.c.l.bf16 %v334
        %v351 = vld [vmem:[%s314] sm:$0x1]
        %v353 = vlaneseq
        %v354 = vshrl.u32 %v353, 7
        %v355 = vsub.s32 0, %v354
        %v356 = vrot.slane %v351, %v355
        %v358 = vmul.f32 %v335, %v356
        %v359 = vmul.f32 %v336, %v356
        %v360 = vmul.f32 %v337, %v356
        %v361 = vmul.f32 %v338, %v356
        %v362 = vmul.f32 %v339, %v356
        %v363 = vmul.f32 %v340, %v356
        %v364 = vmul.f32 %v341, %v356
        %v365 = vmul.f32 %v342, %v356
        %v366 = vmul.f32 %v343, %v356
        %v367 = vmul.f32 %v344, %v356
        %v368 = vmul.f32 %v345, %v356
        %v369 = vmul.f32 %v346, %v356
        %v370 = vmul.f32 %v347, %v356
        %v371 = vmul.f32 %v348, %v356
        %v372 = vmul.f32 %v349, %v356
        %v373 = vmul.f32 %v350, %v356
        %v374 = vld [vmem:[%s317] sm:$0x1]
        %v376 = vlaneseq
        %v377 = vshrl.u32 %v376, 7
        %v378 = vsub.s32 0, %v377
        %v379 = vrot.slane %v374, %v378
        %v381 = vadd.f32 %v358, %v379
        %v382 = vadd.f32 %v359, %v379
        %v383 = vadd.f32 %v360, %v379
        %v384 = vadd.f32 %v361, %v379
        %v385 = vadd.f32 %v362, %v379
        %v386 = vadd.f32 %v363, %v379
        %v387 = vadd.f32 %v364, %v379
        %v388 = vadd.f32 %v365, %v379
        %v389 = vadd.f32 %v366, %v379
        %v390 = vadd.f32 %v367, %v379
        %v391 = vadd.f32 %v368, %v379
        %v392 = vadd.f32 %v369, %v379
        %v393 = vadd.f32 %v370, %v379
        %v394 = vadd.f32 %v371, %v379
        %v395 = vadd.f32 %v372, %v379
        %v396 = vadd.f32 %v373, %v379
        %397 = vst [vmem:[%s309] sm:$0xff] %v381
        %398 = vst [vmem:[%s309 + $0x8] sm:$0xff] %v382
        %399 = vst [vmem:[%s309 + $0x10] sm:$0xff] %v383
        %400 = vst [vmem:[%s309 + $0x18] sm:$0xff] %v384
        %401 = vst [vmem:[%s309 + $0x20] sm:$0xff] %v385
        %402 = vst [vmem:[%s309 + $0x28] sm:$0xff] %v386
        %403 = vst [vmem:[%s309 + $0x30] sm:$0xff] %v387
        %404 = vst [vmem:[%s309 + $0x38] sm:$0xff] %v388
        %405 = vst [vmem:[%s309 + $0x40] sm:$0xff] %v389
        %406 = vst [vmem:[%s309 + $0x48] sm:$0xff] %v390
        %407 = vst [vmem:[%s309 + $0x50] sm:$0xff] %v391
        %408 = vst [vmem:[%s309 + $0x58] sm:$0xff] %v392
        %409 = vst [vmem:[%s309 + $0x60] sm:$0xff] %v393
        %410 = vst [vmem:[%s309 + $0x68] sm:$0xff] %v394
        %411 = vst [vmem:[%s309 + $0x70] sm:$0xff] %v395
        %412 = vst [vmem:[%s309 + $0x78] sm:$0xff] %v396
        %s413 = sand.u32 %s118, 1
        %s414 = sand.u32 %s118, 1
        %s415 = smul.addr %s414, 128
        %s416 = scalar_lea.vmem [#allocation3], %s415
        // Predicated region
        $region74: #{graph_encoder_forward.5} parent=68 // pred_check
          %p417 = pneg %p128
        $region75: #{graph_encoder_forward.5} parent=68 // pred_check_branch
          %419 = sbr.rel (%p417) target = $region77
        $region76: #{graph_encoder_forward.5} parent=68 // pred_region
          %s420 = smul.u32 16, %s18
          %s421 = smul.addr %s420, 2
          %s422 = sadd.s32 %s19, %s421
          %s423 = smul.addr %s422, 8
          %s424 = scalar_lea.vmem %s3, %s423
          // Predicated region
          $region78: #{graph_encoder_forward.5} parent=76 // pred_check
            _
          $region79: #{graph_encoder_forward.5} parent=76 // pred_check_branch
            %426 = sbr.rel (0) target = $region81
          $region80: #{graph_encoder_forward.5} parent=76 // pred_region
            // Predicated region
            $region82: #{graph_encoder_forward.5} parent=80 // pred_check
              _
            $region83: #{graph_encoder_forward.5} parent=80 // pred_check_branch
              %428 = sbr.rel (0) target = $region85
            $region84: #{graph_encoder_forward.5} parent=80 // pred_region
              // Predicated region
              $region97: #{graph_encoder_forward.5} parent=84 // pred_check
                _
              $region98: #{graph_encoder_forward.5} parent=84 // pred_check_branch
                %473 = sbr.rel (0) target = $region100
              $region99: #{graph_encoder_forward.5} parent=84 // pred_region
                loop: start=0, step=1, limit=1
                $region101: #{graph_encoder_forward.5} parent=99 // loop_pre_header
                  _
                $region102: #{graph_encoder_forward.5} parent=99 // loop_header
                  %s475 = sphi 0, %s479
                  %p476 = scmp.ge.s32.totalorder %s475, 1
                  %s480 = sphi %s416, %s416
                  %s481 = sphi %s424, %s424
                $region103: #{graph_encoder_forward.5} parent=99 // loop_header_branch
                  %478 = sbr.rel (%p476) target = $region107
                $region104: #{graph_encoder_forward.5} parent=99 // loop_body
                  %v482 = vld [vmem:[%s480] sm:$0xff]
                  %483 = vst [vmem:[%s481] sm:$0xff] %v482
                  %v484 = vld [vmem:[%s480 + $0x8] sm:$0xff]
                  %485 = vst [vmem:[%s481 + $0x10] sm:$0xff] %v484
                  %v486 = vld [vmem:[%s480 + $0x10] sm:$0xff]
                  %487 = vst [vmem:[%s481 + $0x20] sm:$0xff] %v486
                  %v488 = vld [vmem:[%s480 + $0x18] sm:$0xff]
                  %489 = vst [vmem:[%s481 + $0x30] sm:$0xff] %v488
                  %v490 = vld [vmem:[%s480 + $0x20] sm:$0xff]
                  %491 = vst [vmem:[%s481 + $0x40] sm:$0xff] %v490
                  %v492 = vld [vmem:[%s480 + $0x28] sm:$0xff]
                  %493 = vst [vmem:[%s481 + $0x50] sm:$0xff] %v492
                  %v494 = vld [vmem:[%s480 + $0x30] sm:$0xff]
                  %495 = vst [vmem:[%s481 + $0x60] sm:$0xff] %v494
                  %v496 = vld [vmem:[%s480 + $0x38] sm:$0xff]
                  %497 = vst [vmem:[%s481 + $0x70] sm:$0xff] %v496
                  %v498 = vld [vmem:[%s480 + $0x40] sm:$0xff]
                  %499 = vst [vmem:[%s481 + $0x80] sm:$0xff] %v498
                  %v500 = vld [vmem:[%s480 + $0x48] sm:$0xff]
                  %501 = vst [vmem:[%s481 + $0x90] sm:$0xff] %v500
                  %v502 = vld [vmem:[%s480 + $0x50] sm:$0xff]
                  %503 = vst [vmem:[%s481 + $0xa0] sm:$0xff] %v502
                  %v504 = vld [vmem:[%s480 + $0x58] sm:$0xff]
                  %505 = vst [vmem:[%s481 + $0xb0] sm:$0xff] %v504
                  %v506 = vld [vmem:[%s480 + $0x60] sm:$0xff]
                  %507 = vst [vmem:[%s481 + $0xc0] sm:$0xff] %v506
                  %v508 = vld [vmem:[%s480 + $0x68] sm:$0xff]
                  %509 = vst [vmem:[%s481 + $0xd0] sm:$0xff] %v508
                  %v510 = vld [vmem:[%s480 + $0x70] sm:$0xff]
                  %511 = vst [vmem:[%s481 + $0xe0] sm:$0xff] %v510
                  %v512 = vld [vmem:[%s480 + $0x78] sm:$0xff]
                  %513 = vst [vmem:[%s481 + $0xf0] sm:$0xff] %v512
                $region105: #{graph_encoder_forward.5} parent=99 // loop_footer
                  %s479 = sadd.s32 1, %s475
                $region106: #{graph_encoder_forward.5} parent=99 // loop_footer_branch
                  %474 = sbr.rel target = $region102
                $region107: #{graph_encoder_forward.5} parent=99 // loop_exit
                  _
              $region100: #{graph_encoder_forward.5} parent=84 // pred_fallthru
                _
              // Predicated region
              $region108: #{graph_encoder_forward.5} parent=84 // pred_check
                _
              $region109: #{graph_encoder_forward.5} parent=84 // pred_check_branch
                %515 = sbr.rel target = $region111
              $region110: #{graph_encoder_forward.5} parent=84 // pred_region
                _
              $region111: #{graph_encoder_forward.5} parent=84 // pred_fallthru
                _
            $region85: #{graph_encoder_forward.5} parent=80 // pred_fallthru
              _
            // Predicated region
            $region86: #{graph_encoder_forward.5} parent=80 // pred_check
              _
            $region87: #{graph_encoder_forward.5} parent=80 // pred_check_branch
              %430 = sbr.rel target = $region89
            $region88: #{graph_encoder_forward.5} parent=80 // pred_region
              loop: start=0, step=1, limit=1
              $region90: #{graph_encoder_forward.5} parent=88 // loop_pre_header
                _
              $region91: #{graph_encoder_forward.5} parent=88 // loop_header
                %s433 = sphi 0, %s437
                %p434 = scmp.ge.s32.totalorder %s433, 1
                %s438 = sphi %s416, %s416
                %s439 = sphi %s424, %s424
              $region92: #{graph_encoder_forward.5} parent=88 // loop_header_branch
                %436 = sbr.rel (%p434) target = $region96
              $region93: #{graph_encoder_forward.5} parent=88 // loop_body
                %v440 = vld [vmem:[%s438] sm:$0xff]
                %441 = vst [vmem:[%s439] sm:$0xff] %v440
                %v442 = vld [vmem:[%s438 + $0x8] sm:$0xff]
                %443 = vst [vmem:[%s439 + $0x10] sm:$0xff] %v442
                %v444 = vld [vmem:[%s438 + $0x10] sm:$0xff]
                %445 = vst [vmem:[%s439 + $0x20] sm:$0xff] %v444
                %v446 = vld [vmem:[%s438 + $0x18] sm:$0xff]
                %447 = vst [vmem:[%s439 + $0x30] sm:$0xff] %v446
                %v448 = vld [vmem:[%s438 + $0x20] sm:$0xff]
                %449 = vst [vmem:[%s439 + $0x40] sm:$0xff] %v448
                %v450 = vld [vmem:[%s438 + $0x28] sm:$0xff]
                %451 = vst [vmem:[%s439 + $0x50] sm:$0xff] %v450
                %v452 = vld [vmem:[%s438 + $0x30] sm:$0xff]
                %453 = vst [vmem:[%s439 + $0x60] sm:$0xff] %v452
                %v454 = vld [vmem:[%s438 + $0x38] sm:$0xff]
                %455 = vst [vmem:[%s439 + $0x70] sm:$0xff] %v454
                %v456 = vld [vmem:[%s438 + $0x40] sm:$0xff]
                %457 = vst [vmem:[%s439 + $0x80] sm:$0xff] %v456
                %v458 = vld [vmem:[%s438 + $0x48] sm:$0xff]
                %459 = vst [vmem:[%s439 + $0x90] sm:$0xff] %v458
                %v460 = vld [vmem:[%s438 + $0x50] sm:$0xff]
                %461 = vst [vmem:[%s439 + $0xa0] sm:$0xff] %v460
                %v462 = vld [vmem:[%s438 + $0x58] sm:$0xff]
                %463 = vst [vmem:[%s439 + $0xb0] sm:$0xff] %v462
                %v464 = vld [vmem:[%s438 + $0x60] sm:$0xff]
                %465 = vst [vmem:[%s439 + $0xc0] sm:$0xff] %v464
                %v466 = vld [vmem:[%s438 + $0x68] sm:$0xff]
                %467 = vst [vmem:[%s439 + $0xd0] sm:$0xff] %v466
                %v468 = vld [vmem:[%s438 + $0x70] sm:$0xff]
                %469 = vst [vmem:[%s439 + $0xe0] sm:$0xff] %v468
                %v470 = vld [vmem:[%s438 + $0x78] sm:$0xff]
                %471 = vst [vmem:[%s439 + $0xf0] sm:$0xff] %v470
              $region94: #{graph_encoder_forward.5} parent=88 // loop_footer
                %s437 = sadd.s32 1, %s433
              $region95: #{graph_encoder_forward.5} parent=88 // loop_footer_branch
                %432 = sbr.rel target = $region91
              $region96: #{graph_encoder_forward.5} parent=88 // loop_exit
                _
            $region89: #{graph_encoder_forward.5} parent=80 // pred_fallthru
              _
          $region81: #{graph_encoder_forward.5} parent=76 // pred_fallthru
            _
          %516 = vnop
        $region77: #{graph_encoder_forward.5} parent=68 // pred_fallthru
          _
      $region69: #{graph_encoder_forward.5} parent=5 // pred_fallthru
        _
      %p517 = scmp.le.s32.totalorder 2, %s9
      // Predicated region
      $region112: #{graph_encoder_forward.5} parent=5 // pred_check
        %p518 = pneg %p517
      $region113: #{graph_encoder_forward.5} parent=5 // pred_check_branch
        %520 = sbr.rel (%p518) target = $region115
      $region114: #{graph_encoder_forward.5} parent=5 // pred_region
        %s521 = ssub.s32 %s9, 2
        // Predicated region
        $region116: #{graph_encoder_forward.5} parent=114 // pred_check
          %p522 = pneg %p134
        $region117: #{graph_encoder_forward.5} parent=114 // pred_check_branch
          %524 = sbr.rel (%p522) target = $region119
        $region118: #{graph_encoder_forward.5} parent=114 // pred_region
          %s525 = sand.u32 %s119, 1
          %s526 = sand.u32 %s119, 1
          %s527 = smul.addr %s526, 128
          %s528 = scalar_lea.vmem [#allocation3], %s527
        $region119: #{graph_encoder_forward.5} parent=114 // pred_fallthru
          _
      $region115: #{graph_encoder_forward.5} parent=5 // pred_fallthru
        _
    $region6: #{graph_encoder_forward.5} parent=1 // loop_footer
      %s13 = sadd.s32 1, %s9
    $region7: #{graph_encoder_forward.5} parent=1 // loop_footer_branch
      %8 = sbr.rel target = $region3
    $region8: #{graph_encoder_forward.5} parent=1 // loop_exit
      _

// kernel: graph_encoder_forward.3
$region0: #{graph_encoder_forward.3}
  #allocation0 [shape = 'u32[]', space=smem, size = 0x4, offset = 0x4, fixed_abs, tag = 'smem constant byte address 0x4 - core index']
  #allocation1 [shape = 'u32[144,128]{1,0:T(1,128)}', space=vmem, size = 0x12000, scoped, tag = 'internal scratch']
  #allocation2 [shape = 'f32[128,384]{1,0:T(8,128)}', space=vmem, size = 0x30000, scoped, tag = 'scratch operand']
  %s0 = inlined_call_operand.vmem [shape: bf16[128,128], index: 0, kind: input, shape index: {}]
  %s1 = inlined_call_operand.vmem [shape: bf16[128,384], index: 1, kind: input, shape index: {}, may-alias: {1,8}]
  %s2 = inlined_call_operand.vmem [shape: f32[1,128], index: 2, kind: input, shape index: {}]
  %s3 = inlined_call_operand.vmem [shape: f32[1,128], index: 3, kind: input, shape index: {}]
  %s4 = inlined_call_operand.vmem [shape: bf16[3,128,128], index: 4, kind: input, shape index: {}]
  %s5 = inlined_call_operand.vmem [shape: f32[3,1,128], index: 5, kind: input, shape index: {}]
  %s6 = inlined_call_operand.vmem [shape: bf16[3,128,128], index: 6, kind: input, shape index: {}]
  %s7 = inlined_call_operand.vmem [shape: f32[3,1,128], index: 7, kind: input, shape index: {}]
  %s8 = inlined_call_operand.vmem [shape: bf16[128,384], index: 8, kind: output, shape index: {0}, may-alias: {1,8}]
  %s9 = inlined_call_operand.vmem [shape: f32[8,128], index: 9, kind: output, shape index: {1}]
  %s10 = inlined_call_operand.vmem [shape: f32[8,128], index: 10, kind: output, shape index: {2}]
  %11 = xla_tuple %s8, %s9, %s10
  %s12 = sld [smem:[#allocation0]]
  $region123: #{graph_encoder_forward.3} parent=0
    _
  %s14 = ssub.s32 1, %s12
  %s15 = scalar_select 0, %s14, %s12
  $region1: #{graph_encoder_forward.3} parent=0
    #allocation3 [shape = 'u8[32768]{0}', space=vmem, size = 0x8000, scoped, tag = 'output window, operand 0, single buffered']
    // Predicated region
    $region2: #{graph_encoder_forward.3} parent=1 // pred_check
      _
    $region3: #{graph_encoder_forward.3} parent=1 // pred_check_branch
      %17 = sbr.rel (0) target = $region5
    $region4: #{graph_encoder_forward.3} parent=1 // pred_region
      _
    $region5: #{graph_encoder_forward.3} parent=1 // pred_fallthru
      _
    // Predicated region
    $region6: #{graph_encoder_forward.3} parent=1 // pred_check
      _
    $region7: #{graph_encoder_forward.3} parent=1 // pred_check_branch
      %19 = sbr.rel (0) target = $region9
    $region8: #{graph_encoder_forward.3} parent=1 // pred_region
      _
    $region9: #{graph_encoder_forward.3} parent=1 // pred_fallthru
      _
    // Predicated region
    $region10: #{graph_encoder_forward.3} parent=1 // pred_check
      _
    $region11: #{graph_encoder_forward.3} parent=1 // pred_check_branch
      %21 = sbr.rel (0) target = $region13
    $region12: #{graph_encoder_forward.3} parent=1 // pred_region
      _
    $region13: #{graph_encoder_forward.3} parent=1 // pred_fallthru
      _
    // Predicated region
    $region14: #{graph_encoder_forward.3} parent=1 // pred_check
      _
    $region15: #{graph_encoder_forward.3} parent=1 // pred_check_branch
      %23 = sbr.rel (0) target = $region17
    $region16: #{graph_encoder_forward.3} parent=1 // pred_region
      _
    $region17: #{graph_encoder_forward.3} parent=1 // pred_fallthru
      _
    // Predicated region
    $region18: #{graph_encoder_forward.3} parent=1 // pred_check
      _
    $region19: #{graph_encoder_forward.3} parent=1 // pred_check_branch
      %25 = sbr.rel (0) target = $region21
    $region20: #{graph_encoder_forward.3} parent=1 // pred_region
      _
    $region21: #{graph_encoder_forward.3} parent=1 // pred_fallthru
      _
    // Predicated region
    $region22: #{graph_encoder_forward.3} parent=1 // pred_check
      _
    $region23: #{graph_encoder_forward.3} parent=1 // pred_check_branch
      %27 = sbr.rel (0) target = $region25
    $region24: #{graph_encoder_forward.3} parent=1 // pred_region
      _
    $region25: #{graph_encoder_forward.3} parent=1 // pred_fallthru
      _
    // Predicated region
    $region26: #{graph_encoder_forward.3} parent=1 // pred_check
      _
    $region27: #{graph_encoder_forward.3} parent=1 // pred_check_branch
      %29 = sbr.rel (0) target = $region29
    $region28: #{graph_encoder_forward.3} parent=1 // pred_region
      _
    $region29: #{graph_encoder_forward.3} parent=1 // pred_fallthru
      _
    // Predicated region
    $region30: #{graph_encoder_forward.3} parent=1 // pred_check
      _
    $region31: #{graph_encoder_forward.3} parent=1 // pred_check_branch
      %31 = sbr.rel (0) target = $region33
    $region32: #{graph_encoder_forward.3} parent=1 // pred_region
      _
    $region33: #{graph_encoder_forward.3} parent=1 // pred_fallthru
      _
    %p33 = scmp.eq.s32.totalorder 0, 0
    %p34 = scmp.gt.s32.totalorder 0, 0
    %s35 = smul.u32 0, 128
    %v36 = vld [vmem:[%s0] sm:$0xf]
    %v37 = vld [vmem:[%s0 + $0x4] sm:$0xf]
    %v38 = vld [vmem:[%s0 + $0x8] sm:$0xf]
    %v39 = vld [vmem:[%s0 + $0xc] sm:$0xf]
    %v40 = vld [vmem:[%s0 + $0x10] sm:$0xf]
    %v41 = vld [vmem:[%s0 + $0x14] sm:$0xf]
    %v42 = vld [vmem:[%s0 + $0x18] sm:$0xf]
    %v43 = vld [vmem:[%s0 + $0x1c] sm:$0xf]
    %v44 = vld [vmem:[%s0 + $0x20] sm:$0xf]
    %v45 = vld [vmem:[%s0 + $0x24] sm:$0xf]
    %v46 = vld [vmem:[%s0 + $0x28] sm:$0xf]
    %v47 = vld [vmem:[%s0 + $0x2c] sm:$0xf]
    %v48 = vld [vmem:[%s0 + $0x30] sm:$0xf]
    %v49 = vld [vmem:[%s0 + $0x34] sm:$0xf]
    %v50 = vld [vmem:[%s0 + $0x38] sm:$0xf]
    %v51 = vld [vmem:[%s0 + $0x3c] sm:$0xf]
    %v52 = vld [vmem:[%s1] sm:$0xf]
    %v53 = vld [vmem:[%s1 + $0xc] sm:$0xf]
    %v54 = vld [vmem:[%s1 + $0x18] sm:$0xf]
    %v55 = vld [vmem:[%s1 + $0x24] sm:$0xf]
    %v56 = vld [vmem:[%s1 + $0x30] sm:$0xf]
    %v57 = vld [vmem:[%s1 + $0x3c] sm:$0xf]
    %v58 = vld [vmem:[%s1 + $0x48] sm:$0xf]
    %v59 = vld [vmem:[%s1 + $0x54] sm:$0xf]
    %v60 = vld [vmem:[%s1 + $0x60] sm:$0xf]
    %v61 = vld [vmem:[%s1 + $0x6c] sm:$0xf]
    %v62 = vld [vmem:[%s1 + $0x78] sm:$0xf]
    %v63 = vld [vmem:[%s1 + $0x84] sm:$0xf]
    %v64 = vld [vmem:[%s1 + $0x90] sm:$0xf]
    %v65 = vld [vmem:[%s1 + $0x9c] sm:$0xf]
    %v66 = vld [vmem:[%s1 + $0xa8] sm:$0xf]
    %v67 = vld [vmem:[%s1 + $0xb4] sm:$0xf]
    %v68 = vunpack.c.l.bf16 %v52
    %v69 = vunpack.c.l.bf16 %v53
    %v70 = vunpack.c.l.bf16 %v54
    %v71 = vunpack.c.l.bf16 %v55
    %v72 = vunpack.c.l.bf16 %v56
    %v73 = vunpack.c.l.bf16 %v57
    %v74 = vunpack.c.l.bf16 %v58
    %v75 = vunpack.c.l.bf16 %v59
    %v76 = vunpack.c.l.bf16 %v60
    %v77 = vunpack.c.l.bf16 %v61
    %v78 = vunpack.c.l.bf16 %v62
    %v79 = vunpack.c.l.bf16 %v63
    %v80 = vunpack.c.l.bf16 %v64
    %v81 = vunpack.c.l.bf16 %v65
    %v82 = vunpack.c.l.bf16 %v66
    %v83 = vunpack.c.l.bf16 %v67
    %v84 = vld [vmem:[%s2] sm:$0x1]
    %v86 = vlaneseq
    %v87 = vshrl.u32 %v86, 7
    %v88 = vsub.s32 0, %v87
    %v89 = vrot.slane %v84, %v88
    %v91 = vmul.f32 %v68, %v89
    %v92 = vmul.f32 %v69, %v89
    %v93 = vmul.f32 %v70, %v89
    %v94 = vmul.f32 %v71, %v89
    %v95 = vmul.f32 %v72, %v89
    %v96 = vmul.f32 %v73, %v89
    %v97 = vmul.f32 %v74, %v89
    %v98 = vmul.f32 %v75, %v89
    %v99 = vmul.f32 %v76, %v89
    %v100 = vmul.f32 %v77, %v89
    %v101 = vmul.f32 %v78, %v89
    %v102 = vmul.f32 %v79, %v89
    %v103 = vmul.f32 %v80, %v89
    %v104 = vmul.f32 %v81, %v89
    %v105 = vmul.f32 %v82, %v89
    %v106 = vmul.f32 %v83, %v89
    %v107 = vld [vmem:[%s3] sm:$0x1]
    %v109 = vlaneseq
    %v110 = vshrl.u32 %v109, 7
    %v111 = vsub.s32 0, %v110
    %v112 = vrot.slane %v107, %v111
    %v114 = vadd.f32 %v91, %v112
    %v115 = vadd.f32 %v92, %v112
    %v116 = vadd.f32 %v93, %v112
    %v117 = vadd.f32 %v94, %v112
    %v118 = vadd.f32 %v95, %v112
    %v119 = vadd.f32 %v96, %v112
    %v120 = vadd.f32 %v97, %v112
    %v121 = vadd.f32 %v98, %v112
    %v122 = vadd.f32 %v99, %v112
    %v123 = vadd.f32 %v100, %v112
    %v124 = vadd.f32 %v101, %v112
    %v125 = vadd.f32 %v102, %v112
    %v126 = vadd.f32 %v103, %v112
    %v127 = vadd.f32 %v104, %v112
    %v128 = vadd.f32 %v105, %v112
    %v129 = vadd.f32 %v106, %v112
    %v130 = vpack.c.bf16 %v115, %v114
    %v131 = vpack.c.bf16 %v117, %v116
    %v132 = vpack.c.bf16 %v119, %v118
    %v133 = vpack.c.bf16 %v121, %v120
    %v134 = vpack.c.bf16 %v123, %v122
    %v135 = vpack.c.bf16 %v125, %v124
    %v136 = vpack.c.bf16 %v127, %v126
    %v137 = vpack.c.bf16 %v129, %v128
    %v154 = vunpack.c.l.b16 %v36
    %v155 = vunpack.c.l.b16 %v37
    %v156 = vunpack.c.l.b16 %v38
    %v157 = vunpack.c.l.b16 %v39
    %v158 = vunpack.c.l.b16 %v40
    %v159 = vunpack.c.l.b16 %v41
    %v160 = vunpack.c.l.b16 %v42
    %v161 = vunpack.c.l.b16 %v43
    %v162 = vunpack.c.l.b16 %v44
    %v163 = vunpack.c.l.b16 %v45
    %v164 = vunpack.c.l.b16 %v46
    %v165 = vunpack.c.l.b16 %v47
    %v166 = vunpack.c.l.b16 %v48
    %v167 = vunpack.c.l.b16 %v49
    %v168 = vunpack.c.l.b16 %v50
    %v169 = vunpack.c.l.b16 %v51
    %v170 = vpack.c.b16 %v155, %v154
    %v171 = vpack.c.b16 %v157, %v156
    %v172 = vpack.c.b16 %v159, %v158
    %v173 = vpack.c.b16 %v161, %v160
    %v174 = vpack.c.b16 %v163, %v162
    %v175 = vpack.c.b16 %v165, %v164
    %v176 = vpack.c.b16 %v167, %v166
    %v177 = vpack.c.b16 %v169, %v168
    %186 = vmatprep.subr.bf16.mxu0 0
    %187 = vmatpush1.bf16.msra.mxu0 %v130
    %188 = vmatprep.subr.bf16.mxu0 0
    %189 = vmatpush1.bf16.msra.mxu0 %v131
    %190 = vmatprep.subr.bf16.mxu0 0
    %191 = vmatpush1.bf16.msra.mxu0 %v132
    %192 = vmatprep.subr.bf16.mxu0 0
    %193 = vmatpush1.bf16.msra.mxu0 %v133
    %194 = vmatprep.subr.bf16.mxu0 0
    %195 = vmatpush1.bf16.msra.mxu0 %v134
    %196 = vmatprep.subr.bf16.mxu0 0
    %197 = vmatpush1.bf16.msra.mxu0 %v135
    %198 = vmatprep.subr.bf16.mxu0 0
    %199 = vmatpush1.bf16.msra.mxu0 %v136
    %200 = vmatprep.subr.bf16.mxu0 0
    %201 = vmatpush1.bf16.msra.mxu0 %v137
    %202 = vmatprep.subr.bf16.mxu0 0
    %203 = vmatpush1.bf16.msra.mxu0 0
    %204 = vmatprep.subr.bf16.mxu0 0
    %205 = vmatpush1.bf16.msra.mxu0 0
    %206 = vmatprep.subr.bf16.mxu0 0
    %207 = vmatpush1.bf16.msra.mxu0 0
    %208 = vmatprep.subr.bf16.mxu0 0
    %209 = vmatpush1.bf16.msra.mxu0 0
    %210 = vmatprep.subr.bf16.mxu0 0
    %211 = vmatpush1.bf16.msra.mxu0 0
    %212 = vmatprep.subr.bf16.mxu0 0
    %213 = vmatpush1.bf16.msra.mxu0 0
    %214 = vmatprep.subr.bf16.mxu0 0
    %215 = vmatpush1.bf16.msra.mxu0 0
    %216 = vmatprep.subr.bf16.mxu0 0
    %217 = vmatpush1.bf16.msra.mxu0 0
    %218 = vmatprep.mubr.bf16.mxu0 0
    %219 = vmatmul.mubr.bf16.gmra.mrb[0].mxu0 %v170
    %v220 = vpop.f32.mrb[0].mxu0
    %v221 = vadd.f32 0.0, %v220
    %v222 = vpop.f32.mrb[0].mxu0
    %v223 = vpop.f32.mrb[0].mxu0
    %v224 = vadd.f32 0.0, %v223
    %v225 = vpop.f32.mrb[0].mxu0
    %226 = vmatprep.mubr.bf16.mxu0 0
    %227 = vmatmul.mubr.bf16.gmra.mrb[0].mxu0 %v171
    %v228 = vpop.f32.mrb[0].mxu0
    %v229 = vadd.f32 0.0, %v228
    %v230 = vpop.f32.mrb[0].mxu0
    %v231 = vpop.f32.mrb[0].mxu0
    %v232 = vadd.f32 0.0, %v231
    %v233 = vpop.f32.mrb[0].mxu0
    %234 = vmatprep.mubr.bf16.mxu0 0
    %235 = vmatmul.mubr.bf16.gmra.mrb[0].mxu0 %v172
    %v236 = vpop.f32.mrb[0].mxu0
    %v237 = vadd.f32 0.0, %v236
    %v238 = vpop.f32.mrb[0].mxu0
    %v239 = vpop.f32.mrb[0].mxu0
    %v240 = vadd.f32 0.0, %v239
    %v241 = vpop.f32.mrb[0].mxu0
    %242 = vmatprep.mubr.bf16.mxu0 0
    %243 = vmatmul.mubr.bf16.gmra.mrb[0].mxu0 %v173
    %v244 = vpop.f32.mrb[0].mxu0
    %v245 = vadd.f32 0.0, %v244
    %v246 = vpop.f32.mrb[0].mxu0
    %v247 = vpop.f32.mrb[0].mxu0
    %v248 = vadd.f32 0.0, %v247
    %v249 = vpop.f32.mrb[0].mxu0
    %250 = vmatprep.mubr.bf16.mxu0 0
    %251 = vmatmul.mubr.bf16.gmra.mrb[0].mxu0 %v174
    %v252 = vpop.f32.mrb[0].mxu0
    %v253 = vadd.f32 0.0, %v252
    %v254 = vpop.f32.mrb[0].mxu0
    %v255 = vpop.f32.mrb[0].mxu0
    %v256 = vadd.f32 0.0, %v255
    %v257 = vpop.f32.mrb[0].mxu0
    %258 = vmatprep.mubr.bf16.mxu0 0
    %259 = vmatmul.mubr.bf16.gmra.mrb[0].mxu0 %v175
    %v260 = vpop.f32.mrb[0].mxu0
    %v261 = vadd.f32 0.0, %v260
    %v262 = vpop.f32.mrb[0].mxu0
    %v263 = vpop.f32.mrb[0].mxu0
    %v264 = vadd.f32 0.0, %v263
    %v265 = vpop.f32.mrb[0].mxu0
    %266 = vmatprep.mubr.bf16.mxu0 0
    %267 = vmatmul.mubr.bf16.gmra.mrb[0].mxu0 %v176
    %v268 = vpop.f32.mrb[0].mxu0
    %v269 = vadd.f32 0.0, %v268
    %v270 = vpop.f32.mrb[0].mxu0
    %v271 = vpop.f32.mrb[0].mxu0
    %v272 = vadd.f32 0.0, %v271
    %v273 = vpop.f32.mrb[0].mxu0
    %274 = vmatprep.mubr.bf16.mxu0 0
    %275 = vmatmul.mubr.bf16.gmra.mrb[0].mxu0 %v177
    %v276 = vpop.f32.mrb[0].mxu0
    %v277 = vadd.f32 0.0, %v276
    %v278 = vpop.f32.mrb[0].mxu0
    %v279 = vpop.f32.mrb[0].mxu0
    %v280 = vadd.f32 0.0, %v279
    %v281 = vpop.f32.mrb[0].mxu0
    %282 = vdwg.mxu0
    // Predicated region
    $region34: #{graph_encoder_forward.3} parent=1 // pred_check
      %p283 = pneg %p33
    $region35: #{graph_encoder_forward.3} parent=1 // pred_check_branch
      %285 = sbr.rel (%p283) target = $region37
    $region36: #{graph_encoder_forward.3} parent=1 // pred_region
      %286 = vst [vmem:[#allocation2] sm:$0xff] %v221
      %287 = vst [vmem:[#allocation2 + $0x18] sm:$0xff] %v224
      %288 = vst [vmem:[#allocation2 + $0x30] sm:$0xff] %v229
      %289 = vst [vmem:[#allocation2 + $0x48] sm:$0xff] %v232
      %290 = vst [vmem:[#allocation2 + $0x60] sm:$0xff] %v237
      %291 = vst [vmem:[#allocation2 + $0x78] sm:$0xff] %v240
      %292 = vst [vmem:[#allocation2 + $0x90] sm:$0xff] %v245
      %293 = vst [vmem:[#allocation2 + $0xa8] sm:$0xff] %v248
      %294 = vst [vmem:[#allocation2 + $0xc0] sm:$0xff] %v253
      %295 = vst [vmem:[#allocation2 + $0xd8] sm:$0xff] %v256
      %296 = vst [vmem:[#allocation2 + $0xf0] sm:$0xff] %v261
      %297 = vst [vmem:[#allocation2 + $0x108] sm:$0xff] %v264
      %298 = vst [vmem:[#allocation2 + $0x120] sm:$0xff] %v269
      %299 = vst [vmem:[#allocation2 + $0x138] sm:$0xff] %v272
      %300 = vst [vmem:[#allocation2 + $0x150] sm:$0xff] %v277
      %301 = vst [vmem:[#allocation2 + $0x168] sm:$0xff] %v280
    $region37: #{graph_encoder_forward.3} parent=1 // pred_fallthru
      _
    // Predicated region
    $region38: #{graph_encoder_forward.3} parent=1 // pred_check
      %p302 = pneg %p34
    $region39: #{graph_encoder_forward.3} parent=1 // pred_check_branch
      %304 = sbr.rel (%p302) target = $region41
    $region40: #{graph_encoder_forward.3} parent=1 // pred_region
      %v305 = vld [vmem:[#allocation2] sm:$0xff]
      %v306 = vld [vmem:[#allocation2 + $0x18] sm:$0xff]
      %v307 = vld [vmem:[#allocation2 + $0x30] sm:$0xff]
      %v308 = vld [vmem:[#allocation2 + $0x48] sm:$0xff]
      %v309 = vld [vmem:[#allocation2 + $0x60] sm:$0xff]
      %v310 = vld [vmem:[#allocation2 + $0x78] sm:$0xff]
      %v311 = vld [vmem:[#allocation2 + $0x90] sm:$0xff]
      %v312 = vld [vmem:[#allocation2 + $0xa8] sm:$0xff]
      %v313 = vld [vmem:[#allocation2 + $0xc0] sm:$0xff]
      %v314 = vld [vmem:[#allocation2 + $0xd8] sm:$0xff]
      %v315 = vld [vmem:[#allocation2 + $0xf0] sm:$0xff]
      %v316 = vld [vmem:[#allocation2 + $0x108] sm:$0xff]
      %v317 = vld [vmem:[#allocation2 + $0x120] sm:$0xff]
      %v318 = vld [vmem:[#allocation2 + $0x138] sm:$0xff]
      %v319 = vld [vmem:[#allocation2 + $0x150] sm:$0xff]
      %v320 = vld [vmem:[#allocation2 + $0x168] sm:$0xff]
      %v321 = vadd.f32 %v305, %v221
      %v322 = vadd.f32 %v306, %v224
      %v323 = vadd.f32 %v307, %v229
      %v324 = vadd.f32 %v308, %v232
      %v325 = vadd.f32 %v309, %v237
      %v326 = vadd.f32 %v310, %v240
      %v327 = vadd.f32 %v311, %v245
      %v328 = vadd.f32 %v312, %v248
      %v329 = vadd.f32 %v313, %v253
      %v330 = vadd.f32 %v314, %v256
      %v331 = vadd.f32 %v315, %v261
      %v332 = vadd.f32 %v316, %v264
      %v333 = vadd.f32 %v317, %v269
      %v334 = vadd.f32 %v318, %v272
      %v335 = vadd.f32 %v319, %v277
      %v336 = vadd.f32 %v320, %v280
      %337 = vst [vmem:[#allocation2] sm:$0xff] %v321
      %338 = vst [vmem:[#allocation2 + $0x18] sm:$0xff] %v322
      %339 = vst [vmem:[#allocation2 + $0x30] sm:$0xff] %v323
      %340 = vst [vmem:[#allocation2 + $0x48] sm:$0xff] %v324
      %341 = vst [vmem:[#allocation2 + $0x60] sm:$0xff] %v325
      %342 = vst [vmem:[#allocation2 + $0x78] sm:$0xff] %v326
      %343 = vst [vmem:[#allocation2 + $0x90] sm:$0xff] %v327
      %344 = vst [vmem:[#allocation2 + $0xa8] sm:$0xff] %v328
      %345 = vst [vmem:[#allocation2 + $0xc0] sm:$0xff] %v329
      %346 = vst [vmem:[#allocation2 + $0xd8] sm:$0xff] %v330
      %347 = vst [vmem:[#allocation2 + $0xf0] sm:$0xff] %v331
      %348 = vst [vmem:[#allocation2 + $0x108] sm:$0xff] %v332
      %349 = vst [vmem:[#allocation2 + $0x120] sm:$0xff] %v333
      %350 = vst [vmem:[#allocation2 + $0x138] sm:$0xff] %v334
      %351 = vst [vmem:[#allocation2 + $0x150] sm:$0xff] %v335
      %352 = vst [vmem:[#allocation2 + $0x168] sm:$0xff] %v336
    $region41: #{graph_encoder_forward.3} parent=1 // pred_fallthru
      _
    %v353 = vmul.f32 %v114, %v114
    %v354 = vmul.f32 %v115, %v115
    %v355 = vmul.f32 %v116, %v116
    %v356 = vmul.f32 %v117, %v117
    %v357 = vmul.f32 %v118, %v118
    %v358 = vmul.f32 %v119, %v119
    %v359 = vmul.f32 %v120, %v120
    %v360 = vmul.f32 %v121, %v121
    %v361 = vmul.f32 %v122, %v122
    %v362 = vmul.f32 %v123, %v123
    %v363 = vmul.f32 %v124, %v124
    %v364 = vmul.f32 %v125, %v125
    %v365 = vmul.f32 %v126, %v126
    %v366 = vmul.f32 %v127, %v127
    %v367 = vmul.f32 %v128, %v128
    %v368 = vmul.f32 %v129, %v129
    %v369 = vpack.c.bf16 %v354, %v353
    %v370 = vpack.c.bf16 %v356, %v355
    %v371 = vpack.c.bf16 %v358, %v357
    %v372 = vpack.c.bf16 %v360, %v359
    %v373 = vpack.c.bf16 %v362, %v361
    %v374 = vpack.c.bf16 %v364, %v363
    %v375 = vpack.c.bf16 %v366, %v365
    %v376 = vpack.c.bf16 %v368, %v367
    %377 = vmatprep.subr.bf16.mxu0 0
    %378 = vmatpush1.bf16.msra.mxu0 %v369
    %379 = vmatprep.subr.bf16.mxu0 0
    %380 = vmatpush1.bf16.msra.mxu0 %v370
    %381 = vmatprep.subr.bf16.mxu0 0
    %382 = vmatpush1.bf16.msra.mxu0 %v371
    %383 = vmatprep.subr.bf16.mxu0 0
    %384 = vmatpush1.bf16.msra.mxu0 %v372
    %385 = vmatprep.subr.bf16.mxu0 0
    %386 = vmatpush1.bf16.msra.mxu0 %v373
    %387 = vmatprep.subr.bf16.mxu0 0
    %388 = vmatpush1.bf16.msra.mxu0 %v374
    %389 = vmatprep.subr.bf16.mxu0 0
    %390 = vmatpush1.bf16.msra.mxu0 %v375
    %391 = vmatprep.subr.bf16.mxu0 0
    %392 = vmatpush1.bf16.msra.mxu0 %v376
    %393 = vmatprep.subr.bf16.mxu0 0
    %394 = vmatpush1.bf16.msra.mxu0 0
    %395 = vmatprep.subr.bf16.mxu0 0
    %396 = vmatpush1.bf16.msra.mxu0 0
    %397 = vmatprep.subr.bf16.mxu0 0
    %398 = vmatpush1.bf16.msra.mxu0 0
    %399 = vmatprep.subr.bf16.mxu0 0
    %400 = vmatpush1.bf16.msra.mxu0 0
    %401 = vmatprep.subr.bf16.mxu0 0
    %402 = vmatpush1.bf16.msra.mxu0 0
    %403 = vmatprep.subr.bf16.mxu0 0
    %404 = vmatpush1.bf16.msra.mxu0 0
    %405 = vmatprep.subr.bf16.mxu0 0
    %406 = vmatpush1.bf16.msra.mxu0 0
    %407 = vmatprep.subr.bf16.mxu0 0
    %408 = vmatpush1.bf16.msra.mxu0 0
    %409 = vmatprep.mubr.bf16.mxu0 0
    %410 = vmatmul.mubr.bf16.gmra.mrb[0].mxu0 %v170
    %v411 = vpop.f32.mrb[0].mxu0
    %v412 = vadd.f32 0.0, %v411
    %v413 = vpop.f32.mrb[0].mxu0
    %v414 = vpop.f32.mrb[0].mxu0
    %v415 = vadd.f32 0.0, %v414
    %v416 = vpop.f32.mrb[0].mxu0
    %417 = vmatprep.mubr.bf16.mxu0 0
    %418 = vmatmul.mubr.bf16.gmra.mrb[0].mxu0 %v171
    %v419 = vpop.f32.mrb[0].mxu0
    %v420 = vadd.f32 0.0, %v419
    %v421 = vpop.f32.mrb[0].mxu0
    %v422 = vpop.f32.mrb[0].mxu0
    %v423 = vadd.f32 0.0, %v422
    %v424 = vpop.f32.mrb[0].mxu0
    %425 = vmatprep.mubr.bf16.mxu0 0
    %426 = vmatmul.mubr.bf16.gmra.mrb[0].mxu0 %v172
    %v427 = vpop.f32.mrb[0].mxu0
    %v428 = vadd.f32 0.0, %v427
    %v429 = vpop.f32.mrb[0].mxu0
    %v430 = vpop.f32.mrb[0].mxu0
    %v431 = vadd.f32 0.0, %v430
    %v432 = vpop.f32.mrb[0].mxu0
    %433 = vmatprep.mubr.bf16.mxu0 0
    %434 = vmatmul.mubr.bf16.gmra.mrb[0].mxu0 %v173
    %v435 = vpop.f32.mrb[0].mxu0
    %v436 = vadd.f32 0.0, %v435
    %v437 = vpop.f32.mrb[0].mxu0
    %v438 = vpop.f32.mrb[0].mxu0
    %v439 = vadd.f32 0.0, %v438
    %v440 = vpop.f32.mrb[0].mxu0
    %441 = vmatprep.mubr.bf16.mxu0 0
    %442 = vmatmul.mubr.bf16.gmra.mrb[0].mxu0 %v174
    %v443 = vpop.f32.mrb[0].mxu0
    %v444 = vadd.f32 0.0, %v443
    %v445 = vpop.f32.mrb[0].mxu0
    %v446 = vpop.f32.mrb[0].mxu0
    %v447 = vadd.f32 0.0, %v446
    %v448 = vpop.f32.mrb[0].mxu0
    %449 = vmatprep.mubr.bf16.mxu0 0
    %450 = vmatmul.mubr.bf16.gmra.mrb[0].mxu0 %v175
    %v451 = vpop.f32.mrb[0].mxu0
    %v452 = vadd.f32 0.0, %v451
    %v453 = vpop.f32.mrb[0].mxu0
    %v454 = vpop.f32.mrb[0].mxu0
    %v455 = vadd.f32 0.0, %v454
    %v456 = vpop.f32.mrb[0].mxu0
    %457 = vmatprep.mubr.bf16.mxu0 0
    %458 = vmatmul.mubr.bf16.gmra.mrb[0].mxu0 %v176
    %v459 = vpop.f32.mrb[0].mxu0
    %v460 = vadd.f32 0.0, %v459
    %v461 = vpop.f32.mrb[0].mxu0
    %v462 = vpop.f32.mrb[0].mxu0
    %v463 = vadd.f32 0.0, %v462
    %v464 = vpop.f32.mrb[0].mxu0
    %465 = vmatprep.mubr.bf16.mxu0 0
    %466 = vmatmul.mubr.bf16.gmra.mrb[0].mxu0 %v177
    %v467 = vpop.f32.mrb[0].mxu0
    %v468 = vadd.f32 0.0, %v467
    %v469 = vpop.f32.mrb[0].mxu0
    %v470 = vpop.f32.mrb[0].mxu0
    %v471 = vadd.f32 0.0, %v470
    %v472 = vpop.f32.mrb[0].mxu0
    %473 = vdwg.mxu0
    // Predicated region
    $region42: #{graph_encoder_forward.3} parent=1 // pred_check
      %p474 = pneg %p33
    $region43: #{graph_encoder_forward.3} parent=1 // pred_check_branch
      %476 = sbr.rel (%p474) target = $region45
    $region44: #{graph_encoder_forward.3} parent=1 // pred_region
      %477 = vst [vmem:[#allocation2 + $0x8] sm:$0xff] %v412
      %478 = vst [vmem:[#allocation2 + $0x20] sm:$0xff] %v415
      %479 = vst [vmem:[#allocation2 + $0x38] sm:$0xff] %v420
      %480 = vst [vmem:[#allocation2 + $0x50] sm:$0xff] %v423
      %481 = vst [vmem:[#allocation2 + $0x68] sm:$0xff] %v428
      %482 = vst [vmem:[#allocation2 + $0x80] sm:$0xff] %v431
      %483 = vst [vmem:[#allocation2 + $0x98] sm:$0xff] %v436
      %484 = vst [vmem:[#allocation2 + $0xb0] sm:$0xff] %v439
      %485 = vst [vmem:[#allocation2 + $0xc8] sm:$0xff] %v444
      %486 = vst [vmem:[#allocation2 + $0xe0] sm:$0xff] %v447
      %487 = vst [vmem:[#allocation2 + $0xf8] sm:$0xff] %v452
      %488 = vst [vmem:[#allocation2 + $0x110] sm:$0xff] %v455
      %489 = vst [vmem:[#allocation2 + $0x128] sm:$0xff] %v460
      %490 = vst [vmem:[#allocation2 + $0x140] sm:$0xff] %v463
      %491 = vst [vmem:[#allocation2 + $0x158] sm:$0xff] %v468
      %492 = vst [vmem:[#allocation2 + $0x170] sm:$0xff] %v471
    $region45: #{graph_encoder_forward.3} parent=1 // pred_fallthru
      _
    // Predicated region
    $region46: #{graph_encoder_forward.3} parent=1 // pred_check
      %p493 = pneg %p34
    $region47: #{graph_encoder_forward.3} parent=1 // pred_check_branch
      %495 = sbr.rel (%p493) target = $region49
    $region48: #{graph_encoder_forward.3} parent=1 // pred_region
      %v496 = vld [vmem:[#allocation2 + $0x8] sm:$0xff]
      %v497 = vld [vmem:[#allocation2 + $0x20] sm:$0xff]
      %v498 = vld [vmem:[#allocation2 + $0x38] sm:$0xff]
      %v499 = vld [vmem:[#allocation2 + $0x50] sm:$0xff]
      %v500 = vld [vmem:[#allocation2 + $0x68] sm:$0xff]
      %v501 = vld [vmem:[#allocation2 + $0x80] sm:$0xff]
      %v502 = vld [vmem:[#allocation2 + $0x98] sm:$0xff]
      %v503 = vld [vmem:[#allocation2 + $0xb0] sm:$0xff]
      %v504 = vld [vmem:[#allocation2 + $0xc8] sm:$0xff]
      %v505 = vld [vmem:[#allocation2 + $0xe0] sm:$0xff]
      %v506 = vld [vmem:[#allocation2 + $0xf8] sm:$0xff]
      %v507 = vld [vmem:[#allocation2 + $0x110] sm:$0xff]
      %v508 = vld [vmem:[#allocation2 + $0x128] sm:$0xff]
      %v509 = vld [vmem:[#allocation2 + $0x140] sm:$0xff]
      %v510 = vld [vmem:[#allocation2 + $0x158] sm:$0xff]
      %v511 = vld [vmem:[#allocation2 + $0x170] sm:$0xff]
      %v512 = vadd.f32 %v496, %v412
      %v513 = vadd.f32 %v497, %v415
      %v514 = vadd.f32 %v498, %v420
      %v515 = vadd.f32 %v499, %v423
      %v516 = vadd.f32 %v500, %v428
      %v517 = vadd.f32 %v501, %v431
      %v518 = vadd.f32 %v502, %v436
      %v519 = vadd.f32 %v503, %v439
      %v520 = vadd.f32 %v504, %v444
      %v521 = vadd.f32 %v505, %v447
      %v522 = vadd.f32 %v506, %v452
      %v523 = vadd.f32 %v507, %v455
      %v524 = vadd.f32 %v508, %v460
      %v525 = vadd.f32 %v509, %v463
      %v526 = vadd.f32 %v510, %v468
      %v527 = vadd.f32 %v511, %v471
      %528 = vst [vmem:[#allocation2 + $0x8] sm:$0xff] %v512
      %529 = vst [vmem:[#allocation2 + $0x20] sm:$0xff] %v513
      %530 = vst [vmem:[#allocation2 + $0x38] sm:$0xff] %v514
      %531 = vst [vmem:[#allocation2 + $0x50] sm:$0xff] %v515
      %532 = vst [vmem:[#allocation2 + $0x68] sm:$0xff] %v516
      %533 = vst [vmem:[#allocation2 + $0x80] sm:$0xff] %v517
      %534 = vst [vmem:[#allocation2 + $0x98] sm:$0xff] %v518
      %535 = vst [vmem:[#allocation2 + $0xb0] sm:$0xff] %v519
      %536 = vst [vmem:[#allocation2 + $0xc8] sm:$0xff] %v520
      %537 = vst [vmem:[#allocation2 + $0xe0] sm:$0xff] %v521
      %538 = vst [vmem:[#allocation2 + $0xf8] sm:$0xff] %v522
      %539 = vst [vmem:[#allocation2 + $0x110] sm:$0xff] %v523
      %540 = vst [vmem:[#allocation2 + $0x128] sm:$0xff] %v524
      %541 = vst [vmem:[#allocation2 + $0x140] sm:$0xff] %v525
      %542 = vst [vmem:[#allocation2 + $0x158] sm:$0xff] %v526
      %543 = vst [vmem:[#allocation2 + $0x170] sm:$0xff] %v527
    $region49: #{graph_encoder_forward.3} parent=1 // pred_fallthru
      _
    %v544 = vmul.f32 %v353, %v114
    %v545 = vmul.f32 %v354, %v115
    %v546 = vmul.f32 %v355, %v116
    %v547 = vmul.f32 %v356, %v117
    %v548 = vmul.f32 %v357, %v118
    %v549 = vmul.f32 %v358, %v119
    %v550 = vmul.f32 %v359, %v120
    %v551 = vmul.f32 %v360, %v121
    %v552 = vmul.f32 %v361, %v122
    %v553 = vmul.f32 %v362, %v123
    %v554 = vmul.f32 %v363, %v124
    %v555 = vmul.f32 %v364, %v125
    %v556 = vmul.f32 %v365, %v126
    %v557 = vmul.f32 %v366, %v127
    %v558 = vmul.f32 %v367, %v128
    %v559 = vmul.f32 %v368, %v129
    %v560 = vpack.c.bf16 %v545, %v544
    %v561 = vpack.c.bf16 %v547, %v546
    %v562 = vpack.c.bf16 %v549, %v548
    %v563 = vpack.c.bf16 %v551, %v550
    %v564 = vpack.c.bf16 %v553, %v552
    %v565 = vpack.c.bf16 %v555, %v554
    %v566 = vpack.c.bf16 %v557, %v556
    %v567 = vpack.c.bf16 %v559, %v558
    %568 = vmatprep.subr.bf16.mxu0 0
    %569 = vmatpush1.bf16.msra.mxu0 %v560
    %570 = vmatprep.subr.bf16.mxu0 0
    %571 = vmatpush1.bf16.msra.mxu0 %v561
    %572 = vmatprep.subr.bf16.mxu0 0
    %573 = vmatpush1.bf16.msra.mxu0 %v562
    %574 = vmatprep.subr.bf16.mxu0 0
    %575 = vmatpush1.bf16.msra.mxu0 %v563
    %576 = vmatprep.subr.bf16.mxu0 0
    %577 = vmatpush1.bf16.msra.mxu0 %v564
    %578 = vmatprep.subr.bf16.mxu0 0
    %579 = vmatpush1.bf16.msra.mxu0 %v565
    %580 = vmatprep.subr.bf16.mxu0 0
    %581 = vmatpush1.bf16.msra.mxu0 %v566
    %582 = vmatprep.subr.bf16.mxu0 0
    %583 = vmatpush1.bf16.msra.mxu0 %v567
    %584 = vmatprep.subr.bf16.mxu0 0
    %585 = vmatpush1.bf16.msra.mxu0 0
    %586 = vmatprep.subr.bf16.mxu0 0
    %587 = vmatpush1.bf16.msra.mxu0 0
    %588 = vmatprep.subr.bf16.mxu0 0
    %589 = vmatpush1.bf16.msra.mxu0 0
    %590 = vmatprep.subr.bf16.mxu0 0
    %591 = vmatpush1.bf16.msra.mxu0 0
    %592 = vmatprep.subr.bf16.mxu0 0
    %593 = vmatpush1.bf16.msra.mxu0 0
    %594 = vmatprep.subr.bf16.mxu0 0
    %595 = vmatpush1.bf16.msra.mxu0 0
    %596 = vmatprep.subr.bf16.mxu0 0
    %597 = vmatpush1.bf16.msra.mxu0 0
    %598 = vmatprep.subr.bf16.mxu0 0
    %599 = vmatpush1.bf16.msra.mxu0 0
    %600 = vmatprep.mubr.bf16.mxu0 0
    %601 = vmatmul.mubr.bf16.gmra.mrb[0].mxu0 %v170
    %v602 = vpop.f32.mrb[0].mxu0
    %v603 = vadd.f32 0.0, %v602
    %v604 = vpop.f32.mrb[0].mxu0
    %v605 = vpop.f32.mrb[0].mxu0
    %v606 = vadd.f32 0.0, %v605
    %v607 = vpop.f32.mrb[0].mxu0
    %608 = vmatprep.mubr.bf16.mxu0 0
    %609 = vmatmul.mubr.bf16.gmra.mrb[0].mxu0 %v171
    %v610 = vpop.f32.mrb[0].mxu0
    %v611 = vadd.f32 0.0, %v610
    %v612 = vpop.f32.mrb[0].mxu0
    %v613 = vpop.f32.mrb[0].mxu0
    %v614 = vadd.f32 0.0, %v613
    %v615 = vpop.f32.mrb[0].mxu0
    %616 = vmatprep.mubr.bf16.mxu0 0
    %617 = vmatmul.mubr.bf16.gmra.mrb[0].mxu0 %v172
    %v618 = vpop.f32.mrb[0].mxu0
    %v619 = vadd.f32 0.0, %v618
    %v620 = vpop.f32.mrb[0].mxu0
    %v621 = vpop.f32.mrb[0].mxu0
    %v622 = vadd.f32 0.0, %v621
    %v623 = vpop.f32.mrb[0].mxu0
    %624 = vmatprep.mubr.bf16.mxu0 0
    %625 = vmatmul.mubr.bf16.gmra.mrb[0].mxu0 %v173
    %v626 = vpop.f32.mrb[0].mxu0
    %v627 = vadd.f32 0.0, %v626
    %v628 = vpop.f32.mrb[0].mxu0
    %v629 = vpop.f32.mrb[0].mxu0
    %v630 = vadd.f32 0.0, %v629
    %v631 = vpop.f32.mrb[0].mxu0
    %632 = vmatprep.mubr.bf16.mxu0 0
    %633 = vmatmul.mubr.bf16.gmra.mrb[0].mxu0 %v174
    %v634 = vpop.f32.mrb[0].mxu0
    %v635 = vadd.f32 0.0, %v634
    %v636 = vpop.f32.mrb[0].mxu0
    %v637 = vpop.f32.mrb[0].mxu0
    %v638 = vadd.f32 0.0, %v637
    %v639 = vpop.f32.mrb[0].mxu0
    %640 = vmatprep.mubr.bf16.mxu0 0
    %641 = vmatmul.mubr.bf16.gmra.mrb[0].mxu0 %v175
    %v642 = vpop.f32.mrb[0].mxu0
    %v643 = vadd.f32 0.0, %v642
    %v644 = vpop.f32.mrb[0].mxu0
    %v645 = vpop.f32.mrb[0].mxu0
    %v646 = vadd.f32 0.0, %v645
    %v647 = vpop.f32.mrb[0].mxu0
    %648 = vmatprep.mubr.bf16.mxu0 0
    %649 = vmatmul.mubr.bf16.gmra.mrb[0].mxu0 %v176
    %v650 = vpop.f32.mrb[0].mxu0
    %v651 = vadd.f32 0.0, %v650
    %v652 = vpop.f32.mrb[0].mxu0
    %v653 = vpop.f32.mrb[0].mxu0
    %v654 = vadd.f32 0.0, %v653
    %v655 = vpop.f32.mrb[0].mxu0
    %656 = vmatprep.mubr.bf16.mxu0 0
    %657 = vmatmul.mubr.bf16.gmra.mrb[0].mxu0 %v177
    %v658 = vpop.f32.mrb[0].mxu0
    %v659 = vadd.f32 0.0, %v658
    %v660 = vpop.f32.mrb[0].mxu0
    %v661 = vpop.f32.mrb[0].mxu0
    %v662 = vadd.f32 0.0, %v661
    %v663 = vpop.f32.mrb[0].mxu0
    %664 = vdwg.mxu0
    // Predicated region
    $region50: #{graph_encoder_forward.3} parent=1 // pred_check
      %p665 = pneg %p33
    $region51: #{graph_encoder_forward.3} parent=1 // pred_check_branch
      %667 = sbr.rel (%p665) target = $region53
    $region52: #{graph_encoder_forward.3} parent=1 // pred_region
      %668 = vst [vmem:[#allocation2 + $0x10] sm:$0xff] %v603
      %669 = vst [vmem:[#allocation2 + $0x28] sm:$0xff] %v606
      %670 = vst [vmem:[#allocation2 + $0x40] sm:$0xff] %v611
      %671 = vst [vmem:[#allocation2 + $0x58] sm:$0xff] %v614
      %672 = vst [vmem:[#allocation2 + $0x70] sm:$0xff] %v619
      %673 = vst [vmem:[#allocation2 + $0x88] sm:$0xff] %v622
      %674 = vst [vmem:[#allocation2 + $0xa0] sm:$0xff] %v627
      %675 = vst [vmem:[#allocation2 + $0xb8] sm:$0xff] %v630
      %676 = vst [vmem:[#allocation2 + $0xd0] sm:$0xff] %v635
      %677 = vst [vmem:[#allocation2 + $0xe8] sm:$0xff] %v638
      %678 = vst [vmem:[#allocation2 + $0x100] sm:$0xff] %v643
      %679 = vst [vmem:[#allocation2 + $0x118] sm:$0xff] %v646
      %680 = vst [vmem:[#allocation2 + $0x130] sm:$0xff] %v651
      %681 = vst [vmem:[#allocation2 + $0x148] sm:$0xff] %v654
      %682 = vst [vmem:[#allocation2 + $0x160] sm:$0xff] %v659
      %683 = vst [vmem:[#allocation2 + $0x178] sm:$0xff] %v662
    $region53: #{graph_encoder_forward.3} parent=1 // pred_fallthru
      _
    // Predicated region
    $region54: #{graph_encoder_forward.3} parent=1 // pred_check
      %p684 = pneg %p34
    $region55: #{graph_encoder_forward.3} parent=1 // pred_check_branch
      %686 = sbr.rel (%p684) target = $region57
    $region56: #{graph_encoder_forward.3} parent=1 // pred_region
      %v687 = vld [vmem:[#allocation2 + $0x10] sm:$0xff]
      %v688 = vld [vmem:[#allocation2 + $0x28] sm:$0xff]
      %v689 = vld [vmem:[#allocation2 + $0x40] sm:$0xff]
      %v690 = vld [vmem:[#allocation2 + $0x58] sm:$0xff]
      %v691 = vld [vmem:[#allocation2 + $0x70] sm:$0xff]
      %v692 = vld [vmem:[#allocation2 + $0x88] sm:$0xff]
      %v693 = vld [vmem:[#allocation2 + $0xa0] sm:$0xff]
      %v694 = vld [vmem:[#allocation2 + $0xb8] sm:$0xff]
      %v695 = vld [vmem:[#allocation2 + $0xd0] sm:$0xff]
      %v696 = vld [vmem:[#allocation2 + $0xe8] sm:$0xff]
      %v697 = vld [vmem:[#allocation2 + $0x100] sm:$0xff]
      %v698 = vld [vmem:[#allocation2 + $0x118] sm:$0xff]
      %v699 = vld [vmem:[#allocation2 + $0x130] sm:$0xff]
      %v700 = vld [vmem:[#allocation2 + $0x148] sm:$0xff]
      %v701 = vld [vmem:[#allocation2 + $0x160] sm:$0xff]
      %v702 = vld [vmem:[#allocation2 + $0x178] sm:$0xff]
      %v703 = vadd.f32 %v687, %v603
      %v704 = vadd.f32 %v688, %v606
      %v705 = vadd.f32 %v689, %v611
      %v706 = vadd.f32 %v690, %v614
      %v707 = vadd.f32 %v691, %v619
      %v708 = vadd.f32 %v692, %v622
      %v709 = vadd.f32 %v693, %v627
      %v710 = vadd.f32 %v694, %v630
      %v711 = vadd.f32 %v695, %v635
      %v712 = vadd.f32 %v696, %v638
      %v713 = vadd.f32 %v697, %v643
      %v714 = vadd.f32 %v698, %v646
      %v715 = vadd.f32 %v699, %v651
      %v716 = vadd.f32 %v700, %v654
      %v717 = vadd.f32 %v701, %v659
      %v718 = vadd.f32 %v702, %v662
      %719 = vst [vmem:[#allocation2 + $0x10] sm:$0xff] %v703
      %720 = vst [vmem:[#allocation2 + $0x28] sm:$0xff] %v704
      %721 = vst [vmem:[#allocation2 + $0x40] sm:$0xff] %v705
      %722 = vst [vmem:[#allocation2 + $0x58] sm:$0xff] %v706
      %723 = vst [vmem:[#allocation2 + $0x70] sm:$0xff] %v707
      %724 = vst [vmem:[#allocation2 + $0x88] sm:$0xff] %v708
      %725 = vst [vmem:[#allocation2 + $0xa0] sm:$0xff] %v709
      %726 = vst [vmem:[#allocation2 + $0xb8] sm:$0xff] %v710
      %727 = vst [vmem:[#allocation2 + $0xd0] sm:$0xff] %v711
      %728 = vst [vmem:[#allocation2 + $0xe8] sm:$0xff] %v712
      %729 = vst [vmem:[#allocation2 + $0x100] sm:$0xff] %v713
      %730 = vst [vmem:[#allocation2 + $0x118] sm:$0xff] %v714
      %731 = vst [vmem:[#allocation2 + $0x130] sm:$0xff] %v715
      %732 = vst [vmem:[#allocation2 + $0x148] sm:$0xff] %v716
      %733 = vst [vmem:[#allocation2 + $0x160] sm:$0xff] %v717
      %734 = vst [vmem:[#allocation2 + $0x178] sm:$0xff] %v718
    $region57: #{graph_encoder_forward.3} parent=1 // pred_fallthru
      _
    // Predicated region
    $region58: #{graph_encoder_forward.3} parent=1 // pred_check
      %p735 = pneg %p33
    $region59: #{graph_encoder_forward.3} parent=1 // pred_check_branch
      %737 = sbr.rel (%p735) target = $region61
    $region60: #{graph_encoder_forward.3} parent=1 // pred_region
      %v738 = vld [vmem:[#allocation2] sm:$0xff]
      %v739 = vld [vmem:[#allocation2 + $0x18] sm:$0xff]
      %v740 = vld [vmem:[#allocation2 + $0x30] sm:$0xff]
      %v741 = vld [vmem:[#allocation2 + $0x48] sm:$0xff]
      %v742 = vld [vmem:[#allocation2 + $0x60] sm:$0xff]
      %v743 = vld [vmem:[#allocation2 + $0x78] sm:$0xff]
      %v744 = vld [vmem:[#allocation2 + $0x90] sm:$0xff]
      %v745 = vld [vmem:[#allocation2 + $0xa8] sm:$0xff]
      %v746 = vld [vmem:[#allocation2 + $0xc0] sm:$0xff]
      %v747 = vld [vmem:[#allocation2 + $0xd8] sm:$0xff]
      %v748 = vld [vmem:[#allocation2 + $0xf0] sm:$0xff]
      %v749 = vld [vmem:[#allocation2 + $0x108] sm:$0xff]
      %v750 = vld [vmem:[#allocation2 + $0x120] sm:$0xff]
      %v751 = vld [vmem:[#allocation2 + $0x138] sm:$0xff]
      %v752 = vld [vmem:[#allocation2 + $0x150] sm:$0xff]
      %v753 = vld [vmem:[#allocation2 + $0x168] sm:$0xff]
      %v754 = vld [vmem:[%s4] sm:$0xf]
      %v755 = vld [vmem:[%s4 + $0x4] sm:$0xf]
      %v756 = vld [vmem:[%s4 + $0x8] sm:$0xf]
      %v757 = vld [vmem:[%s4 + $0xc] sm:$0xf]
      %v758 = vld [vmem:[%s4 + $0x10] sm:$0xf]
      %v759 = vld [vmem:[%s4 + $0x14] sm:$0xf]
      %v760 = vld [vmem:[%s4 + $0x18] sm:$0xf]
      %v761 = vld [vmem:[%s4 + $0x1c] sm:$0xf]
      %v762 = vld [vmem:[%s4 + $0x20] sm:$0xf]
      %v763 = vld [vmem:[%s4 + $0x24] sm:$0xf]
      %v764 = vld [vmem:[%s4 + $0x28] sm:$0xf]
      %v765 = vld [vmem:[%s4 + $0x2c] sm:$0xf]
      %v766 = vld [vmem:[%s4 + $0x30] sm:$0xf]
      %v767 = vld [vmem:[%s4 + $0x34] sm:$0xf]
      %v768 = vld [vmem:[%s4 + $0x38] sm:$0xf]
      %v769 = vld [vmem:[%s4 + $0x3c] sm:$0xf]
      %v770 = vld [vmem:[%s5] sm:$0x1]
      %v771 = vpack.c.bf16 %v739, %v738
      %v772 = vpack.c.bf16 %v741, %v740
      %v773 = vpack.c.bf16 %v743, %v742
      %v774 = vpack.c.bf16 %v745, %v744
      %v775 = vpack.c.bf16 %v747, %v746
      %v776 = vpack.c.bf16 %v749, %v748
      %v777 = vpack.c.bf16 %v751, %v750
      %v778 = vpack.c.bf16 %v753, %v752
      %v780 = vlaneseq
      %v781 = vshrl.u32 %v780, 7
      %v782 = vsub.s32 0, %v781
      %v783 = vrot.slane %v770, %v782
      %v801 = vunpack.c.l.b16 %v754
      %v802 = vunpack.c.l.b16 %v755
      %v803 = vunpack.c.l.b16 %v756
      %v804 = vunpack.c.l.b16 %v757
      %v805 = vunpack.c.l.b16 %v758
      %v806 = vunpack.c.l.b16 %v759
      %v807 = vunpack.c.l.b16 %v760
      %v808 = vunpack.c.l.b16 %v761
      %v809 = vunpack.c.l.b16 %v762
      %v810 = vunpack.c.l.b16 %v763
      %v811 = vunpack.c.l.b16 %v764
      %v812 = vunpack.c.l.b16 %v765
      %v813 = vunpack.c.l.b16 %v766
      %v814 = vunpack.c.l.b16 %v767
      %v815 = vunpack.c.l.b16 %v768
      %v816 = vunpack.c.l.b16 %v769
      %v817 = vpack.c.b16 %v802, %v801
      %v818 = vpack.c.b16 %v804, %v803
      %v819 = vpack.c.b16 %v806, %v805
      %v820 = vpack.c.b16 %v808, %v807
      %v821 = vpack.c.b16 %v810, %v809
      %v822 = vpack.c.b16 %v812, %v811
      %v823 = vpack.c.b16 %v814, %v813
      %v824 = vpack.c.b16 %v816, %v815
      %833 = vmatprep.subr.bf16.mxu0 0
      %834 = vmatpush1.bf16.msra.mxu0 %v817
      %835 = vmatprep.subr.bf16.mxu0 0
      %836 = vmatpush1.bf16.msra.mxu0 %v818
      %837 = vmatprep.subr.bf16.mxu0 0
      %838 = vmatpush1.bf16.msra.mxu0 %v819
      %839 = vmatprep.subr.bf16.mxu0 0
      %840 = vmatpush1.bf16.msra.mxu0 %v820
      %841 = vmatprep.subr.bf16.mxu0 0
      %842 = vmatpush1.bf16.msra.mxu0 %v821
      %843 = vmatprep.subr.bf16.mxu0 0
      %844 = vmatpush1.bf16.msra.mxu0 %v822
      %845 = vmatprep.subr.bf16.mxu0 0
      %846 = vmatpush1.bf16.msra.mxu0 %v823
      %847 = vmatprep.subr.bf16.mxu0 0
      %848 = vmatpush1.bf16.msra.mxu0 %v824
      %849 = vmatprep.subr.bf16.mxu0 0
      %850 = vmatpush1.bf16.msra.mxu0 0
      %851 = vmatprep.subr.bf16.mxu0 0
      %852 = vmatpush1.bf16.msra.mxu0 0
      %853 = vmatprep.subr.bf16.mxu0 0
      %854 = vmatpush1.bf16.msra.mxu0 0
      %855 = vmatprep.subr.bf16.mxu0 0
      %856 = vmatpush1.bf16.msra.mxu0 0
      %857 = vmatprep.subr.bf16.mxu0 0
      %858 = vmatpush1.bf16.msra.mxu0 0
      %859 = vmatprep.subr.bf16.mxu0 0
      %860 = vmatpush1.bf16.msra.mxu0 0
      %861 = vmatprep.subr.bf16.mxu0 0
      %862 = vmatpush1.bf16.msra.mxu0 0
      %863 = vmatprep.subr.bf16.mxu0 0
      %864 = vmatpush1.bf16.msra.mxu0 0
      %865 = vmatprep.mubr.bf16.mxu0 0
      %866 = vmatmul.mubr.bf16.gmra.mrb[0].mxu0 %v771
      %v867 = vpop.f32.mrb[0].mxu0
      %v868 = vadd.f32 %v783, %v867
      %v869 = vpop.f32.mrb[0].mxu0
      %v870 = vpop.f32.mrb[0].mxu0
      %v871 = vadd.f32 %v783, %v870
      %v872 = vpop.f32.mrb[0].mxu0
      %873 = vmatprep.mubr.bf16.mxu0 0
      %874 = vmatmul.mubr.bf16.gmra.mrb[0].mxu0 %v772
      %v875 = vpop.f32.mrb[0].mxu0
      %v876 = vadd.f32 %v783, %v875
      %v877 = vpop.f32.mrb[0].mxu0
      %v878 = vpop.f32.mrb[0].mxu0
      %v879 = vadd.f32 %v783, %v878
      %v880 = vpop.f32.mrb[0].mxu0
      %881 = vmatprep.mubr.bf16.mxu0 0
      %882 = vmatmul.mubr.bf16.gmra.mrb[0].mxu0 %v773
      %v883 = vpop.f32.mrb[0].mxu0
      %v884 = vadd.f32 %v783, %v883
      %v885 = vpop.f32.mrb[0].mxu0
      %v886 = vpop.f32.mrb[0].mxu0
      %v887 = vadd.f32 %v783, %v886
      %v888 = vpop.f32.mrb[0].mxu0
      %889 = vmatprep.mubr.bf16.mxu0 0
      %890 = vmatmul.mubr.bf16.gmra.mrb[0].mxu0 %v774
      %v891 = vpop.f32.mrb[0].mxu0
      %v892 = vadd.f32 %v783, %v891
      %v893 = vpop.f32.mrb[0].mxu0
      %v894 = vpop.f32.mrb[0].mxu0
      %v895 = vadd.f32 %v783, %v894
      %v896 = vpop.f32.mrb[0].mxu0
      %897 = vmatprep.mubr.bf16.mxu0 0
      %898 = vmatmul.mubr.bf16.gmra.mrb[0].mxu0 %v775
      %v899 = vpop.f32.mrb[0].mxu0
      %v900 = vadd.f32 %v783, %v899
      %v901 = vpop.f32.mrb[0].mxu0
      %v902 = vpop.f32.mrb[0].mxu0
      %v903 = vadd.f32 %v783, %v902
      %v904 = vpop.f32.mrb[0].mxu0
      %905 = vmatprep.mubr.bf16.mxu0 0
      %906 = vmatmul.mubr.bf16.gmra.mrb[0].mxu0 %v776
      %v907 = vpop.f32.mrb[0].mxu0
      %v908 = vadd.f32 %v783, %v907
      %v909 = vpop.f32.mrb[0].mxu0
      %v910 = vpop.f32.mrb[0].mxu0
      %v911 = vadd.f32 %v783, %v910
      %v912 = vpop.f32.mrb[0].mxu0
      %913 = vmatprep.mubr.bf16.mxu0 0
      %914 = vmatmul.mubr.bf16.gmra.mrb[0].mxu0 %v777
      %v915 = vpop.f32.mrb[0].mxu0
      %v916 = vadd.f32 %v783, %v915
      %v917 = vpop.f32.mrb[0].mxu0
      %v918 = vpop.f32.mrb[0].mxu0
      %v919 = vadd.f32 %v783, %v918
      %v920 = vpop.f32.mrb[0].mxu0
      %921 = vmatprep.mubr.bf16.mxu0 0
      %922 = vmatmul.mubr.bf16.gmra.mrb[0].mxu0 %v778
      %v923 = vpop.f32.mrb[0].mxu0
      %v924 = vadd.f32 %v783, %v923
      %v925 = vpop.f32.mrb[0].mxu0
      %v926 = vpop.f32.mrb[0].mxu0
      %v927 = vadd.f32 %v783, %v926
      %v928 = vpop.f32.mrb[0].mxu0
      %929 = vdwg.mxu0
      %v930 = vmax.f32 %v868, 0.0
      %v931 = vmax.f32 %v871, 0.0
      %v932 = vmax.f32 %v876, 0.0
      %v933 = vmax.f32 %v879, 0.0
      %v934 = vmax.f32 %v884, 0.0
      %v935 = vmax.f32 %v887, 0.0
      %v936 = vmax.f32 %v892, 0.0
      %v937 = vmax.f32 %v895, 0.0
      %v938 = vmax.f32 %v900, 0.0
      %v939 = vmax.f32 %v903, 0.0
      %v940 = vmax.f32 %v908, 0.0
      %v941 = vmax.f32 %v911, 0.0
      %v942 = vmax.f32 %v916, 0.0
      %v943 = vmax.f32 %v919, 0.0
      %v944 = vmax.f32 %v924, 0.0
      %v945 = vmax.f32 %v927, 0.0
      %v946 = vld [vmem:[%s6] sm:$0xf]
      %v947 = vld [vmem:[%s6 + $0x4] sm:$0xf]
      %v948 = vld [vmem:[%s6 + $0x8] sm:$0xf]
      %v949 = vld [vmem:[%s6 + $0xc] sm:$0xf]
      %v950 = vld [vmem:[%s6 + $0x10] sm:$0xf]
      %v951 = vld [vmem:[%s6 + $0x14] sm:$0xf]
      %v952 = vld [vmem:[%s6 + $0x18] sm:$0xf]
      %v953 = vld [vmem:[%s6 + $0x1c] sm:$0xf]
      %v954 = vld [vmem:[%s6 + $0x20] sm:$0xf]
      %v955 = vld [vmem:[%s6 + $0x24] sm:$0xf]
      %v956 = vld [vmem:[%s6 + $0x28] sm:$0xf]
      %v957 = vld [vmem:[%s6 + $0x2c] sm:$0xf]
      %v958 = vld [vmem:[%s6 + $0x30] sm:$0xf]
      %v959 = vld [vmem:[%s6 + $0x34] sm:$0xf]
      %v960 = vld [vmem:[%s6 + $0x38] sm:$0xf]
      %v961 = vld [vmem:[%s6 + $0x3c] sm:$0xf]
      %v962 = vld [vmem:[%s7] sm:$0x1]
      %v963 = vpack.c.bf16 %v931, %v930
      %v964 = vpack.c.bf16 %v933, %v932
      %v965 = vpack.c.bf16 %v935, %v934
      %v966 = vpack.c.bf16 %v937, %v936
      %v967 = vpack.c.bf16 %v939, %v938
      %v968 = vpack.c.bf16 %v941, %v940
      %v969 = vpack.c.bf16 %v943, %v942
      %v970 = vpack.c.bf16 %v945, %v944
      %v972 = vlaneseq
      %v973 = vshrl.u32 %v972, 7
      %v974 = vsub.s32 0, %v973
      %v975 = vrot.slane %v962, %v974
      %v993 = vunpack.c.l.b16 %v946
      %v994 = vunpack.c.l.b16 %v947
      %v995 = vunpack.c.l.b16 %v948
      %v996 = vunpack.c.l.b16 %v949
      %v997 = vunpack.c.l.b16 %v950
      %v998 = vunpack.c.l.b16 %v951
      %v999 = vunpack.c.l.b16 %v952
      %v1000 = vunpack.c.l.b16 %v953
      %v1001 = vunpack.c.l.b16 %v954
      %v1002 = vunpack.c.l.b16 %v955
      %v1003 = vunpack.c.l.b16 %v956
      %v1004 = vunpack.c.l.b16 %v957
      %v1005 = vunpack.c.l.b16 %v958
      %v1006 = vunpack.c.l.b16 %v959
      %v1007 = vunpack.c.l.b16 %v960
      %v1008 = vunpack.c.l.b16 %v961
      %v1009 = vpack.c.b16 %v994, %v993
      %v1010 = vpack.c.b16 %v996, %v995
      %v1011 = vpack.c.b16 %v998, %v997
      %v1012 = vpack.c.b16 %v1000, %v999
      %v1013 = vpack.c.b16 %v1002, %v1001
      %v1014 = vpack.c.b16 %v1004, %v1003
      %v1015 = vpack.c.b16 %v1006, %v1005
      %v1016 = vpack.c.b16 %v1008, %v1007
      %1025 = vmatprep.subr.bf16.mxu0 0
      %1026 = vmatpush1.bf16.msra.mxu0 %v1009
      %1027 = vmatprep.subr.bf16.mxu0 0
      %1028 = vmatpush1.bf16.msra.mxu0 %v1010
      %1029 = vmatprep.subr.bf16.mxu0 0
      %1030 = vmatpush1.bf16.msra.mxu0 %v1011
      %1031 = vmatprep.subr.bf16.mxu0 0
      %1032 = vmatpush1.bf16.msra.mxu0 %v1012
      %1033 = vmatprep.subr.bf16.mxu0 0
      %1034 = vmatpush1.bf16.msra.mxu0 %v1013
      %1035 = vmatprep.subr.bf16.mxu0 0
      %1036 = vmatpush1.bf16.msra.mxu0 %v1014
      %1037 = vmatprep.subr.bf16.mxu0 0
      %1038 = vmatpush1.bf16.msra.mxu0 %v1015
      %1039 = vmatprep.subr.bf16.mxu0 0
      %1040 = vmatpush1.bf16.msra.mxu0 %v1016
      %1041 = vmatprep.subr.bf16.mxu0 0
      %1042 = vmatpush1.bf16.msra.mxu0 0
      %1043 = vmatprep.subr.bf16.mxu0 0
      %1044 = vmatpush1.bf16.msra.mxu0 0
      %1045 = vmatprep.subr.bf16.mxu0 0
      %1046 = vmatpush1.bf16.msra.mxu0 0
      %1047 = vmatprep.subr.bf16.mxu0 0
      %1048 = vmatpush1.bf16.msra.mxu0 0
      %1049 = vmatprep.subr.bf16.mxu0 0
      %1050 = vmatpush1.bf16.msra.mxu0 0
      %1051 = vmatprep.subr.bf16.mxu0 0
      %1052 = vmatpush1.bf16.msra.mxu0 0
      %1053 = vmatprep.subr.bf16.mxu0 0
      %1054 = vmatpush1.bf16.msra.mxu0 0
      %1055 = vmatprep.subr.bf16.mxu0 0
      %1056 = vmatpush1.bf16.msra.mxu0 0
      %1057 = vmatprep.mubr.bf16.mxu0 0
      %1058 = vmatmul.mubr.bf16.gmra.mrb[0].mxu0 %v963
      %v1059 = vpop.f32.mrb[0].mxu0
      %v1060 = vadd.f32 %v975, %v1059
      %v1061 = vpop.f32.mrb[0].mxu0
      %v1062 = vpop.f32.mrb[0].mxu0
      %v1063 = vadd.f32 %v975, %v1062
      %v1064 = vpop.f32.mrb[0].mxu0
      %1065 = vmatprep.mubr.bf16.mxu0 0
      %1066 = vmatmul.mubr.bf16.gmra.mrb[0].mxu0 %v964
      %v1067 = vpop.f32.mrb[0].mxu0
      %v1068 = vadd.f32 %v975, %v1067
      %v1069 = vpop.f32.mrb[0].mxu0
      %v1070 = vpop.f32.mrb[0].mxu0
      %v1071 = vadd.f32 %v975, %v1070
      %v1072 = vpop.f32.mrb[0].mxu0
      %1073 = vmatprep.mubr.bf16.mxu0 0
      %1074 = vmatmul.mubr.bf16.gmra.mrb[0].mxu0 %v965
      %v1075 = vpop.f32.mrb[0].mxu0
      %v1076 = vadd.f32 %v975, %v1075
      %v1077 = vpop.f32.mrb[0].mxu0
      %v1078 = vpop.f32.mrb[0].mxu0
      %v1079 = vadd.f32 %v975, %v1078
      %v1080 = vpop.f32.mrb[0].mxu0
      %1081 = vmatprep.mubr.bf16.mxu0 0
      %1082 = vmatmul.mubr.bf16.gmra.mrb[0].mxu0 %v966
      %v1083 = vpop.f32.mrb[0].mxu0
      %v1084 = vadd.f32 %v975, %v1083
      %v1085 = vpop.f32.mrb[0].mxu0
      %v1086 = vpop.f32.mrb[0].mxu0
      %v1087 = vadd.f32 %v975, %v1086
      %v1088 = vpop.f32.mrb[0].mxu0
      %1089 = vmatprep.mubr.bf16.mxu0 0
      %1090 = vmatmul.mubr.bf16.gmra.mrb[0].mxu0 %v967
      %v1091 = vpop.f32.mrb[0].mxu0
      %v1092 = vadd.f32 %v975, %v1091
      %v1093 = vpop.f32.mrb[0].mxu0
      %v1094 = vpop.f32.mrb[0].mxu0
      %v1095 = vadd.f32 %v975, %v1094
      %v1096 = vpop.f32.mrb[0].mxu0
      %1097 = vmatprep.mubr.bf16.mxu0 0
      %1098 = vmatmul.mubr.bf16.gmra.mrb[0].mxu0 %v968
      %v1099 = vpop.f32.mrb[0].mxu0
      %v1100 = vadd.f32 %v975, %v1099
      %v1101 = vpop.f32.mrb[0].mxu0
      %v1102 = vpop.f32.mrb[0].mxu0
      %v1103 = vadd.f32 %v975, %v1102
      %v1104 = vpop.f32.mrb[0].mxu0
      %1105 = vmatprep.mubr.bf16.mxu0 0
      %1106 = vmatmul.mubr.bf16.gmra.mrb[0].mxu0 %v969
      %v1107 = vpop.f32.mrb[0].mxu0
      %v1108 = vadd.f32 %v975, %v1107
      %v1109 = vpop.f32.mrb[0].mxu0
      %v1110 = vpop.f32.mrb[0].mxu0
      %v1111 = vadd.f32 %v975, %v1110
      %v1112 = vpop.f32.mrb[0].mxu0
      %1113 = vmatprep.mubr.bf16.mxu0 0
      %1114 = vmatmul.mubr.bf16.gmra.mrb[0].mxu0 %v970
      %v1115 = vpop.f32.mrb[0].mxu0
      %v1116 = vadd.f32 %v975, %v1115
      %v1117 = vpop.f32.mrb[0].mxu0
      %v1118 = vpop.f32.mrb[0].mxu0
      %v1119 = vadd.f32 %v975, %v1118
      %v1120 = vpop.f32.mrb[0].mxu0
      %1121 = vdwg.mxu0
      %v1122 = vmax.f32 %v1060, 0.0
      %v1123 = vmax.f32 %v1063, 0.0
      %v1124 = vmax.f32 %v1068, 0.0
      %v1125 = vmax.f32 %v1071, 0.0
      %v1126 = vmax.f32 %v1076, 0.0
      %v1127 = vmax.f32 %v1079, 0.0
      %v1128 = vmax.f32 %v1084, 0.0
      %v1129 = vmax.f32 %v1087, 0.0
      %v1130 = vmax.f32 %v1092, 0.0
      %v1131 = vmax.f32 %v1095, 0.0
      %v1132 = vmax.f32 %v1100, 0.0
      %v1133 = vmax.f32 %v1103, 0.0
      %v1134 = vmax.f32 %v1108, 0.0
      %v1135 = vmax.f32 %v1111, 0.0
      %v1136 = vmax.f32 %v1116, 0.0
      %v1137 = vmax.f32 %v1119, 0.0
      %v1138 = vld [vmem:[#allocation2 + $0x8] sm:$0xff]
      %v1139 = vld [vmem:[#allocation2 + $0x20] sm:$0xff]
      %v1140 = vld [vmem:[#allocation2 + $0x38] sm:$0xff]
      %v1141 = vld [vmem:[#allocation2 + $0x50] sm:$0xff]
      %v1142 = vld [vmem:[#allocation2 + $0x68] sm:$0xff]
      %v1143 = vld [vmem:[#allocation2 + $0x80] sm:$0xff]
      %v1144 = vld [vmem:[#allocation2 + $0x98] sm:$0xff]
      %v1145 = vld [vmem:[#allocation2 + $0xb0] sm:$0xff]
      %v1146 = vld [vmem:[#allocation2 + $0xc8] sm:$0xff]
      %v1147 = vld [vmem:[#allocation2 + $0xe0] sm:$0xff]
      %v1148 = vld [vmem:[#allocation2 + $0xf8] sm:$0xff]
      %v1149 = vld [vmem:[#allocation2 + $0x110] sm:$0xff]
      %v1150 = vld [vmem:[#allocation2 + $0x128] sm:$0xff]
      %v1151 = vld [vmem:[#allocation2 + $0x140] sm:$0xff]
      %v1152 = vld [vmem:[#allocation2 + $0x158] sm:$0xff]
      %v1153 = vld [vmem:[#allocation2 + $0x170] sm:$0xff]
      %s1154 = scalar_lea.vmem %s4, 64
      %v1155 = vld [vmem:[%s1154] sm:$0xf]
      %v1156 = vld [vmem:[%s1154 + $0x4] sm:$0xf]
      %v1157 = vld [vmem:[%s1154 + $0x8] sm:$0xf]
      %v1158 = vld [vmem:[%s1154 + $0xc] sm:$0xf]
      %v1159 = vld [vmem:[%s1154 + $0x10] sm:$0xf]
      %v1160 = vld [vmem:[%s1154 + $0x14] sm:$0xf]
      %v1161 = vld [vmem:[%s1154 + $0x18] sm:$0xf]
      %v1162 = vld [vmem:[%s1154 + $0x1c] sm:$0xf]
      %v1163 = vld [vmem:[%s1154 + $0x20] sm:$0xf]
      %v1164 = vld [vmem:[%s1154 + $0x24] sm:$0xf]
      %v1165 = vld [vmem:[%s1154 + $0x28] sm:$0xf]
      %v1166 = vld [vmem:[%s1154 + $0x2c] sm:$0xf]
      %v1167 = vld [vmem:[%s1154 + $0x30] sm:$0xf]
      %v1168 = vld [vmem:[%s1154 + $0x34] sm:$0xf]
      %v1169 = vld [vmem:[%s1154 + $0x38] sm:$0xf]
      %v1170 = vld [vmem:[%s1154 + $0x3c] sm:$0xf]
      %s1171 = scalar_lea.vmem %s5, 1
      %v1172 = vld [vmem:[%s1171] sm:$0x1]
      %v1173 = vpack.c.bf16 %v1139, %v1138
      %v1174 = vpack.c.bf16 %v1141, %v1140
      %v1175 = vpack.c.bf16 %v1143, %v1142
      %v1176 = vpack.c.bf16 %v1145, %v1144
      %v1177 = vpack.c.bf16 %v1147, %v1146
      %v1178 = vpack.c.bf16 %v1149, %v1148
      %v1179 = vpack.c.bf16 %v1151, %v1150
      %v1180 = vpack.c.bf16 %v1153, %v1152
      %v1182 = vlaneseq
      %v1183 = vshrl.u32 %v1182, 7
      %v1184 = vsub.s32 0, %v1183
      %v1185 = vrot.slane %v1172, %v1184
      %v1203 = vunpack.c.l.b16 %v1155
      %v1204 = vunpack.c.l.b16 %v1156
      %v1205 = vunpack.c.l.b16 %v1157
      %v1206 = vunpack.c.l.b16 %v1158
      %v1207 = vunpack.c.l.b16 %v1159
      %v1208 = vunpack.c.l.b16 %v1160
      %v1209 = vunpack.c.l.b16 %v1161
      %v1210 = vunpack.c.l.b16 %v1162
      %v1211 = vunpack.c.l.b16 %v1163
      %v1212 = vunpack.c.l.b16 %v1164
      %v1213 = vunpack.c.l.b16 %v1165
      %v1214 = vunpack.c.l.b16 %v1166
      %v1215 = vunpack.c.l.b16 %v1167
      %v1216 = vunpack.c.l.b16 %v1168
      %v1217 = vunpack.c.l.b16 %v1169
      %v1218 = vunpack.c.l.b16 %v1170
      %v1219 = vpack.c.b16 %v1204, %v1203
      %v1220 = vpack.c.b16 %v1206, %v1205
      %v1221 = vpack.c.b16 %v1208, %v1207
      %v1222 = vpack.c.b16 %v1210, %v1209
      %v1223 = vpack.c.b16 %v1212, %v1211
      %v1224 = vpack.c.b16 %v1214, %v1213
      %v1225 = vpack.c.b16 %v1216, %v1215
      %v1226 = vpack.c.b16 %v1218, %v1217
      %1235 = vmatprep.subr.bf16.mxu0 0
      %1236 = vmatpush1.bf16.msra.mxu0 %v1219
      %1237 = vmatprep.subr.bf16.mxu0 0
      %1238 = vmatpush1.bf16.msra.mxu0 %v1220
      %1239 = vmatprep.subr.bf16.mxu0 0
      %1240 = vmatpush1.bf16.msra.mxu0 %v1221
      %1241 = vmatprep.subr.bf16.mxu0 0
      %1242 = vmatpush1.bf16.msra.mxu0 %v1222
      %1243 = vmatprep.subr.bf16.mxu0 0
      %1244 = vmatpush1.bf16.msra.mxu0 %v1223
      %1245 = vmatprep.subr.bf16.mxu0 0
      %1246 = vmatpush1.bf16.msra.mxu0 %v1224
      %1247 = vmatprep.subr.bf16.mxu0 0
      %1248 = vmatpush1.bf16.msra.mxu0 %v1225
      %1249 = vmatprep.subr.bf16.mxu0 0
      %1250 = vmatpush1.bf16.msra.mxu0 %v1226
      %1251 = vmatprep.subr.bf16.mxu0 0
      %1252 = vmatpush1.bf16.msra.mxu0 0
      %1253 = vmatprep.subr.bf16.mxu0 0
      %1254 = vmatpush1.bf16.msra.mxu0 0
      %1255 = vmatprep.subr.bf16.mxu0 0
      %1256 = vmatpush1.bf16.msra.mxu0 0
      %1257 = vmatprep.subr.bf16.mxu0 0
      %1258 = vmatpush1.bf16.msra.mxu0 0
      %1259 = vmatprep.subr.bf16.mxu0 0
      %1260 = vmatpush1.bf16.msra.mxu0 0
      %1261 = vmatprep.subr.bf16.mxu0 0
      %1262 = vmatpush1.bf16.msra.mxu0 0
      %1263 = vmatprep.subr.bf16.mxu0 0
      %1264 = vmatpush1.bf16.msra.mxu0 0
      %1265 = vmatprep.subr.bf16.mxu0 0
      %1266 = vmatpush1.bf16.msra.mxu0 0
      %1267 = vmatprep.mubr.bf16.mxu0 0
      %1268 = vmatmul.mubr.bf16.gmra.mrb[0].mxu0 %v1173
      %v1269 = vpop.f32.mrb[0].mxu0
      %v1270 = vadd.f32 %v1185, %v1269
      %v1271 = vpop.f32.mrb[0].mxu0
      %v1272 = vpop.f32.mrb[0].mxu0
      %v1273 = vadd.f32 %v1185, %v1272
      %v1274 = vpop.f32.mrb[0].mxu0
      %1275 = vmatprep.mubr.bf16.mxu0 0
      %1276 = vmatmul.mubr.bf16.gmra.mrb[0].mxu0 %v1174
      %v1277 = vpop.f32.mrb[0].mxu0
      %v1278 = vadd.f32 %v1185, %v1277
      %v1279 = vpop.f32.mrb[0].mxu0
      %v1280 = vpop.f32.mrb[0].mxu0
      %v1281 = vadd.f32 %v1185, %v1280
      %v1282 = vpop.f32.mrb[0].mxu0
      %1283 = vmatprep.mubr.bf16.mxu0 0
      %1284 = vmatmul.mubr.bf16.gmra.mrb[0].mxu0 %v1175
      %v1285 = vpop.f32.mrb[0].mxu0
      %v1286 = vadd.f32 %v1185, %v1285
      %v1287 = vpop.f32.mrb[0].mxu0
      %v1288 = vpop.f32.mrb[0].mxu0
      %v1289 = vadd.f32 %v1185, %v1288
      %v1290 = vpop.f32.mrb[0].mxu0
      %1291 = vmatprep.mubr.bf16.mxu0 0
      %1292 = vmatmul.mubr.bf16.gmra.mrb[0].mxu0 %v1176
      %v1293 = vpop.f32.mrb[0].mxu0
      %v1294 = vadd.f32 %v1185, %v1293
      %v1295 = vpop.f32.mrb[0].mxu0
      %v1296 = vpop.f32.mrb[0].mxu0
      %v1297 = vadd.f32 %v1185, %v1296
      %v1298 = vpop.f32.mrb[0].mxu0
      %1299 = vmatprep.mubr.bf16.mxu0 0
      %1300 = vmatmul.mubr.bf16.gmra.mrb[0].mxu0 %v1177
      %v1301 = vpop.f32.mrb[0].mxu0
      %v1302 = vadd.f32 %v1185, %v1301
      %v1303 = vpop.f32.mrb[0].mxu0
      %v1304 = vpop.f32.mrb[0].mxu0
      %v1305 = vadd.f32 %v1185, %v1304
      %v1306 = vpop.f32.mrb[0].mxu0
      %1307 = vmatprep.mubr.bf16.mxu0 0
      %1308 = vmatmul.mubr.bf16.gmra.mrb[0].mxu0 %v1178
      %v1309 = vpop.f32.mrb[0].mxu0
      %v1310 = vadd.f32 %v1185, %v1309
      %v1311 = vpop.f32.mrb[0].mxu0
      %v1312 = vpop.f32.mrb[0].mxu0
      %v1313 = vadd.f32 %v1185, %v1312
      %v1314 = vpop.f32.mrb[0].mxu0
      %1315 = vmatprep.mubr.bf16.mxu0 0
      %1316 = vmatmul.mubr.bf16.gmra.mrb[0].mxu0 %v1179
      %v1317 = vpop.f32.mrb[0].mxu0
      %v1318 = vadd.f32 %v1185, %v1317
      %v1319 = vpop.f32.mrb[0].mxu0
      %v1320 = vpop.f32.mrb[0].mxu0
      %v1321 = vadd.f32 %v1185, %v1320
      %v1322 = vpop.f32.mrb[0].mxu0
      %1323 = vmatprep.mubr.bf16.mxu0 0
      %1324 = vmatmul.mubr.bf16.gmra.mrb[0].mxu0 %v1180
      %v1325 = vpop.f32.mrb[0].mxu0
      %v1326 = vadd.f32 %v1185, %v1325
      %v1327 = vpop.f32.mrb[0].mxu0
      %v1328 = vpop.f32.mrb[0].mxu0
      %v1329 = vadd.f32 %v1185, %v1328
      %v1330 = vpop.f32.mrb[0].mxu0
      %1331 = vdwg.mxu0
      %v1332 = vmax.f32 %v1270, 0.0
      %v1333 = vmax.f32 %v1273, 0.0
      %v1334 = vmax.f32 %v1278, 0.0
      %v1335 = vmax.f32 %v1281, 0.0
      %v1336 = vmax.f32 %v1286, 0.0
      %v1337 = vmax.f32 %v1289, 0.0
      %v1338 = vmax.f32 %v1294, 0.0
      %v1339 = vmax.f32 %v1297, 0.0
      %v1340 = vmax.f32 %v1302, 0.0
      %v1341 = vmax.f32 %v1305, 0.0
      %v1342 = vmax.f32 %v1310, 0.0
      %v1343 = vmax.f32 %v1313, 0.0
      %v1344 = vmax.f32 %v1318, 0.0
      %v1345 = vmax.f32 %v1321, 0.0
      %v1346 = vmax.f32 %v1326, 0.0
      %v1347 = vmax.f32 %v1329, 0.0
      %s1348 = scalar_lea.vmem %s6, 64
      %v1349 = vld [vmem:[%s1348] sm:$0xf]
      %v1350 = vld [vmem:[%s1348 + $0x4] sm:$0xf]
      %v1351 = vld [vmem:[%s1348 + $0x8] sm:$0xf]
      %v1352 = vld [vmem:[%s1348 + $0xc] sm:$0xf]
      %v1353 = vld [vmem:[%s1348 + $0x10] sm:$0xf]
      %v1354 = vld [vmem:[%s1348 + $0x14] sm:$0xf]
      %v1355 = vld [vmem:[%s1348 + $0x18] sm:$0xf]
      %v1356 = vld [vmem:[%s1348 + $0x1c] sm:$0xf]
      %v1357 = vld [vmem:[%s1348 + $0x20] sm:$0xf]
      %v1358 = vld [vmem:[%s1348 + $0x24] sm:$0xf]
      %v1359 = vld [vmem:[%s1348 + $0x28] sm:$0xf]
      %v1360 = vld [vmem:[%s1348 + $0x2c] sm:$0xf]
      %v1361 = vld [vmem:[%s1348 + $0x30] sm:$0xf]
      %v1362 = vld [vmem:[%s1348 + $0x34] sm:$0xf]
      %v1363 = vld [vmem:[%s1348 + $0x38] sm:$0xf]
      %v1364 = vld [vmem:[%s1348 + $0x3c] sm:$0xf]
      %s1365 = scalar_lea.vmem %s7, 1
      %v1366 = vld [vmem:[%s1365] sm:$0x1]
      %v1367 = vpack.c.bf16 %v1333, %v1332
      %v1368 = vpack.c.bf16 %v1335, %v1334
      %v1369 = vpack.c.bf16 %v1337, %v1336
      %v1370 = vpack.c.bf16 %v1339, %v1338
      %v1371 = vpack.c.bf16 %v1341, %v1340
      %v1372 = vpack.c.bf16 %v1343, %v1342
      %v1373 = vpack.c.bf16 %v1345, %v1344
      %v1374 = vpack.c.bf16 %v1347, %v1346
      %v1376 = vlaneseq
      %v1377 = vshrl.u32 %v1376, 7
      %v1378 = vsub.s32 0, %v1377
      %v1379 = vrot.slane %v1366, %v1378
      %v1397 = vunpack.c.l.b16 %v1349
      %v1398 = vunpack.c.l.b16 %v1350
      %v1399 = vunpack.c.l.b16 %v1351
      %v1400 = vunpack.c.l.b16 %v1352
      %v1401 = vunpack.c.l.b16 %v1353
      %v1402 = vunpack.c.l.b16 %v1354
      %v1403 = vunpack.c.l.b16 %v1355
      %v1404 = vunpack.c.l.b16 %v1356
      %v1405 = vunpack.c.l.b16 %v1357
      %v1406 = vunpack.c.l.b16 %v1358
      %v1407 = vunpack.c.l.b16 %v1359
      %v1408 = vunpack.c.l.b16 %v1360
      %v1409 = vunpack.c.l.b16 %v1361
      %v1410 = vunpack.c.l.b16 %v1362
      %v1411 = vunpack.c.l.b16 %v1363
      %v1412 = vunpack.c.l.b16 %v1364
      %v1413 = vpack.c.b16 %v1398, %v1397
      %v1414 = vpack.c.b16 %v1400, %v1399
      %v1415 = vpack.c.b16 %v1402, %v1401
      %v1416 = vpack.c.b16 %v1404, %v1403
      %v1417 = vpack.c.b16 %v1406, %v1405
      %v1418 = vpack.c.b16 %v1408, %v1407
      %v1419 = vpack.c.b16 %v1410, %v1409
      %v1420 = vpack.c.b16 %v1412, %v1411
      %1429 = vmatprep.subr.bf16.mxu0 0
      %1430 = vmatpush1.bf16.msra.mxu0 %v1413
      %1431 = vmatprep.subr.bf16.mxu0 0
      %1432 = vmatpush1.bf16.msra.mxu0 %v1414
      %1433 = vmatprep.subr.bf16.mxu0 0
      %1434 = vmatpush1.bf16.msra.mxu0 %v1415
      %1435 = vmatprep.subr.bf16.mxu0 0
      %1436 = vmatpush1.bf16.msra.mxu0 %v1416
      %1437 = vmatprep.subr.bf16.mxu0 0
      %1438 = vmatpush1.bf16.msra.mxu0 %v1417
      %1439 = vmatprep.subr.bf16.mxu0 0
      %1440 = vmatpush1.bf16.msra.mxu0 %v1418
      %1441 = vmatprep.subr.bf16.mxu0 0
      %1442 = vmatpush1.bf16.msra.mxu0 %v1419
      %1443 = vmatprep.subr.bf16.mxu0 0
      %1444 = vmatpush1.bf16.msra.mxu0 %v1420
      %1445 = vmatprep.subr.bf16.mxu0 0
      %1446 = vmatpush1.bf16.msra.mxu0 0
      %1447 = vmatprep.subr.bf16.mxu0 0
      %1448 = vmatpush1.bf16.msra.mxu0 0
      %1449 = vmatprep.subr.bf16.mxu0 0
      %1450 = vmatpush1.bf16.msra.mxu0 0
      %1451 = vmatprep.subr.bf16.mxu0 0
      %1452 = vmatpush1.bf16.msra.mxu0 0
      %1453 = vmatprep.subr.bf16.mxu0 0
      %1454 = vmatpush1.bf16.msra.mxu0 0
      %1455 = vmatprep.subr.bf16.mxu0 0
      %1456 = vmatpush1.bf16.msra.mxu0 0
      %1457 = vmatprep.subr.bf16.mxu0 0
      %1458 = vmatpush1.bf16.msra.mxu0 0
      %1459 = vmatprep.subr.bf16.mxu0 0
      %1460 = vmatpush1.bf16.msra.mxu0 0
      %1461 = vmatprep.mubr.bf16.mxu0 0
      %1462 = vmatmul.mubr.bf16.gmra.mrb[0].mxu0 %v1367
      %v1463 = vpop.f32.mrb[0].mxu0
      %v1464 = vadd.f32 %v1379, %v1463
      %v1465 = vpop.f32.mrb[0].mxu0
      %v1466 = vpop.f32.mrb[0].mxu0
      %v1467 = vadd.f32 %v1379, %v1466
      %v1468 = vpop.f32.mrb[0].mxu0
      %1469 = vmatprep.mubr.bf16.mxu0 0
      %1470 = vmatmul.mubr.bf16.gmra.mrb[0].mxu0 %v1368
      %v1471 = vpop.f32.mrb[0].mxu0
      %v1472 = vadd.f32 %v1379, %v1471
      %v1473 = vpop.f32.mrb[0].mxu0
      %v1474 = vpop.f32.mrb[0].mxu0
      %v1475 = vadd.f32 %v1379, %v1474
      %v1476 = vpop.f32.mrb[0].mxu0
      %1477 = vmatprep.mubr.bf16.mxu0 0
      %1478 = vmatmul.mubr.bf16.gmra.mrb[0].mxu0 %v1369
      %v1479 = vpop.f32.mrb[0].mxu0
      %v1480 = vadd.f32 %v1379, %v1479
      %v1481 = vpop.f32.mrb[0].mxu0
      %v1482 = vpop.f32.mrb[0].mxu0
      %v1483 = vadd.f32 %v1379, %v1482
      %v1484 = vpop.f32.mrb[0].mxu0
      %1485 = vmatprep.mubr.bf16.mxu0 0
      %1486 = vmatmul.mubr.bf16.gmra.mrb[0].mxu0 %v1370
      %v1487 = vpop.f32.mrb[0].mxu0
      %v1488 = vadd.f32 %v1379, %v1487
      %v1489 = vpop.f32.mrb[0].mxu0
      %v1490 = vpop.f32.mrb[0].mxu0
      %v1491 = vadd.f32 %v1379, %v1490
      %v1492 = vpop.f32.mrb[0].mxu0
      %1493 = vmatprep.mubr.bf16.mxu0 0
      %1494 = vmatmul.mubr.bf16.gmra.mrb[0].mxu0 %v1371
      %v1495 = vpop.f32.mrb[0].mxu0
      %v1496 = vadd.f32 %v1379, %v1495
      %v1497 = vpop.f32.mrb[0].mxu0
      %v1498 = vpop.f32.mrb[0].mxu0
      %v1499 = vadd.f32 %v1379, %v1498
      %v1500 = vpop.f32.mrb[0].mxu0
      %1501 = vmatprep.mubr.bf16.mxu0 0
      %1502 = vmatmul.mubr.bf16.gmra.mrb[0].mxu0 %v1372
      %v1503 = vpop.f32.mrb[0].mxu0
      %v1504 = vadd.f32 %v1379, %v1503
      %v1505 = vpop.f32.mrb[0].mxu0
      %v1506 = vpop.f32.mrb[0].mxu0
      %v1507 = vadd.f32 %v1379, %v1506
      %v1508 = vpop.f32.mrb[0].mxu0
      %1509 = vmatprep.mubr.bf16.mxu0 0
      %1510 = vmatmul.mubr.bf16.gmra.mrb[0].mxu0 %v1373
      %v1511 = vpop.f32.mrb[0].mxu0
      %v1512 = vadd.f32 %v1379, %v1511
      %v1513 = vpop.f32.mrb[0].mxu0
      %v1514 = vpop.f32.mrb[0].mxu0
      %v1515 = vadd.f32 %v1379, %v1514
      %v1516 = vpop.f32.mrb[0].mxu0
      %1517 = vmatprep.mubr.bf16.mxu0 0
      %1518 = vmatmul.mubr.bf16.gmra.mrb[0].mxu0 %v1374
      %v1519 = vpop.f32.mrb[0].mxu0
      %v1520 = vadd.f32 %v1379, %v1519
      %v1521 = vpop.f32.mrb[0].mxu0
      %v1522 = vpop.f32.mrb[0].mxu0
      %v1523 = vadd.f32 %v1379, %v1522
      %v1524 = vpop.f32.mrb[0].mxu0
      %1525 = vdwg.mxu0
      %v1526 = vmax.f32 %v1464, 0.0
      %v1527 = vmax.f32 %v1467, 0.0
      %v1528 = vmax.f32 %v1472, 0.0
      %v1529 = vmax.f32 %v1475, 0.0
      %v1530 = vmax.f32 %v1480, 0.0
      %v1531 = vmax.f32 %v1483, 0.0
      %v1532 = vmax.f32 %v1488, 0.0
      %v1533 = vmax.f32 %v1491, 0.0
      %v1534 = vmax.f32 %v1496, 0.0
      %v1535 = vmax.f32 %v1499, 0.0
      %v1536 = vmax.f32 %v1504, 0.0
      %v1537 = vmax.f32 %v1507, 0.0
      %v1538 = vmax.f32 %v1512, 0.0
      %v1539 = vmax.f32 %v1515, 0.0
      %v1540 = vmax.f32 %v1520, 0.0
      %v1541 = vmax.f32 %v1523, 0.0
      %v1542 = vadd.f32 %v1122, %v1526
      %v1543 = vadd.f32 %v1123, %v1527
      %v1544 = vadd.f32 %v1124, %v1528
      %v1545 = vadd.f32 %v1125, %v1529
      %v1546 = vadd.f32 %v1126, %v1530
      %v1547 = vadd.f32 %v1127, %v1531
      %v1548 = vadd.f32 %v1128, %v1532
      %v1549 = vadd.f32 %v1129, %v1533
      %v1550 = vadd.f32 %v1130, %v1534
      %v1551 = vadd.f32 %v1131, %v1535
      %v1552 = vadd.f32 %v1132, %v1536
      %v1553 = vadd.f32 %v1133, %v1537
      %v1554 = vadd.f32 %v1134, %v1538
      %v1555 = vadd.f32 %v1135, %v1539
      %v1556 = vadd.f32 %v1136, %v1540
      %v1557 = vadd.f32 %v1137, %v1541
      %v1558 = vld [vmem:[#allocation2 + $0x10] sm:$0xff]
      %v1559 = vld [vmem:[#allocation2 + $0x28] sm:$0xff]
      %v1560 = vld [vmem:[#allocation2 + $0x40] sm:$0xff]
      %v1561 = vld [vmem:[#allocation2 + $0x58] sm:$0xff]
      %v1562 = vld [vmem:[#allocation2 + $0x70] sm:$0xff]
      %v1563 = vld [vmem:[#allocation2 + $0x88] sm:$0xff]
      %v1564 = vld [vmem:[#allocation2 + $0xa0] sm:$0xff]
      %v1565 = vld [vmem:[#allocation2 + $0xb8] sm:$0xff]
      %v1566 = vld [vmem:[#allocation2 + $0xd0] sm:$0xff]
      %v1567 = vld [vmem:[#allocation2 + $0xe8] sm:$0xff]
      %v1568 = vld [vmem:[#allocation2 + $0x100] sm:$0xff]
      %v1569 = vld [vmem:[#allocation2 + $0x118] sm:$0xff]
      %v1570 = vld [vmem:[#allocation2 + $0x130] sm:$0xff]
      %v1571 = vld [vmem:[#allocation2 + $0x148] sm:$0xff]
      %v1572 = vld [vmem:[#allocation2 + $0x160] sm:$0xff]
      %v1573 = vld [vmem:[#allocation2 + $0x178] sm:$0xff]
      %s1574 = scalar_lea.vmem %s4, 128
      %v1575 = vld [vmem:[%s1574] sm:$0xf]
      %v1576 = vld [vmem:[%s1574 + $0x4] sm:$0xf]
      %v1577 = vld [vmem:[%s1574 + $0x8] sm:$0xf]
      %v1578 = vld [vmem:[%s1574 + $0xc] sm:$0xf]
      %v1579 = vld [vmem:[%s1574 + $0x10] sm:$0xf]
      %v1580 = vld [vmem:[%s1574 + $0x14] sm:$0xf]
      %v1581 = vld [vmem:[%s1574 + $0x18] sm:$0xf]
      %v1582 = vld [vmem:[%s1574 + $0x1c] sm:$0xf]
      %v1583 = vld [vmem:[%s1574 + $0x20] sm:$0xf]
      %v1584 = vld [vmem:[%s1574 + $0x24] sm:$0xf]
      %v1585 = vld [vmem:[%s1574 + $0x28] sm:$0xf]
      %v1586 = vld [vmem:[%s1574 + $0x2c] sm:$0xf]
      %v1587 = vld [vmem:[%s1574 + $0x30] sm:$0xf]
      %v1588 = vld [vmem:[%s1574 + $0x34] sm:$0xf]
      %v1589 = vld [vmem:[%s1574 + $0x38] sm:$0xf]
      %v1590 = vld [vmem:[%s1574 + $0x3c] sm:$0xf]
      %s1591 = scalar_lea.vmem %s5, 2
      %v1592 = vld [vmem:[%s1591] sm:$0x1]
      %v1593 = vpack.c.bf16 %v1559, %v1558
      %v1594 = vpack.c.bf16 %v1561, %v1560
      %v1595 = vpack.c.bf16 %v1563, %v1562
      %v1596 = vpack.c.bf16 %v1565, %v1564
      %v1597 = vpack.c.bf16 %v1567, %v1566
      %v1598 = vpack.c.bf16 %v1569, %v1568
      %v1599 = vpack.c.bf16 %v1571, %v1570
      %v1600 = vpack.c.bf16 %v1573, %v1572
      %v1602 = vlaneseq
      %v1603 = vshrl.u32 %v1602, 7
      %v1604 = vsub.s32 0, %v1603
      %v1605 = vrot.slane %v1592, %v1604
      %v1623 = vunpack.c.l.b16 %v1575
      %v1624 = vunpack.c.l.b16 %v1576
      %v1625 = vunpack.c.l.b16 %v1577
      %v1626 = vunpack.c.l.b16 %v1578
      %v1627 = vunpack.c.l.b16 %v1579
      %v1628 = vunpack.c.l.b16 %v1580
      %v1629 = vunpack.c.l.b16 %v1581
      %v1630 = vunpack.c.l.b16 %v1582
      %v1631 = vunpack.c.l.b16 %v1583
      %v1632 = vunpack.c.l.b16 %v1584
      %v1633 = vunpack.c.l.b16 %v1585
      %v1634 = vunpack.c.l.b16 %v1586
      %v1635 = vunpack.c.l.b16 %v1587
      %v1636 = vunpack.c.l.b16 %v1588
      %v1637 = vunpack.c.l.b16 %v1589
      %v1638 = vunpack.c.l.b16 %v1590
      %v1639 = vpack.c.b16 %v1624, %v1623
      %v1640 = vpack.c.b16 %v1626, %v1625
      %v1641 = vpack.c.b16 %v1628, %v1627
      %v1642 = vpack.c.b16 %v1630, %v1629
      %v1643 = vpack.c.b16 %v1632, %v1631
      %v1644 = vpack.c.b16 %v1634, %v1633
      %v1645 = vpack.c.b16 %v1636, %v1635
      %v1646 = vpack.c.b16 %v1638, %v1637
      %1655 = vmatprep.subr.bf16.mxu0 0
      %1656 = vmatpush1.bf16.msra.mxu0 %v1639
      %1657 = vmatprep.subr.bf16.mxu0 0
      %1658 = vmatpush1.bf16.msra.mxu0 %v1640
      %1659 = vmatprep.subr.bf16.mxu0 0
      %1660 = vmatpush1.bf16.msra.mxu0 %v1641
      %1661 = vmatprep.subr.bf16.mxu0 0
      %1662 = vmatpush1.bf16.msra.mxu0 %v1642
      %1663 = vmatprep.subr.bf16.mxu0 0
      %1664 = vmatpush1.bf16.msra.mxu0 %v1643
      %1665 = vmatprep.subr.bf16.mxu0 0
      %1666 = vmatpush1.bf16.msra.mxu0 %v1644
      %1667 = vmatprep.subr.bf16.mxu0 0
      %1668 = vmatpush1.bf16.msra.mxu0 %v1645
      %1669 = vmatprep.subr.bf16.mxu0 0
      %1670 = vmatpush1.bf16.msra.mxu0 %v1646
      %1671 = vmatprep.subr.bf16.mxu0 0
      %1672 = vmatpush1.bf16.msra.mxu0 0
      %1673 = vmatprep.subr.bf16.mxu0 0
      %1674 = vmatpush1.bf16.msra.mxu0 0
      %1675 = vmatprep.subr.bf16.mxu0 0
      %1676 = vmatpush1.bf16.msra.mxu0 0
      %1677 = vmatprep.subr.bf16.mxu0 0
      %1678 = vmatpush1.bf16.msra.mxu0 0
      %1679 = vmatprep.subr.bf16.mxu0 0
      %1680 = vmatpush1.bf16.msra.mxu0 0
      %1681 = vmatprep.subr.bf16.mxu0 0
      %1682 = vmatpush1.bf16.msra.mxu0 0
      %1683 = vmatprep.subr.bf16.mxu0 0
      %1684 = vmatpush1.bf16.msra.mxu0 0
      %1685 = vmatprep.subr.bf16.mxu0 0
      %1686 = vmatpush1.bf16.msra.mxu0 0
      %1687 = vmatprep.mubr.bf16.mxu0 0
      %1688 = vmatmul.mubr.bf16.gmra.mrb[0].mxu0 %v1593
      %v1689 = vpop.f32.mrb[0].mxu0
      %v1690 = vadd.f32 %v1605, %v1689
      %v1691 = vpop.f32.mrb[0].mxu0
      %v1692 = vpop.f32.mrb[0].mxu0
      %v1693 = vadd.f32 %v1605, %v1692
      %v1694 = vpop.f32.mrb[0].mxu0
      %1695 = vmatprep.mubr.bf16.mxu0 0
      %1696 = vmatmul.mubr.bf16.gmra.mrb[0].mxu0 %v1594
      %v1697 = vpop.f32.mrb[0].mxu0
      %v1698 = vadd.f32 %v1605, %v1697
      %v1699 = vpop.f32.mrb[0].mxu0
      %v1700 = vpop.f32.mrb[0].mxu0
      %v1701 = vadd.f32 %v1605, %v1700
      %v1702 = vpop.f32.mrb[0].mxu0
      %1703 = vmatprep.mubr.bf16.mxu0 0
      %1704 = vmatmul.mubr.bf16.gmra.mrb[0].mxu0 %v1595
      %v1705 = vpop.f32.mrb[0].mxu0
      %v1706 = vadd.f32 %v1605, %v1705
      %v1707 = vpop.f32.mrb[0].mxu0
      %v1708 = vpop.f32.mrb[0].mxu0
      %v1709 = vadd.f32 %v1605, %v1708
      %v1710 = vpop.f32.mrb[0].mxu0
      %1711 = vmatprep.mubr.bf16.mxu0 0
      %1712 = vmatmul.mubr.bf16.gmra.mrb[0].mxu0 %v1596
      %v1713 = vpop.f32.mrb[0].mxu0
      %v1714 = vadd.f32 %v1605, %v1713
      %v1715 = vpop.f32.mrb[0].mxu0
      %v1716 = vpop.f32.mrb[0].mxu0
      %v1717 = vadd.f32 %v1605, %v1716
      %v1718 = vpop.f32.mrb[0].mxu0
      %1719 = vmatprep.mubr.bf16.mxu0 0
      %1720 = vmatmul.mubr.bf16.gmra.mrb[0].mxu0 %v1597
      %v1721 = vpop.f32.mrb[0].mxu0
      %v1722 = vadd.f32 %v1605, %v1721
      %v1723 = vpop.f32.mrb[0].mxu0
      %v1724 = vpop.f32.mrb[0].mxu0
      %v1725 = vadd.f32 %v1605, %v1724
      %v1726 = vpop.f32.mrb[0].mxu0
      %1727 = vmatprep.mubr.bf16.mxu0 0
      %1728 = vmatmul.mubr.bf16.gmra.mrb[0].mxu0 %v1598
      %v1729 = vpop.f32.mrb[0].mxu0
      %v1730 = vadd.f32 %v1605, %v1729
      %v1731 = vpop.f32.mrb[0].mxu0
      %v1732 = vpop.f32.mrb[0].mxu0
      %v1733 = vadd.f32 %v1605, %v1732
      %v1734 = vpop.f32.mrb[0].mxu0
      %1735 = vmatprep.mubr.bf16.mxu0 0
      %1736 = vmatmul.mubr.bf16.gmra.mrb[0].mxu0 %v1599
      %v1737 = vpop.f32.mrb[0].mxu0
      %v1738 = vadd.f32 %v1605, %v1737
      %v1739 = vpop.f32.mrb[0].mxu0
      %v1740 = vpop.f32.mrb[0].mxu0
      %v1741 = vadd.f32 %v1605, %v1740
      %v1742 = vpop.f32.mrb[0].mxu0
      %1743 = vmatprep.mubr.bf16.mxu0 0
      %1744 = vmatmul.mubr.bf16.gmra.mrb[0].mxu0 %v1600
      %v1745 = vpop.f32.mrb[0].mxu0
      %v1746 = vadd.f32 %v1605, %v1745
      %v1747 = vpop.f32.mrb[0].mxu0
      %v1748 = vpop.f32.mrb[0].mxu0
      %v1749 = vadd.f32 %v1605, %v1748
      %v1750 = vpop.f32.mrb[0].mxu0
      %1751 = vdwg.mxu0
      %v1752 = vmax.f32 %v1690, 0.0
      %v1753 = vmax.f32 %v1693, 0.0
      %v1754 = vmax.f32 %v1698, 0.0
      %v1755 = vmax.f32 %v1701, 0.0
      %v1756 = vmax.f32 %v1706, 0.0
      %v1757 = vmax.f32 %v1709, 0.0
      %v1758 = vmax.f32 %v1714, 0.0
      %v1759 = vmax.f32 %v1717, 0.0
      %v1760 = vmax.f32 %v1722, 0.0
      %v1761 = vmax.f32 %v1725, 0.0
      %v1762 = vmax.f32 %v1730, 0.0
      %v1763 = vmax.f32 %v1733, 0.0
      %v1764 = vmax.f32 %v1738, 0.0
      %v1765 = vmax.f32 %v1741, 0.0
      %v1766 = vmax.f32 %v1746, 0.0
      %v1767 = vmax.f32 %v1749, 0.0
      %s1768 = scalar_lea.vmem %s6, 128
      %v1769 = vld [vmem:[%s1768] sm:$0xf]
      %v1770 = vld [vmem:[%s1768 + $0x4] sm:$0xf]
      %v1771 = vld [vmem:[%s1768 + $0x8] sm:$0xf]
      %v1772 = vld [vmem:[%s1768 + $0xc] sm:$0xf]
      %v1773 = vld [vmem:[%s1768 + $0x10] sm:$0xf]
      %v1774 = vld [vmem:[%s1768 + $0x14] sm:$0xf]
      %v1775 = vld [vmem:[%s1768 + $0x18] sm:$0xf]
      %v1776 = vld [vmem:[%s1768 + $0x1c] sm:$0xf]
      %v1777 = vld [vmem:[%s1768 + $0x20] sm:$0xf]
      %v1778 = vld [vmem:[%s1768 + $0x24] sm:$0xf]
      %v1779 = vld [vmem:[%s1768 + $0x28] sm:$0xf]
      %v1780 = vld [vmem:[%s1768 + $0x2c] sm:$0xf]
      %v1781 = vld [vmem:[%s1768 + $0x30] sm:$0xf]
      %v1782 = vld [vmem:[%s1768 + $0x34] sm:$0xf]
      %v1783 = vld [vmem:[%s1768 + $0x38] sm:$0xf]
      %v1784 = vld [vmem:[%s1768 + $0x3c] sm:$0xf]
      %s1785 = scalar_lea.vmem %s7, 2
      %v1786 = vld [vmem:[%s1785] sm:$0x1]
      %v1787 = vpack.c.bf16 %v1753, %v1752
      %v1788 = vpack.c.bf16 %v1755, %v1754
      %v1789 = vpack.c.bf16 %v1757, %v1756
      %v1790 = vpack.c.bf16 %v1759, %v1758
      %v1791 = vpack.c.bf16 %v1761, %v1760
      %v1792 = vpack.c.bf16 %v1763, %v1762
      %v1793 = vpack.c.bf16 %v1765, %v1764
      %v1794 = vpack.c.bf16 %v1767, %v1766
      %v1796 = vlaneseq
      %v1797 = vshrl.u32 %v1796, 7
      %v1798 = vsub.s32 0, %v1797
      %v1799 = vrot.slane %v1786, %v1798
      %v1817 = vunpack.c.l.b16 %v1769
      %v1818 = vunpack.c.l.b16 %v1770
      %v1819 = vunpack.c.l.b16 %v1771
      %v1820 = vunpack.c.l.b16 %v1772
      %v1821 = vunpack.c.l.b16 %v1773
      %v1822 = vunpack.c.l.b16 %v1774
      %v1823 = vunpack.c.l.b16 %v1775
      %v1824 = vunpack.c.l.b16 %v1776
      %v1825 = vunpack.c.l.b16 %v1777
      %v1826 = vunpack.c.l.b16 %v1778
      %v1827 = vunpack.c.l.b16 %v1779
      %v1828 = vunpack.c.l.b16 %v1780
      %v1829 = vunpack.c.l.b16 %v1781
      %v1830 = vunpack.c.l.b16 %v1782
      %v1831 = vunpack.c.l.b16 %v1783
      %v1832 = vunpack.c.l.b16 %v1784
      %v1833 = vpack.c.b16 %v1818, %v1817
      %v1834 = vpack.c.b16 %v1820, %v1819
      %v1835 = vpack.c.b16 %v1822, %v1821
      %v1836 = vpack.c.b16 %v1824, %v1823
      %v1837 = vpack.c.b16 %v1826, %v1825
      %v1838 = vpack.c.b16 %v1828, %v1827
      %v1839 = vpack.c.b16 %v1830, %v1829
      %v1840 = vpack.c.b16 %v1832, %v1831
      %1849 = vmatprep.subr.bf16.mxu0 0
      %1850 = vmatpush1.bf16.msra.mxu0 %v1833
      %1851 = vmatprep.subr.bf16.mxu0 0
      %1852 = vmatpush1.bf16.msra.mxu0 %v1834
      %1853 = vmatprep.subr.bf16.mxu0 0
      %1854 = vmatpush1.bf16.msra.mxu0 %v1835
      %1855 = vmatprep.subr.bf16.mxu0 0
      %1856 = vmatpush1.bf16.msra.mxu0 %v1836
      %1857 = vmatprep.subr.bf16.mxu0 0
      %1858 = vmatpush1.bf16.msra.mxu0 %v1837
      %1859 = vmatprep.subr.bf16.mxu0 0
      %1860 = vmatpush1.bf16.msra.mxu0 %v1838
      %1861 = vmatprep.subr.bf16.mxu0 0
      %1862 = vmatpush1.bf16.msra.mxu0 %v1839
      %1863 = vmatprep.subr.bf16.mxu0 0
      %1864 = vmatpush1.bf16.msra.mxu0 %v1840
      %1865 = vmatprep.subr.bf16.mxu0 0
      %1866 = vmatpush1.bf16.msra.mxu0 0
      %1867 = vmatprep.subr.bf16.mxu0 0
      %1868 = vmatpush1.bf16.msra.mxu0 0
      %1869 = vmatprep.subr.bf16.mxu0 0
      %1870 = vmatpush1.bf16.msra.mxu0 0
      %1871 = vmatprep.subr.bf16.mxu0 0
      %1872 = vmatpush1.bf16.msra.mxu0 0
      %1873 = vmatprep.subr.bf16.mxu0 0
      %1874 = vmatpush1.bf16.msra.mxu0 0
      %1875 = vmatprep.subr.bf16.mxu0 0
      %1876 = vmatpush1.bf16.msra.mxu0 0
      %1877 = vmatprep.subr.bf16.mxu0 0
      %1878 = vmatpush1.bf16.msra.mxu0 0
      %1879 = vmatprep.subr.bf16.mxu0 0
      %1880 = vmatpush1.bf16.msra.mxu0 0
      %1881 = vmatprep.mubr.bf16.mxu0 0
      %1882 = vmatmul.mubr.bf16.gmra.mrb[0].mxu0 %v1787
      %v1883 = vpop.f32.mrb[0].mxu0
      %v1884 = vadd.f32 %v1799, %v1883
      %v1885 = vpop.f32.mrb[0].mxu0
      %v1886 = vpop.f32.mrb[0].mxu0
      %v1887 = vadd.f32 %v1799, %v1886
      %v1888 = vpop.f32.mrb[0].mxu0
      %1889 = vmatprep.mubr.bf16.mxu0 0
      %1890 = vmatmul.mubr.bf16.gmra.mrb[0].mxu0 %v1788
      %v1891 = vpop.f32.mrb[0].mxu0
      %v1892 = vadd.f32 %v1799, %v1891
      %v1893 = vpop.f32.mrb[0].mxu0
      %v1894 = vpop.f32.mrb[0].mxu0
      %v1895 = vadd.f32 %v1799, %v1894
      %v1896 = vpop.f32.mrb[0].mxu0
      %1897 = vmatprep.mubr.bf16.mxu0 0
      %1898 = vmatmul.mubr.bf16.gmra.mrb[0].mxu0 %v1789
      %v1899 = vpop.f32.mrb[0].mxu0
      %v1900 = vadd.f32 %v1799, %v1899
      %v1901 = vpop.f32.mrb[0].mxu0
      %v1902 = vpop.f32.mrb[0].mxu0
      %v1903 = vadd.f32 %v1799, %v1902
      %v1904 = vpop.f32.mrb[0].mxu0
      %1905 = vmatprep.mubr.bf16.mxu0 0
      %1906 = vmatmul.mubr.bf16.gmra.mrb[0].mxu0 %v1790
      %v1907 = vpop.f32.mrb[0].mxu0
      %v1908 = vadd.f32 %v1799, %v1907
      %v1909 = vpop.f32.mrb[0].mxu0
      %v1910 = vpop.f32.mrb[0].mxu0
      %v1911 = vadd.f32 %v1799, %v1910
      %v1912 = vpop.f32.mrb[0].mxu0
      %1913 = vmatprep.mubr.bf16.mxu0 0
      %1914 = vmatmul.mubr.bf16.gmra.mrb[0].mxu0 %v1791
      %v1915 = vpop.f32.mrb[0].mxu0
      %v1916 = vadd.f32 %v1799, %v1915
      %v1917 = vpop.f32.mrb[0].mxu0
      %v1918 = vpop.f32.mrb[0].mxu0
      %v1919 = vadd.f32 %v1799, %v1918
      %v1920 = vpop.f32.mrb[0].mxu0
      %1921 = vmatprep.mubr.bf16.mxu0 0
      %1922 = vmatmul.mubr.bf16.gmra.mrb[0].mxu0 %v1792
      %v1923 = vpop.f32.mrb[0].mxu0
      %v1924 = vadd.f32 %v1799, %v1923
      %v1925 = vpop.f32.mrb[0].mxu0
      %v1926 = vpop.f32.mrb[0].mxu0
      %v1927 = vadd.f32 %v1799, %v1926
      %v1928 = vpop.f32.mrb[0].mxu0
      %1929 = vmatprep.mubr.bf16.mxu0 0
      %1930 = vmatmul.mubr.bf16.gmra.mrb[0].mxu0 %v1793
      %v1931 = vpop.f32.mrb[0].mxu0
      %v1932 = vadd.f32 %v1799, %v1931
      %v1933 = vpop.f32.mrb[0].mxu0
      %v1934 = vpop.f32.mrb[0].mxu0
      %v1935 = vadd.f32 %v1799, %v1934
      %v1936 = vpop.f32.mrb[0].mxu0
      %1937 = vmatprep.mubr.bf16.mxu0 0
      %1938 = vmatmul.mubr.bf16.gmra.mrb[0].mxu0 %v1794
      %v1939 = vpop.f32.mrb[0].mxu0
      %v1940 = vadd.f32 %v1799, %v1939
      %v1941 = vpop.f32.mrb[0].mxu0
      %v1942 = vpop.f32.mrb[0].mxu0
      %v1943 = vadd.f32 %v1799, %v1942
      %v1944 = vpop.f32.mrb[0].mxu0
      %1945 = vdwg.mxu0
      %v1946 = vmax.f32 %v1884, 0.0
      %v1947 = vmax.f32 %v1887, 0.0
      %v1948 = vmax.f32 %v1892, 0.0
      %v1949 = vmax.f32 %v1895, 0.0
      %v1950 = vmax.f32 %v1900, 0.0
      %v1951 = vmax.f32 %v1903, 0.0
      %v1952 = vmax.f32 %v1908, 0.0
      %v1953 = vmax.f32 %v1911, 0.0
      %v1954 = vmax.f32 %v1916, 0.0
      %v1955 = vmax.f32 %v1919, 0.0
      %v1956 = vmax.f32 %v1924, 0.0
      %v1957 = vmax.f32 %v1927, 0.0
      %v1958 = vmax.f32 %v1932, 0.0
      %v1959 = vmax.f32 %v1935, 0.0
      %v1960 = vmax.f32 %v1940, 0.0
      %v1961 = vmax.f32 %v1943, 0.0
      %v1962 = vadd.f32 %v1542, %v1946
      %v1963 = vadd.f32 %v1543, %v1947
      %v1964 = vadd.f32 %v1544, %v1948
      %v1965 = vadd.f32 %v1545, %v1949
      %v1966 = vadd.f32 %v1546, %v1950
      %v1967 = vadd.f32 %v1547, %v1951
      %v1968 = vadd.f32 %v1548, %v1952
      %v1969 = vadd.f32 %v1549, %v1953
      %v1970 = vadd.f32 %v1550, %v1954
      %v1971 = vadd.f32 %v1551, %v1955
      %v1972 = vadd.f32 %v1552, %v1956
      %v1973 = vadd.f32 %v1553, %v1957
      %v1974 = vadd.f32 %v1554, %v1958
      %v1975 = vadd.f32 %v1555, %v1959
      %v1976 = vadd.f32 %v1556, %v1960
      %v1977 = vadd.f32 %v1557, %v1961
      %vm1978 = vcmp.gt.f32.partialorder %v1962, 0.0
      %vm1979 = vcmp.gt.f32.partialorder %v1963, 0.0
      %vm1980 = vcmp.gt.f32.partialorder %v1964, 0.0
      %vm1981 = vcmp.gt.f32.partialorder %v1965, 0.0
      %vm1982 = vcmp.gt.f32.partialorder %v1966, 0.0
      %vm1983 = vcmp.gt.f32.partialorder %v1967, 0.0
      %vm1984 = vcmp.gt.f32.partialorder %v1968, 0.0
      %vm1985 = vcmp.gt.f32.partialorder %v1969, 0.0
      %vm1986 = vcmp.gt.f32.partialorder %v1970, 0.0
      %vm1987 = vcmp.gt.f32.partialorder %v1971, 0.0
      %vm1988 = vcmp.gt.f32.partialorder %v1972, 0.0
      %vm1989 = vcmp.gt.f32.partialorder %v1973, 0.0
      %vm1990 = vcmp.gt.f32.partialorder %v1974, 0.0
      %vm1991 = vcmp.gt.f32.partialorder %v1975, 0.0
      %vm1992 = vcmp.gt.f32.partialorder %v1976, 0.0
      %vm1993 = vcmp.gt.f32.partialorder %v1977, 0.0
      %v1994 = vmin.f32 %v1962, 0.0
      %v1995 = vmin.f32 %v1963, 0.0
      %v1996 = vmin.f32 %v1964, 0.0
      %v1997 = vmin.f32 %v1965, 0.0
      %v1998 = vmin.f32 %v1966, 0.0
      %v1999 = vmin.f32 %v1967, 0.0
      %v2000 = vmin.f32 %v1968, 0.0
      %v2001 = vmin.f32 %v1969, 0.0
      %v2002 = vmin.f32 %v1970, 0.0
      %v2003 = vmin.f32 %v1971, 0.0
      %v2004 = vmin.f32 %v1972, 0.0
      %v2005 = vmin.f32 %v1973, 0.0
      %v2006 = vmin.f32 %v1974, 0.0
      %v2007 = vmin.f32 %v1975, 0.0
      %v2008 = vmin.f32 %v1976, 0.0
      %v2009 = vmin.f32 %v1977, 0.0
      %v2010 = vmul.f32 %v1994, 1.442695
      %v2011 = vpow.pop %v2010
      %v2012 = vmul.f32 %v1995, 1.442695
      %v2013 = vpow.pop %v2012
      %v2014 = vmul.f32 %v1996, 1.442695
      %v2015 = vpow.pop %v2014
      %v2016 = vmul.f32 %v1997, 1.442695
      %v2017 = vpow.pop %v2016
      %v2018 = vmul.f32 %v1998, 1.442695
      %v2019 = vpow.pop %v2018
      %v2020 = vmul.f32 %v1999, 1.442695
      %v2021 = vpow.pop %v2020
      %v2022 = vmul.f32 %v2000, 1.442695
      %v2023 = vpow.pop %v2022
      %v2024 = vmul.f32 %v2001, 1.442695
      %v2025 = vpow.pop %v2024
      %v2026 = vmul.f32 %v2002, 1.442695
      %v2027 = vpow.pop %v2026
      %v2028 = vmul.f32 %v2003, 1.442695
      %v2029 = vpow.pop %v2028
      %v2030 = vmul.f32 %v2004, 1.442695
      %v2031 = vpow.pop %v2030
      %v2032 = vmul.f32 %v2005, 1.442695
      %v2033 = vpow.pop %v2032
      %v2034 = vmul.f32 %v2006, 1.442695
      %v2035 = vpow.pop %v2034
      %v2036 = vmul.f32 %v2007, 1.442695
      %v2037 = vpow.pop %v2036
      %v2038 = vmul.f32 %v2008, 1.442695
      %v2039 = vpow.pop %v2038
      %v2040 = vmul.f32 %v2009, 1.442695
      %v2041 = vpow.pop %v2040
      %v2042 = vsub.f32 %v2011, 1.0
      %v2043 = vsub.f32 %v2013, 1.0
      %v2044 = vsub.f32 %v2015, 1.0
      %v2045 = vsub.f32 %v2017, 1.0
      %v2046 = vsub.f32 %v2019, 1.0
      %v2047 = vsub.f32 %v2021, 1.0
      %v2048 = vsub.f32 %v2023, 1.0
      %v2049 = vsub.f32 %v2025, 1.0
      %v2050 = vsub.f32 %v2027, 1.0
      %v2051 = vsub.f32 %v2029, 1.0
      %v2052 = vsub.f32 %v2031, 1.0
      %v2053 = vsub.f32 %v2033, 1.0
      %v2054 = vsub.f32 %v2035, 1.0
      %v2055 = vsub.f32 %v2037, 1.0
      %v2056 = vsub.f32 %v2039, 1.0
      %v2057 = vsub.f32 %v2041, 1.0
      %v2058 = vmul.f32 %v2042, 1.6732632
      %v2059 = vmul.f32 %v2043, 1.6732632
      %v2060 = vmul.f32 %v2044, 1.6732632
      %v2061 = vmul.f32 %v2045, 1.6732632
      %v2062 = vmul.f32 %v2046, 1.6732632
      %v2063 = vmul.f32 %v2047, 1.6732632
      %v2064 = vmul.f32 %v2048, 1.6732632
      %v2065 = vmul.f32 %v2049, 1.6732632
      %v2066 = vmul.f32 %v2050, 1.6732632
      %v2067 = vmul.f32 %v2051, 1.6732632
      %v2068 = vmul.f32 %v2052, 1.6732632
      %v2069 = vmul.f32 %v2053, 1.6732632
      %v2070 = vmul.f32 %v2054, 1.6732632
      %v2071 = vmul.f32 %v2055, 1.6732632
      %v2072 = vmul.f32 %v2056, 1.6732632
      %v2073 = vmul.f32 %v2057, 1.6732632
      %v2074 = vsel %vm1978, %v1962, %v2058
      %v2075 = vsel %vm1979, %v1963, %v2059
      %v2076 = vsel %vm1980, %v1964, %v2060
      %v2077 = vsel %vm1981, %v1965, %v2061
      %v2078 = vsel %vm1982, %v1966, %v2062
      %v2079 = vsel %vm1983, %v1967, %v2063
      %v2080 = vsel %vm1984, %v1968, %v2064
      %v2081 = vsel %vm1985, %v1969, %v2065
      %v2082 = vsel %vm1986, %v1970, %v2066
      %v2083 = vsel %vm1987, %v1971, %v2067
      %v2084 = vsel %vm1988, %v1972, %v2068
      %v2085 = vsel %vm1989, %v1973, %v2069
      %v2086 = vsel %vm1990, %v1974, %v2070
      %v2087 = vsel %vm1991, %v1975, %v2071
      %v2088 = vsel %vm1992, %v1976, %v2072
      %v2089 = vsel %vm1993, %v1977, %v2073
      %v2090 = vmul.f32 %v2074, 1.050701
      %v2091 = vmul.f32 %v2075, 1.050701
      %v2092 = vmul.f32 %v2076, 1.050701
      %v2093 = vmul.f32 %v2077, 1.050701
      %v2094 = vmul.f32 %v2078, 1.050701
      %v2095 = vmul.f32 %v2079, 1.050701
      %v2096 = vmul.f32 %v2080, 1.050701
      %v2097 = vmul.f32 %v2081, 1.050701
      %v2098 = vmul.f32 %v2082, 1.050701
      %v2099 = vmul.f32 %v2083, 1.050701
      %v2100 = vmul.f32 %v2084, 1.050701
      %v2101 = vmul.f32 %v2085, 1.050701
      %v2102 = vmul.f32 %v2086, 1.050701
      %v2103 = vmul.f32 %v2087, 1.050701
      %v2104 = vmul.f32 %v2088, 1.050701
      %v2105 = vmul.f32 %v2089, 1.050701
      %v2106 = vlaneseq
      %v2107 = vshrl.u32 %v2106, 7
      %v2108 = vadd.s32 %v2107, 8
      %v2109 = vadd.s32 %v2107, 16
      %v2110 = vadd.s32 %v2107, 24
      %v2111 = vadd.s32 %v2107, 32
      %v2112 = vadd.s32 %v2107, 40
      %v2113 = vadd.s32 %v2107, 48
      %v2114 = vadd.s32 %v2107, 56
      %v2115 = vadd.s32 %v2107, 64
      %v2116 = vadd.s32 %v2107, 72
      %v2117 = vadd.s32 %v2107, 80
      %v2118 = vadd.s32 %v2107, 88
      %v2119 = vadd.s32 %v2107, 96
      %v2120 = vadd.s32 %v2107, 104
      %v2121 = vadd.s32 %v2107, 112
      %v2122 = vadd.s32 %v2107, 120
      %v2123 = vstv %s35
      %v2124 = vadd.s32 %v2107, %v2123
      %v2125 = vadd.s32 %v2108, %v2123
      %v2126 = vadd.s32 %v2109, %v2123
      %v2127 = vadd.s32 %v2110, %v2123
      %v2128 = vadd.s32 %v2111, %v2123
      %v2129 = vadd.s32 %v2112, %v2123
      %v2130 = vadd.s32 %v2113, %v2123
      %v2131 = vadd.s32 %v2114, %v2123
      %v2132 = vadd.s32 %v2115, %v2123
      %v2133 = vadd.s32 %v2116, %v2123
      %v2134 = vadd.s32 %v2117, %v2123
      %v2135 = vadd.s32 %v2118, %v2123
      %v2136 = vadd.s32 %v2119, %v2123
      %v2137 = vadd.s32 %v2120, %v2123
      %v2138 = vadd.s32 %v2121, %v2123
      %v2139 = vadd.s32 %v2122, %v2123
      %vm2140 = vcmp.lt.s32.totalorder %v2124, 16
      %vm2141 = vcmp.lt.s32.totalorder %v2125, 16
      %vm2142 = vcmp.lt.s32.totalorder %v2126, 16
      %vm2143 = vcmp.lt.s32.totalorder %v2127, 16
      %vm2144 = vcmp.lt.s32.totalorder %v2128, 16
      %vm2145 = vcmp.lt.s32.totalorder %v2129, 16
      %vm2146 = vcmp.lt.s32.totalorder %v2130, 16
      %vm2147 = vcmp.lt.s32.totalorder %v2131, 16
      %vm2148 = vcmp.lt.s32.totalorder %v2132, 16
      %vm2149 = vcmp.lt.s32.totalorder %v2133, 16
      %vm2150 = vcmp.lt.s32.totalorder %v2134, 16
      %vm2151 = vcmp.lt.s32.totalorder %v2135, 16
      %vm2152 = vcmp.lt.s32.totalorder %v2136, 16
      %vm2153 = vcmp.lt.s32.totalorder %v2137, 16
      %vm2154 = vcmp.lt.s32.totalorder %v2138, 16
      %vm2155 = vcmp.lt.s32.totalorder %v2139, 16
      %v2156 = vsel %vm2140, %v2090, 0.0
      %v2157 = vsel %vm2141, %v2091, 0.0
      %v2158 = vsel %vm2142, %v2092, 0.0
      %v2159 = vsel %vm2143, %v2093, 0.0
      %v2160 = vsel %vm2144, %v2094, 0.0
      %v2161 = vsel %vm2145, %v2095, 0.0
      %v2162 = vsel %vm2146, %v2096, 0.0
      %v2163 = vsel %vm2147, %v2097, 0.0
      %v2164 = vsel %vm2148, %v2098, 0.0
      %v2165 = vsel %vm2149, %v2099, 0.0
      %v2166 = vsel %vm2150, %v2100, 0.0
      %v2167 = vsel %vm2151, %v2101, 0.0
      %v2168 = vsel %vm2152, %v2102, 0.0
      %v2169 = vsel %vm2153, %v2103, 0.0
      %v2170 = vsel %vm2154, %v2104, 0.0
      %v2171 = vsel %vm2155, %v2105, 0.0
      %v2172 = vpack.c.bf16 %v2157, %v2156
      %v2173 = vpack.c.bf16 %v2159, %v2158
      %v2174 = vpack.c.bf16 %v2161, %v2160
      %v2175 = vpack.c.bf16 %v2163, %v2162
      %v2176 = vpack.c.bf16 %v2165, %v2164
      %v2177 = vpack.c.bf16 %v2167, %v2166
      %v2178 = vpack.c.bf16 %v2169, %v2168
      %v2179 = vpack.c.bf16 %v2171, %v2170
      %v2188 = vunpack.c.l.b16 %v2172
      %v2189 = vunpack.c.h.b16 %v2172
      %v2190 = vunpack.c.l.b16 %v2173
      %v2191 = vunpack.c.h.b16 %v2173
      %v2192 = vunpack.c.l.b16 %v2174
      %v2193 = vunpack.c.h.b16 %v2174
      %v2194 = vunpack.c.l.b16 %v2175
      %v2195 = vunpack.c.h.b16 %v2175
      %v2196 = vunpack.c.l.b16 %v2176
      %v2197 = vunpack.c.h.b16 %v2176
      %v2198 = vunpack.c.l.b16 %v2177
      %v2199 = vunpack.c.h.b16 %v2177
      %v2200 = vunpack.c.l.b16 %v2178
      %v2201 = vunpack.c.h.b16 %v2178
      %v2202 = vunpack.c.l.b16 %v2179
      %v2203 = vunpack.c.h.b16 %v2179
      %v2204 = vpack.c.b16 %v2188, %v2188
      %v2205 = vpack.c.b16 %v2189, %v2189
      %v2206 = vpack.c.b16 %v2190, %v2190
      %v2207 = vpack.c.b16 %v2191, %v2191
      %v2208 = vpack.c.b16 %v2192, %v2192
      %v2209 = vpack.c.b16 %v2193, %v2193
      %v2210 = vpack.c.b16 %v2194, %v2194
      %v2211 = vpack.c.b16 %v2195, %v2195
      %v2212 = vpack.c.b16 %v2196, %v2196
      %v2213 = vpack.c.b16 %v2197, %v2197
      %v2214 = vpack.c.b16 %v2198, %v2198
      %v2215 = vpack.c.b16 %v2199, %v2199
      %v2216 = vpack.c.b16 %v2200, %v2200
      %v2217 = vpack.c.b16 %v2201, %v2201
      %v2218 = vpack.c.b16 %v2202, %v2202
      %v2219 = vpack.c.b16 %v2203, %v2203
      %2236 = vst [vmem:[#allocation3] sm:$0xf] %v2204
      %2237 = vst [vmem:[#allocation3 + $0x4] sm:$0xf] %v2205
      %2238 = vst [vmem:[#allocation3 + $0x8] sm:$0xf] %v2206
      %2239 = vst [vmem:[#allocation3 + $0xc] sm:$0xf] %v2207
      %2240 = vst [vmem:[#allocation3 + $0x10] sm:$0xf] %v2208
      %2241 = vst [vmem:[#allocation3 + $0x14] sm:$0xf] %v2209
      %2242 = vst [vmem:[#allocation3 + $0x18] sm:$0xf] %v2210
      %2243 = vst [vmem:[#allocation3 + $0x1c] sm:$0xf] %v2211
      %2244 = vst [vmem:[#allocation3 + $0x20] sm:$0xf] %v2212
      %2245 = vst [vmem:[#allocation3 + $0x24] sm:$0xf] %v2213
      %2246 = vst [vmem:[#allocation3 + $0x28] sm:$0xf] %v2214
      %2247 = vst [vmem:[#allocation3 + $0x2c] sm:$0xf] %v2215
      %2248 = vst [vmem:[#allocation3 + $0x30] sm:$0xf] %v2216
      %2249 = vst [vmem:[#allocation3 + $0x34] sm:$0xf] %v2217
      %2250 = vst [vmem:[#allocation3 + $0x38] sm:$0xf] %v2218
      %2251 = vst [vmem:[#allocation3 + $0x3c] sm:$0xf] %v2219
      %v2252 = vadd.f32 %v2156, %v2157
      %v2253 = vadd.f32 %v2252, %v2158
      %v2254 = vadd.f32 %v2253, %v2159
      %v2255 = vadd.f32 %v2254, %v2160
      %v2256 = vadd.f32 %v2255, %v2161
      %v2257 = vadd.f32 %v2256, %v2162
      %v2258 = vadd.f32 %v2257, %v2163
      %v2259 = vadd.f32 %v2258, %v2164
      %v2260 = vadd.f32 %v2259, %v2165
      %v2261 = vadd.f32 %v2260, %v2166
      %v2262 = vadd.f32 %v2261, %v2167
      %v2263 = vadd.f32 %v2262, %v2168
      %v2264 = vadd.f32 %v2263, %v2169
      %v2265 = vadd.f32 %v2264, %v2170
      %v2266 = vadd.f32 %v2265, %v2171
      %v2267 = vrot.slane %v2266, 4
      %v2268 = vadd.f32 %v2266, %v2267
      %v2269 = vrot.slane %v2268, 2
      %v2270 = vadd.f32 %v2268, %v2269
      %v2271 = vrot.slane %v2270, 1
      %v2272 = vadd.f32 %v2270, %v2271
      %v2273 = vmul.f32 %v2156, %v2156
      %v2274 = vmul.f32 %v2157, %v2157
      %v2275 = vmul.f32 %v2158, %v2158
      %v2276 = vmul.f32 %v2159, %v2159
      %v2277 = vmul.f32 %v2160, %v2160
      %v2278 = vmul.f32 %v2161, %v2161
      %v2279 = vmul.f32 %v2162, %v2162
      %v2280 = vmul.f32 %v2163, %v2163
      %v2281 = vmul.f32 %v2164, %v2164
      %v2282 = vmul.f32 %v2165, %v2165
      %v2283 = vmul.f32 %v2166, %v2166
      %v2284 = vmul.f32 %v2167, %v2167
      %v2285 = vmul.f32 %v2168, %v2168
      %v2286 = vmul.f32 %v2169, %v2169
      %v2287 = vmul.f32 %v2170, %v2170
      %v2288 = vmul.f32 %v2171, %v2171
      %v2289 = vadd.f32 %v2273, %v2274
      %v2290 = vadd.f32 %v2289, %v2275
      %v2291 = vadd.f32 %v2290, %v2276
      %v2292 = vadd.f32 %v2291, %v2277
      %v2293 = vadd.f32 %v2292, %v2278
      %v2294 = vadd.f32 %v2293, %v2279
      %v2295 = vadd.f32 %v2294, %v2280
      %v2296 = vadd.f32 %v2295, %v2281
      %v2297 = vadd.f32 %v2296, %v2282
      %v2298 = vadd.f32 %v2297, %v2283
      %v2299 = vadd.f32 %v2298, %v2284
      %v2300 = vadd.f32 %v2299, %v2285
      %v2301 = vadd.f32 %v2300, %v2286
      %v2302 = vadd.f32 %v2301, %v2287
      %v2303 = vadd.f32 %v2302, %v2288
      %v2304 = vrot.slane %v2303, 4
      %v2305 = vadd.f32 %v2303, %v2304
      %v2306 = vrot.slane %v2305, 2
      %v2307 = vadd.f32 %v2305, %v2306
      %v2308 = vrot.slane %v2307, 1
      %v2309 = vadd.f32 %v2307, %v2308
      %2310 = vst [vmem:[%s9] sm:$0xff] %v2272
      %2311 = vst [vmem:[%s10] sm:$0xff] %v2309
    $region61: #{graph_encoder_forward.3} parent=1 // pred_fallthru
      _
    // Predicated region
    $region62: #{graph_encoder_forward.3} parent=1 // pred_check
      _
    $region63: #{graph_encoder_forward.3} parent=1 // pred_check_branch
      %2313 = sbr.rel (0) target = $region65
    $region64: #{graph_encoder_forward.3} parent=1 // pred_region
      %s2314 = scalar_lea.vmem %s8, 4
      // Predicated region
      $region66: #{graph_encoder_forward.3} parent=64 // pred_check
        _
      $region67: #{graph_encoder_forward.3} parent=64 // pred_check_branch
        %2316 = sbr.rel (0) target = $region69
      $region68: #{graph_encoder_forward.3} parent=64 // pred_region
        // Predicated region
        $region70: #{graph_encoder_forward.3} parent=68 // pred_check
          _
        $region71: #{graph_encoder_forward.3} parent=68 // pred_check_branch
          %2318 = sbr.rel target = $region73
        $region72: #{graph_encoder_forward.3} parent=68 // pred_region
          // Predicated region
          $region85: #{graph_encoder_forward.3} parent=72 // pred_check
            _
          $region86: #{graph_encoder_forward.3} parent=72 // pred_check_branch
            %2363 = sbr.rel (0) target = $region88
          $region87: #{graph_encoder_forward.3} parent=72 // pred_region
            loop: start=0, step=1, limit=1
            $region89: #{graph_encoder_forward.3} parent=87 // loop_pre_header
              _
            $region90: #{graph_encoder_forward.3} parent=87 // loop_header
              %s2365 = sphi 0, %s2369
              %p2366 = scmp.ge.s32.totalorder %s2365, 1
              %s2370 = sphi [#allocation3], [#allocation3]
              %s2371 = sphi %s2314, %s2314
            $region91: #{graph_encoder_forward.3} parent=87 // loop_header_branch
              %2368 = sbr.rel (%p2366) target = $region95
            $region92: #{graph_encoder_forward.3} parent=87 // loop_body
              _
            $region93: #{graph_encoder_forward.3} parent=87 // loop_footer
              %s2369 = sadd.s32 1, %s2365
            $region94: #{graph_encoder_forward.3} parent=87 // loop_footer_branch
              %2364 = sbr.rel target = $region90
            $region95: #{graph_encoder_forward.3} parent=87 // loop_exit
              _
            loop: start=0, step=1, limit=1
            $region96: #{graph_encoder_forward.3} parent=87 // loop_pre_header
              _
            $region97: #{graph_encoder_forward.3} parent=87 // loop_header
              %s2374 = sphi 0, %s2378
              %p2375 = scmp.ge.s32.totalorder %s2374, 1
              %s2379 = sphi [#allocation3], [#allocation3]
              %s2380 = sphi %s2314, %s2314
            $region98: #{graph_encoder_forward.3} parent=87 // loop_header_branch
              %2377 = sbr.rel (%p2375) target = $region102
            $region99: #{graph_encoder_forward.3} parent=87 // loop_body
              %v2381 = vld [vmem:[%s2379] sm:$0xf]
              %2382 = vst [vmem:[%s2380] sm:$0xf] %v2381
              %v2383 = vld [vmem:[%s2379 + $0x4] sm:$0xf]
              %2384 = vst [vmem:[%s2380 + $0xc] sm:$0xf] %v2383
              %v2385 = vld [vmem:[%s2379 + $0x8] sm:$0xf]
              %2386 = vst [vmem:[%s2380 + $0x18] sm:$0xf] %v2385
              %v2387 = vld [vmem:[%s2379 + $0xc] sm:$0xf]
              %2388 = vst [vmem:[%s2380 + $0x24] sm:$0xf] %v2387
              %v2389 = vld [vmem:[%s2379 + $0x10] sm:$0xf]
              %2390 = vst [vmem:[%s2380 + $0x30] sm:$0xf] %v2389
              %v2391 = vld [vmem:[%s2379 + $0x14] sm:$0xf]
              %2392 = vst [vmem:[%s2380 + $0x3c] sm:$0xf] %v2391
              %v2393 = vld [vmem:[%s2379 + $0x18] sm:$0xf]
              %2394 = vst [vmem:[%s2380 + $0x48] sm:$0xf] %v2393
              %v2395 = vld [vmem:[%s2379 + $0x1c] sm:$0xf]
              %2396 = vst [vmem:[%s2380 + $0x54] sm:$0xf] %v2395
              %v2397 = vld [vmem:[%s2379 + $0x20] sm:$0xf]
              %2398 = vst [vmem:[%s2380 + $0x60] sm:$0xf] %v2397
              %v2399 = vld [vmem:[%s2379 + $0x24] sm:$0xf]
              %2400 = vst [vmem:[%s2380 + $0x6c] sm:$0xf] %v2399
              %v2401 = vld [vmem:[%s2379 + $0x28] sm:$0xf]
              %2402 = vst [vmem:[%s2380 + $0x78] sm:$0xf] %v2401
              %v2403 = vld [vmem:[%s2379 + $0x2c] sm:$0xf]
              %2404 = vst [vmem:[%s2380 + $0x84] sm:$0xf] %v2403
              %v2405 = vld [vmem:[%s2379 + $0x30] sm:$0xf]
              %2406 = vst [vmem:[%s2380 + $0x90] sm:$0xf] %v2405
              %v2407 = vld [vmem:[%s2379 + $0x34] sm:$0xf]
              %2408 = vst [vmem:[%s2380 + $0x9c] sm:$0xf] %v2407
              %v2409 = vld [vmem:[%s2379 + $0x38] sm:$0xf]
              %2410 = vst [vmem:[%s2380 + $0xa8] sm:$0xf] %v2409
              %v2411 = vld [vmem:[%s2379 + $0x3c] sm:$0xf]
              %2412 = vst [vmem:[%s2380 + $0xb4] sm:$0xf] %v2411
            $region100: #{graph_encoder_forward.3} parent=87 // loop_footer
              %s2378 = sadd.s32 1, %s2374
            $region101: #{graph_encoder_forward.3} parent=87 // loop_footer_branch
              %2373 = sbr.rel target = $region97
            $region102: #{graph_encoder_forward.3} parent=87 // loop_exit
              _
          $region88: #{graph_encoder_forward.3} parent=72 // pred_fallthru
            _
        $region73: #{graph_encoder_forward.3} parent=68 // pred_fallthru
          _
        // Predicated region
        $region74: #{graph_encoder_forward.3} parent=68 // pred_check
          _
        $region75: #{graph_encoder_forward.3} parent=68 // pred_check_branch
          %2320 = sbr.rel (0) target = $region77
        $region76: #{graph_encoder_forward.3} parent=68 // pred_region
          loop: start=0, step=1, limit=1
          $region78: #{graph_encoder_forward.3} parent=76 // loop_pre_header
            _
          $region79: #{graph_encoder_forward.3} parent=76 // loop_header
            %s2323 = sphi 0, %s2327
            %p2324 = scmp.ge.s32.totalorder %s2323, 1
            %s2328 = sphi [#allocation3], [#allocation3]
            %s2329 = sphi %s2314, %s2314
          $region80: #{graph_encoder_forward.3} parent=76 // loop_header_branch
            %2326 = sbr.rel (%p2324) target = $region84
          $region81: #{graph_encoder_forward.3} parent=76 // loop_body
            %v2330 = vld [vmem:[%s2328] sm:$0xf]
            %2331 = vst [vmem:[%s2329] sm:$0xf] %v2330
            %v2332 = vld [vmem:[%s2328 + $0x4] sm:$0xf]
            %2333 = vst [vmem:[%s2329 + $0xc] sm:$0xf] %v2332
            %v2334 = vld [vmem:[%s2328 + $0x8] sm:$0xf]
            %2335 = vst [vmem:[%s2329 + $0x18] sm:$0xf] %v2334
            %v2336 = vld [vmem:[%s2328 + $0xc] sm:$0xf]
            %2337 = vst [vmem:[%s2329 + $0x24] sm:$0xf] %v2336
            %v2338 = vld [vmem:[%s2328 + $0x10] sm:$0xf]
            %2339 = vst [vmem:[%s2329 + $0x30] sm:$0xf] %v2338
            %v2340 = vld [vmem:[%s2328 + $0x14] sm:$0xf]
            %2341 = vst [vmem:[%s2329 + $0x3c] sm:$0xf] %v2340
            %v2342 = vld [vmem:[%s2328 + $0x18] sm:$0xf]
            %2343 = vst [vmem:[%s2329 + $0x48] sm:$0xf] %v2342
            %v2344 = vld [vmem:[%s2328 + $0x1c] sm:$0xf]
            %2345 = vst [vmem:[%s2329 + $0x54] sm:$0xf] %v2344
            %v2346 = vld [vmem:[%s2328 + $0x20] sm:$0xf]
            %2347 = vst [vmem:[%s2329 + $0x60] sm:$0xf] %v2346
            %v2348 = vld [vmem:[%s2328 + $0x24] sm:$0xf]
            %2349 = vst [vmem:[%s2329 + $0x6c] sm:$0xf] %v2348
            %v2350 = vld [vmem:[%s2328 + $0x28] sm:$0xf]
            %2351 = vst [vmem:[%s2329 + $0x78] sm:$0xf] %v2350
            %v2352 = vld [vmem:[%s2328 + $0x2c] sm:$0xf]
            %2353 = vst [vmem:[%s2329 + $0x84] sm:$0xf] %v2352
            %v2354 = vld [vmem:[%s2328 + $0x30] sm:$0xf]
            %2355 = vst [vmem:[%s2329 + $0x90] sm:$0xf] %v2354
            %v2356 = vld [vmem:[%s2328 + $0x34] sm:$0xf]
            %2357 = vst [vmem:[%s2329 + $0x9c] sm:$0xf] %v2356
            %v2358 = vld [vmem:[%s2328 + $0x38] sm:$0xf]
            %2359 = vst [vmem:[%s2329 + $0xa8] sm:$0xf] %v2358
            %v2360 = vld [vmem:[%s2328 + $0x3c] sm:$0xf]
            %2361 = vst [vmem:[%s2329 + $0xb4] sm:$0xf] %v2360
          $region82: #{graph_encoder_forward.3} parent=76 // loop_footer
            %s2327 = sadd.s32 1, %s2323
          $region83: #{graph_encoder_forward.3} parent=76 // loop_footer_branch
            %2322 = sbr.rel target = $region79
          $region84: #{graph_encoder_forward.3} parent=76 // loop_exit
            _
        $region77: #{graph_encoder_forward.3} parent=68 // pred_fallthru
          _
      $region69: #{graph_encoder_forward.3} parent=64 // pred_fallthru
        _
      %2413 = vnop
    $region65: #{graph_encoder_forward.3} parent=1 // pred_fallthru
      _
    // Predicated region
    $region103: #{graph_encoder_forward.3} parent=1 // pred_check
      _
    $region104: #{graph_encoder_forward.3} parent=1 // pred_check_branch
      %2415 = sbr.rel (0) target = $region106
    $region105: #{graph_encoder_forward.3} parent=1 // pred_region
      _
    $region106: #{graph_encoder_forward.3} parent=1 // pred_fallthru
      _
    // Predicated region
    $region107: #{graph_encoder_forward.3} parent=1 // pred_check
      _
    $region108: #{graph_encoder_forward.3} parent=1 // pred_check_branch
      %2417 = sbr.rel (0) target = $region110
    $region109: #{graph_encoder_forward.3} parent=1 // pred_region
      _
    $region110: #{graph_encoder_forward.3} parent=1 // pred_fallthru
      _
    // Predicated region
    $region111: #{graph_encoder_forward.3} parent=1 // pred_check
      _
    $region112: #{graph_encoder_forward.3} parent=1 // pred_check_branch
      %2419 = sbr.rel (0) target = $region114
    $region113: #{graph_encoder_forward.3} parent=1 // pred_region
      _
    $region114: #{graph_encoder_forward.3} parent=1 // pred_fallthru
      _
    // Predicated region
    $region115: #{graph_encoder_forward.3} parent=1 // pred_check
      _
    $region116: #{graph_encoder_forward.3} parent=1 // pred_check_branch
      %2421 = sbr.rel (0) target = $region118
    $region117: #{graph_encoder_forward.3} parent=1 // pred_region
      _
    $region118: #{graph_encoder_forward.3} parent=1 // pred_fallthru
      _
    // Predicated region
    $region119: #{graph_encoder_forward.3} parent=1 // pred_check
      _
    $region120: #{graph_encoder_forward.3} parent=1 // pred_check_branch
      %2423 = sbr.rel (0) target = $region122
    $region121: #{graph_encoder_forward.3} parent=1 // pred_region
      _
    $region122: #{graph_encoder_forward.3} parent=1 // pred_fallthru
      _

// kernel: graph_encoder_forward.4
$region0: #{graph_encoder_forward.4}
  #allocation0 [shape = 'u32[]', space=smem, size = 0x4, offset = 0x4, fixed_abs, tag = 'smem constant byte address 0x4 - core index']
  #allocation1 [shape = 'u32[144,128]{1,0:T(1,128)}', space=vmem, size = 0x12000, scoped, tag = 'internal scratch']
  #allocation2 [shape = 'f32[128,768]{1,0:T(8,128)}', space=vmem, size = 0x60000, scoped, tag = 'scratch operand']
  %s0 = inlined_call_operand.vmem [shape: bf16[128,128], index: 0, kind: input, shape index: {}]
  %s1 = inlined_call_operand.vmem [shape: bf16[128,384], index: 1, kind: input, shape index: {}, may-alias: {1,8}]
  %s2 = inlined_call_operand.vmem [shape: f32[1,256], index: 2, kind: input, shape index: {}]
  %s3 = inlined_call_operand.vmem [shape: f32[1,256], index: 3, kind: input, shape index: {}]
  %s4 = inlined_call_operand.vmem [shape: bf16[3,256,128], index: 4, kind: input, shape index: {}]
  %s5 = inlined_call_operand.vmem [shape: f32[3,1,128], index: 5, kind: input, shape index: {}]
  %s6 = inlined_call_operand.vmem [shape: bf16[3,128,128], index: 6, kind: input, shape index: {}]
  %s7 = inlined_call_operand.vmem [shape: f32[3,1,128], index: 7, kind: input, shape index: {}]
  %s8 = inlined_call_operand.vmem [shape: bf16[128,384], index: 8, kind: output, shape index: {0}, may-alias: {1,8}]
  %s9 = inlined_call_operand.vmem [shape: f32[8,128], index: 9, kind: output, shape index: {1}]
  %s10 = inlined_call_operand.vmem [shape: f32[8,128], index: 10, kind: output, shape index: {2}]
  %11 = xla_tuple %s8, %s9, %s10
  %s12 = sld [smem:[#allocation0]]
  $region123: #{graph_encoder_forward.4} parent=0
    _
  %s14 = ssub.s32 1, %s12
  %s15 = scalar_select 0, %s14, %s12
  $region1: #{graph_encoder_forward.4} parent=0
    #allocation3 [shape = 'u8[32768]{0}', space=vmem, size = 0x8000, scoped, tag = 'output window, operand 0, single buffered']
    // Predicated region
    $region2: #{graph_encoder_forward.4} parent=1 // pred_check
      _
    $region3: #{graph_encoder_forward.4} parent=1 // pred_check_branch
      %17 = sbr.rel (0) target = $region5
    $region4: #{graph_encoder_forward.4} parent=1 // pred_region
      _
    $region5: #{graph_encoder_forward.4} parent=1 // pred_fallthru
      _
    // Predicated region
    $region6: #{graph_encoder_forward.4} parent=1 // pred_check
      _
    $region7: #{graph_encoder_forward.4} parent=1 // pred_check_branch
      %19 = sbr.rel (0) target = $region9
    $region8: #{graph_encoder_forward.4} parent=1 // pred_region
      _
    $region9: #{graph_encoder_forward.4} parent=1 // pred_fallthru
      _
    // Predicated region
    $region10: #{graph_encoder_forward.4} parent=1 // pred_check
      _
    $region11: #{graph_encoder_forward.4} parent=1 // pred_check_branch
      %21 = sbr.rel (0) target = $region13
    $region12: #{graph_encoder_forward.4} parent=1 // pred_region
      _
    $region13: #{graph_encoder_forward.4} parent=1 // pred_fallthru
      _
    // Predicated region
    $region14: #{graph_encoder_forward.4} parent=1 // pred_check
      _
    $region15: #{graph_encoder_forward.4} parent=1 // pred_check_branch
      %23 = sbr.rel (0) target = $region17
    $region16: #{graph_encoder_forward.4} parent=1 // pred_region
      _
    $region17: #{graph_encoder_forward.4} parent=1 // pred_fallthru
      _
    // Predicated region
    $region18: #{graph_encoder_forward.4} parent=1 // pred_check
      _
    $region19: #{graph_encoder_forward.4} parent=1 // pred_check_branch
      %25 = sbr.rel (0) target = $region21
    $region20: #{graph_encoder_forward.4} parent=1 // pred_region
      _
    $region21: #{graph_encoder_forward.4} parent=1 // pred_fallthru
      _
    // Predicated region
    $region22: #{graph_encoder_forward.4} parent=1 // pred_check
      _
    $region23: #{graph_encoder_forward.4} parent=1 // pred_check_branch
      %27 = sbr.rel (0) target = $region25
    $region24: #{graph_encoder_forward.4} parent=1 // pred_region
      _
    $region25: #{graph_encoder_forward.4} parent=1 // pred_fallthru
      _
    // Predicated region
    $region26: #{graph_encoder_forward.4} parent=1 // pred_check
      _
    $region27: #{graph_encoder_forward.4} parent=1 // pred_check_branch
      %29 = sbr.rel (0) target = $region29
    $region28: #{graph_encoder_forward.4} parent=1 // pred_region
      _
    $region29: #{graph_encoder_forward.4} parent=1 // pred_fallthru
      _
    // Predicated region
    $region30: #{graph_encoder_forward.4} parent=1 // pred_check
      _
    $region31: #{graph_encoder_forward.4} parent=1 // pred_check_branch
      %31 = sbr.rel (0) target = $region33
    $region32: #{graph_encoder_forward.4} parent=1 // pred_region
      _
    $region33: #{graph_encoder_forward.4} parent=1 // pred_fallthru
      _
    %p33 = scmp.eq.s32.totalorder 0, 0
    %p34 = scmp.gt.s32.totalorder 0, 0
    %s35 = smul.u32 0, 128
    %v36 = vld [vmem:[%s0] sm:$0xf]
    %v37 = vld [vmem:[%s0 + $0x4] sm:$0xf]
    %v38 = vld [vmem:[%s0 + $0x8] sm:$0xf]
    %v39 = vld [vmem:[%s0 + $0xc] sm:$0xf]
    %v40 = vld [vmem:[%s0 + $0x10] sm:$0xf]
    %v41 = vld [vmem:[%s0 + $0x14] sm:$0xf]
    %v42 = vld [vmem:[%s0 + $0x18] sm:$0xf]
    %v43 = vld [vmem:[%s0 + $0x1c] sm:$0xf]
    %v44 = vld [vmem:[%s0 + $0x20] sm:$0xf]
    %v45 = vld [vmem:[%s0 + $0x24] sm:$0xf]
    %v46 = vld [vmem:[%s0 + $0x28] sm:$0xf]
    %v47 = vld [vmem:[%s0 + $0x2c] sm:$0xf]
    %v48 = vld [vmem:[%s0 + $0x30] sm:$0xf]
    %v49 = vld [vmem:[%s0 + $0x34] sm:$0xf]
    %v50 = vld [vmem:[%s0 + $0x38] sm:$0xf]
    %v51 = vld [vmem:[%s0 + $0x3c] sm:$0xf]
    %v52 = vld [vmem:[%s1] sm:$0xff]
    %v53 = vld [vmem:[%s1 + $0xc] sm:$0xff]
    %v54 = vld [vmem:[%s1 + $0x18] sm:$0xff]
    %v55 = vld [vmem:[%s1 + $0x24] sm:$0xff]
    %v56 = vld [vmem:[%s1 + $0x30] sm:$0xff]
    %v57 = vld [vmem:[%s1 + $0x3c] sm:$0xff]
    %v58 = vld [vmem:[%s1 + $0x48] sm:$0xff]
    %v59 = vld [vmem:[%s1 + $0x54] sm:$0xff]
    %v60 = vld [vmem:[%s1 + $0x60] sm:$0xff]
    %v61 = vld [vmem:[%s1 + $0x6c] sm:$0xff]
    %v62 = vld [vmem:[%s1 + $0x78] sm:$0xff]
    %v63 = vld [vmem:[%s1 + $0x84] sm:$0xff]
    %v64 = vld [vmem:[%s1 + $0x90] sm:$0xff]
    %v65 = vld [vmem:[%s1 + $0x9c] sm:$0xff]
    %v66 = vld [vmem:[%s1 + $0xa8] sm:$0xff]
    %v67 = vld [vmem:[%s1 + $0xb4] sm:$0xff]
    %v68 = vunpack.c.l.bf16 %v52
    %v69 = vunpack.c.h.bf16 %v52
    %v70 = vunpack.c.l.bf16 %v53
    %v71 = vunpack.c.h.bf16 %v53
    %v72 = vunpack.c.l.bf16 %v54
    %v73 = vunpack.c.h.bf16 %v54
    %v74 = vunpack.c.l.bf16 %v55
    %v75 = vunpack.c.h.bf16 %v55
    %v76 = vunpack.c.l.bf16 %v56
    %v77 = vunpack.c.h.bf16 %v56
    %v78 = vunpack.c.l.bf16 %v57
    %v79 = vunpack.c.h.bf16 %v57
    %v80 = vunpack.c.l.bf16 %v58
    %v81 = vunpack.c.h.bf16 %v58
    %v82 = vunpack.c.l.bf16 %v59
    %v83 = vunpack.c.h.bf16 %v59
    %v84 = vunpack.c.l.bf16 %v60
    %v85 = vunpack.c.h.bf16 %v60
    %v86 = vunpack.c.l.bf16 %v61
    %v87 = vunpack.c.h.bf16 %v61
    %v88 = vunpack.c.l.bf16 %v62
    %v89 = vunpack.c.h.bf16 %v62
    %v90 = vunpack.c.l.bf16 %v63
    %v91 = vunpack.c.h.bf16 %v63
    %v92 = vunpack.c.l.bf16 %v64
    %v93 = vunpack.c.h.bf16 %v64
    %v94 = vunpack.c.l.bf16 %v65
    %v95 = vunpack.c.h.bf16 %v65
    %v96 = vunpack.c.l.bf16 %v66
    %v97 = vunpack.c.h.bf16 %v66
    %v98 = vunpack.c.l.bf16 %v67
    %v99 = vunpack.c.h.bf16 %v67
    %v100 = vld [vmem:[%s2] sm:$0x3]
    %v102 = vlaneseq
    %v103 = vshrl.u32 %v102, 7
    %v104 = vsub.s32 0, %v103
    %v105 = vrot.slane %v100, %v104
    %v106 = vlaneseq
    %v107 = vshrl.u32 %v106, 7
    %v108 = vsub.s32 1, %v107
    %v109 = vrot.slane %v100, %v108
    %v112 = vmul.f32 %v68, %v105
    %v113 = vmul.f32 %v69, %v109
    %v114 = vmul.f32 %v70, %v105
    %v115 = vmul.f32 %v71, %v109
    %v116 = vmul.f32 %v72, %v105
    %v117 = vmul.f32 %v73, %v109
    %v118 = vmul.f32 %v74, %v105
    %v119 = vmul.f32 %v75, %v109
    %v120 = vmul.f32 %v76, %v105
    %v121 = vmul.f32 %v77, %v109
    %v122 = vmul.f32 %v78, %v105
    %v123 = vmul.f32 %v79, %v109
    %v124 = vmul.f32 %v80, %v105
    %v125 = vmul.f32 %v81, %v109
    %v126 = vmul.f32 %v82, %v105
    %v127 = vmul.f32 %v83, %v109
    %v128 = vmul.f32 %v84, %v105
    %v129 = vmul.f32 %v85, %v109
    %v130 = vmul.f32 %v86, %v105
    %v131 = vmul.f32 %v87, %v109
    %v132 = vmul.f32 %v88, %v105
    %v133 = vmul.f32 %v89, %v109
    %v134 = vmul.f32 %v90, %v105
    %v135 = vmul.f32 %v91, %v109
    %v136 = vmul.f32 %v92, %v105
    %v137 = vmul.f32 %v93, %v109
    %v138 = vmul.f32 %v94, %v105
    %v139 = vmul.f32 %v95, %v109
    %v140 = vmul.f32 %v96, %v105
    %v141 = vmul.f32 %v97, %v109
    %v142 = vmul.f32 %v98, %v105
    %v143 = vmul.f32 %v99, %v109
    %v144 = vld [vmem:[%s3] sm:$0x3]
    %v146 = vlaneseq
    %v147 = vshrl.u32 %v146, 7
    %v148 = vsub.s32 0, %v147
    %v149 = vrot.slane %v144, %v148
    %v150 = vlaneseq
    %v151 = vshrl.u32 %v150, 7
    %v152 = vsub.s32 1, %v151
    %v153 = vrot.slane %v144, %v152
    %v156 = vadd.f32 %v112, %v149
    %v157 = vadd.f32 %v113, %v153
    %v158 = vadd.f32 %v114, %v149
    %v159 = vadd.f32 %v115, %v153
    %v160 = vadd.f32 %v116, %v149
    %v161 = vadd.f32 %v117, %v153
    %v162 = vadd.f32 %v118, %v149
    %v163 = vadd.f32 %v119, %v153
    %v164 = vadd.f32 %v120, %v149
    %v165 = vadd.f32 %v121, %v153
    %v166 = vadd.f32 %v122, %v149
    %v167 = vadd.f32 %v123, %v153
    %v168 = vadd.f32 %v124, %v149
    %v169 = vadd.f32 %v125, %v153
    %v170 = vadd.f32 %v126, %v149
    %v171 = vadd.f32 %v127, %v153
    %v172 = vadd.f32 %v128, %v149
    %v173 = vadd.f32 %v129, %v153
    %v174 = vadd.f32 %v130, %v149
    %v175 = vadd.f32 %v131, %v153
    %v176 = vadd.f32 %v132, %v149
    %v177 = vadd.f32 %v133, %v153
    %v178 = vadd.f32 %v134, %v149
    %v179 = vadd.f32 %v135, %v153
    %v180 = vadd.f32 %v136, %v149
    %v181 = vadd.f32 %v137, %v153
    %v182 = vadd.f32 %v138, %v149
    %v183 = vadd.f32 %v139, %v153
    %v184 = vadd.f32 %v140, %v149
    %v185 = vadd.f32 %v141, %v153
    %v186 = vadd.f32 %v142, %v149
    %v187 = vadd.f32 %v143, %v153
    %v188 = vpack.c.bf16 %v158, %v156
    %v189 = vpack.c.bf16 %v159, %v157
    %v190 = vpack.c.bf16 %v162, %v160
    %v191 = vpack.c.bf16 %v163, %v161
    %v192 = vpack.c.bf16 %v166, %v164
    %v193 = vpack.c.bf16 %v167, %v165
    %v194 = vpack.c.bf16 %v170, %v168
    %v195 = vpack.c.bf16 %v171, %v169
    %v196 = vpack.c.bf16 %v174, %v172
    %v197 = vpack.c.bf16 %v175, %v173
    %v198 = vpack.c.bf16 %v178, %v176
    %v199 = vpack.c.bf16 %v179, %v177
    %v200 = vpack.c.bf16 %v182, %v180
    %v201 = vpack.c.bf16 %v183, %v181
    %v202 = vpack.c.bf16 %v186, %v184
    %v203 = vpack.c.bf16 %v187, %v185
    %v220 = vunpack.c.l.b16 %v36
    %v221 = vunpack.c.l.b16 %v37
    %v222 = vunpack.c.l.b16 %v38
    %v223 = vunpack.c.l.b16 %v39
    %v224 = vunpack.c.l.b16 %v40
    %v225 = vunpack.c.l.b16 %v41
    %v226 = vunpack.c.l.b16 %v42
    %v227 = vunpack.c.l.b16 %v43
    %v228 = vunpack.c.l.b16 %v44
    %v229 = vunpack.c.l.b16 %v45
    %v230 = vunpack.c.l.b16 %v46
    %v231 = vunpack.c.l.b16 %v47
    %v232 = vunpack.c.l.b16 %v48
    %v233 = vunpack.c.l.b16 %v49
    %v234 = vunpack.c.l.b16 %v50
    %v235 = vunpack.c.l.b16 %v51
    %v236 = vpack.c.b16 %v221, %v220
    %v237 = vpack.c.b16 %v223, %v222
    %v238 = vpack.c.b16 %v225, %v224
    %v239 = vpack.c.b16 %v227, %v226
    %v240 = vpack.c.b16 %v229, %v228
    %v241 = vpack.c.b16 %v231, %v230
    %v242 = vpack.c.b16 %v233, %v232
    %v243 = vpack.c.b16 %v235, %v234
    %252 = vmatprep.subr.bf16.mxu0 %v189
    %253 = vmatpush1.bf16.msra.mxu0 %v188
    %254 = vmatprep.subr.bf16.mxu0 %v191
    %255 = vmatpush1.bf16.msra.mxu0 %v190
    %256 = vmatprep.subr.bf16.mxu0 %v193
    %257 = vmatpush1.bf16.msra.mxu0 %v192
    %258 = vmatprep.subr.bf16.mxu0 %v195
    %259 = vmatpush1.bf16.msra.mxu0 %v194
    %260 = vmatprep.subr.bf16.mxu0 %v197
    %261 = vmatpush1.bf16.msra.mxu0 %v196
    %262 = vmatprep.subr.bf16.mxu0 %v199
    %263 = vmatpush1.bf16.msra.mxu0 %v198
    %264 = vmatprep.subr.bf16.mxu0 %v201
    %265 = vmatpush1.bf16.msra.mxu0 %v200
    %266 = vmatprep.subr.bf16.mxu0 %v203
    %267 = vmatpush1.bf16.msra.mxu0 %v202
    %268 = vmatprep.subr.bf16.mxu0 0
    %269 = vmatpush1.bf16.msra.mxu0 0
    %270 = vmatprep.subr.bf16.mxu0 0
    %271 = vmatpush1.bf16.msra.mxu0 0
    %272 = vmatprep.subr.bf16.mxu0 0
    %273 = vmatpush1.bf16.msra.mxu0 0
    %274 = vmatprep.subr.bf16.mxu0 0
    %275 = vmatpush1.bf16.msra.mxu0 0
    %276 = vmatprep.subr.bf16.mxu0 0
    %277 = vmatpush1.bf16.msra.mxu0 0
    %278 = vmatprep.subr.bf16.mxu0 0
    %279 = vmatpush1.bf16.msra.mxu0 0
    %280 = vmatprep.subr.bf16.mxu0 0
    %281 = vmatpush1.bf16.msra.mxu0 0
    %282 = vmatprep.subr.bf16.mxu0 0
    %283 = vmatpush1.bf16.msra.mxu0 0
    %284 = vmatprep.mubr.bf16.mxu0 0
    %285 = vmatmul.mubr.bf16.gmra.mrb[0].mxu0 %v236
    %v286 = vpop.f32.mrb[0].mxu0
    %v287 = vadd.f32 0.0, %v286
    %v288 = vpop.f32.mrb[0].mxu0
    %v289 = vadd.f32 0.0, %v288
    %v290 = vpop.f32.mrb[0].mxu0
    %v291 = vadd.f32 0.0, %v290
    %v292 = vpop.f32.mrb[0].mxu0
    %v293 = vadd.f32 0.0, %v292
    %294 = vmatprep.mubr.bf16.mxu0 0
    %295 = vmatmul.mubr.bf16.gmra.mrb[0].mxu0 %v237
    %v296 = vpop.f32.mrb[0].mxu0
    %v297 = vadd.f32 0.0, %v296
    %v298 = vpop.f32.mrb[0].mxu0
    %v299 = vadd.f32 0.0, %v298
    %v300 = vpop.f32.mrb[0].mxu0
    %v301 = vadd.f32 0.0, %v300
    %v302 = vpop.f32.mrb[0].mxu0
    %v303 = vadd.f32 0.0, %v302
    %304 = vmatprep.mubr.bf16.mxu0 0
    %305 = vmatmul.mubr.bf16.gmra.mrb[0].mxu0 %v238
    %v306 = vpop.f32.mrb[0].mxu0
    %v307 = vadd.f32 0.0, %v306
    %v308 = vpop.f32.mrb[0].mxu0
    %v309 = vadd.f32 0.0, %v308
    %v310 = vpop.f32.mrb[0].mxu0
    %v311 = vadd.f32 0.0, %v310
    %v312 = vpop.f32.mrb[0].mxu0
    %v313 = vadd.f32 0.0, %v312
    %314 = vmatprep.mubr.bf16.mxu0 0
    %315 = vmatmul.mubr.bf16.gmra.mrb[0].mxu0 %v239
    %v316 = vpop.f32.mrb[0].mxu0
    %v317 = vadd.f32 0.0, %v316
    %v318 = vpop.f32.mrb[0].mxu0
    %v319 = vadd.f32 0.0, %v318
    %v320 = vpop.f32.mrb[0].mxu0
    %v321 = vadd.f32 0.0, %v320
    %v322 = vpop.f32.mrb[0].mxu0
    %v323 = vadd.f32 0.0, %v322
    %324 = vmatprep.mubr.bf16.mxu0 0
    %325 = vmatmul.mubr.bf16.gmra.mrb[0].mxu0 %v240
    %v326 = vpop.f32.mrb[0].mxu0
    %v327 = vadd.f32 0.0, %v326
    %v328 = vpop.f32.mrb[0].mxu0
    %v329 = vadd.f32 0.0, %v328
    %v330 = vpop.f32.mrb[0].mxu0
    %v331 = vadd.f32 0.0, %v330
    %v332 = vpop.f32.mrb[0].mxu0
    %v333 = vadd.f32 0.0, %v332
    %334 = vmatprep.mubr.bf16.mxu0 0
    %335 = vmatmul.mubr.bf16.gmra.mrb[0].mxu0 %v241
    %v336 = vpop.f32.mrb[0].mxu0
    %v337 = vadd.f32 0.0, %v336
    %v338 = vpop.f32.mrb[0].mxu0
    %v339 = vadd.f32 0.0, %v338
    %v340 = vpop.f32.mrb[0].mxu0
    %v341 = vadd.f32 0.0, %v340
    %v342 = vpop.f32.mrb[0].mxu0
    %v343 = vadd.f32 0.0, %v342
    %344 = vmatprep.mubr.bf16.mxu0 0
    %345 = vmatmul.mubr.bf16.gmra.mrb[0].mxu0 %v242
    %v346 = vpop.f32.mrb[0].mxu0
    %v347 = vadd.f32 0.0, %v346
    %v348 = vpop.f32.mrb[0].mxu0
    %v349 = vadd.f32 0.0, %v348
    %v350 = vpop.f32.mrb[0].mxu0
    %v351 = vadd.f32 0.0, %v350
    %v352 = vpop.f32.mrb[0].mxu0
    %v353 = vadd.f32 0.0, %v352
    %354 = vmatprep.mubr.bf16.mxu0 0
    %355 = vmatmul.mubr.bf16.gmra.mrb[0].mxu0 %v243
    %v356 = vpop.f32.mrb[0].mxu0
    %v357 = vadd.f32 0.0, %v356
    %v358 = vpop.f32.mrb[0].mxu0
    %v359 = vadd.f32 0.0, %v358
    %v360 = vpop.f32.mrb[0].mxu0
    %v361 = vadd.f32 0.0, %v360
    %v362 = vpop.f32.mrb[0].mxu0
    %v363 = vadd.f32 0.0, %v362
    %364 = vdwg.mxu0
    // Predicated region
    $region34: #{graph_encoder_forward.4} parent=1 // pred_check
      %p365 = pneg %p33
    $region35: #{graph_encoder_forward.4} parent=1 // pred_check_branch
      %367 = sbr.rel (%p365) target = $region37
    $region36: #{graph_encoder_forward.4} parent=1 // pred_region
      %368 = vst [vmem:[#allocation2] sm:$0xff] %v287
      %369 = vst [vmem:[#allocation2 + $0x8] sm:$0xff] %v289
      %370 = vst [vmem:[#allocation2 + $0x30] sm:$0xff] %v291
      %371 = vst [vmem:[#allocation2 + $0x38] sm:$0xff] %v293
      %372 = vst [vmem:[#allocation2 + $0x60] sm:$0xff] %v297
      %373 = vst [vmem:[#allocation2 + $0x68] sm:$0xff] %v299
      %374 = vst [vmem:[#allocation2 + $0x90] sm:$0xff] %v301
      %375 = vst [vmem:[#allocation2 + $0x98] sm:$0xff] %v303
      %376 = vst [vmem:[#allocation2 + $0xc0] sm:$0xff] %v307
      %377 = vst [vmem:[#allocation2 + $0xc8] sm:$0xff] %v309
      %378 = vst [vmem:[#allocation2 + $0xf0] sm:$0xff] %v311
      %379 = vst [vmem:[#allocation2 + $0xf8] sm:$0xff] %v313
      %380 = vst [vmem:[#allocation2 + $0x120] sm:$0xff] %v317
      %381 = vst [vmem:[#allocation2 + $0x128] sm:$0xff] %v319
      %382 = vst [vmem:[#allocation2 + $0x150] sm:$0xff] %v321
      %383 = vst [vmem:[#allocation2 + $0x158] sm:$0xff] %v323
      %384 = vst [vmem:[#allocation2 + $0x180] sm:$0xff] %v327
      %385 = vst [vmem:[#allocation2 + $0x188] sm:$0xff] %v329
      %386 = vst [vmem:[#allocation2 + $0x1b0] sm:$0xff] %v331
      %387 = vst [vmem:[#allocation2 + $0x1b8] sm:$0xff] %v333
      %388 = vst [vmem:[#allocation2 + $0x1e0] sm:$0xff] %v337
      %389 = vst [vmem:[#allocation2 + $0x1e8] sm:$0xff] %v339
      %390 = vst [vmem:[#allocation2 + $0x210] sm:$0xff] %v341
      %391 = vst [vmem:[#allocation2 + $0x218] sm:$0xff] %v343
      %392 = vst [vmem:[#allocation2 + $0x240] sm:$0xff] %v347
      %393 = vst [vmem:[#allocation2 + $0x248] sm:$0xff] %v349
      %394 = vst [vmem:[#allocation2 + $0x270] sm:$0xff] %v351
      %395 = vst [vmem:[#allocation2 + $0x278] sm:$0xff] %v353
      %396 = vst [vmem:[#allocation2 + $0x2a0] sm:$0xff] %v357
      %397 = vst [vmem:[#allocation2 + $0x2a8] sm:$0xff] %v359
      %398 = vst [vmem:[#allocation2 + $0x2d0] sm:$0xff] %v361
      %399 = vst [vmem:[#allocation2 + $0x2d8] sm:$0xff] %v363
    $region37: #{graph_encoder_forward.4} parent=1 // pred_fallthru
      _
    // Predicated region
    $region38: #{graph_encoder_forward.4} parent=1 // pred_check
      %p400 = pneg %p34
    $region39: #{graph_encoder_forward.4} parent=1 // pred_check_branch
      %402 = sbr.rel (%p400) target = $region41
    $region40: #{graph_encoder_forward.4} parent=1 // pred_region
      %v403 = vld [vmem:[#allocation2] sm:$0xff]
      %v404 = vld [vmem:[#allocation2 + $0x8] sm:$0xff]
      %v405 = vld [vmem:[#allocation2 + $0x30] sm:$0xff]
      %v406 = vld [vmem:[#allocation2 + $0x38] sm:$0xff]
      %v407 = vld [vmem:[#allocation2 + $0x60] sm:$0xff]
      %v408 = vld [vmem:[#allocation2 + $0x68] sm:$0xff]
      %v409 = vld [vmem:[#allocation2 + $0x90] sm:$0xff]
      %v410 = vld [vmem:[#allocation2 + $0x98] sm:$0xff]
      %v411 = vld [vmem:[#allocation2 + $0xc0] sm:$0xff]
      %v412 = vld [vmem:[#allocation2 + $0xc8] sm:$0xff]
      %v413 = vld [vmem:[#allocation2 + $0xf0] sm:$0xff]
      %v414 = vld [vmem:[#allocation2 + $0xf8] sm:$0xff]
      %v415 = vld [vmem:[#allocation2 + $0x120] sm:$0xff]
      %v416 = vld [vmem:[#allocation2 + $0x128] sm:$0xff]
      %v417 = vld [vmem:[#allocation2 + $0x150] sm:$0xff]
      %v418 = vld [vmem:[#allocation2 + $0x158] sm:$0xff]
      %v419 = vld [vmem:[#allocation2 + $0x180] sm:$0xff]
      %v420 = vld [vmem:[#allocation2 + $0x188] sm:$0xff]
      %v421 = vld [vmem:[#allocation2 + $0x1b0] sm:$0xff]
      %v422 = vld [vmem:[#allocation2 + $0x1b8] sm:$0xff]
      %v423 = vld [vmem:[#allocation2 + $0x1e0] sm:$0xff]
      %v424 = vld [vmem:[#allocation2 + $0x1e8] sm:$0xff]
      %v425 = vld [vmem:[#allocation2 + $0x210] sm:$0xff]
      %v426 = vld [vmem:[#allocation2 + $0x218] sm:$0xff]
      %v427 = vld [vmem:[#allocation2 + $0x240] sm:$0xff]
      %v428 = vld [vmem:[#allocation2 + $0x248] sm:$0xff]
      %v429 = vld [vmem:[#allocation2 + $0x270] sm:$0xff]
      %v430 = vld [vmem:[#allocation2 + $0x278] sm:$0xff]
      %v431 = vld [vmem:[#allocation2 + $0x2a0] sm:$0xff]
      %v432 = vld [vmem:[#allocation2 + $0x2a8] sm:$0xff]
      %v433 = vld [vmem:[#allocation2 + $0x2d0] sm:$0xff]
      %v434 = vld [vmem:[#allocation2 + $0x2d8] sm:$0xff]
      %v435 = vadd.f32 %v403, %v287
      %v436 = vadd.f32 %v404, %v289
      %v437 = vadd.f32 %v405, %v291
      %v438 = vadd.f32 %v406, %v293
      %v439 = vadd.f32 %v407, %v297
      %v440 = vadd.f32 %v408, %v299
      %v441 = vadd.f32 %v409, %v301
      %v442 = vadd.f32 %v410, %v303
      %v443 = vadd.f32 %v411, %v307
      %v444 = vadd.f32 %v412, %v309
      %v445 = vadd.f32 %v413, %v311
      %v446 = vadd.f32 %v414, %v313
      %v447 = vadd.f32 %v415, %v317
      %v448 = vadd.f32 %v416, %v319
      %v449 = vadd.f32 %v417, %v321
      %v450 = vadd.f32 %v418, %v323
      %v451 = vadd.f32 %v419, %v327
      %v452 = vadd.f32 %v420, %v329
      %v453 = vadd.f32 %v421, %v331
      %v454 = vadd.f32 %v422, %v333
      %v455 = vadd.f32 %v423, %v337
      %v456 = vadd.f32 %v424, %v339
      %v457 = vadd.f32 %v425, %v341
      %v458 = vadd.f32 %v426, %v343
      %v459 = vadd.f32 %v427, %v347
      %v460 = vadd.f32 %v428, %v349
      %v461 = vadd.f32 %v429, %v351
      %v462 = vadd.f32 %v430, %v353
      %v463 = vadd.f32 %v431, %v357
      %v464 = vadd.f32 %v432, %v359
      %v465 = vadd.f32 %v433, %v361
      %v466 = vadd.f32 %v434, %v363
      %467 = vst [vmem:[#allocation2] sm:$0xff] %v435
      %468 = vst [vmem:[#allocation2 + $0x8] sm:$0xff] %v436
      %469 = vst [vmem:[#allocation2 + $0x30] sm:$0xff] %v437
      %470 = vst [vmem:[#allocation2 + $0x38] sm:$0xff] %v438
      %471 = vst [vmem:[#allocation2 + $0x60] sm:$0xff] %v439
      %472 = vst [vmem:[#allocation2 + $0x68] sm:$0xff] %v440
      %473 = vst [vmem:[#allocation2 + $0x90] sm:$0xff] %v441
      %474 = vst [vmem:[#allocation2 + $0x98] sm:$0xff] %v442
      %475 = vst [vmem:[#allocation2 + $0xc0] sm:$0xff] %v443
      %476 = vst [vmem:[#allocation2 + $0xc8] sm:$0xff] %v444
      %477 = vst [vmem:[#allocation2 + $0xf0] sm:$0xff] %v445
      %478 = vst [vmem:[#allocation2 + $0xf8] sm:$0xff] %v446
      %479 = vst [vmem:[#allocation2 + $0x120] sm:$0xff] %v447
      %480 = vst [vmem:[#allocation2 + $0x128] sm:$0xff] %v448
      %481 = vst [vmem:[#allocation2 + $0x150] sm:$0xff] %v449
      %482 = vst [vmem:[#allocation2 + $0x158] sm:$0xff] %v450
      %483 = vst [vmem:[#allocation2 + $0x180] sm:$0xff] %v451
      %484 = vst [vmem:[#allocation2 + $0x188] sm:$0xff] %v452
      %485 = vst [vmem:[#allocation2 + $0x1b0] sm:$0xff] %v453
      %486 = vst [vmem:[#allocation2 + $0x1b8] sm:$0xff] %v454
      %487 = vst [vmem:[#allocation2 + $0x1e0] sm:$0xff] %v455
      %488 = vst [vmem:[#allocation2 + $0x1e8] sm:$0xff] %v456
      %489 = vst [vmem:[#allocation2 + $0x210] sm:$0xff] %v457
      %490 = vst [vmem:[#allocation2 + $0x218] sm:$0xff] %v458
      %491 = vst [vmem:[#allocation2 + $0x240] sm:$0xff] %v459
      %492 = vst [vmem:[#allocation2 + $0x248] sm:$0xff] %v460
      %493 = vst [vmem:[#allocation2 + $0x270] sm:$0xff] %v461
      %494 = vst [vmem:[#allocation2 + $0x278] sm:$0xff] %v462
      %495 = vst [vmem:[#allocation2 + $0x2a0] sm:$0xff] %v463
      %496 = vst [vmem:[#allocation2 + $0x2a8] sm:$0xff] %v464
      %497 = vst [vmem:[#allocation2 + $0x2d0] sm:$0xff] %v465
      %498 = vst [vmem:[#allocation2 + $0x2d8] sm:$0xff] %v466
    $region41: #{graph_encoder_forward.4} parent=1 // pred_fallthru
      _
    %v499 = vmul.f32 %v156, %v156
    %v500 = vmul.f32 %v157, %v157
    %v501 = vmul.f32 %v158, %v158
    %v502 = vmul.f32 %v159, %v159
    %v503 = vmul.f32 %v160, %v160
    %v504 = vmul.f32 %v161, %v161
    %v505 = vmul.f32 %v162, %v162
    %v506 = vmul.f32 %v163, %v163
    %v507 = vmul.f32 %v164, %v164
    %v508 = vmul.f32 %v165, %v165
    %v509 = vmul.f32 %v166, %v166
    %v510 = vmul.f32 %v167, %v167
    %v511 = vmul.f32 %v168, %v168
    %v512 = vmul.f32 %v169, %v169
    %v513 = vmul.f32 %v170, %v170
    %v514 = vmul.f32 %v171, %v171
    %v515 = vmul.f32 %v172, %v172
    %v516 = vmul.f32 %v173, %v173
    %v517 = vmul.f32 %v174, %v174
    %v518 = vmul.f32 %v175, %v175
    %v519 = vmul.f32 %v176, %v176
    %v520 = vmul.f32 %v177, %v177
    %v521 = vmul.f32 %v178, %v178
    %v522 = vmul.f32 %v179, %v179
    %v523 = vmul.f32 %v180, %v180
    %v524 = vmul.f32 %v181, %v181
    %v525 = vmul.f32 %v182, %v182
    %v526 = vmul.f32 %v183, %v183
    %v527 = vmul.f32 %v184, %v184
    %v528 = vmul.f32 %v185, %v185
    %v529 = vmul.f32 %v186, %v186
    %v530 = vmul.f32 %v187, %v187
    %v531 = vpack.c.bf16 %v501, %v499
    %v532 = vpack.c.bf16 %v502, %v500
    %v533 = vpack.c.bf16 %v505, %v503
    %v534 = vpack.c.bf16 %v506, %v504
    %v535 = vpack.c.bf16 %v509, %v507
    %v536 = vpack.c.bf16 %v510, %v508
    %v537 = vpack.c.bf16 %v513, %v511
    %v538 = vpack.c.bf16 %v514, %v512
    %v539 = vpack.c.bf16 %v517, %v515
    %v540 = vpack.c.bf16 %v518, %v516
    %v541 = vpack.c.bf16 %v521, %v519
    %v542 = vpack.c.bf16 %v522, %v520
    %v543 = vpack.c.bf16 %v525, %v523
    %v544 = vpack.c.bf16 %v526, %v524
    %v545 = vpack.c.bf16 %v529, %v527
    %v546 = vpack.c.bf16 %v530, %v528
    %547 = vmatprep.subr.bf16.mxu0 %v532
    %548 = vmatpush1.bf16.msra.mxu0 %v531
    %549 = vmatprep.subr.bf16.mxu0 %v534
    %550 = vmatpush1.bf16.msra.mxu0 %v533
    %551 = vmatprep.subr.bf16.mxu0 %v536
    %552 = vmatpush1.bf16.msra.mxu0 %v535
    %553 = vmatprep.subr.bf16.mxu0 %v538
    %554 = vmatpush1.bf16.msra.mxu0 %v537
    %555 = vmatprep.subr.bf16.mxu0 %v540
    %556 = vmatpush1.bf16.msra.mxu0 %v539
    %557 = vmatprep.subr.bf16.mxu0 %v542
    %558 = vmatpush1.bf16.msra.mxu0 %v541
    %559 = vmatprep.subr.bf16.mxu0 %v544
    %560 = vmatpush1.bf16.msra.mxu0 %v543
    %561 = vmatprep.subr.bf16.mxu0 %v546
    %562 = vmatpush1.bf16.msra.mxu0 %v545
    %563 = vmatprep.subr.bf16.mxu0 0
    %564 = vmatpush1.bf16.msra.mxu0 0
    %565 = vmatprep.subr.bf16.mxu0 0
    %566 = vmatpush1.bf16.msra.mxu0 0
    %567 = vmatprep.subr.bf16.mxu0 0
    %568 = vmatpush1.bf16.msra.mxu0 0
    %569 = vmatprep.subr.bf16.mxu0 0
    %570 = vmatpush1.bf16.msra.mxu0 0
    %571 = vmatprep.subr.bf16.mxu0 0
    %572 = vmatpush1.bf16.msra.mxu0 0
    %573 = vmatprep.subr.bf16.mxu0 0
    %574 = vmatpush1.bf16.msra.mxu0 0
    %575 = vmatprep.subr.bf16.mxu0 0
    %576 = vmatpush1.bf16.msra.mxu0 0
    %577 = vmatprep.subr.bf16.mxu0 0
    %578 = vmatpush1.bf16.msra.mxu0 0
    %579 = vmatprep.mubr.bf16.mxu0 0
    %580 = vmatmul.mubr.bf16.gmra.mrb[0].mxu0 %v236
    %v581 = vpop.f32.mrb[0].mxu0
    %v582 = vadd.f32 0.0, %v581
    %v583 = vpop.f32.mrb[0].mxu0
    %v584 = vadd.f32 0.0, %v583
    %v585 = vpop.f32.mrb[0].mxu0
    %v586 = vadd.f32 0.0, %v585
    %v587 = vpop.f32.mrb[0].mxu0
    %v588 = vadd.f32 0.0, %v587
    %589 = vmatprep.mubr.bf16.mxu0 0
    %590 = vmatmul.mubr.bf16.gmra.mrb[0].mxu0 %v237
    %v591 = vpop.f32.mrb[0].mxu0
    %v592 = vadd.f32 0.0, %v591
    %v593 = vpop.f32.mrb[0].mxu0
    %v594 = vadd.f32 0.0, %v593
    %v595 = vpop.f32.mrb[0].mxu0
    %v596 = vadd.f32 0.0, %v595
    %v597 = vpop.f32.mrb[0].mxu0
    %v598 = vadd.f32 0.0, %v597
    %599 = vmatprep.mubr.bf16.mxu0 0
    %600 = vmatmul.mubr.bf16.gmra.mrb[0].mxu0 %v238
    %v601 = vpop.f32.mrb[0].mxu0
    %v602 = vadd.f32 0.0, %v601
    %v603 = vpop.f32.mrb[0].mxu0
    %v604 = vadd.f32 0.0, %v603
    %v605 = vpop.f32.mrb[0].mxu0
    %v606 = vadd.f32 0.0, %v605
    %v607 = vpop.f32.mrb[0].mxu0
    %v608 = vadd.f32 0.0, %v607
    %609 = vmatprep.mubr.bf16.mxu0 0
    %610 = vmatmul.mubr.bf16.gmra.mrb[0].mxu0 %v239
    %v611 = vpop.f32.mrb[0].mxu0
    %v612 = vadd.f32 0.0, %v611
    %v613 = vpop.f32.mrb[0].mxu0
    %v614 = vadd.f32 0.0, %v613
    %v615 = vpop.f32.mrb[0].mxu0
    %v616 = vadd.f32 0.0, %v615
    %v617 = vpop.f32.mrb[0].mxu0
    %v618 = vadd.f32 0.0, %v617
    %619 = vmatprep.mubr.bf16.mxu0 0
    %620 = vmatmul.mubr.bf16.gmra.mrb[0].mxu0 %v240
    %v621 = vpop.f32.mrb[0].mxu0
    %v622 = vadd.f32 0.0, %v621
    %v623 = vpop.f32.mrb[0].mxu0
    %v624 = vadd.f32 0.0, %v623
    %v625 = vpop.f32.mrb[0].mxu0
    %v626 = vadd.f32 0.0, %v625
    %v627 = vpop.f32.mrb[0].mxu0
    %v628 = vadd.f32 0.0, %v627
    %629 = vmatprep.mubr.bf16.mxu0 0
    %630 = vmatmul.mubr.bf16.gmra.mrb[0].mxu0 %v241
    %v631 = vpop.f32.mrb[0].mxu0
    %v632 = vadd.f32 0.0, %v631
    %v633 = vpop.f32.mrb[0].mxu0
    %v634 = vadd.f32 0.0, %v633
    %v635 = vpop.f32.mrb[0].mxu0
    %v636 = vadd.f32 0.0, %v635
    %v637 = vpop.f32.mrb[0].mxu0
    %v638 = vadd.f32 0.0, %v637
    %639 = vmatprep.mubr.bf16.mxu0 0
    %640 = vmatmul.mubr.bf16.gmra.mrb[0].mxu0 %v242
    %v641 = vpop.f32.mrb[0].mxu0
    %v642 = vadd.f32 0.0, %v641
    %v643 = vpop.f32.mrb[0].mxu0
    %v644 = vadd.f32 0.0, %v643
    %v645 = vpop.f32.mrb[0].mxu0
    %v646 = vadd.f32 0.0, %v645
    %v647 = vpop.f32.mrb[0].mxu0
    %v648 = vadd.f32 0.0, %v647
    %649 = vmatprep.mubr.bf16.mxu0 0
    %650 = vmatmul.mubr.bf16.gmra.mrb[0].mxu0 %v243
    %v651 = vpop.f32.mrb[0].mxu0
    %v652 = vadd.f32 0.0, %v651
    %v653 = vpop.f32.mrb[0].mxu0
    %v654 = vadd.f32 0.0, %v653
    %v655 = vpop.f32.mrb[0].mxu0
    %v656 = vadd.f32 0.0, %v655
    %v657 = vpop.f32.mrb[0].mxu0
    %v658 = vadd.f32 0.0, %v657
    %659 = vdwg.mxu0
    // Predicated region
    $region42: #{graph_encoder_forward.4} parent=1 // pred_check
      %p660 = pneg %p33
    $region43: #{graph_encoder_forward.4} parent=1 // pred_check_branch
      %662 = sbr.rel (%p660) target = $region45
    $region44: #{graph_encoder_forward.4} parent=1 // pred_region
      %663 = vst [vmem:[#allocation2 + $0x10] sm:$0xff] %v582
      %664 = vst [vmem:[#allocation2 + $0x18] sm:$0xff] %v584
      %665 = vst [vmem:[#allocation2 + $0x40] sm:$0xff] %v586
      %666 = vst [vmem:[#allocation2 + $0x48] sm:$0xff] %v588
      %667 = vst [vmem:[#allocation2 + $0x70] sm:$0xff] %v592
      %668 = vst [vmem:[#allocation2 + $0x78] sm:$0xff] %v594
      %669 = vst [vmem:[#allocation2 + $0xa0] sm:$0xff] %v596
      %670 = vst [vmem:[#allocation2 + $0xa8] sm:$0xff] %v598
      %671 = vst [vmem:[#allocation2 + $0xd0] sm:$0xff] %v602
      %672 = vst [vmem:[#allocation2 + $0xd8] sm:$0xff] %v604
      %673 = vst [vmem:[#allocation2 + $0x100] sm:$0xff] %v606
      %674 = vst [vmem:[#allocation2 + $0x108] sm:$0xff] %v608
      %675 = vst [vmem:[#allocation2 + $0x130] sm:$0xff] %v612
      %676 = vst [vmem:[#allocation2 + $0x138] sm:$0xff] %v614
      %677 = vst [vmem:[#allocation2 + $0x160] sm:$0xff] %v616
      %678 = vst [vmem:[#allocation2 + $0x168] sm:$0xff] %v618
      %679 = vst [vmem:[#allocation2 + $0x190] sm:$0xff] %v622
      %680 = vst [vmem:[#allocation2 + $0x198] sm:$0xff] %v624
      %681 = vst [vmem:[#allocation2 + $0x1c0] sm:$0xff] %v626
      %682 = vst [vmem:[#allocation2 + $0x1c8] sm:$0xff] %v628
      %683 = vst [vmem:[#allocation2 + $0x1f0] sm:$0xff] %v632
      %684 = vst [vmem:[#allocation2 + $0x1f8] sm:$0xff] %v634
      %685 = vst [vmem:[#allocation2 + $0x220] sm:$0xff] %v636
      %686 = vst [vmem:[#allocation2 + $0x228] sm:$0xff] %v638
      %687 = vst [vmem:[#allocation2 + $0x250] sm:$0xff] %v642
      %688 = vst [vmem:[#allocation2 + $0x258] sm:$0xff] %v644
      %689 = vst [vmem:[#allocation2 + $0x280] sm:$0xff] %v646
      %690 = vst [vmem:[#allocation2 + $0x288] sm:$0xff] %v648
      %691 = vst [vmem:[#allocation2 + $0x2b0] sm:$0xff] %v652
      %692 = vst [vmem:[#allocation2 + $0x2b8] sm:$0xff] %v654
      %693 = vst [vmem:[#allocation2 + $0x2e0] sm:$0xff] %v656
      %694 = vst [vmem:[#allocation2 + $0x2e8] sm:$0xff] %v658
    $region45: #{graph_encoder_forward.4} parent=1 // pred_fallthru
      _
    // Predicated region
    $region46: #{graph_encoder_forward.4} parent=1 // pred_check
      %p695 = pneg %p34
    $region47: #{graph_encoder_forward.4} parent=1 // pred_check_branch
      %697 = sbr.rel (%p695) target = $region49
    $region48: #{graph_encoder_forward.4} parent=1 // pred_region
      %v698 = vld [vmem:[#allocation2 + $0x10] sm:$0xff]
      %v699 = vld [vmem:[#allocation2 + $0x18] sm:$0xff]
      %v700 = vld [vmem:[#allocation2 + $0x40] sm:$0xff]
      %v701 = vld [vmem:[#allocation2 + $0x48] sm:$0xff]
      %v702 = vld [vmem:[#allocation2 + $0x70] sm:$0xff]
      %v703 = vld [vmem:[#allocation2 + $0x78] sm:$0xff]
      %v704 = vld [vmem:[#allocation2 + $0xa0] sm:$0xff]
      %v705 = vld [vmem:[#allocation2 + $0xa8] sm:$0xff]
      %v706 = vld [vmem:[#allocation2 + $0xd0] sm:$0xff]
      %v707 = vld [vmem:[#allocation2 + $0xd8] sm:$0xff]
      %v708 = vld [vmem:[#allocation2 + $0x100] sm:$0xff]
      %v709 = vld [vmem:[#allocation2 + $0x108] sm:$0xff]
      %v710 = vld [vmem:[#allocation2 + $0x130] sm:$0xff]
      %v711 = vld [vmem:[#allocation2 + $0x138] sm:$0xff]
      %v712 = vld [vmem:[#allocation2 + $0x160] sm:$0xff]
      %v713 = vld [vmem:[#allocation2 + $0x168] sm:$0xff]
      %v714 = vld [vmem:[#allocation2 + $0x190] sm:$0xff]
      %v715 = vld [vmem:[#allocation2 + $0x198] sm:$0xff]
      %v716 = vld [vmem:[#allocation2 + $0x1c0] sm:$0xff]
      %v717 = vld [vmem:[#allocation2 + $0x1c8] sm:$0xff]
      %v718 = vld [vmem:[#allocation2 + $0x1f0] sm:$0xff]
      %v719 = vld [vmem:[#allocation2 + $0x1f8] sm:$0xff]
      %v720 = vld [vmem:[#allocation2 + $0x220] sm:$0xff]
      %v721 = vld [vmem:[#allocation2 + $0x228] sm:$0xff]
      %v722 = vld [vmem:[#allocation2 + $0x250] sm:$0xff]
      %v723 = vld [vmem:[#allocation2 + $0x258] sm:$0xff]
      %v724 = vld [vmem:[#allocation2 + $0x280] sm:$0xff]
      %v725 = vld [vmem:[#allocation2 + $0x288] sm:$0xff]
      %v726 = vld [vmem:[#allocation2 + $0x2b0] sm:$0xff]
      %v727 = vld [vmem:[#allocation2 + $0x2b8] sm:$0xff]
      %v728 = vld [vmem:[#allocation2 + $0x2e0] sm:$0xff]
      %v729 = vld [vmem:[#allocation2 + $0x2e8] sm:$0xff]
      %v730 = vadd.f32 %v698, %v582
      %v731 = vadd.f32 %v699, %v584
      %v732 = vadd.f32 %v700, %v586
      %v733 = vadd.f32 %v701, %v588
      %v734 = vadd.f32 %v702, %v592
      %v735 = vadd.f32 %v703, %v594
      %v736 = vadd.f32 %v704, %v596
      %v737 = vadd.f32 %v705, %v598
      %v738 = vadd.f32 %v706, %v602
      %v739 = vadd.f32 %v707, %v604
      %v740 = vadd.f32 %v708, %v606
      %v741 = vadd.f32 %v709, %v608
      %v742 = vadd.f32 %v710, %v612
      %v743 = vadd.f32 %v711, %v614
      %v744 = vadd.f32 %v712, %v616
      %v745 = vadd.f32 %v713, %v618
      %v746 = vadd.f32 %v714, %v622
      %v747 = vadd.f32 %v715, %v624
      %v748 = vadd.f32 %v716, %v626
      %v749 = vadd.f32 %v717, %v628
      %v750 = vadd.f32 %v718, %v632
      %v751 = vadd.f32 %v719, %v634
      %v752 = vadd.f32 %v720, %v636
      %v753 = vadd.f32 %v721, %v638
      %v754 = vadd.f32 %v722, %v642
      %v755 = vadd.f32 %v723, %v644
      %v756 = vadd.f32 %v724, %v646
      %v757 = vadd.f32 %v725, %v648
      %v758 = vadd.f32 %v726, %v652
      %v759 = vadd.f32 %v727, %v654
      %v760 = vadd.f32 %v728, %v656
      %v761 = vadd.f32 %v729, %v658
      %762 = vst [vmem:[#allocation2 + $0x10] sm:$0xff] %v730
      %763 = vst [vmem:[#allocation2 + $0x18] sm:$0xff] %v731
      %764 = vst [vmem:[#allocation2 + $0x40] sm:$0xff] %v732
      %765 = vst [vmem:[#allocation2 + $0x48] sm:$0xff] %v733
      %766 = vst [vmem:[#allocation2 + $0x70] sm:$0xff] %v734
      %767 = vst [vmem:[#allocation2 + $0x78] sm:$0xff] %v735
      %768 = vst [vmem:[#allocation2 + $0xa0] sm:$0xff] %v736
      %769 = vst [vmem:[#allocation2 + $0xa8] sm:$0xff] %v737
      %770 = vst [vmem:[#allocation2 + $0xd0] sm:$0xff] %v738
      %771 = vst [vmem:[#allocation2 + $0xd8] sm:$0xff] %v739
      %772 = vst [vmem:[#allocation2 + $0x100] sm:$0xff] %v740
      %773 = vst [vmem:[#allocation2 + $0x108] sm:$0xff] %v741
      %774 = vst [vmem:[#allocation2 + $0x130] sm:$0xff] %v742
      %775 = vst [vmem:[#allocation2 + $0x138] sm:$0xff] %v743
      %776 = vst [vmem:[#allocation2 + $0x160] sm:$0xff] %v744
      %777 = vst [vmem:[#allocation2 + $0x168] sm:$0xff] %v745
      %778 = vst [vmem:[#allocation2 + $0x190] sm:$0xff] %v746
      %779 = vst [vmem:[#allocation2 + $0x198] sm:$0xff] %v747
      %780 = vst [vmem:[#allocation2 + $0x1c0] sm:$0xff] %v748
      %781 = vst [vmem:[#allocation2 + $0x1c8] sm:$0xff] %v749
      %782 = vst [vmem:[#allocation2 + $0x1f0] sm:$0xff] %v750
      %783 = vst [vmem:[#allocation2 + $0x1f8] sm:$0xff] %v751
      %784 = vst [vmem:[#allocation2 + $0x220] sm:$0xff] %v752
      %785 = vst [vmem:[#allocation2 + $0x228] sm:$0xff] %v753
      %786 = vst [vmem:[#allocation2 + $0x250] sm:$0xff] %v754
      %787 = vst [vmem:[#allocation2 + $0x258] sm:$0xff] %v755
      %788 = vst [vmem:[#allocation2 + $0x280] sm:$0xff] %v756
      %789 = vst [vmem:[#allocation2 + $0x288] sm:$0xff] %v757
      %790 = vst [vmem:[#allocation2 + $0x2b0] sm:$0xff] %v758
      %791 = vst [vmem:[#allocation2 + $0x2b8] sm:$0xff] %v759
      %792 = vst [vmem:[#allocation2 + $0x2e0] sm:$0xff] %v760
      %793 = vst [vmem:[#allocation2 + $0x2e8] sm:$0xff] %v761
    $region49: #{graph_encoder_forward.4} parent=1 // pred_fallthru
      _
    %v794 = vmul.f32 %v499, %v156
    %v795 = vmul.f32 %v500, %v157
    %v796 = vmul.f32 %v501, %v158
    %v797 = vmul.f32 %v502, %v159
    %v798 = vmul.f32 %v503, %v160
    %v799 = vmul.f32 %v504, %v161
    %v800 = vmul.f32 %v505, %v162
    %v801 = vmul.f32 %v506, %v163
    %v802 = vmul.f32 %v507, %v164
    %v803 = vmul.f32 %v508, %v165
    %v804 = vmul.f32 %v509, %v166
    %v805 = vmul.f32 %v510, %v167
    %v806 = vmul.f32 %v511, %v168
    %v807 = vmul.f32 %v512, %v169
    %v808 = vmul.f32 %v513, %v170
    %v809 = vmul.f32 %v514, %v171
    %v810 = vmul.f32 %v515, %v172
    %v811 = vmul.f32 %v516, %v173
    %v812 = vmul.f32 %v517, %v174
    %v813 = vmul.f32 %v518, %v175
    %v814 = vmul.f32 %v519, %v176
    %v815 = vmul.f32 %v520, %v177
    %v816 = vmul.f32 %v521, %v178
    %v817 = vmul.f32 %v522, %v179
    %v818 = vmul.f32 %v523, %v180
    %v819 = vmul.f32 %v524, %v181
    %v820 = vmul.f32 %v525, %v182
    %v821 = vmul.f32 %v526, %v183
    %v822 = vmul.f32 %v527, %v184
    %v823 = vmul.f32 %v528, %v185
    %v824 = vmul.f32 %v529, %v186
    %v825 = vmul.f32 %v530, %v187
    %v826 = vpack.c.bf16 %v796, %v794
    %v827 = vpack.c.bf16 %v797, %v795
    %v828 = vpack.c.bf16 %v800, %v798
    %v829 = vpack.c.bf16 %v801, %v799
    %v830 = vpack.c.bf16 %v804, %v802
    %v831 = vpack.c.bf16 %v805, %v803
    %v832 = vpack.c.bf16 %v808, %v806
    %v833 = vpack.c.bf16 %v809, %v807
    %v834 = vpack.c.bf16 %v812, %v810
    %v835 = vpack.c.bf16 %v813, %v811
    %v836 = vpack.c.bf16 %v816, %v814
    %v837 = vpack.c.bf16 %v817, %v815
    %v838 = vpack.c.bf16 %v820, %v818
    %v839 = vpack.c.bf16 %v821, %v819
    %v840 = vpack.c.bf16 %v824, %v822
    %v841 = vpack.c.bf16 %v825, %v823
    %842 = vmatprep.subr.bf16.mxu0 %v827
    %843 = vmatpush1.bf16.msra.mxu0 %v826
    %844 = vmatprep.subr.bf16.mxu0 %v829
    %845 = vmatpush1.bf16.msra.mxu0 %v828
    %846 = vmatprep.subr.bf16.mxu0 %v831
    %847 = vmatpush1.bf16.msra.mxu0 %v830
    %848 = vmatprep.subr.bf16.mxu0 %v833
    %849 = vmatpush1.bf16.msra.mxu0 %v832
    %850 = vmatprep.subr.bf16.mxu0 %v835
    %851 = vmatpush1.bf16.msra.mxu0 %v834
    %852 = vmatprep.subr.bf16.mxu0 %v837
    %853 = vmatpush1.bf16.msra.mxu0 %v836
    %854 = vmatprep.subr.bf16.mxu0 %v839
    %855 = vmatpush1.bf16.msra.mxu0 %v838
    %856 = vmatprep.subr.bf16.mxu0 %v841
    %857 = vmatpush1.bf16.msra.mxu0 %v840
    %858 = vmatprep.subr.bf16.mxu0 0
    %859 = vmatpush1.bf16.msra.mxu0 0
    %860 = vmatprep.subr.bf16.mxu0 0
    %861 = vmatpush1.bf16.msra.mxu0 0
    %862 = vmatprep.subr.bf16.mxu0 0
    %863 = vmatpush1.bf16.msra.mxu0 0
    %864 = vmatprep.subr.bf16.mxu0 0
    %865 = vmatpush1.bf16.msra.mxu0 0
    %866 = vmatprep.subr.bf16.mxu0 0
    %867 = vmatpush1.bf16.msra.mxu0 0
    %868 = vmatprep.subr.bf16.mxu0 0
    %869 = vmatpush1.bf16.msra.mxu0 0
    %870 = vmatprep.subr.bf16.mxu0 0
    %871 = vmatpush1.bf16.msra.mxu0 0
    %872 = vmatprep.subr.bf16.mxu0 0
    %873 = vmatpush1.bf16.msra.mxu0 0
    %874 = vmatprep.mubr.bf16.mxu0 0
    %875 = vmatmul.mubr.bf16.gmra.mrb[0].mxu0 %v236
    %v876 = vpop.f32.mrb[0].mxu0
    %v877 = vadd.f32 0.0, %v876
    %v878 = vpop.f32.mrb[0].mxu0
    %v879 = vadd.f32 0.0, %v878
    %v880 = vpop.f32.mrb[0].mxu0
    %v881 = vadd.f32 0.0, %v880
    %v882 = vpop.f32.mrb[0].mxu0
    %v883 = vadd.f32 0.0, %v882
    %884 = vmatprep.mubr.bf16.mxu0 0
    %885 = vmatmul.mubr.bf16.gmra.mrb[0].mxu0 %v237
    %v886 = vpop.f32.mrb[0].mxu0
    %v887 = vadd.f32 0.0, %v886
    %v888 = vpop.f32.mrb[0].mxu0
    %v889 = vadd.f32 0.0, %v888
    %v890 = vpop.f32.mrb[0].mxu0
    %v891 = vadd.f32 0.0, %v890
    %v892 = vpop.f32.mrb[0].mxu0
    %v893 = vadd.f32 0.0, %v892
    %894 = vmatprep.mubr.bf16.mxu0 0
    %895 = vmatmul.mubr.bf16.gmra.mrb[0].mxu0 %v238
    %v896 = vpop.f32.mrb[0].mxu0
    %v897 = vadd.f32 0.0, %v896
    %v898 = vpop.f32.mrb[0].mxu0
    %v899 = vadd.f32 0.0, %v898
    %v900 = vpop.f32.mrb[0].mxu0
    %v901 = vadd.f32 0.0, %v900
    %v902 = vpop.f32.mrb[0].mxu0
    %v903 = vadd.f32 0.0, %v902
    %904 = vmatprep.mubr.bf16.mxu0 0
    %905 = vmatmul.mubr.bf16.gmra.mrb[0].mxu0 %v239
    %v906 = vpop.f32.mrb[0].mxu0
    %v907 = vadd.f32 0.0, %v906
    %v908 = vpop.f32.mrb[0].mxu0
    %v909 = vadd.f32 0.0, %v908
    %v910 = vpop.f32.mrb[0].mxu0
    %v911 = vadd.f32 0.0, %v910
    %v912 = vpop.f32.mrb[0].mxu0
    %v913 = vadd.f32 0.0, %v912
    %914 = vmatprep.mubr.bf16.mxu0 0
    %915 = vmatmul.mubr.bf16.gmra.mrb[0].mxu0 %v240
    %v916 = vpop.f32.mrb[0].mxu0
    %v917 = vadd.f32 0.0, %v916
    %v918 = vpop.f32.mrb[0].mxu0
    %v919 = vadd.f32 0.0, %v918
    %v920 = vpop.f32.mrb[0].mxu0
    %v921 = vadd.f32 0.0, %v920
    %v922 = vpop.f32.mrb[0].mxu0
    %v923 = vadd.f32 0.0, %v922
    %924 = vmatprep.mubr.bf16.mxu0 0
    %925 = vmatmul.mubr.bf16.gmra.mrb[0].mxu0 %v241
    %v926 = vpop.f32.mrb[0].mxu0
    %v927 = vadd.f32 0.0, %v926
    %v928 = vpop.f32.mrb[0].mxu0
    %v929 = vadd.f32 0.0, %v928
    %v930 = vpop.f32.mrb[0].mxu0
    %v931 = vadd.f32 0.0, %v930
    %v932 = vpop.f32.mrb[0].mxu0
    %v933 = vadd.f32 0.0, %v932
    %934 = vmatprep.mubr.bf16.mxu0 0
    %935 = vmatmul.mubr.bf16.gmra.mrb[0].mxu0 %v242
    %v936 = vpop.f32.mrb[0].mxu0
    %v937 = vadd.f32 0.0, %v936
    %v938 = vpop.f32.mrb[0].mxu0
    %v939 = vadd.f32 0.0, %v938
    %v940 = vpop.f32.mrb[0].mxu0
    %v941 = vadd.f32 0.0, %v940
    %v942 = vpop.f32.mrb[0].mxu0
    %v943 = vadd.f32 0.0, %v942
    %944 = vmatprep.mubr.bf16.mxu0 0
    %945 = vmatmul.mubr.bf16.gmra.mrb[0].mxu0 %v243
    %v946 = vpop.f32.mrb[0].mxu0
    %v947 = vadd.f32 0.0, %v946
    %v948 = vpop.f32.mrb[0].mxu0
    %v949 = vadd.f32 0.0, %v948
    %v950 = vpop.f32.mrb[0].mxu0
    %v951 = vadd.f32 0.0, %v950
    %v952 = vpop.f32.mrb[0].mxu0
    %v953 = vadd.f32 0.0, %v952
    %954 = vdwg.mxu0
    // Predicated region
    $region50: #{graph_encoder_forward.4} parent=1 // pred_check
      %p955 = pneg %p33
    $region51: #{graph_encoder_forward.4} parent=1 // pred_check_branch
      %957 = sbr.rel (%p955) target = $region53
    $region52: #{graph_encoder_forward.4} parent=1 // pred_region
      %958 = vst [vmem:[#allocation2 + $0x20] sm:$0xff] %v877
      %959 = vst [vmem:[#allocation2 + $0x28] sm:$0xff] %v879
      %960 = vst [vmem:[#allocation2 + $0x50] sm:$0xff] %v881
      %961 = vst [vmem:[#allocation2 + $0x58] sm:$0xff] %v883
      %962 = vst [vmem:[#allocation2 + $0x80] sm:$0xff] %v887
      %963 = vst [vmem:[#allocation2 + $0x88] sm:$0xff] %v889
      %964 = vst [vmem:[#allocation2 + $0xb0] sm:$0xff] %v891
      %965 = vst [vmem:[#allocation2 + $0xb8] sm:$0xff] %v893
      %966 = vst [vmem:[#allocation2 + $0xe0] sm:$0xff] %v897
      %967 = vst [vmem:[#allocation2 + $0xe8] sm:$0xff] %v899
      %968 = vst [vmem:[#allocation2 + $0x110] sm:$0xff] %v901
      %969 = vst [vmem:[#allocation2 + $0x118] sm:$0xff] %v903
      %970 = vst [vmem:[#allocation2 + $0x140] sm:$0xff] %v907
      %971 = vst [vmem:[#allocation2 + $0x148] sm:$0xff] %v909
      %972 = vst [vmem:[#allocation2 + $0x170] sm:$0xff] %v911
      %973 = vst [vmem:[#allocation2 + $0x178] sm:$0xff] %v913
      %974 = vst [vmem:[#allocation2 + $0x1a0] sm:$0xff] %v917
      %975 = vst [vmem:[#allocation2 + $0x1a8] sm:$0xff] %v919
      %976 = vst [vmem:[#allocation2 + $0x1d0] sm:$0xff] %v921
      %977 = vst [vmem:[#allocation2 + $0x1d8] sm:$0xff] %v923
      %978 = vst [vmem:[#allocation2 + $0x200] sm:$0xff] %v927
      %979 = vst [vmem:[#allocation2 + $0x208] sm:$0xff] %v929
      %980 = vst [vmem:[#allocation2 + $0x230] sm:$0xff] %v931
      %981 = vst [vmem:[#allocation2 + $0x238] sm:$0xff] %v933
      %982 = vst [vmem:[#allocation2 + $0x260] sm:$0xff] %v937
      %983 = vst [vmem:[#allocation2 + $0x268] sm:$0xff] %v939
      %984 = vst [vmem:[#allocation2 + $0x290] sm:$0xff] %v941
      %985 = vst [vmem:[#allocation2 + $0x298] sm:$0xff] %v943
      %986 = vst [vmem:[#allocation2 + $0x2c0] sm:$0xff] %v947
      %987 = vst [vmem:[#allocation2 + $0x2c8] sm:$0xff] %v949
      %988 = vst [vmem:[#allocation2 + $0x2f0] sm:$0xff] %v951
      %989 = vst [vmem:[#allocation2 + $0x2f8] sm:$0xff] %v953
    $region53: #{graph_encoder_forward.4} parent=1 // pred_fallthru
      _
    // Predicated region
    $region54: #{graph_encoder_forward.4} parent=1 // pred_check
      %p990 = pneg %p34
    $region55: #{graph_encoder_forward.4} parent=1 // pred_check_branch
      %992 = sbr.rel (%p990) target = $region57
    $region56: #{graph_encoder_forward.4} parent=1 // pred_region
      %v993 = vld [vmem:[#allocation2 + $0x20] sm:$0xff]
      %v994 = vld [vmem:[#allocation2 + $0x28] sm:$0xff]
      %v995 = vld [vmem:[#allocation2 + $0x50] sm:$0xff]
      %v996 = vld [vmem:[#allocation2 + $0x58] sm:$0xff]
      %v997 = vld [vmem:[#allocation2 + $0x80] sm:$0xff]
      %v998 = vld [vmem:[#allocation2 + $0x88] sm:$0xff]
      %v999 = vld [vmem:[#allocation2 + $0xb0] sm:$0xff]
      %v1000 = vld [vmem:[#allocation2 + $0xb8] sm:$0xff]
      %v1001 = vld [vmem:[#allocation2 + $0xe0] sm:$0xff]
      %v1002 = vld [vmem:[#allocation2 + $0xe8] sm:$0xff]
      %v1003 = vld [vmem:[#allocation2 + $0x110] sm:$0xff]
      %v1004 = vld [vmem:[#allocation2 + $0x118] sm:$0xff]
      %v1005 = vld [vmem:[#allocation2 + $0x140] sm:$0xff]
      %v1006 = vld [vmem:[#allocation2 + $0x148] sm:$0xff]
      %v1007 = vld [vmem:[#allocation2 + $0x170] sm:$0xff]
      %v1008 = vld [vmem:[#allocation2 + $0x178] sm:$0xff]
      %v1009 = vld [vmem:[#allocation2 + $0x1a0] sm:$0xff]
      %v1010 = vld [vmem:[#allocation2 + $0x1a8] sm:$0xff]
      %v1011 = vld [vmem:[#allocation2 + $0x1d0] sm:$0xff]
      %v1012 = vld [vmem:[#allocation2 + $0x1d8] sm:$0xff]
      %v1013 = vld [vmem:[#allocation2 + $0x200] sm:$0xff]
      %v1014 = vld [vmem:[#allocation2 + $0x208] sm:$0xff]
      %v1015 = vld [vmem:[#allocation2 + $0x230] sm:$0xff]
      %v1016 = vld [vmem:[#allocation2 + $0x238] sm:$0xff]
      %v1017 = vld [vmem:[#allocation2 + $0x260] sm:$0xff]
      %v1018 = vld [vmem:[#allocation2 + $0x268] sm:$0xff]
      %v1019 = vld [vmem:[#allocation2 + $0x290] sm:$0xff]
      %v1020 = vld [vmem:[#allocation2 + $0x298] sm:$0xff]
      %v1021 = vld [vmem:[#allocation2 + $0x2c0] sm:$0xff]
      %v1022 = vld [vmem:[#allocation2 + $0x2c8] sm:$0xff]
      %v1023 = vld [vmem:[#allocation2 + $0x2f0] sm:$0xff]
      %v1024 = vld [vmem:[#allocation2 + $0x2f8] sm:$0xff]
      %v1025 = vadd.f32 %v993, %v877
      %v1026 = vadd.f32 %v994, %v879
      %v1027 = vadd.f32 %v995, %v881
      %v1028 = vadd.f32 %v996, %v883
      %v1029 = vadd.f32 %v997, %v887
      %v1030 = vadd.f32 %v998, %v889
      %v1031 = vadd.f32 %v999, %v891
      %v1032 = vadd.f32 %v1000, %v893
      %v1033 = vadd.f32 %v1001, %v897
      %v1034 = vadd.f32 %v1002, %v899
      %v1035 = vadd.f32 %v1003, %v901
      %v1036 = vadd.f32 %v1004, %v903
      %v1037 = vadd.f32 %v1005, %v907
      %v1038 = vadd.f32 %v1006, %v909
      %v1039 = vadd.f32 %v1007, %v911
      %v1040 = vadd.f32 %v1008, %v913
      %v1041 = vadd.f32 %v1009, %v917
      %v1042 = vadd.f32 %v1010, %v919
      %v1043 = vadd.f32 %v1011, %v921
      %v1044 = vadd.f32 %v1012, %v923
      %v1045 = vadd.f32 %v1013, %v927
      %v1046 = vadd.f32 %v1014, %v929
      %v1047 = vadd.f32 %v1015, %v931
      %v1048 = vadd.f32 %v1016, %v933
      %v1049 = vadd.f32 %v1017, %v937
      %v1050 = vadd.f32 %v1018, %v939
      %v1051 = vadd.f32 %v1019, %v941
      %v1052 = vadd.f32 %v1020, %v943
      %v1053 = vadd.f32 %v1021, %v947
      %v1054 = vadd.f32 %v1022, %v949
      %v1055 = vadd.f32 %v1023, %v951
      %v1056 = vadd.f32 %v1024, %v953
      %1057 = vst [vmem:[#allocation2 + $0x20] sm:$0xff] %v1025
      %1058 = vst [vmem:[#allocation2 + $0x28] sm:$0xff] %v1026
      %1059 = vst [vmem:[#allocation2 + $0x50] sm:$0xff] %v1027
      %1060 = vst [vmem:[#allocation2 + $0x58] sm:$0xff] %v1028
      %1061 = vst [vmem:[#allocation2 + $0x80] sm:$0xff] %v1029
      %1062 = vst [vmem:[#allocation2 + $0x88] sm:$0xff] %v1030
      %1063 = vst [vmem:[#allocation2 + $0xb0] sm:$0xff] %v1031
      %1064 = vst [vmem:[#allocation2 + $0xb8] sm:$0xff] %v1032
      %1065 = vst [vmem:[#allocation2 + $0xe0] sm:$0xff] %v1033
      %1066 = vst [vmem:[#allocation2 + $0xe8] sm:$0xff] %v1034
      %1067 = vst [vmem:[#allocation2 + $0x110] sm:$0xff] %v1035
      %1068 = vst [vmem:[#allocation2 + $0x118] sm:$0xff] %v1036
      %1069 = vst [vmem:[#allocation2 + $0x140] sm:$0xff] %v1037
      %1070 = vst [vmem:[#allocation2 + $0x148] sm:$0xff] %v1038
      %1071 = vst [vmem:[#allocation2 + $0x170] sm:$0xff] %v1039
      %1072 = vst [vmem:[#allocation2 + $0x178] sm:$0xff] %v1040
      %1073 = vst [vmem:[#allocation2 + $0x1a0] sm:$0xff] %v1041
      %1074 = vst [vmem:[#allocation2 + $0x1a8] sm:$0xff] %v1042
      %1075 = vst [vmem:[#allocation2 + $0x1d0] sm:$0xff] %v1043
      %1076 = vst [vmem:[#allocation2 + $0x1d8] sm:$0xff] %v1044
      %1077 = vst [vmem:[#allocation2 + $0x200] sm:$0xff] %v1045
      %1078 = vst [vmem:[#allocation2 + $0x208] sm:$0xff] %v1046
      %1079 = vst [vmem:[#allocation2 + $0x230] sm:$0xff] %v1047
      %1080 = vst [vmem:[#allocation2 + $0x238] sm:$0xff] %v1048
      %1081 = vst [vmem:[#allocation2 + $0x260] sm:$0xff] %v1049
      %1082 = vst [vmem:[#allocation2 + $0x268] sm:$0xff] %v1050
      %1083 = vst [vmem:[#allocation2 + $0x290] sm:$0xff] %v1051
      %1084 = vst [vmem:[#allocation2 + $0x298] sm:$0xff] %v1052
      %1085 = vst [vmem:[#allocation2 + $0x2c0] sm:$0xff] %v1053
      %1086 = vst [vmem:[#allocation2 + $0x2c8] sm:$0xff] %v1054
      %1087 = vst [vmem:[#allocation2 + $0x2f0] sm:$0xff] %v1055
      %1088 = vst [vmem:[#allocation2 + $0x2f8] sm:$0xff] %v1056
    $region57: #{graph_encoder_forward.4} parent=1 // pred_fallthru
      _
    // Predicated region
    $region58: #{graph_encoder_forward.4} parent=1 // pred_check
      %p1089 = pneg %p33
    $region59: #{graph_encoder_forward.4} parent=1 // pred_check_branch
      %1091 = sbr.rel (%p1089) target = $region61
    $region60: #{graph_encoder_forward.4} parent=1 // pred_region
      %v1092 = vld [vmem:[#allocation2] sm:$0xff]
      %v1093 = vld [vmem:[#allocation2 + $0x8] sm:$0xff]
      %v1094 = vld [vmem:[#allocation2 + $0x30] sm:$0xff]
      %v1095 = vld [vmem:[#allocation2 + $0x38] sm:$0xff]
      %v1096 = vld [vmem:[#allocation2 + $0x60] sm:$0xff]
      %v1097 = vld [vmem:[#allocation2 + $0x68] sm:$0xff]
      %v1098 = vld [vmem:[#allocation2 + $0x90] sm:$0xff]
      %v1099 = vld [vmem:[#allocation2 + $0x98] sm:$0xff]
      %v1100 = vld [vmem:[#allocation2 + $0xc0] sm:$0xff]
      %v1101 = vld [vmem:[#allocation2 + $0xc8] sm:$0xff]
      %v1102 = vld [vmem:[#allocation2 + $0xf0] sm:$0xff]
      %v1103 = vld [vmem:[#allocation2 + $0xf8] sm:$0xff]
      %v1104 = vld [vmem:[#allocation2 + $0x120] sm:$0xff]
      %v1105 = vld [vmem:[#allocation2 + $0x128] sm:$0xff]
      %v1106 = vld [vmem:[#allocation2 + $0x150] sm:$0xff]
      %v1107 = vld [vmem:[#allocation2 + $0x158] sm:$0xff]
      %v1108 = vld [vmem:[#allocation2 + $0x180] sm:$0xff]
      %v1109 = vld [vmem:[#allocation2 + $0x188] sm:$0xff]
      %v1110 = vld [vmem:[#allocation2 + $0x1b0] sm:$0xff]
      %v1111 = vld [vmem:[#allocation2 + $0x1b8] sm:$0xff]
      %v1112 = vld [vmem:[#allocation2 + $0x1e0] sm:$0xff]
      %v1113 = vld [vmem:[#allocation2 + $0x1e8] sm:$0xff]
      %v1114 = vld [vmem:[#allocation2 + $0x210] sm:$0xff]
      %v1115 = vld [vmem:[#allocation2 + $0x218] sm:$0xff]
      %v1116 = vld [vmem:[#allocation2 + $0x240] sm:$0xff]
      %v1117 = vld [vmem:[#allocation2 + $0x248] sm:$0xff]
      %v1118 = vld [vmem:[#allocation2 + $0x270] sm:$0xff]
      %v1119 = vld [vmem:[#allocation2 + $0x278] sm:$0xff]
      %v1120 = vld [vmem:[#allocation2 + $0x2a0] sm:$0xff]
      %v1121 = vld [vmem:[#allocation2 + $0x2a8] sm:$0xff]
      %v1122 = vld [vmem:[#allocation2 + $0x2d0] sm:$0xff]
      %v1123 = vld [vmem:[#allocation2 + $0x2d8] sm:$0xff]
      %v1124 = vld [vmem:[%s4] sm:$0xf]
      %v1125 = vld [vmem:[%s4 + $0x4] sm:$0xf]
      %v1126 = vld [vmem:[%s4 + $0x8] sm:$0xf]
      %v1127 = vld [vmem:[%s4 + $0xc] sm:$0xf]
      %v1128 = vld [vmem:[%s4 + $0x10] sm:$0xf]
      %v1129 = vld [vmem:[%s4 + $0x14] sm:$0xf]
      %v1130 = vld [vmem:[%s4 + $0x18] sm:$0xf]
      %v1131 = vld [vmem:[%s4 + $0x1c] sm:$0xf]
      %v1132 = vld [vmem:[%s4 + $0x20] sm:$0xf]
      %v1133 = vld [vmem:[%s4 + $0x24] sm:$0xf]
      %v1134 = vld [vmem:[%s4 + $0x28] sm:$0xf]
      %v1135 = vld [vmem:[%s4 + $0x2c] sm:$0xf]
      %v1136 = vld [vmem:[%s4 + $0x30] sm:$0xf]
      %v1137 = vld [vmem:[%s4 + $0x34] sm:$0xf]
      %v1138 = vld [vmem:[%s4 + $0x38] sm:$0xf]
      %v1139 = vld [vmem:[%s4 + $0x3c] sm:$0xf]
      %v1140 = vld [vmem:[%s4 + $0x40] sm:$0xf]
      %v1141 = vld [vmem:[%s4 + $0x44] sm:$0xf]
      %v1142 = vld [vmem:[%s4 + $0x48] sm:$0xf]
      %v1143 = vld [vmem:[%s4 + $0x4c] sm:$0xf]
      %v1144 = vld [vmem:[%s4 + $0x50] sm:$0xf]
      %v1145 = vld [vmem:[%s4 + $0x54] sm:$0xf]
      %v1146 = vld [vmem:[%s4 + $0x58] sm:$0xf]
      %v1147 = vld [vmem:[%s4 + $0x5c] sm:$0xf]
      %v1148 = vld [vmem:[%s4 + $0x60] sm:$0xf]
      %v1149 = vld [vmem:[%s4 + $0x64] sm:$0xf]
      %v1150 = vld [vmem:[%s4 + $0x68] sm:$0xf]
      %v1151 = vld [vmem:[%s4 + $0x6c] sm:$0xf]
      %v1152 = vld [vmem:[%s4 + $0x70] sm:$0xf]
      %v1153 = vld [vmem:[%s4 + $0x74] sm:$0xf]
      %v1154 = vld [vmem:[%s4 + $0x78] sm:$0xf]
      %v1155 = vld [vmem:[%s4 + $0x7c] sm:$0xf]
      %v1156 = vld [vmem:[%s5] sm:$0x1]
      %v1157 = vpack.c.bf16 %v1094, %v1092
      %v1158 = vpack.c.bf16 %v1095, %v1093
      %v1159 = vpack.c.bf16 %v1098, %v1096
      %v1160 = vpack.c.bf16 %v1099, %v1097
      %v1161 = vpack.c.bf16 %v1102, %v1100
      %v1162 = vpack.c.bf16 %v1103, %v1101
      %v1163 = vpack.c.bf16 %v1106, %v1104
      %v1164 = vpack.c.bf16 %v1107, %v1105
      %v1165 = vpack.c.bf16 %v1110, %v1108
      %v1166 = vpack.c.bf16 %v1111, %v1109
      %v1167 = vpack.c.bf16 %v1114, %v1112
      %v1168 = vpack.c.bf16 %v1115, %v1113
      %v1169 = vpack.c.bf16 %v1118, %v1116
      %v1170 = vpack.c.bf16 %v1119, %v1117
      %v1171 = vpack.c.bf16 %v1122, %v1120
      %v1172 = vpack.c.bf16 %v1123, %v1121
      %v1174 = vlaneseq
      %v1175 = vshrl.u32 %v1174, 7
      %v1176 = vsub.s32 0, %v1175
      %v1177 = vrot.slane %v1156, %v1176
      %v1211 = vunpack.c.l.b16 %v1124
      %v1212 = vunpack.c.l.b16 %v1125
      %v1213 = vunpack.c.l.b16 %v1126
      %v1214 = vunpack.c.l.b16 %v1127
      %v1215 = vunpack.c.l.b16 %v1128
      %v1216 = vunpack.c.l.b16 %v1129
      %v1217 = vunpack.c.l.b16 %v1130
      %v1218 = vunpack.c.l.b16 %v1131
      %v1219 = vunpack.c.l.b16 %v1132
      %v1220 = vunpack.c.l.b16 %v1133
      %v1221 = vunpack.c.l.b16 %v1134
      %v1222 = vunpack.c.l.b16 %v1135
      %v1223 = vunpack.c.l.b16 %v1136
      %v1224 = vunpack.c.l.b16 %v1137
      %v1225 = vunpack.c.l.b16 %v1138
      %v1226 = vunpack.c.l.b16 %v1139
      %v1227 = vunpack.c.l.b16 %v1140
      %v1228 = vunpack.c.l.b16 %v1141
      %v1229 = vunpack.c.l.b16 %v1142
      %v1230 = vunpack.c.l.b16 %v1143
      %v1231 = vunpack.c.l.b16 %v1144
      %v1232 = vunpack.c.l.b16 %v1145
      %v1233 = vunpack.c.l.b16 %v1146
      %v1234 = vunpack.c.l.b16 %v1147
      %v1235 = vunpack.c.l.b16 %v1148
      %v1236 = vunpack.c.l.b16 %v1149
      %v1237 = vunpack.c.l.b16 %v1150
      %v1238 = vunpack.c.l.b16 %v1151
      %v1239 = vunpack.c.l.b16 %v1152
      %v1240 = vunpack.c.l.b16 %v1153
      %v1241 = vunpack.c.l.b16 %v1154
      %v1242 = vunpack.c.l.b16 %v1155
      %v1243 = vpack.c.b16 %v1212, %v1211
      %v1244 = vpack.c.b16 %v1214, %v1213
      %v1245 = vpack.c.b16 %v1216, %v1215
      %v1246 = vpack.c.b16 %v1218, %v1217
      %v1247 = vpack.c.b16 %v1220, %v1219
      %v1248 = vpack.c.b16 %v1222, %v1221
      %v1249 = vpack.c.b16 %v1224, %v1223
      %v1250 = vpack.c.b16 %v1226, %v1225
      %v1251 = vpack.c.b16 %v1228, %v1227
      %v1252 = vpack.c.b16 %v1230, %v1229
      %v1253 = vpack.c.b16 %v1232, %v1231
      %v1254 = vpack.c.b16 %v1234, %v1233
      %v1255 = vpack.c.b16 %v1236, %v1235
      %v1256 = vpack.c.b16 %v1238, %v1237
      %v1257 = vpack.c.b16 %v1240, %v1239
      %v1258 = vpack.c.b16 %v1242, %v1241
      %1275 = vmatprep.subr.bf16.mxu0 0
      %1276 = vmatpush1.bf16.msra.mxu0 %v1243
      %1277 = vmatprep.subr.bf16.mxu0 0
      %1278 = vmatpush1.bf16.msra.mxu0 %v1244
      %1279 = vmatprep.subr.bf16.mxu0 0
      %1280 = vmatpush1.bf16.msra.mxu0 %v1245
      %1281 = vmatprep.subr.bf16.mxu0 0
      %1282 = vmatpush1.bf16.msra.mxu0 %v1246
      %1283 = vmatprep.subr.bf16.mxu0 0
      %1284 = vmatpush1.bf16.msra.mxu0 %v1247
      %1285 = vmatprep.subr.bf16.mxu0 0
      %1286 = vmatpush1.bf16.msra.mxu0 %v1248
      %1287 = vmatprep.subr.bf16.mxu0 0
      %1288 = vmatpush1.bf16.msra.mxu0 %v1249
      %1289 = vmatprep.subr.bf16.mxu0 0
      %1290 = vmatpush1.bf16.msra.mxu0 %v1250
      %1291 = vmatprep.subr.bf16.mxu0 0
      %1292 = vmatpush1.bf16.msra.mxu0 %v1251
      %1293 = vmatprep.subr.bf16.mxu0 0
      %1294 = vmatpush1.bf16.msra.mxu0 %v1252
      %1295 = vmatprep.subr.bf16.mxu0 0
      %1296 = vmatpush1.bf16.msra.mxu0 %v1253
      %1297 = vmatprep.subr.bf16.mxu0 0
      %1298 = vmatpush1.bf16.msra.mxu0 %v1254
      %1299 = vmatprep.subr.bf16.mxu0 0
      %1300 = vmatpush1.bf16.msra.mxu0 %v1255
      %1301 = vmatprep.subr.bf16.mxu0 0
      %1302 = vmatpush1.bf16.msra.mxu0 %v1256
      %1303 = vmatprep.subr.bf16.mxu0 0
      %1304 = vmatpush1.bf16.msra.mxu0 %v1257
      %1305 = vmatprep.subr.bf16.mxu0 0
      %1306 = vmatpush1.bf16.msra.mxu0 %v1258
      %1307 = vmatprep.mubr.bf16.mxu0 %v1158
      %1308 = vmatmul.mubr.bf16.gmra.mrb[0].mxu0 %v1157
      %v1309 = vpop.f32.mrb[0].mxu0
      %v1310 = vadd.f32 %v1177, %v1309
      %v1311 = vpop.f32.mrb[0].mxu0
      %v1312 = vpop.f32.mrb[0].mxu0
      %v1313 = vadd.f32 %v1177, %v1312
      %v1314 = vpop.f32.mrb[0].mxu0
      %1315 = vmatprep.mubr.bf16.mxu0 %v1160
      %1316 = vmatmul.mubr.bf16.gmra.mrb[0].mxu0 %v1159
      %v1317 = vpop.f32.mrb[0].mxu0
      %v1318 = vadd.f32 %v1177, %v1317
      %v1319 = vpop.f32.mrb[0].mxu0
      %v1320 = vpop.f32.mrb[0].mxu0
      %v1321 = vadd.f32 %v1177, %v1320
      %v1322 = vpop.f32.mrb[0].mxu0
      %1323 = vmatprep.mubr.bf16.mxu0 %v1162
      %1324 = vmatmul.mubr.bf16.gmra.mrb[0].mxu0 %v1161
      %v1325 = vpop.f32.mrb[0].mxu0
      %v1326 = vadd.f32 %v1177, %v1325
      %v1327 = vpop.f32.mrb[0].mxu0
      %v1328 = vpop.f32.mrb[0].mxu0
      %v1329 = vadd.f32 %v1177, %v1328
      %v1330 = vpop.f32.mrb[0].mxu0
      %1331 = vmatprep.mubr.bf16.mxu0 %v1164
      %1332 = vmatmul.mubr.bf16.gmra.mrb[0].mxu0 %v1163
      %v1333 = vpop.f32.mrb[0].mxu0
      %v1334 = vadd.f32 %v1177, %v1333
      %v1335 = vpop.f32.mrb[0].mxu0
      %v1336 = vpop.f32.mrb[0].mxu0
      %v1337 = vadd.f32 %v1177, %v1336
      %v1338 = vpop.f32.mrb[0].mxu0
      %1339 = vmatprep.mubr.bf16.mxu0 %v1166
      %1340 = vmatmul.mubr.bf16.gmra.mrb[0].mxu0 %v1165
      %v1341 = vpop.f32.mrb[0].mxu0
      %v1342 = vadd.f32 %v1177, %v1341
      %v1343 = vpop.f32.mrb[0].mxu0
      %v1344 = vpop.f32.mrb[0].mxu0
      %v1345 = vadd.f32 %v1177, %v1344
      %v1346 = vpop.f32.mrb[0].mxu0
      %1347 = vmatprep.mubr.bf16.mxu0 %v1168
      %1348 = vmatmul.mubr.bf16.gmra.mrb[0].mxu0 %v1167
      %v1349 = vpop.f32.mrb[0].mxu0
      %v1350 = vadd.f32 %v1177, %v1349
      %v1351 = vpop.f32.mrb[0].mxu0
      %v1352 = vpop.f32.mrb[0].mxu0
      %v1353 = vadd.f32 %v1177, %v1352
      %v1354 = vpop.f32.mrb[0].mxu0
      %1355 = vmatprep.mubr.bf16.mxu0 %v1170
      %1356 = vmatmul.mubr.bf16.gmra.mrb[0].mxu0 %v1169
      %v1357 = vpop.f32.mrb[0].mxu0
      %v1358 = vadd.f32 %v1177, %v1357
      %v1359 = vpop.f32.mrb[0].mxu0
      %v1360 = vpop.f32.mrb[0].mxu0
      %v1361 = vadd.f32 %v1177, %v1360
      %v1362 = vpop.f32.mrb[0].mxu0
      %1363 = vmatprep.mubr.bf16.mxu0 %v1172
      %1364 = vmatmul.mubr.bf16.gmra.mrb[0].mxu0 %v1171
      %v1365 = vpop.f32.mrb[0].mxu0
      %v1366 = vadd.f32 %v1177, %v1365
      %v1367 = vpop.f32.mrb[0].mxu0
      %v1368 = vpop.f32.mrb[0].mxu0
      %v1369 = vadd.f32 %v1177, %v1368
      %v1370 = vpop.f32.mrb[0].mxu0
      %1371 = vdwg.mxu0
      %v1372 = vmax.f32 %v1310, 0.0
      %v1373 = vmax.f32 %v1313, 0.0
      %v1374 = vmax.f32 %v1318, 0.0
      %v1375 = vmax.f32 %v1321, 0.0
      %v1376 = vmax.f32 %v1326, 0.0
      %v1377 = vmax.f32 %v1329, 0.0
      %v1378 = vmax.f32 %v1334, 0.0
      %v1379 = vmax.f32 %v1337, 0.0
      %v1380 = vmax.f32 %v1342, 0.0
      %v1381 = vmax.f32 %v1345, 0.0
      %v1382 = vmax.f32 %v1350, 0.0
      %v1383 = vmax.f32 %v1353, 0.0
      %v1384 = vmax.f32 %v1358, 0.0
      %v1385 = vmax.f32 %v1361, 0.0
      %v1386 = vmax.f32 %v1366, 0.0
      %v1387 = vmax.f32 %v1369, 0.0
      %v1388 = vld [vmem:[%s6] sm:$0xf]
      %v1389 = vld [vmem:[%s6 + $0x4] sm:$0xf]
      %v1390 = vld [vmem:[%s6 + $0x8] sm:$0xf]
      %v1391 = vld [vmem:[%s6 + $0xc] sm:$0xf]
      %v1392 = vld [vmem:[%s6 + $0x10] sm:$0xf]
      %v1393 = vld [vmem:[%s6 + $0x14] sm:$0xf]
      %v1394 = vld [vmem:[%s6 + $0x18] sm:$0xf]
      %v1395 = vld [vmem:[%s6 + $0x1c] sm:$0xf]
      %v1396 = vld [vmem:[%s6 + $0x20] sm:$0xf]
      %v1397 = vld [vmem:[%s6 + $0x24] sm:$0xf]
      %v1398 = vld [vmem:[%s6 + $0x28] sm:$0xf]
      %v1399 = vld [vmem:[%s6 + $0x2c] sm:$0xf]
      %v1400 = vld [vmem:[%s6 + $0x30] sm:$0xf]
      %v1401 = vld [vmem:[%s6 + $0x34] sm:$0xf]
      %v1402 = vld [vmem:[%s6 + $0x38] sm:$0xf]
      %v1403 = vld [vmem:[%s6 + $0x3c] sm:$0xf]
      %v1404 = vld [vmem:[%s7] sm:$0x1]
      %v1405 = vpack.c.bf16 %v1373, %v1372
      %v1406 = vpack.c.bf16 %v1375, %v1374
      %v1407 = vpack.c.bf16 %v1377, %v1376
      %v1408 = vpack.c.bf16 %v1379, %v1378
      %v1409 = vpack.c.bf16 %v1381, %v1380
      %v1410 = vpack.c.bf16 %v1383, %v1382
      %v1411 = vpack.c.bf16 %v1385, %v1384
      %v1412 = vpack.c.bf16 %v1387, %v1386
      %v1414 = vlaneseq
      %v1415 = vshrl.u32 %v1414, 7
      %v1416 = vsub.s32 0, %v1415
      %v1417 = vrot.slane %v1404, %v1416
      %v1435 = vunpack.c.l.b16 %v1388
      %v1436 = vunpack.c.l.b16 %v1389
      %v1437 = vunpack.c.l.b16 %v1390
      %v1438 = vunpack.c.l.b16 %v1391
      %v1439 = vunpack.c.l.b16 %v1392
      %v1440 = vunpack.c.l.b16 %v1393
      %v1441 = vunpack.c.l.b16 %v1394
      %v1442 = vunpack.c.l.b16 %v1395
      %v1443 = vunpack.c.l.b16 %v1396
      %v1444 = vunpack.c.l.b16 %v1397
      %v1445 = vunpack.c.l.b16 %v1398
      %v1446 = vunpack.c.l.b16 %v1399
      %v1447 = vunpack.c.l.b16 %v1400
      %v1448 = vunpack.c.l.b16 %v1401
      %v1449 = vunpack.c.l.b16 %v1402
      %v1450 = vunpack.c.l.b16 %v1403
      %v1451 = vpack.c.b16 %v1436, %v1435
      %v1452 = vpack.c.b16 %v1438, %v1437
      %v1453 = vpack.c.b16 %v1440, %v1439
      %v1454 = vpack.c.b16 %v1442, %v1441
      %v1455 = vpack.c.b16 %v1444, %v1443
      %v1456 = vpack.c.b16 %v1446, %v1445
      %v1457 = vpack.c.b16 %v1448, %v1447
      %v1458 = vpack.c.b16 %v1450, %v1449
      %1467 = vmatprep.subr.bf16.mxu0 0
      %1468 = vmatpush1.bf16.msra.mxu0 %v1451
      %1469 = vmatprep.subr.bf16.mxu0 0
      %1470 = vmatpush1.bf16.msra.mxu0 %v1452
      %1471 = vmatprep.subr.bf16.mxu0 0
      %1472 = vmatpush1.bf16.msra.mxu0 %v1453
      %1473 = vmatprep.subr.bf16.mxu0 0
      %1474 = vmatpush1.bf16.msra.mxu0 %v1454
      %1475 = vmatprep.subr.bf16.mxu0 0
      %1476 = vmatpush1.bf16.msra.mxu0 %v1455
      %1477 = vmatprep.subr.bf16.mxu0 0
      %1478 = vmatpush1.bf16.msra.mxu0 %v1456
      %1479 = vmatprep.subr.bf16.mxu0 0
      %1480 = vmatpush1.bf16.msra.mxu0 %v1457
      %1481 = vmatprep.subr.bf16.mxu0 0
      %1482 = vmatpush1.bf16.msra.mxu0 %v1458
      %1483 = vmatprep.subr.bf16.mxu0 0
      %1484 = vmatpush1.bf16.msra.mxu0 0
      %1485 = vmatprep.subr.bf16.mxu0 0
      %1486 = vmatpush1.bf16.msra.mxu0 0
      %1487 = vmatprep.subr.bf16.mxu0 0
      %1488 = vmatpush1.bf16.msra.mxu0 0
      %1489 = vmatprep.subr.bf16.mxu0 0
      %1490 = vmatpush1.bf16.msra.mxu0 0
      %1491 = vmatprep.subr.bf16.mxu0 0
      %1492 = vmatpush1.bf16.msra.mxu0 0
      %1493 = vmatprep.subr.bf16.mxu0 0
      %1494 = vmatpush1.bf16.msra.mxu0 0
      %1495 = vmatprep.subr.bf16.mxu0 0
      %1496 = vmatpush1.bf16.msra.mxu0 0
      %1497 = vmatprep.subr.bf16.mxu0 0
      %1498 = vmatpush1.bf16.msra.mxu0 0
      %1499 = vmatprep.mubr.bf16.mxu0 0
      %1500 = vmatmul.mubr.bf16.gmra.mrb[0].mxu0 %v1405
      %v1501 = vpop.f32.mrb[0].mxu0
      %v1502 = vadd.f32 %v1417, %v1501
      %v1503 = vpop.f32.mrb[0].mxu0
      %v1504 = vpop.f32.mrb[0].mxu0
      %v1505 = vadd.f32 %v1417, %v1504
      %v1506 = vpop.f32.mrb[0].mxu0
      %1507 = vmatprep.mubr.bf16.mxu0 0
      %1508 = vmatmul.mubr.bf16.gmra.mrb[0].mxu0 %v1406
      %v1509 = vpop.f32.mrb[0].mxu0
      %v1510 = vadd.f32 %v1417, %v1509
      %v1511 = vpop.f32.mrb[0].mxu0
      %v1512 = vpop.f32.mrb[0].mxu0
      %v1513 = vadd.f32 %v1417, %v1512
      %v1514 = vpop.f32.mrb[0].mxu0
      %1515 = vmatprep.mubr.bf16.mxu0 0
      %1516 = vmatmul.mubr.bf16.gmra.mrb[0].mxu0 %v1407
      %v1517 = vpop.f32.mrb[0].mxu0
      %v1518 = vadd.f32 %v1417, %v1517
      %v1519 = vpop.f32.mrb[0].mxu0
      %v1520 = vpop.f32.mrb[0].mxu0
      %v1521 = vadd.f32 %v1417, %v1520
      %v1522 = vpop.f32.mrb[0].mxu0
      %1523 = vmatprep.mubr.bf16.mxu0 0
      %1524 = vmatmul.mubr.bf16.gmra.mrb[0].mxu0 %v1408
      %v1525 = vpop.f32.mrb[0].mxu0
      %v1526 = vadd.f32 %v1417, %v1525
      %v1527 = vpop.f32.mrb[0].mxu0
      %v1528 = vpop.f32.mrb[0].mxu0
      %v1529 = vadd.f32 %v1417, %v1528
      %v1530 = vpop.f32.mrb[0].mxu0
      %1531 = vmatprep.mubr.bf16.mxu0 0
      %1532 = vmatmul.mubr.bf16.gmra.mrb[0].mxu0 %v1409
      %v1533 = vpop.f32.mrb[0].mxu0
      %v1534 = vadd.f32 %v1417, %v1533
      %v1535 = vpop.f32.mrb[0].mxu0
      %v1536 = vpop.f32.mrb[0].mxu0
      %v1537 = vadd.f32 %v1417, %v1536
      %v1538 = vpop.f32.mrb[0].mxu0
      %1539 = vmatprep.mubr.bf16.mxu0 0
      %1540 = vmatmul.mubr.bf16.gmra.mrb[0].mxu0 %v1410
      %v1541 = vpop.f32.mrb[0].mxu0
      %v1542 = vadd.f32 %v1417, %v1541
      %v1543 = vpop.f32.mrb[0].mxu0
      %v1544 = vpop.f32.mrb[0].mxu0
      %v1545 = vadd.f32 %v1417, %v1544
      %v1546 = vpop.f32.mrb[0].mxu0
      %1547 = vmatprep.mubr.bf16.mxu0 0
      %1548 = vmatmul.mubr.bf16.gmra.mrb[0].mxu0 %v1411
      %v1549 = vpop.f32.mrb[0].mxu0
      %v1550 = vadd.f32 %v1417, %v1549
      %v1551 = vpop.f32.mrb[0].mxu0
      %v1552 = vpop.f32.mrb[0].mxu0
      %v1553 = vadd.f32 %v1417, %v1552
      %v1554 = vpop.f32.mrb[0].mxu0
      %1555 = vmatprep.mubr.bf16.mxu0 0
      %1556 = vmatmul.mubr.bf16.gmra.mrb[0].mxu0 %v1412
      %v1557 = vpop.f32.mrb[0].mxu0
      %v1558 = vadd.f32 %v1417, %v1557
      %v1559 = vpop.f32.mrb[0].mxu0
      %v1560 = vpop.f32.mrb[0].mxu0
      %v1561 = vadd.f32 %v1417, %v1560
      %v1562 = vpop.f32.mrb[0].mxu0
      %1563 = vdwg.mxu0
      %v1564 = vmax.f32 %v1502, 0.0
      %v1565 = vmax.f32 %v1505, 0.0
      %v1566 = vmax.f32 %v1510, 0.0
      %v1567 = vmax.f32 %v1513, 0.0
      %v1568 = vmax.f32 %v1518, 0.0
      %v1569 = vmax.f32 %v1521, 0.0
      %v1570 = vmax.f32 %v1526, 0.0
      %v1571 = vmax.f32 %v1529, 0.0
      %v1572 = vmax.f32 %v1534, 0.0
      %v1573 = vmax.f32 %v1537, 0.0
      %v1574 = vmax.f32 %v1542, 0.0
      %v1575 = vmax.f32 %v1545, 0.0
      %v1576 = vmax.f32 %v1550, 0.0
      %v1577 = vmax.f32 %v1553, 0.0
      %v1578 = vmax.f32 %v1558, 0.0
      %v1579 = vmax.f32 %v1561, 0.0
      %v1580 = vld [vmem:[#allocation2 + $0x10] sm:$0xff]
      %v1581 = vld [vmem:[#allocation2 + $0x18] sm:$0xff]
      %v1582 = vld [vmem:[#allocation2 + $0x40] sm:$0xff]
      %v1583 = vld [vmem:[#allocation2 + $0x48] sm:$0xff]
      %v1584 = vld [vmem:[#allocation2 + $0x70] sm:$0xff]
      %v1585 = vld [vmem:[#allocation2 + $0x78] sm:$0xff]
      %v1586 = vld [vmem:[#allocation2 + $0xa0] sm:$0xff]
      %v1587 = vld [vmem:[#allocation2 + $0xa8] sm:$0xff]
      %v1588 = vld [vmem:[#allocation2 + $0xd0] sm:$0xff]
      %v1589 = vld [vmem:[#allocation2 + $0xd8] sm:$0xff]
      %v1590 = vld [vmem:[#allocation2 + $0x100] sm:$0xff]
      %v1591 = vld [vmem:[#allocation2 + $0x108] sm:$0xff]
      %v1592 = vld [vmem:[#allocation2 + $0x130] sm:$0xff]
      %v1593 = vld [vmem:[#allocation2 + $0x138] sm:$0xff]
      %v1594 = vld [vmem:[#allocation2 + $0x160] sm:$0xff]
      %v1595 = vld [vmem:[#allocation2 + $0x168] sm:$0xff]
      %v1596 = vld [vmem:[#allocation2 + $0x190] sm:$0xff]
      %v1597 = vld [vmem:[#allocation2 + $0x198] sm:$0xff]
      %v1598 = vld [vmem:[#allocation2 + $0x1c0] sm:$0xff]
      %v1599 = vld [vmem:[#allocation2 + $0x1c8] sm:$0xff]
      %v1600 = vld [vmem:[#allocation2 + $0x1f0] sm:$0xff]
      %v1601 = vld [vmem:[#allocation2 + $0x1f8] sm:$0xff]
      %v1602 = vld [vmem:[#allocation2 + $0x220] sm:$0xff]
      %v1603 = vld [vmem:[#allocation2 + $0x228] sm:$0xff]
      %v1604 = vld [vmem:[#allocation2 + $0x250] sm:$0xff]
      %v1605 = vld [vmem:[#allocation2 + $0x258] sm:$0xff]
      %v1606 = vld [vmem:[#allocation2 + $0x280] sm:$0xff]
      %v1607 = vld [vmem:[#allocation2 + $0x288] sm:$0xff]
      %v1608 = vld [vmem:[#allocation2 + $0x2b0] sm:$0xff]
      %v1609 = vld [vmem:[#allocation2 + $0x2b8] sm:$0xff]
      %v1610 = vld [vmem:[#allocation2 + $0x2e0] sm:$0xff]
      %v1611 = vld [vmem:[#allocation2 + $0x2e8] sm:$0xff]
      %s1612 = scalar_lea.vmem %s4, 128
      %v1613 = vld [vmem:[%s1612] sm:$0xf]
      %v1614 = vld [vmem:[%s1612 + $0x4] sm:$0xf]
      %v1615 = vld [vmem:[%s1612 + $0x8] sm:$0xf]
      %v1616 = vld [vmem:[%s1612 + $0xc] sm:$0xf]
      %v1617 = vld [vmem:[%s1612 + $0x10] sm:$0xf]
      %v1618 = vld [vmem:[%s1612 + $0x14] sm:$0xf]
      %v1619 = vld [vmem:[%s1612 + $0x18] sm:$0xf]
      %v1620 = vld [vmem:[%s1612 + $0x1c] sm:$0xf]
      %v1621 = vld [vmem:[%s1612 + $0x20] sm:$0xf]
      %v1622 = vld [vmem:[%s1612 + $0x24] sm:$0xf]
      %v1623 = vld [vmem:[%s1612 + $0x28] sm:$0xf]
      %v1624 = vld [vmem:[%s1612 + $0x2c] sm:$0xf]
      %v1625 = vld [vmem:[%s1612 + $0x30] sm:$0xf]
      %v1626 = vld [vmem:[%s1612 + $0x34] sm:$0xf]
      %v1627 = vld [vmem:[%s1612 + $0x38] sm:$0xf]
      %v1628 = vld [vmem:[%s1612 + $0x3c] sm:$0xf]
      %v1629 = vld [vmem:[%s1612 + $0x40] sm:$0xf]
      %v1630 = vld [vmem:[%s1612 + $0x44] sm:$0xf]
      %v1631 = vld [vmem:[%s1612 + $0x48] sm:$0xf]
      %v1632 = vld [vmem:[%s1612 + $0x4c] sm:$0xf]
      %v1633 = vld [vmem:[%s1612 + $0x50] sm:$0xf]
      %v1634 = vld [vmem:[%s1612 + $0x54] sm:$0xf]
      %v1635 = vld [vmem:[%s1612 + $0x58] sm:$0xf]
      %v1636 = vld [vmem:[%s1612 + $0x5c] sm:$0xf]
      %v1637 = vld [vmem:[%s1612 + $0x60] sm:$0xf]
      %v1638 = vld [vmem:[%s1612 + $0x64] sm:$0xf]
      %v1639 = vld [vmem:[%s1612 + $0x68] sm:$0xf]
      %v1640 = vld [vmem:[%s1612 + $0x6c] sm:$0xf]
      %v1641 = vld [vmem:[%s1612 + $0x70] sm:$0xf]
      %v1642 = vld [vmem:[%s1612 + $0x74] sm:$0xf]
      %v1643 = vld [vmem:[%s1612 + $0x78] sm:$0xf]
      %v1644 = vld [vmem:[%s1612 + $0x7c] sm:$0xf]
      %s1645 = scalar_lea.vmem %s5, 1
      %v1646 = vld [vmem:[%s1645] sm:$0x1]
      %v1647 = vpack.c.bf16 %v1582, %v1580
      %v1648 = vpack.c.bf16 %v1583, %v1581
      %v1649 = vpack.c.bf16 %v1586, %v1584
      %v1650 = vpack.c.bf16 %v1587, %v1585
      %v1651 = vpack.c.bf16 %v1590, %v1588
      %v1652 = vpack.c.bf16 %v1591, %v1589
      %v1653 = vpack.c.bf16 %v1594, %v1592
      %v1654 = vpack.c.bf16 %v1595, %v1593
      %v1655 = vpack.c.bf16 %v1598, %v1596
      %v1656 = vpack.c.bf16 %v1599, %v1597
      %v1657 = vpack.c.bf16 %v1602, %v1600
      %v1658 = vpack.c.bf16 %v1603, %v1601
      %v1659 = vpack.c.bf16 %v1606, %v1604
      %v1660 = vpack.c.bf16 %v1607, %v1605
      %v1661 = vpack.c.bf16 %v1610, %v1608
      %v1662 = vpack.c.bf16 %v1611, %v1609
      %v1664 = vlaneseq
      %v1665 = vshrl.u32 %v1664, 7
      %v1666 = vsub.s32 0, %v1665
      %v1667 = vrot.slane %v1646, %v1666
      %v1701 = vunpack.c.l.b16 %v1613
      %v1702 = vunpack.c.l.b16 %v1614
      %v1703 = vunpack.c.l.b16 %v1615
      %v1704 = vunpack.c.l.b16 %v1616
      %v1705 = vunpack.c.l.b16 %v1617
      %v1706 = vunpack.c.l.b16 %v1618
      %v1707 = vunpack.c.l.b16 %v1619
      %v1708 = vunpack.c.l.b16 %v1620
      %v1709 = vunpack.c.l.b16 %v1621
      %v1710 = vunpack.c.l.b16 %v1622
      %v1711 = vunpack.c.l.b16 %v1623
      %v1712 = vunpack.c.l.b16 %v1624
      %v1713 = vunpack.c.l.b16 %v1625
      %v1714 = vunpack.c.l.b16 %v1626
      %v1715 = vunpack.c.l.b16 %v1627
      %v1716 = vunpack.c.l.b16 %v1628
      %v1717 = vunpack.c.l.b16 %v1629
      %v1718 = vunpack.c.l.b16 %v1630
      %v1719 = vunpack.c.l.b16 %v1631
      %v1720 = vunpack.c.l.b16 %v1632
      %v1721 = vunpack.c.l.b16 %v1633
      %v1722 = vunpack.c.l.b16 %v1634
      %v1723 = vunpack.c.l.b16 %v1635
      %v1724 = vunpack.c.l.b16 %v1636
      %v1725 = vunpack.c.l.b16 %v1637
      %v1726 = vunpack.c.l.b16 %v1638
      %v1727 = vunpack.c.l.b16 %v1639
      %v1728 = vunpack.c.l.b16 %v1640
      %v1729 = vunpack.c.l.b16 %v1641
      %v1730 = vunpack.c.l.b16 %v1642
      %v1731 = vunpack.c.l.b16 %v1643
      %v1732 = vunpack.c.l.b16 %v1644
      %v1733 = vpack.c.b16 %v1702, %v1701
      %v1734 = vpack.c.b16 %v1704, %v1703
      %v1735 = vpack.c.b16 %v1706, %v1705
      %v1736 = vpack.c.b16 %v1708, %v1707
      %v1737 = vpack.c.b16 %v1710, %v1709
      %v1738 = vpack.c.b16 %v1712, %v1711
      %v1739 = vpack.c.b16 %v1714, %v1713
      %v1740 = vpack.c.b16 %v1716, %v1715
      %v1741 = vpack.c.b16 %v1718, %v1717
      %v1742 = vpack.c.b16 %v1720, %v1719
      %v1743 = vpack.c.b16 %v1722, %v1721
      %v1744 = vpack.c.b16 %v1724, %v1723
      %v1745 = vpack.c.b16 %v1726, %v1725
      %v1746 = vpack.c.b16 %v1728, %v1727
      %v1747 = vpack.c.b16 %v1730, %v1729
      %v1748 = vpack.c.b16 %v1732, %v1731
      %1765 = vmatprep.subr.bf16.mxu0 0
      %1766 = vmatpush1.bf16.msra.mxu0 %v1733
      %1767 = vmatprep.subr.bf16.mxu0 0
      %1768 = vmatpush1.bf16.msra.mxu0 %v1734
      %1769 = vmatprep.subr.bf16.mxu0 0
      %1770 = vmatpush1.bf16.msra.mxu0 %v1735
      %1771 = vmatprep.subr.bf16.mxu0 0
      %1772 = vmatpush1.bf16.msra.mxu0 %v1736
      %1773 = vmatprep.subr.bf16.mxu0 0
      %1774 = vmatpush1.bf16.msra.mxu0 %v1737
      %1775 = vmatprep.subr.bf16.mxu0 0
      %1776 = vmatpush1.bf16.msra.mxu0 %v1738
      %1777 = vmatprep.subr.bf16.mxu0 0
      %1778 = vmatpush1.bf16.msra.mxu0 %v1739
      %1779 = vmatprep.subr.bf16.mxu0 0
      %1780 = vmatpush1.bf16.msra.mxu0 %v1740
      %1781 = vmatprep.subr.bf16.mxu0 0
      %1782 = vmatpush1.bf16.msra.mxu0 %v1741
      %1783 = vmatprep.subr.bf16.mxu0 0
      %1784 = vmatpush1.bf16.msra.mxu0 %v1742
      %1785 = vmatprep.subr.bf16.mxu0 0
      %1786 = vmatpush1.bf16.msra.mxu0 %v1743
      %1787 = vmatprep.subr.bf16.mxu0 0
      %1788 = vmatpush1.bf16.msra.mxu0 %v1744
      %1789 = vmatprep.subr.bf16.mxu0 0
      %1790 = vmatpush1.bf16.msra.mxu0 %v1745
      %1791 = vmatprep.subr.bf16.mxu0 0
      %1792 = vmatpush1.bf16.msra.mxu0 %v1746
      %1793 = vmatprep.subr.bf16.mxu0 0
      %1794 = vmatpush1.bf16.msra.mxu0 %v1747
      %1795 = vmatprep.subr.bf16.mxu0 0
      %1796 = vmatpush1.bf16.msra.mxu0 %v1748
      %1797 = vmatprep.mubr.bf16.mxu0 %v1648
      %1798 = vmatmul.mubr.bf16.gmra.mrb[0].mxu0 %v1647
      %v1799 = vpop.f32.mrb[0].mxu0
      %v1800 = vadd.f32 %v1667, %v1799
      %v1801 = vpop.f32.mrb[0].mxu0
      %v1802 = vpop.f32.mrb[0].mxu0
      %v1803 = vadd.f32 %v1667, %v1802
      %v1804 = vpop.f32.mrb[0].mxu0
      %1805 = vmatprep.mubr.bf16.mxu0 %v1650
      %1806 = vmatmul.mubr.bf16.gmra.mrb[0].mxu0 %v1649
      %v1807 = vpop.f32.mrb[0].mxu0
      %v1808 = vadd.f32 %v1667, %v1807
      %v1809 = vpop.f32.mrb[0].mxu0
      %v1810 = vpop.f32.mrb[0].mxu0
      %v1811 = vadd.f32 %v1667, %v1810
      %v1812 = vpop.f32.mrb[0].mxu0
      %1813 = vmatprep.mubr.bf16.mxu0 %v1652
      %1814 = vmatmul.mubr.bf16.gmra.mrb[0].mxu0 %v1651
      %v1815 = vpop.f32.mrb[0].mxu0
      %v1816 = vadd.f32 %v1667, %v1815
      %v1817 = vpop.f32.mrb[0].mxu0
      %v1818 = vpop.f32.mrb[0].mxu0
      %v1819 = vadd.f32 %v1667, %v1818
      %v1820 = vpop.f32.mrb[0].mxu0
      %1821 = vmatprep.mubr.bf16.mxu0 %v1654
      %1822 = vmatmul.mubr.bf16.gmra.mrb[0].mxu0 %v1653
      %v1823 = vpop.f32.mrb[0].mxu0
      %v1824 = vadd.f32 %v1667, %v1823
      %v1825 = vpop.f32.mrb[0].mxu0
      %v1826 = vpop.f32.mrb[0].mxu0
      %v1827 = vadd.f32 %v1667, %v1826
      %v1828 = vpop.f32.mrb[0].mxu0
      %1829 = vmatprep.mubr.bf16.mxu0 %v1656
      %1830 = vmatmul.mubr.bf16.gmra.mrb[0].mxu0 %v1655
      %v1831 = vpop.f32.mrb[0].mxu0
      %v1832 = vadd.f32 %v1667, %v1831
      %v1833 = vpop.f32.mrb[0].mxu0
      %v1834 = vpop.f32.mrb[0].mxu0
      %v1835 = vadd.f32 %v1667, %v1834
      %v1836 = vpop.f32.mrb[0].mxu0
      %1837 = vmatprep.mubr.bf16.mxu0 %v1658
      %1838 = vmatmul.mubr.bf16.gmra.mrb[0].mxu0 %v1657
      %v1839 = vpop.f32.mrb[0].mxu0
      %v1840 = vadd.f32 %v1667, %v1839
      %v1841 = vpop.f32.mrb[0].mxu0
      %v1842 = vpop.f32.mrb[0].mxu0
      %v1843 = vadd.f32 %v1667, %v1842
      %v1844 = vpop.f32.mrb[0].mxu0
      %1845 = vmatprep.mubr.bf16.mxu0 %v1660
      %1846 = vmatmul.mubr.bf16.gmra.mrb[0].mxu0 %v1659
      %v1847 = vpop.f32.mrb[0].mxu0
      %v1848 = vadd.f32 %v1667, %v1847
      %v1849 = vpop.f32.mrb[0].mxu0
      %v1850 = vpop.f32.mrb[0].mxu0
      %v1851 = vadd.f32 %v1667, %v1850
      %v1852 = vpop.f32.mrb[0].mxu0
      %1853 = vmatprep.mubr.bf16.mxu0 %v1662
      %1854 = vmatmul.mubr.bf16.gmra.mrb[0].mxu0 %v1661
      %v1855 = vpop.f32.mrb[0].mxu0
      %v1856 = vadd.f32 %v1667, %v1855
      %v1857 = vpop.f32.mrb[0].mxu0
      %v1858 = vpop.f32.mrb[0].mxu0
      %v1859 = vadd.f32 %v1667, %v1858
      %v1860 = vpop.f32.mrb[0].mxu0
      %1861 = vdwg.mxu0
      %v1862 = vmax.f32 %v1800, 0.0
      %v1863 = vmax.f32 %v1803, 0.0
      %v1864 = vmax.f32 %v1808, 0.0
      %v1865 = vmax.f32 %v1811, 0.0
      %v1866 = vmax.f32 %v1816, 0.0
      %v1867 = vmax.f32 %v1819, 0.0
      %v1868 = vmax.f32 %v1824, 0.0
      %v1869 = vmax.f32 %v1827, 0.0
      %v1870 = vmax.f32 %v1832, 0.0
      %v1871 = vmax.f32 %v1835, 0.0
      %v1872 = vmax.f32 %v1840, 0.0
      %v1873 = vmax.f32 %v1843, 0.0
      %v1874 = vmax.f32 %v1848, 0.0
      %v1875 = vmax.f32 %v1851, 0.0
      %v1876 = vmax.f32 %v1856, 0.0
      %v1877 = vmax.f32 %v1859, 0.0
      %s1878 = scalar_lea.vmem %s6, 64
      %v1879 = vld [vmem:[%s1878] sm:$0xf]
      %v1880 = vld [vmem:[%s1878 + $0x4] sm:$0xf]
      %v1881 = vld [vmem:[%s1878 + $0x8] sm:$0xf]
      %v1882 = vld [vmem:[%s1878 + $0xc] sm:$0xf]
      %v1883 = vld [vmem:[%s1878 + $0x10] sm:$0xf]
      %v1884 = vld [vmem:[%s1878 + $0x14] sm:$0xf]
      %v1885 = vld [vmem:[%s1878 + $0x18] sm:$0xf]
      %v1886 = vld [vmem:[%s1878 + $0x1c] sm:$0xf]
      %v1887 = vld [vmem:[%s1878 + $0x20] sm:$0xf]
      %v1888 = vld [vmem:[%s1878 + $0x24] sm:$0xf]
      %v1889 = vld [vmem:[%s1878 + $0x28] sm:$0xf]
      %v1890 = vld [vmem:[%s1878 + $0x2c] sm:$0xf]
      %v1891 = vld [vmem:[%s1878 + $0x30] sm:$0xf]
      %v1892 = vld [vmem:[%s1878 + $0x34] sm:$0xf]
      %v1893 = vld [vmem:[%s1878 + $0x38] sm:$0xf]
      %v1894 = vld [vmem:[%s1878 + $0x3c] sm:$0xf]
      %s1895 = scalar_lea.vmem %s7, 1
      %v1896 = vld [vmem:[%s1895] sm:$0x1]
      %v1897 = vpack.c.bf16 %v1863, %v1862
      %v1898 = vpack.c.bf16 %v1865, %v1864
      %v1899 = vpack.c.bf16 %v1867, %v1866
      %v1900 = vpack.c.bf16 %v1869, %v1868
      %v1901 = vpack.c.bf16 %v1871, %v1870
      %v1902 = vpack.c.bf16 %v1873, %v1872
      %v1903 = vpack.c.bf16 %v1875, %v1874
      %v1904 = vpack.c.bf16 %v1877, %v1876
      %v1906 = vlaneseq
      %v1907 = vshrl.u32 %v1906, 7
      %v1908 = vsub.s32 0, %v1907
      %v1909 = vrot.slane %v1896, %v1908
      %v1927 = vunpack.c.l.b16 %v1879
      %v1928 = vunpack.c.l.b16 %v1880
      %v1929 = vunpack.c.l.b16 %v1881
      %v1930 = vunpack.c.l.b16 %v1882
      %v1931 = vunpack.c.l.b16 %v1883
      %v1932 = vunpack.c.l.b16 %v1884
      %v1933 = vunpack.c.l.b16 %v1885
      %v1934 = vunpack.c.l.b16 %v1886
      %v1935 = vunpack.c.l.b16 %v1887
      %v1936 = vunpack.c.l.b16 %v1888
      %v1937 = vunpack.c.l.b16 %v1889
      %v1938 = vunpack.c.l.b16 %v1890
      %v1939 = vunpack.c.l.b16 %v1891
      %v1940 = vunpack.c.l.b16 %v1892
      %v1941 = vunpack.c.l.b16 %v1893
      %v1942 = vunpack.c.l.b16 %v1894
      %v1943 = vpack.c.b16 %v1928, %v1927
      %v1944 = vpack.c.b16 %v1930, %v1929
      %v1945 = vpack.c.b16 %v1932, %v1931
      %v1946 = vpack.c.b16 %v1934, %v1933
      %v1947 = vpack.c.b16 %v1936, %v1935
      %v1948 = vpack.c.b16 %v1938, %v1937
      %v1949 = vpack.c.b16 %v1940, %v1939
      %v1950 = vpack.c.b16 %v1942, %v1941
      %1959 = vmatprep.subr.bf16.mxu0 0
      %1960 = vmatpush1.bf16.msra.mxu0 %v1943
      %1961 = vmatprep.subr.bf16.mxu0 0
      %1962 = vmatpush1.bf16.msra.mxu0 %v1944
      %1963 = vmatprep.subr.bf16.mxu0 0
      %1964 = vmatpush1.bf16.msra.mxu0 %v1945
      %1965 = vmatprep.subr.bf16.mxu0 0
      %1966 = vmatpush1.bf16.msra.mxu0 %v1946
      %1967 = vmatprep.subr.bf16.mxu0 0
      %1968 = vmatpush1.bf16.msra.mxu0 %v1947
      %1969 = vmatprep.subr.bf16.mxu0 0
      %1970 = vmatpush1.bf16.msra.mxu0 %v1948
      %1971 = vmatprep.subr.bf16.mxu0 0
      %1972 = vmatpush1.bf16.msra.mxu0 %v1949
      %1973 = vmatprep.subr.bf16.mxu0 0
      %1974 = vmatpush1.bf16.msra.mxu0 %v1950
      %1975 = vmatprep.subr.bf16.mxu0 0
      %1976 = vmatpush1.bf16.msra.mxu0 0
      %1977 = vmatprep.subr.bf16.mxu0 0
      %1978 = vmatpush1.bf16.msra.mxu0 0
      %1979 = vmatprep.subr.bf16.mxu0 0
      %1980 = vmatpush1.bf16.msra.mxu0 0
      %1981 = vmatprep.subr.bf16.mxu0 0
      %1982 = vmatpush1.bf16.msra.mxu0 0
      %1983 = vmatprep.subr.bf16.mxu0 0
      %1984 = vmatpush1.bf16.msra.mxu0 0
      %1985 = vmatprep.subr.bf16.mxu0 0
      %1986 = vmatpush1.bf16.msra.mxu0 0
      %1987 = vmatprep.subr.bf16.mxu0 0
      %1988 = vmatpush1.bf16.msra.mxu0 0
      %1989 = vmatprep.subr.bf16.mxu0 0
      %1990 = vmatpush1.bf16.msra.mxu0 0
      %1991 = vmatprep.mubr.bf16.mxu0 0
      %1992 = vmatmul.mubr.bf16.gmra.mrb[0].mxu0 %v1897
      %v1993 = vpop.f32.mrb[0].mxu0
      %v1994 = vadd.f32 %v1909, %v1993
      %v1995 = vpop.f32.mrb[0].mxu0
      %v1996 = vpop.f32.mrb[0].mxu0
      %v1997 = vadd.f32 %v1909, %v1996
      %v1998 = vpop.f32.mrb[0].mxu0
      %1999 = vmatprep.mubr.bf16.mxu0 0
      %2000 = vmatmul.mubr.bf16.gmra.mrb[0].mxu0 %v1898
      %v2001 = vpop.f32.mrb[0].mxu0
      %v2002 = vadd.f32 %v1909, %v2001
      %v2003 = vpop.f32.mrb[0].mxu0
      %v2004 = vpop.f32.mrb[0].mxu0
      %v2005 = vadd.f32 %v1909, %v2004
      %v2006 = vpop.f32.mrb[0].mxu0
      %2007 = vmatprep.mubr.bf16.mxu0 0
      %2008 = vmatmul.mubr.bf16.gmra.mrb[0].mxu0 %v1899
      %v2009 = vpop.f32.mrb[0].mxu0
      %v2010 = vadd.f32 %v1909, %v2009
      %v2011 = vpop.f32.mrb[0].mxu0
      %v2012 = vpop.f32.mrb[0].mxu0
      %v2013 = vadd.f32 %v1909, %v2012
      %v2014 = vpop.f32.mrb[0].mxu0
      %2015 = vmatprep.mubr.bf16.mxu0 0
      %2016 = vmatmul.mubr.bf16.gmra.mrb[0].mxu0 %v1900
      %v2017 = vpop.f32.mrb[0].mxu0
      %v2018 = vadd.f32 %v1909, %v2017
      %v2019 = vpop.f32.mrb[0].mxu0
      %v2020 = vpop.f32.mrb[0].mxu0
      %v2021 = vadd.f32 %v1909, %v2020
      %v2022 = vpop.f32.mrb[0].mxu0
      %2023 = vmatprep.mubr.bf16.mxu0 0
      %2024 = vmatmul.mubr.bf16.gmra.mrb[0].mxu0 %v1901
      %v2025 = vpop.f32.mrb[0].mxu0
      %v2026 = vadd.f32 %v1909, %v2025
      %v2027 = vpop.f32.mrb[0].mxu0
      %v2028 = vpop.f32.mrb[0].mxu0
      %v2029 = vadd.f32 %v1909, %v2028
      %v2030 = vpop.f32.mrb[0].mxu0
      %2031 = vmatprep.mubr.bf16.mxu0 0
      %2032 = vmatmul.mubr.bf16.gmra.mrb[0].mxu0 %v1902
      %v2033 = vpop.f32.mrb[0].mxu0
      %v2034 = vadd.f32 %v1909, %v2033
      %v2035 = vpop.f32.mrb[0].mxu0
      %v2036 = vpop.f32.mrb[0].mxu0
      %v2037 = vadd.f32 %v1909, %v2036
      %v2038 = vpop.f32.mrb[0].mxu0
      %2039 = vmatprep.mubr.bf16.mxu0 0
      %2040 = vmatmul.mubr.bf16.gmra.mrb[0].mxu0 %v1903
      %v2041 = vpop.f32.mrb[0].mxu0
      %v2042 = vadd.f32 %v1909, %v2041
      %v2043 = vpop.f32.mrb[0].mxu0
      %v2044 = vpop.f32.mrb[0].mxu0
      %v2045 = vadd.f32 %v1909, %v2044
      %v2046 = vpop.f32.mrb[0].mxu0
      %2047 = vmatprep.mubr.bf16.mxu0 0
      %2048 = vmatmul.mubr.bf16.gmra.mrb[0].mxu0 %v1904
      %v2049 = vpop.f32.mrb[0].mxu0
      %v2050 = vadd.f32 %v1909, %v2049
      %v2051 = vpop.f32.mrb[0].mxu0
      %v2052 = vpop.f32.mrb[0].mxu0
      %v2053 = vadd.f32 %v1909, %v2052
      %v2054 = vpop.f32.mrb[0].mxu0
      %2055 = vdwg.mxu0
      %v2056 = vmax.f32 %v1994, 0.0
      %v2057 = vmax.f32 %v1997, 0.0
      %v2058 = vmax.f32 %v2002, 0.0
      %v2059 = vmax.f32 %v2005, 0.0
      %v2060 = vmax.f32 %v2010, 0.0
      %v2061 = vmax.f32 %v2013, 0.0
      %v2062 = vmax.f32 %v2018, 0.0
      %v2063 = vmax.f32 %v2021, 0.0
      %v2064 = vmax.f32 %v2026, 0.0
      %v2065 = vmax.f32 %v2029, 0.0
      %v2066 = vmax.f32 %v2034, 0.0
      %v2067 = vmax.f32 %v2037, 0.0
      %v2068 = vmax.f32 %v2042, 0.0
      %v2069 = vmax.f32 %v2045, 0.0
      %v2070 = vmax.f32 %v2050, 0.0
      %v2071 = vmax.f32 %v2053, 0.0
      %v2072 = vadd.f32 %v1564, %v2056
      %v2073 = vadd.f32 %v1565, %v2057
      %v2074 = vadd.f32 %v1566, %v2058
      %v2075 = vadd.f32 %v1567, %v2059
      %v2076 = vadd.f32 %v1568, %v2060
      %v2077 = vadd.f32 %v1569, %v2061
      %v2078 = vadd.f32 %v1570, %v2062
      %v2079 = vadd.f32 %v1571, %v2063
      %v2080 = vadd.f32 %v1572, %v2064
      %v2081 = vadd.f32 %v1573, %v2065
      %v2082 = vadd.f32 %v1574, %v2066
      %v2083 = vadd.f32 %v1575, %v2067
      %v2084 = vadd.f32 %v1576, %v2068
      %v2085 = vadd.f32 %v1577, %v2069
      %v2086 = vadd.f32 %v1578, %v2070
      %v2087 = vadd.f32 %v1579, %v2071
      %v2088 = vld [vmem:[#allocation2 + $0x20] sm:$0xff]
      %v2089 = vld [vmem:[#allocation2 + $0x28] sm:$0xff]
      %v2090 = vld [vmem:[#allocation2 + $0x50] sm:$0xff]
      %v2091 = vld [vmem:[#allocation2 + $0x58] sm:$0xff]
      %v2092 = vld [vmem:[#allocation2 + $0x80] sm:$0xff]
      %v2093 = vld [vmem:[#allocation2 + $0x88] sm:$0xff]
      %v2094 = vld [vmem:[#allocation2 + $0xb0] sm:$0xff]
      %v2095 = vld [vmem:[#allocation2 + $0xb8] sm:$0xff]
      %v2096 = vld [vmem:[#allocation2 + $0xe0] sm:$0xff]
      %v2097 = vld [vmem:[#allocation2 + $0xe8] sm:$0xff]
      %v2098 = vld [vmem:[#allocation2 + $0x110] sm:$0xff]
      %v2099 = vld [vmem:[#allocation2 + $0x118] sm:$0xff]
      %v2100 = vld [vmem:[#allocation2 + $0x140] sm:$0xff]
      %v2101 = vld [vmem:[#allocation2 + $0x148] sm:$0xff]
      %v2102 = vld [vmem:[#allocation2 + $0x170] sm:$0xff]
      %v2103 = vld [vmem:[#allocation2 + $0x178] sm:$0xff]
      %v2104 = vld [vmem:[#allocation2 + $0x1a0] sm:$0xff]
      %v2105 = vld [vmem:[#allocation2 + $0x1a8] sm:$0xff]
      %v2106 = vld [vmem:[#allocation2 + $0x1d0] sm:$0xff]
      %v2107 = vld [vmem:[#allocation2 + $0x1d8] sm:$0xff]
      %v2108 = vld [vmem:[#allocation2 + $0x200] sm:$0xff]
      %v2109 = vld [vmem:[#allocation2 + $0x208] sm:$0xff]
      %v2110 = vld [vmem:[#allocation2 + $0x230] sm:$0xff]
      %v2111 = vld [vmem:[#allocation2 + $0x238] sm:$0xff]
      %v2112 = vld [vmem:[#allocation2 + $0x260] sm:$0xff]
      %v2113 = vld [vmem:[#allocation2 + $0x268] sm:$0xff]
      %v2114 = vld [vmem:[#allocation2 + $0x290] sm:$0xff]
      %v2115 = vld [vmem:[#allocation2 + $0x298] sm:$0xff]
      %v2116 = vld [vmem:[#allocation2 + $0x2c0] sm:$0xff]
      %v2117 = vld [vmem:[#allocation2 + $0x2c8] sm:$0xff]
      %v2118 = vld [vmem:[#allocation2 + $0x2f0] sm:$0xff]
      %v2119 = vld [vmem:[#allocation2 + $0x2f8] sm:$0xff]
      %s2120 = scalar_lea.vmem %s4, 256
      %v2121 = vld [vmem:[%s2120] sm:$0xf]
      %v2122 = vld [vmem:[%s2120 + $0x4] sm:$0xf]
      %v2123 = vld [vmem:[%s2120 + $0x8] sm:$0xf]
      %v2124 = vld [vmem:[%s2120 + $0xc] sm:$0xf]
      %v2125 = vld [vmem:[%s2120 + $0x10] sm:$0xf]
      %v2126 = vld [vmem:[%s2120 + $0x14] sm:$0xf]
      %v2127 = vld [vmem:[%s2120 + $0x18] sm:$0xf]
      %v2128 = vld [vmem:[%s2120 + $0x1c] sm:$0xf]
      %v2129 = vld [vmem:[%s2120 + $0x20] sm:$0xf]
      %v2130 = vld [vmem:[%s2120 + $0x24] sm:$0xf]
      %v2131 = vld [vmem:[%s2120 + $0x28] sm:$0xf]
      %v2132 = vld [vmem:[%s2120 + $0x2c] sm:$0xf]
      %v2133 = vld [vmem:[%s2120 + $0x30] sm:$0xf]
      %v2134 = vld [vmem:[%s2120 + $0x34] sm:$0xf]
      %v2135 = vld [vmem:[%s2120 + $0x38] sm:$0xf]
      %v2136 = vld [vmem:[%s2120 + $0x3c] sm:$0xf]
      %v2137 = vld [vmem:[%s2120 + $0x40] sm:$0xf]
      %v2138 = vld [vmem:[%s2120 + $0x44] sm:$0xf]
      %v2139 = vld [vmem:[%s2120 + $0x48] sm:$0xf]
      %v2140 = vld [vmem:[%s2120 + $0x4c] sm:$0xf]
      %v2141 = vld [vmem:[%s2120 + $0x50] sm:$0xf]
      %v2142 = vld [vmem:[%s2120 + $0x54] sm:$0xf]
      %v2143 = vld [vmem:[%s2120 + $0x58] sm:$0xf]
      %v2144 = vld [vmem:[%s2120 + $0x5c] sm:$0xf]
      %v2145 = vld [vmem:[%s2120 + $0x60] sm:$0xf]
      %v2146 = vld [vmem:[%s2120 + $0x64] sm:$0xf]
      %v2147 = vld [vmem:[%s2120 + $0x68] sm:$0xf]
      %v2148 = vld [vmem:[%s2120 + $0x6c] sm:$0xf]
      %v2149 = vld [vmem:[%s2120 + $0x70] sm:$0xf]
      %v2150 = vld [vmem:[%s2120 + $0x74] sm:$0xf]
      %v2151 = vld [vmem:[%s2120 + $0x78] sm:$0xf]
      %v2152 = vld [vmem:[%s2120 + $0x7c] sm:$0xf]
      %s2153 = scalar_lea.vmem %s5, 2
      %v2154 = vld [vmem:[%s2153] sm:$0x1]
      %v2155 = vpack.c.bf16 %v2090, %v2088
      %v2156 = vpack.c.bf16 %v2091, %v2089
      %v2157 = vpack.c.bf16 %v2094, %v2092
      %v2158 = vpack.c.bf16 %v2095, %v2093
      %v2159 = vpack.c.bf16 %v2098, %v2096
      %v2160 = vpack.c.bf16 %v2099, %v2097
      %v2161 = vpack.c.bf16 %v2102, %v2100
      %v2162 = vpack.c.bf16 %v2103, %v2101
      %v2163 = vpack.c.bf16 %v2106, %v2104
      %v2164 = vpack.c.bf16 %v2107, %v2105
      %v2165 = vpack.c.bf16 %v2110, %v2108
      %v2166 = vpack.c.bf16 %v2111, %v2109
      %v2167 = vpack.c.bf16 %v2114, %v2112
      %v2168 = vpack.c.bf16 %v2115, %v2113
      %v2169 = vpack.c.bf16 %v2118, %v2116
      %v2170 = vpack.c.bf16 %v2119, %v2117
      %v2172 = vlaneseq
      %v2173 = vshrl.u32 %v2172, 7
      %v2174 = vsub.s32 0, %v2173
      %v2175 = vrot.slane %v2154, %v2174
      %v2209 = vunpack.c.l.b16 %v2121
      %v2210 = vunpack.c.l.b16 %v2122
      %v2211 = vunpack.c.l.b16 %v2123
      %v2212 = vunpack.c.l.b16 %v2124
      %v2213 = vunpack.c.l.b16 %v2125
      %v2214 = vunpack.c.l.b16 %v2126
      %v2215 = vunpack.c.l.b16 %v2127
      %v2216 = vunpack.c.l.b16 %v2128
      %v2217 = vunpack.c.l.b16 %v2129
      %v2218 = vunpack.c.l.b16 %v2130
      %v2219 = vunpack.c.l.b16 %v2131
      %v2220 = vunpack.c.l.b16 %v2132
      %v2221 = vunpack.c.l.b16 %v2133
      %v2222 = vunpack.c.l.b16 %v2134
      %v2223 = vunpack.c.l.b16 %v2135
      %v2224 = vunpack.c.l.b16 %v2136
      %v2225 = vunpack.c.l.b16 %v2137
      %v2226 = vunpack.c.l.b16 %v2138
      %v2227 = vunpack.c.l.b16 %v2139
      %v2228 = vunpack.c.l.b16 %v2140
      %v2229 = vunpack.c.l.b16 %v2141
      %v2230 = vunpack.c.l.b16 %v2142
      %v2231 = vunpack.c.l.b16 %v2143
      %v2232 = vunpack.c.l.b16 %v2144
      %v2233 = vunpack.c.l.b16 %v2145
      %v2234 = vunpack.c.l.b16 %v2146
      %v2235 = vunpack.c.l.b16 %v2147
      %v2236 = vunpack.c.l.b16 %v2148
      %v2237 = vunpack.c.l.b16 %v2149
      %v2238 = vunpack.c.l.b16 %v2150
      %v2239 = vunpack.c.l.b16 %v2151
      %v2240 = vunpack.c.l.b16 %v2152
      %v2241 = vpack.c.b16 %v2210, %v2209
      %v2242 = vpack.c.b16 %v2212, %v2211
      %v2243 = vpack.c.b16 %v2214, %v2213
      %v2244 = vpack.c.b16 %v2216, %v2215
      %v2245 = vpack.c.b16 %v2218, %v2217
      %v2246 = vpack.c.b16 %v2220, %v2219
      %v2247 = vpack.c.b16 %v2222, %v2221
      %v2248 = vpack.c.b16 %v2224, %v2223
      %v2249 = vpack.c.b16 %v2226, %v2225
      %v2250 = vpack.c.b16 %v2228, %v2227
      %v2251 = vpack.c.b16 %v2230, %v2229
      %v2252 = vpack.c.b16 %v2232, %v2231
      %v2253 = vpack.c.b16 %v2234, %v2233
      %v2254 = vpack.c.b16 %v2236, %v2235
      %v2255 = vpack.c.b16 %v2238, %v2237
      %v2256 = vpack.c.b16 %v2240, %v2239
      %2273 = vmatprep.subr.bf16.mxu0 0
      %2274 = vmatpush1.bf16.msra.mxu0 %v2241
      %2275 = vmatprep.subr.bf16.mxu0 0
      %2276 = vmatpush1.bf16.msra.mxu0 %v2242
      %2277 = vmatprep.subr.bf16.mxu0 0
      %2278 = vmatpush1.bf16.msra.mxu0 %v2243
      %2279 = vmatprep.subr.bf16.mxu0 0
      %2280 = vmatpush1.bf16.msra.mxu0 %v2244
      %2281 = vmatprep.subr.bf16.mxu0 0
      %2282 = vmatpush1.bf16.msra.mxu0 %v2245
      %2283 = vmatprep.subr.bf16.mxu0 0
      %2284 = vmatpush1.bf16.msra.mxu0 %v2246
      %2285 = vmatprep.subr.bf16.mxu0 0
      %2286 = vmatpush1.bf16.msra.mxu0 %v2247
      %2287 = vmatprep.subr.bf16.mxu0 0
      %2288 = vmatpush1.bf16.msra.mxu0 %v2248
      %2289 = vmatprep.subr.bf16.mxu0 0
      %2290 = vmatpush1.bf16.msra.mxu0 %v2249
      %2291 = vmatprep.subr.bf16.mxu0 0
      %2292 = vmatpush1.bf16.msra.mxu0 %v2250
      %2293 = vmatprep.subr.bf16.mxu0 0
      %2294 = vmatpush1.bf16.msra.mxu0 %v2251
      %2295 = vmatprep.subr.bf16.mxu0 0
      %2296 = vmatpush1.bf16.msra.mxu0 %v2252
      %2297 = vmatprep.subr.bf16.mxu0 0
      %2298 = vmatpush1.bf16.msra.mxu0 %v2253
      %2299 = vmatprep.subr.bf16.mxu0 0
      %2300 = vmatpush1.bf16.msra.mxu0 %v2254
      %2301 = vmatprep.subr.bf16.mxu0 0
      %2302 = vmatpush1.bf16.msra.mxu0 %v2255
      %2303 = vmatprep.subr.bf16.mxu0 0
      %2304 = vmatpush1.bf16.msra.mxu0 %v2256
      %2305 = vmatprep.mubr.bf16.mxu0 %v2156
      %2306 = vmatmul.mubr.bf16.gmra.mrb[0].mxu0 %v2155
      %v2307 = vpop.f32.mrb[0].mxu0
      %v2308 = vadd.f32 %v2175, %v2307
      %v2309 = vpop.f32.mrb[0].mxu0
      %v2310 = vpop.f32.mrb[0].mxu0
      %v2311 = vadd.f32 %v2175, %v2310
      %v2312 = vpop.f32.mrb[0].mxu0
      %2313 = vmatprep.mubr.bf16.mxu0 %v2158
      %2314 = vmatmul.mubr.bf16.gmra.mrb[0].mxu0 %v2157
      %v2315 = vpop.f32.mrb[0].mxu0
      %v2316 = vadd.f32 %v2175, %v2315
      %v2317 = vpop.f32.mrb[0].mxu0
      %v2318 = vpop.f32.mrb[0].mxu0
      %v2319 = vadd.f32 %v2175, %v2318
      %v2320 = vpop.f32.mrb[0].mxu0
      %2321 = vmatprep.mubr.bf16.mxu0 %v2160
      %2322 = vmatmul.mubr.bf16.gmra.mrb[0].mxu0 %v2159
      %v2323 = vpop.f32.mrb[0].mxu0
      %v2324 = vadd.f32 %v2175, %v2323
      %v2325 = vpop.f32.mrb[0].mxu0
      %v2326 = vpop.f32.mrb[0].mxu0
      %v2327 = vadd.f32 %v2175, %v2326
      %v2328 = vpop.f32.mrb[0].mxu0
      %2329 = vmatprep.mubr.bf16.mxu0 %v2162
      %2330 = vmatmul.mubr.bf16.gmra.mrb[0].mxu0 %v2161
      %v2331 = vpop.f32.mrb[0].mxu0
      %v2332 = vadd.f32 %v2175, %v2331
      %v2333 = vpop.f32.mrb[0].mxu0
      %v2334 = vpop.f32.mrb[0].mxu0
      %v2335 = vadd.f32 %v2175, %v2334
      %v2336 = vpop.f32.mrb[0].mxu0
      %2337 = vmatprep.mubr.bf16.mxu0 %v2164
      %2338 = vmatmul.mubr.bf16.gmra.mrb[0].mxu0 %v2163
      %v2339 = vpop.f32.mrb[0].mxu0
      %v2340 = vadd.f32 %v2175, %v2339
      %v2341 = vpop.f32.mrb[0].mxu0
      %v2342 = vpop.f32.mrb[0].mxu0
      %v2343 = vadd.f32 %v2175, %v2342
      %v2344 = vpop.f32.mrb[0].mxu0
      %2345 = vmatprep.mubr.bf16.mxu0 %v2166
      %2346 = vmatmul.mubr.bf16.gmra.mrb[0].mxu0 %v2165
      %v2347 = vpop.f32.mrb[0].mxu0
      %v2348 = vadd.f32 %v2175, %v2347
      %v2349 = vpop.f32.mrb[0].mxu0
      %v2350 = vpop.f32.mrb[0].mxu0
      %v2351 = vadd.f32 %v2175, %v2350
      %v2352 = vpop.f32.mrb[0].mxu0
      %2353 = vmatprep.mubr.bf16.mxu0 %v2168
      %2354 = vmatmul.mubr.bf16.gmra.mrb[0].mxu0 %v2167
      %v2355 = vpop.f32.mrb[0].mxu0
      %v2356 = vadd.f32 %v2175, %v2355
      %v2357 = vpop.f32.mrb[0].mxu0
      %v2358 = vpop.f32.mrb[0].mxu0
      %v2359 = vadd.f32 %v2175, %v2358
      %v2360 = vpop.f32.mrb[0].mxu0
      %2361 = vmatprep.mubr.bf16.mxu0 %v2170
      %2362 = vmatmul.mubr.bf16.gmra.mrb[0].mxu0 %v2169
      %v2363 = vpop.f32.mrb[0].mxu0
      %v2364 = vadd.f32 %v2175, %v2363
      %v2365 = vpop.f32.mrb[0].mxu0
      %v2366 = vpop.f32.mrb[0].mxu0
      %v2367 = vadd.f32 %v2175, %v2366
      %v2368 = vpop.f32.mrb[0].mxu0
      %2369 = vdwg.mxu0
      %v2370 = vmax.f32 %v2308, 0.0
      %v2371 = vmax.f32 %v2311, 0.0
      %v2372 = vmax.f32 %v2316, 0.0
      %v2373 = vmax.f32 %v2319, 0.0
      %v2374 = vmax.f32 %v2324, 0.0
      %v2375 = vmax.f32 %v2327, 0.0
      %v2376 = vmax.f32 %v2332, 0.0
      %v2377 = vmax.f32 %v2335, 0.0
      %v2378 = vmax.f32 %v2340, 0.0
      %v2379 = vmax.f32 %v2343, 0.0
      %v2380 = vmax.f32 %v2348, 0.0
      %v2381 = vmax.f32 %v2351, 0.0
      %v2382 = vmax.f32 %v2356, 0.0
      %v2383 = vmax.f32 %v2359, 0.0
      %v2384 = vmax.f32 %v2364, 0.0
      %v2385 = vmax.f32 %v2367, 0.0
      %s2386 = scalar_lea.vmem %s6, 128
      %v2387 = vld [vmem:[%s2386] sm:$0xf]
      %v2388 = vld [vmem:[%s2386 + $0x4] sm:$0xf]
      %v2389 = vld [vmem:[%s2386 + $0x8] sm:$0xf]
      %v2390 = vld [vmem:[%s2386 + $0xc] sm:$0xf]
      %v2391 = vld [vmem:[%s2386 + $0x10] sm:$0xf]
      %v2392 = vld [vmem:[%s2386 + $0x14] sm:$0xf]
      %v2393 = vld [vmem:[%s2386 + $0x18] sm:$0xf]
      %v2394 = vld [vmem:[%s2386 + $0x1c] sm:$0xf]
      %v2395 = vld [vmem:[%s2386 + $0x20] sm:$0xf]
      %v2396 = vld [vmem:[%s2386 + $0x24] sm:$0xf]
      %v2397 = vld [vmem:[%s2386 + $0x28] sm:$0xf]
      %v2398 = vld [vmem:[%s2386 + $0x2c] sm:$0xf]
      %v2399 = vld [vmem:[%s2386 + $0x30] sm:$0xf]
      %v2400 = vld [vmem:[%s2386 + $0x34] sm:$0xf]
      %v2401 = vld [vmem:[%s2386 + $0x38] sm:$0xf]
      %v2402 = vld [vmem:[%s2386 + $0x3c] sm:$0xf]
      %s2403 = scalar_lea.vmem %s7, 2
      %v2404 = vld [vmem:[%s2403] sm:$0x1]
      %v2405 = vpack.c.bf16 %v2371, %v2370
      %v2406 = vpack.c.bf16 %v2373, %v2372
      %v2407 = vpack.c.bf16 %v2375, %v2374
      %v2408 = vpack.c.bf16 %v2377, %v2376
      %v2409 = vpack.c.bf16 %v2379, %v2378
      %v2410 = vpack.c.bf16 %v2381, %v2380
      %v2411 = vpack.c.bf16 %v2383, %v2382
      %v2412 = vpack.c.bf16 %v2385, %v2384
      %v2414 = vlaneseq
      %v2415 = vshrl.u32 %v2414, 7
      %v2416 = vsub.s32 0, %v2415
      %v2417 = vrot.slane %v2404, %v2416
      %v2435 = vunpack.c.l.b16 %v2387
      %v2436 = vunpack.c.l.b16 %v2388
      %v2437 = vunpack.c.l.b16 %v2389
      %v2438 = vunpack.c.l.b16 %v2390
      %v2439 = vunpack.c.l.b16 %v2391
      %v2440 = vunpack.c.l.b16 %v2392
      %v2441 = vunpack.c.l.b16 %v2393
      %v2442 = vunpack.c.l.b16 %v2394
      %v2443 = vunpack.c.l.b16 %v2395
      %v2444 = vunpack.c.l.b16 %v2396
      %v2445 = vunpack.c.l.b16 %v2397
      %v2446 = vunpack.c.l.b16 %v2398
      %v2447 = vunpack.c.l.b16 %v2399
      %v2448 = vunpack.c.l.b16 %v2400
      %v2449 = vunpack.c.l.b16 %v2401
      %v2450 = vunpack.c.l.b16 %v2402
      %v2451 = vpack.c.b16 %v2436, %v2435
      %v2452 = vpack.c.b16 %v2438, %v2437
      %v2453 = vpack.c.b16 %v2440, %v2439
      %v2454 = vpack.c.b16 %v2442, %v2441
      %v2455 = vpack.c.b16 %v2444, %v2443
      %v2456 = vpack.c.b16 %v2446, %v2445
      %v2457 = vpack.c.b16 %v2448, %v2447
      %v2458 = vpack.c.b16 %v2450, %v2449
      %2467 = vmatprep.subr.bf16.mxu0 0
      %2468 = vmatpush1.bf16.msra.mxu0 %v2451
      %2469 = vmatprep.subr.bf16.mxu0 0
      %2470 = vmatpush1.bf16.msra.mxu0 %v2452
      %2471 = vmatprep.subr.bf16.mxu0 0
      %2472 = vmatpush1.bf16.msra.mxu0 %v2453
      %2473 = vmatprep.subr.bf16.mxu0 0
      %2474 = vmatpush1.bf16.msra.mxu0 %v2454
      %2475 = vmatprep.subr.bf16.mxu0 0
      %2476 = vmatpush1.bf16.msra.mxu0 %v2455
      %2477 = vmatprep.subr.bf16.mxu0 0
      %2478 = vmatpush1.bf16.msra.mxu0 %v2456
      %2479 = vmatprep.subr.bf16.mxu0 0
      %2480 = vmatpush1.bf16.msra.mxu0 %v2457
      %2481 = vmatprep.subr.bf16.mxu0 0
      %2482 = vmatpush1.bf16.msra.mxu0 %v2458
      %2483 = vmatprep.subr.bf16.mxu0 0
      %2484 = vmatpush1.bf16.msra.mxu0 0
      %2485 = vmatprep.subr.bf16.mxu0 0
      %2486 = vmatpush1.bf16.msra.mxu0 0
      %2487 = vmatprep.subr.bf16.mxu0 0
      %2488 = vmatpush1.bf16.msra.mxu0 0
      %2489 = vmatprep.subr.bf16.mxu0 0
      %2490 = vmatpush1.bf16.msra.mxu0 0
      %2491 = vmatprep.subr.bf16.mxu0 0
      %2492 = vmatpush1.bf16.msra.mxu0 0
      %2493 = vmatprep.subr.bf16.mxu0 0
      %2494 = vmatpush1.bf16.msra.mxu0 0
      %2495 = vmatprep.subr.bf16.mxu0 0
      %2496 = vmatpush1.bf16.msra.mxu0 0
      %2497 = vmatprep.subr.bf16.mxu0 0
      %2498 = vmatpush1.bf16.msra.mxu0 0
      %2499 = vmatprep.mubr.bf16.mxu0 0
      %2500 = vmatmul.mubr.bf16.gmra.mrb[0].mxu0 %v2405
      %v2501 = vpop.f32.mrb[0].mxu0
      %v2502 = vadd.f32 %v2417, %v2501
      %v2503 = vpop.f32.mrb[0].mxu0
      %v2504 = vpop.f32.mrb[0].mxu0
      %v2505 = vadd.f32 %v2417, %v2504
      %v2506 = vpop.f32.mrb[0].mxu0
      %2507 = vmatprep.mubr.bf16.mxu0 0
      %2508 = vmatmul.mubr.bf16.gmra.mrb[0].mxu0 %v2406
      %v2509 = vpop.f32.mrb[0].mxu0
      %v2510 = vadd.f32 %v2417, %v2509
      %v2511 = vpop.f32.mrb[0].mxu0
      %v2512 = vpop.f32.mrb[0].mxu0
      %v2513 = vadd.f32 %v2417, %v2512
      %v2514 = vpop.f32.mrb[0].mxu0
      %2515 = vmatprep.mubr.bf16.mxu0 0
      %2516 = vmatmul.mubr.bf16.gmra.mrb[0].mxu0 %v2407
      %v2517 = vpop.f32.mrb[0].mxu0
      %v2518 = vadd.f32 %v2417, %v2517
      %v2519 = vpop.f32.mrb[0].mxu0
      %v2520 = vpop.f32.mrb[0].mxu0
      %v2521 = vadd.f32 %v2417, %v2520
      %v2522 = vpop.f32.mrb[0].mxu0
      %2523 = vmatprep.mubr.bf16.mxu0 0
      %2524 = vmatmul.mubr.bf16.gmra.mrb[0].mxu0 %v2408
      %v2525 = vpop.f32.mrb[0].mxu0
      %v2526 = vadd.f32 %v2417, %v2525
      %v2527 = vpop.f32.mrb[0].mxu0
      %v2528 = vpop.f32.mrb[0].mxu0
      %v2529 = vadd.f32 %v2417, %v2528
      %v2530 = vpop.f32.mrb[0].mxu0
      %2531 = vmatprep.mubr.bf16.mxu0 0
      %2532 = vmatmul.mubr.bf16.gmra.mrb[0].mxu0 %v2409
      %v2533 = vpop.f32.mrb[0].mxu0
      %v2534 = vadd.f32 %v2417, %v2533
      %v2535 = vpop.f32.mrb[0].mxu0
      %v2536 = vpop.f32.mrb[0].mxu0
      %v2537 = vadd.f32 %v2417, %v2536
      %v2538 = vpop.f32.mrb[0].mxu0
      %2539 = vmatprep.mubr.bf16.mxu0 0
      %2540 = vmatmul.mubr.bf16.gmra.mrb[0].mxu0 %v2410
      %v2541 = vpop.f32.mrb[0].mxu0
      %v2542 = vadd.f32 %v2417, %v2541
      %v2543 = vpop.f32.mrb[0].mxu0
      %v2544 = vpop.f32.mrb[0].mxu0
      %v2545 = vadd.f32 %v2417, %v2544
      %v2546 = vpop.f32.mrb[0].mxu0
      %2547 = vmatprep.mubr.bf16.mxu0 0
      %2548 = vmatmul.mubr.bf16.gmra.mrb[0].mxu0 %v2411
      %v2549 = vpop.f32.mrb[0].mxu0
      %v2550 = vadd.f32 %v2417, %v2549
      %v2551 = vpop.f32.mrb[0].mxu0
      %v2552 = vpop.f32.mrb[0].mxu0
      %v2553 = vadd.f32 %v2417, %v2552
      %v2554 = vpop.f32.mrb[0].mxu0
      %2555 = vmatprep.mubr.bf16.mxu0 0
      %2556 = vmatmul.mubr.bf16.gmra.mrb[0].mxu0 %v2412
      %v2557 = vpop.f32.mrb[0].mxu0
      %v2558 = vadd.f32 %v2417, %v2557
      %v2559 = vpop.f32.mrb[0].mxu0
      %v2560 = vpop.f32.mrb[0].mxu0
      %v2561 = vadd.f32 %v2417, %v2560
      %v2562 = vpop.f32.mrb[0].mxu0
      %2563 = vdwg.mxu0
      %v2564 = vmax.f32 %v2502, 0.0
      %v2565 = vmax.f32 %v2505, 0.0
      %v2566 = vmax.f32 %v2510, 0.0
      %v2567 = vmax.f32 %v2513, 0.0
      %v2568 = vmax.f32 %v2518, 0.0
      %v2569 = vmax.f32 %v2521, 0.0
      %v2570 = vmax.f32 %v2526, 0.0
      %v2571 = vmax.f32 %v2529, 0.0
      %v2572 = vmax.f32 %v2534, 0.0
      %v2573 = vmax.f32 %v2537, 0.0
      %v2574 = vmax.f32 %v2542, 0.0
      %v2575 = vmax.f32 %v2545, 0.0
      %v2576 = vmax.f32 %v2550, 0.0
      %v2577 = vmax.f32 %v2553, 0.0
      %v2578 = vmax.f32 %v2558, 0.0
      %v2579 = vmax.f32 %v2561, 0.0
      %v2580 = vadd.f32 %v2072, %v2564
      %v2581 = vadd.f32 %v2073, %v2565
      %v2582 = vadd.f32 %v2074, %v2566
      %v2583 = vadd.f32 %v2075, %v2567
      %v2584 = vadd.f32 %v2076, %v2568
      %v2585 = vadd.f32 %v2077, %v2569
      %v2586 = vadd.f32 %v2078, %v2570
      %v2587 = vadd.f32 %v2079, %v2571
      %v2588 = vadd.f32 %v2080, %v2572
      %v2589 = vadd.f32 %v2081, %v2573
      %v2590 = vadd.f32 %v2082, %v2574
      %v2591 = vadd.f32 %v2083, %v2575
      %v2592 = vadd.f32 %v2084, %v2576
      %v2593 = vadd.f32 %v2085, %v2577
      %v2594 = vadd.f32 %v2086, %v2578
      %v2595 = vadd.f32 %v2087, %v2579
      %vm2596 = vcmp.gt.f32.partialorder %v2580, 0.0
      %vm2597 = vcmp.gt.f32.partialorder %v2581, 0.0
      %vm2598 = vcmp.gt.f32.partialorder %v2582, 0.0
      %vm2599 = vcmp.gt.f32.partialorder %v2583, 0.0
      %vm2600 = vcmp.gt.f32.partialorder %v2584, 0.0
      %vm2601 = vcmp.gt.f32.partialorder %v2585, 0.0
      %vm2602 = vcmp.gt.f32.partialorder %v2586, 0.0
      %vm2603 = vcmp.gt.f32.partialorder %v2587, 0.0
      %vm2604 = vcmp.gt.f32.partialorder %v2588, 0.0
      %vm2605 = vcmp.gt.f32.partialorder %v2589, 0.0
      %vm2606 = vcmp.gt.f32.partialorder %v2590, 0.0
      %vm2607 = vcmp.gt.f32.partialorder %v2591, 0.0
      %vm2608 = vcmp.gt.f32.partialorder %v2592, 0.0
      %vm2609 = vcmp.gt.f32.partialorder %v2593, 0.0
      %vm2610 = vcmp.gt.f32.partialorder %v2594, 0.0
      %vm2611 = vcmp.gt.f32.partialorder %v2595, 0.0
      %v2612 = vmin.f32 %v2580, 0.0
      %v2613 = vmin.f32 %v2581, 0.0
      %v2614 = vmin.f32 %v2582, 0.0
      %v2615 = vmin.f32 %v2583, 0.0
      %v2616 = vmin.f32 %v2584, 0.0
      %v2617 = vmin.f32 %v2585, 0.0
      %v2618 = vmin.f32 %v2586, 0.0
      %v2619 = vmin.f32 %v2587, 0.0
      %v2620 = vmin.f32 %v2588, 0.0
      %v2621 = vmin.f32 %v2589, 0.0
      %v2622 = vmin.f32 %v2590, 0.0
      %v2623 = vmin.f32 %v2591, 0.0
      %v2624 = vmin.f32 %v2592, 0.0
      %v2625 = vmin.f32 %v2593, 0.0
      %v2626 = vmin.f32 %v2594, 0.0
      %v2627 = vmin.f32 %v2595, 0.0
      %v2628 = vmul.f32 %v2612, 1.442695
      %v2629 = vpow.pop %v2628
      %v2630 = vmul.f32 %v2613, 1.442695
      %v2631 = vpow.pop %v2630
      %v2632 = vmul.f32 %v2614, 1.442695
      %v2633 = vpow.pop %v2632
      %v2634 = vmul.f32 %v2615, 1.442695
      %v2635 = vpow.pop %v2634
      %v2636 = vmul.f32 %v2616, 1.442695
      %v2637 = vpow.pop %v2636
      %v2638 = vmul.f32 %v2617, 1.442695
      %v2639 = vpow.pop %v2638
      %v2640 = vmul.f32 %v2618, 1.442695
      %v2641 = vpow.pop %v2640
      %v2642 = vmul.f32 %v2619, 1.442695
      %v2643 = vpow.pop %v2642
      %v2644 = vmul.f32 %v2620, 1.442695
      %v2645 = vpow.pop %v2644
      %v2646 = vmul.f32 %v2621, 1.442695
      %v2647 = vpow.pop %v2646
      %v2648 = vmul.f32 %v2622, 1.442695
      %v2649 = vpow.pop %v2648
      %v2650 = vmul.f32 %v2623, 1.442695
      %v2651 = vpow.pop %v2650
      %v2652 = vmul.f32 %v2624, 1.442695
      %v2653 = vpow.pop %v2652
      %v2654 = vmul.f32 %v2625, 1.442695
      %v2655 = vpow.pop %v2654
      %v2656 = vmul.f32 %v2626, 1.442695
      %v2657 = vpow.pop %v2656
      %v2658 = vmul.f32 %v2627, 1.442695
      %v2659 = vpow.pop %v2658
      %v2660 = vsub.f32 %v2629, 1.0
      %v2661 = vsub.f32 %v2631, 1.0
      %v2662 = vsub.f32 %v2633, 1.0
      %v2663 = vsub.f32 %v2635, 1.0
      %v2664 = vsub.f32 %v2637, 1.0
      %v2665 = vsub.f32 %v2639, 1.0
      %v2666 = vsub.f32 %v2641, 1.0
      %v2667 = vsub.f32 %v2643, 1.0
      %v2668 = vsub.f32 %v2645, 1.0
      %v2669 = vsub.f32 %v2647, 1.0
      %v2670 = vsub.f32 %v2649, 1.0
      %v2671 = vsub.f32 %v2651, 1.0
      %v2672 = vsub.f32 %v2653, 1.0
      %v2673 = vsub.f32 %v2655, 1.0
      %v2674 = vsub.f32 %v2657, 1.0
      %v2675 = vsub.f32 %v2659, 1.0
      %v2676 = vmul.f32 %v2660, 1.6732632
      %v2677 = vmul.f32 %v2661, 1.6732632
      %v2678 = vmul.f32 %v2662, 1.6732632
      %v2679 = vmul.f32 %v2663, 1.6732632
      %v2680 = vmul.f32 %v2664, 1.6732632
      %v2681 = vmul.f32 %v2665, 1.6732632
      %v2682 = vmul.f32 %v2666, 1.6732632
      %v2683 = vmul.f32 %v2667, 1.6732632
      %v2684 = vmul.f32 %v2668, 1.6732632
      %v2685 = vmul.f32 %v2669, 1.6732632
      %v2686 = vmul.f32 %v2670, 1.6732632
      %v2687 = vmul.f32 %v2671, 1.6732632
      %v2688 = vmul.f32 %v2672, 1.6732632
      %v2689 = vmul.f32 %v2673, 1.6732632
      %v2690 = vmul.f32 %v2674, 1.6732632
      %v2691 = vmul.f32 %v2675, 1.6732632
      %v2692 = vsel %vm2596, %v2580, %v2676
      %v2693 = vsel %vm2597, %v2581, %v2677
      %v2694 = vsel %vm2598, %v2582, %v2678
      %v2695 = vsel %vm2599, %v2583, %v2679
      %v2696 = vsel %vm2600, %v2584, %v2680
      %v2697 = vsel %vm2601, %v2585, %v2681
      %v2698 = vsel %vm2602, %v2586, %v2682
      %v2699 = vsel %vm2603, %v2587, %v2683
      %v2700 = vsel %vm2604, %v2588, %v2684
      %v2701 = vsel %vm2605, %v2589, %v2685
      %v2702 = vsel %vm2606, %v2590, %v2686
      %v2703 = vsel %vm2607, %v2591, %v2687
      %v2704 = vsel %vm2608, %v2592, %v2688
      %v2705 = vsel %vm2609, %v2593, %v2689
      %v2706 = vsel %vm2610, %v2594, %v2690
      %v2707 = vsel %vm2611, %v2595, %v2691
      %v2708 = vmul.f32 %v2692, 1.050701
      %v2709 = vmul.f32 %v2693, 1.050701
      %v2710 = vmul.f32 %v2694, 1.050701
      %v2711 = vmul.f32 %v2695, 1.050701
      %v2712 = vmul.f32 %v2696, 1.050701
      %v2713 = vmul.f32 %v2697, 1.050701
      %v2714 = vmul.f32 %v2698, 1.050701
      %v2715 = vmul.f32 %v2699, 1.050701
      %v2716 = vmul.f32 %v2700, 1.050701
      %v2717 = vmul.f32 %v2701, 1.050701
      %v2718 = vmul.f32 %v2702, 1.050701
      %v2719 = vmul.f32 %v2703, 1.050701
      %v2720 = vmul.f32 %v2704, 1.050701
      %v2721 = vmul.f32 %v2705, 1.050701
      %v2722 = vmul.f32 %v2706, 1.050701
      %v2723 = vmul.f32 %v2707, 1.050701
      %v2724 = vlaneseq
      %v2725 = vshrl.u32 %v2724, 7
      %v2726 = vadd.s32 %v2725, 8
      %v2727 = vadd.s32 %v2725, 16
      %v2728 = vadd.s32 %v2725, 24
      %v2729 = vadd.s32 %v2725, 32
      %v2730 = vadd.s32 %v2725, 40
      %v2731 = vadd.s32 %v2725, 48
      %v2732 = vadd.s32 %v2725, 56
      %v2733 = vadd.s32 %v2725, 64
      %v2734 = vadd.s32 %v2725, 72
      %v2735 = vadd.s32 %v2725, 80
      %v2736 = vadd.s32 %v2725, 88
      %v2737 = vadd.s32 %v2725, 96
      %v2738 = vadd.s32 %v2725, 104
      %v2739 = vadd.s32 %v2725, 112
      %v2740 = vadd.s32 %v2725, 120
      %v2741 = vstv %s35
      %v2742 = vadd.s32 %v2725, %v2741
      %v2743 = vadd.s32 %v2726, %v2741
      %v2744 = vadd.s32 %v2727, %v2741
      %v2745 = vadd.s32 %v2728, %v2741
      %v2746 = vadd.s32 %v2729, %v2741
      %v2747 = vadd.s32 %v2730, %v2741
      %v2748 = vadd.s32 %v2731, %v2741
      %v2749 = vadd.s32 %v2732, %v2741
      %v2750 = vadd.s32 %v2733, %v2741
      %v2751 = vadd.s32 %v2734, %v2741
      %v2752 = vadd.s32 %v2735, %v2741
      %v2753 = vadd.s32 %v2736, %v2741
      %v2754 = vadd.s32 %v2737, %v2741
      %v2755 = vadd.s32 %v2738, %v2741
      %v2756 = vadd.s32 %v2739, %v2741
      %v2757 = vadd.s32 %v2740, %v2741
      %vm2758 = vcmp.lt.s32.totalorder %v2742, 16
      %vm2759 = vcmp.lt.s32.totalorder %v2743, 16
      %vm2760 = vcmp.lt.s32.totalorder %v2744, 16
      %vm2761 = vcmp.lt.s32.totalorder %v2745, 16
      %vm2762 = vcmp.lt.s32.totalorder %v2746, 16
      %vm2763 = vcmp.lt.s32.totalorder %v2747, 16
      %vm2764 = vcmp.lt.s32.totalorder %v2748, 16
      %vm2765 = vcmp.lt.s32.totalorder %v2749, 16
      %vm2766 = vcmp.lt.s32.totalorder %v2750, 16
      %vm2767 = vcmp.lt.s32.totalorder %v2751, 16
      %vm2768 = vcmp.lt.s32.totalorder %v2752, 16
      %vm2769 = vcmp.lt.s32.totalorder %v2753, 16
      %vm2770 = vcmp.lt.s32.totalorder %v2754, 16
      %vm2771 = vcmp.lt.s32.totalorder %v2755, 16
      %vm2772 = vcmp.lt.s32.totalorder %v2756, 16
      %vm2773 = vcmp.lt.s32.totalorder %v2757, 16
      %v2774 = vsel %vm2758, %v2708, 0.0
      %v2775 = vsel %vm2759, %v2709, 0.0
      %v2776 = vsel %vm2760, %v2710, 0.0
      %v2777 = vsel %vm2761, %v2711, 0.0
      %v2778 = vsel %vm2762, %v2712, 0.0
      %v2779 = vsel %vm2763, %v2713, 0.0
      %v2780 = vsel %vm2764, %v2714, 0.0
      %v2781 = vsel %vm2765, %v2715, 0.0
      %v2782 = vsel %vm2766, %v2716, 0.0
      %v2783 = vsel %vm2767, %v2717, 0.0
      %v2784 = vsel %vm2768, %v2718, 0.0
      %v2785 = vsel %vm2769, %v2719, 0.0
      %v2786 = vsel %vm2770, %v2720, 0.0
      %v2787 = vsel %vm2771, %v2721, 0.0
      %v2788 = vsel %vm2772, %v2722, 0.0
      %v2789 = vsel %vm2773, %v2723, 0.0
      %v2790 = vpack.c.bf16 %v2775, %v2774
      %v2791 = vpack.c.bf16 %v2777, %v2776
      %v2792 = vpack.c.bf16 %v2779, %v2778
      %v2793 = vpack.c.bf16 %v2781, %v2780
      %v2794 = vpack.c.bf16 %v2783, %v2782
      %v2795 = vpack.c.bf16 %v2785, %v2784
      %v2796 = vpack.c.bf16 %v2787, %v2786
      %v2797 = vpack.c.bf16 %v2789, %v2788
      %v2806 = vunpack.c.l.b16 %v2790
      %v2807 = vunpack.c.h.b16 %v2790
      %v2808 = vunpack.c.l.b16 %v2791
      %v2809 = vunpack.c.h.b16 %v2791
      %v2810 = vunpack.c.l.b16 %v2792
      %v2811 = vunpack.c.h.b16 %v2792
      %v2812 = vunpack.c.l.b16 %v2793
      %v2813 = vunpack.c.h.b16 %v2793
      %v2814 = vunpack.c.l.b16 %v2794
      %v2815 = vunpack.c.h.b16 %v2794
      %v2816 = vunpack.c.l.b16 %v2795
      %v2817 = vunpack.c.h.b16 %v2795
      %v2818 = vunpack.c.l.b16 %v2796
      %v2819 = vunpack.c.h.b16 %v2796
      %v2820 = vunpack.c.l.b16 %v2797
      %v2821 = vunpack.c.h.b16 %v2797
      %v2822 = vpack.c.b16 %v2806, %v2806
      %v2823 = vpack.c.b16 %v2807, %v2807
      %v2824 = vpack.c.b16 %v2808, %v2808
      %v2825 = vpack.c.b16 %v2809, %v2809
      %v2826 = vpack.c.b16 %v2810, %v2810
      %v2827 = vpack.c.b16 %v2811, %v2811
      %v2828 = vpack.c.b16 %v2812, %v2812
      %v2829 = vpack.c.b16 %v2813, %v2813
      %v2830 = vpack.c.b16 %v2814, %v2814
      %v2831 = vpack.c.b16 %v2815, %v2815
      %v2832 = vpack.c.b16 %v2816, %v2816
      %v2833 = vpack.c.b16 %v2817, %v2817
      %v2834 = vpack.c.b16 %v2818, %v2818
      %v2835 = vpack.c.b16 %v2819, %v2819
      %v2836 = vpack.c.b16 %v2820, %v2820
      %v2837 = vpack.c.b16 %v2821, %v2821
      %2854 = vst [vmem:[#allocation3] sm:$0xf] %v2822
      %2855 = vst [vmem:[#allocation3 + $0x4] sm:$0xf] %v2823
      %2856 = vst [vmem:[#allocation3 + $0x8] sm:$0xf] %v2824
      %2857 = vst [vmem:[#allocation3 + $0xc] sm:$0xf] %v2825
      %2858 = vst [vmem:[#allocation3 + $0x10] sm:$0xf] %v2826
      %2859 = vst [vmem:[#allocation3 + $0x14] sm:$0xf] %v2827
      %2860 = vst [vmem:[#allocation3 + $0x18] sm:$0xf] %v2828
      %2861 = vst [vmem:[#allocation3 + $0x1c] sm:$0xf] %v2829
      %2862 = vst [vmem:[#allocation3 + $0x20] sm:$0xf] %v2830
      %2863 = vst [vmem:[#allocation3 + $0x24] sm:$0xf] %v2831
      %2864 = vst [vmem:[#allocation3 + $0x28] sm:$0xf] %v2832
      %2865 = vst [vmem:[#allocation3 + $0x2c] sm:$0xf] %v2833
      %2866 = vst [vmem:[#allocation3 + $0x30] sm:$0xf] %v2834
      %2867 = vst [vmem:[#allocation3 + $0x34] sm:$0xf] %v2835
      %2868 = vst [vmem:[#allocation3 + $0x38] sm:$0xf] %v2836
      %2869 = vst [vmem:[#allocation3 + $0x3c] sm:$0xf] %v2837
      %v2870 = vadd.f32 %v2774, %v2775
      %v2871 = vadd.f32 %v2870, %v2776
      %v2872 = vadd.f32 %v2871, %v2777
      %v2873 = vadd.f32 %v2872, %v2778
      %v2874 = vadd.f32 %v2873, %v2779
      %v2875 = vadd.f32 %v2874, %v2780
      %v2876 = vadd.f32 %v2875, %v2781
      %v2877 = vadd.f32 %v2876, %v2782
      %v2878 = vadd.f32 %v2877, %v2783
      %v2879 = vadd.f32 %v2878, %v2784
      %v2880 = vadd.f32 %v2879, %v2785
      %v2881 = vadd.f32 %v2880, %v2786
      %v2882 = vadd.f32 %v2881, %v2787
      %v2883 = vadd.f32 %v2882, %v2788
      %v2884 = vadd.f32 %v2883, %v2789
      %v2885 = vrot.slane %v2884, 4
      %v2886 = vadd.f32 %v2884, %v2885
      %v2887 = vrot.slane %v2886, 2
      %v2888 = vadd.f32 %v2886, %v2887
      %v2889 = vrot.slane %v2888, 1
      %v2890 = vadd.f32 %v2888, %v2889
      %v2891 = vmul.f32 %v2774, %v2774
      %v2892 = vmul.f32 %v2775, %v2775
      %v2893 = vmul.f32 %v2776, %v2776
      %v2894 = vmul.f32 %v2777, %v2777
      %v2895 = vmul.f32 %v2778, %v2778
      %v2896 = vmul.f32 %v2779, %v2779
      %v2897 = vmul.f32 %v2780, %v2780
      %v2898 = vmul.f32 %v2781, %v2781
      %v2899 = vmul.f32 %v2782, %v2782
      %v2900 = vmul.f32 %v2783, %v2783
      %v2901 = vmul.f32 %v2784, %v2784
      %v2902 = vmul.f32 %v2785, %v2785
      %v2903 = vmul.f32 %v2786, %v2786
      %v2904 = vmul.f32 %v2787, %v2787
      %v2905 = vmul.f32 %v2788, %v2788
      %v2906 = vmul.f32 %v2789, %v2789
      %v2907 = vadd.f32 %v2891, %v2892
      %v2908 = vadd.f32 %v2907, %v2893
      %v2909 = vadd.f32 %v2908, %v2894
      %v2910 = vadd.f32 %v2909, %v2895
      %v2911 = vadd.f32 %v2910, %v2896
      %v2912 = vadd.f32 %v2911, %v2897
      %v2913 = vadd.f32 %v2912, %v2898
      %v2914 = vadd.f32 %v2913, %v2899
      %v2915 = vadd.f32 %v2914, %v2900
      %v2916 = vadd.f32 %v2915, %v2901
      %v2917 = vadd.f32 %v2916, %v2902
      %v2918 = vadd.f32 %v2917, %v2903
      %v2919 = vadd.f32 %v2918, %v2904
      %v2920 = vadd.f32 %v2919, %v2905
      %v2921 = vadd.f32 %v2920, %v2906
      %v2922 = vrot.slane %v2921, 4
      %v2923 = vadd.f32 %v2921, %v2922
      %v2924 = vrot.slane %v2923, 2
      %v2925 = vadd.f32 %v2923, %v2924
      %v2926 = vrot.slane %v2925, 1
      %v2927 = vadd.f32 %v2925, %v2926
      %2928 = vst [vmem:[%s9] sm:$0xff] %v2890
      %2929 = vst [vmem:[%s10] sm:$0xff] %v2927
    $region61: #{graph_encoder_forward.4} parent=1 // pred_fallthru
      _
    // Predicated region
    $region62: #{graph_encoder_forward.4} parent=1 // pred_check
      _
    $region63: #{graph_encoder_forward.4} parent=1 // pred_check_branch
      %2931 = sbr.rel (0) target = $region65
    $region64: #{graph_encoder_forward.4} parent=1 // pred_region
      %s2932 = scalar_lea.vmem %s8, 8
      // Predicated region
      $region66: #{graph_encoder_forward.4} parent=64 // pred_check
        _
      $region67: #{graph_encoder_forward.4} parent=64 // pred_check_branch
        %2934 = sbr.rel (0) target = $region69
      $region68: #{graph_encoder_forward.4} parent=64 // pred_region
        // Predicated region
        $region70: #{graph_encoder_forward.4} parent=68 // pred_check
          _
        $region71: #{graph_encoder_forward.4} parent=68 // pred_check_branch
          %2936 = sbr.rel target = $region73
        $region72: #{graph_encoder_forward.4} parent=68 // pred_region
          // Predicated region
          $region85: #{graph_encoder_forward.4} parent=72 // pred_check
            _
          $region86: #{graph_encoder_forward.4} parent=72 // pred_check_branch
            %2981 = sbr.rel (0) target = $region88
          $region87: #{graph_encoder_forward.4} parent=72 // pred_region
            loop: start=0, step=1, limit=1
            $region89: #{graph_encoder_forward.4} parent=87 // loop_pre_header
              _
            $region90: #{graph_encoder_forward.4} parent=87 // loop_header
              %s2983 = sphi 0, %s2987
              %p2984 = scmp.ge.s32.totalorder %s2983, 1
              %s2988 = sphi [#allocation3], [#allocation3]
              %s2989 = sphi %s2932, %s2932
            $region91: #{graph_encoder_forward.4} parent=87 // loop_header_branch
              %2986 = sbr.rel (%p2984) target = $region95
            $region92: #{graph_encoder_forward.4} parent=87 // loop_body
              _
            $region93: #{graph_encoder_forward.4} parent=87 // loop_footer
              %s2987 = sadd.s32 1, %s2983
            $region94: #{graph_encoder_forward.4} parent=87 // loop_footer_branch
              %2982 = sbr.rel target = $region90
            $region95: #{graph_encoder_forward.4} parent=87 // loop_exit
              _
            loop: start=0, step=1, limit=1
            $region96: #{graph_encoder_forward.4} parent=87 // loop_pre_header
              _
            $region97: #{graph_encoder_forward.4} parent=87 // loop_header
              %s2992 = sphi 0, %s2996
              %p2993 = scmp.ge.s32.totalorder %s2992, 1
              %s2997 = sphi [#allocation3], [#allocation3]
              %s2998 = sphi %s2932, %s2932
            $region98: #{graph_encoder_forward.4} parent=87 // loop_header_branch
              %2995 = sbr.rel (%p2993) target = $region102
            $region99: #{graph_encoder_forward.4} parent=87 // loop_body
              %v2999 = vld [vmem:[%s2997] sm:$0xf]
              %3000 = vst [vmem:[%s2998] sm:$0xf] %v2999
              %v3001 = vld [vmem:[%s2997 + $0x4] sm:$0xf]
              %3002 = vst [vmem:[%s2998 + $0xc] sm:$0xf] %v3001
              %v3003 = vld [vmem:[%s2997 + $0x8] sm:$0xf]
              %3004 = vst [vmem:[%s2998 + $0x18] sm:$0xf] %v3003
              %v3005 = vld [vmem:[%s2997 + $0xc] sm:$0xf]
              %3006 = vst [vmem:[%s2998 + $0x24] sm:$0xf] %v3005
              %v3007 = vld [vmem:[%s2997 + $0x10] sm:$0xf]
              %3008 = vst [vmem:[%s2998 + $0x30] sm:$0xf] %v3007
              %v3009 = vld [vmem:[%s2997 + $0x14] sm:$0xf]
              %3010 = vst [vmem:[%s2998 + $0x3c] sm:$0xf] %v3009
              %v3011 = vld [vmem:[%s2997 + $0x18] sm:$0xf]
              %3012 = vst [vmem:[%s2998 + $0x48] sm:$0xf] %v3011
              %v3013 = vld [vmem:[%s2997 + $0x1c] sm:$0xf]
              %3014 = vst [vmem:[%s2998 + $0x54] sm:$0xf] %v3013
              %v3015 = vld [vmem:[%s2997 + $0x20] sm:$0xf]
              %3016 = vst [vmem:[%s2998 + $0x60] sm:$0xf] %v3015
              %v3017 = vld [vmem:[%s2997 + $0x24] sm:$0xf]
              %3018 = vst [vmem:[%s2998 + $0x6c] sm:$0xf] %v3017
              %v3019 = vld [vmem:[%s2997 + $0x28] sm:$0xf]
              %3020 = vst [vmem:[%s2998 + $0x78] sm:$0xf] %v3019
              %v3021 = vld [vmem:[%s2997 + $0x2c] sm:$0xf]
              %3022 = vst [vmem:[%s2998 + $0x84] sm:$0xf] %v3021
              %v3023 = vld [vmem:[%s2997 + $0x30] sm:$0xf]
              %3024 = vst [vmem:[%s2998 + $0x90] sm:$0xf] %v3023
              %v3025 = vld [vmem:[%s2997 + $0x34] sm:$0xf]
              %3026 = vst [vmem:[%s2998 + $0x9c] sm:$0xf] %v3025
              %v3027 = vld [vmem:[%s2997 + $0x38] sm:$0xf]
              %3028 = vst [vmem:[%s2998 + $0xa8] sm:$0xf] %v3027
              %v3029 = vld [vmem:[%s2997 + $0x3c] sm:$0xf]
              %3030 = vst [vmem:[%s2998 + $0xb4] sm:$0xf] %v3029
            $region100: #{graph_encoder_forward.4} parent=87 // loop_footer
              %s2996 = sadd.s32 1, %s2992
            $region101: #{graph_encoder_forward.4} parent=87 // loop_footer_branch
              %2991 = sbr.rel target = $region97
            $region102: #{graph_encoder_forward.4} parent=87 // loop_exit
              _
          $region88: #{graph_encoder_forward.4} parent=72 // pred_fallthru
            _
        $region73: #{graph_encoder_forward.4} parent=68 // pred_fallthru
          _
        // Predicated region
        $region74: #{graph_encoder_forward.4} parent=68 // pred_check
          _
        $region75: #{graph_encoder_forward.4} parent=68 // pred_check_branch
          %2938 = sbr.rel (0) target = $region77
        $region76: #{graph_encoder_forward.4} parent=68 // pred_region
          loop: start=0, step=1, limit=1
          $region78: #{graph_encoder_forward.4} parent=76 // loop_pre_header
            _
          $region79: #{graph_encoder_forward.4} parent=76 // loop_header
            %s2941 = sphi 0, %s2945
            %p2942 = scmp.ge.s32.totalorder %s2941, 1
            %s2946 = sphi [#allocation3], [#allocation3]
            %s2947 = sphi %s2932, %s2932
          $region80: #{graph_encoder_forward.4} parent=76 // loop_header_branch
            %2944 = sbr.rel (%p2942) target = $region84
          $region81: #{graph_encoder_forward.4} parent=76 // loop_body
            %v2948 = vld [vmem:[%s2946] sm:$0xf]
            %2949 = vst [vmem:[%s2947] sm:$0xf] %v2948
            %v2950 = vld [vmem:[%s2946 + $0x4] sm:$0xf]
            %2951 = vst [vmem:[%s2947 + $0xc] sm:$0xf] %v2950
            %v2952 = vld [vmem:[%s2946 + $0x8] sm:$0xf]
            %2953 = vst [vmem:[%s2947 + $0x18] sm:$0xf] %v2952
            %v2954 = vld [vmem:[%s2946 + $0xc] sm:$0xf]
            %2955 = vst [vmem:[%s2947 + $0x24] sm:$0xf] %v2954
            %v2956 = vld [vmem:[%s2946 + $0x10] sm:$0xf]
            %2957 = vst [vmem:[%s2947 + $0x30] sm:$0xf] %v2956
            %v2958 = vld [vmem:[%s2946 + $0x14] sm:$0xf]
            %2959 = vst [vmem:[%s2947 + $0x3c] sm:$0xf] %v2958
            %v2960 = vld [vmem:[%s2946 + $0x18] sm:$0xf]
            %2961 = vst [vmem:[%s2947 + $0x48] sm:$0xf] %v2960
            %v2962 = vld [vmem:[%s2946 + $0x1c] sm:$0xf]
            %2963 = vst [vmem:[%s2947 + $0x54] sm:$0xf] %v2962
            %v2964 = vld [vmem:[%s2946 + $0x20] sm:$0xf]
            %2965 = vst [vmem:[%s2947 + $0x60] sm:$0xf] %v2964
            %v2966 = vld [vmem:[%s2946 + $0x24] sm:$0xf]
            %2967 = vst [vmem:[%s2947 + $0x6c] sm:$0xf] %v2966
            %v2968 = vld [vmem:[%s2946 + $0x28] sm:$0xf]
            %2969 = vst [vmem:[%s2947 + $0x78] sm:$0xf] %v2968
            %v2970 = vld [vmem:[%s2946 + $0x2c] sm:$0xf]
            %2971 = vst [vmem:[%s2947 + $0x84] sm:$0xf] %v2970
            %v2972 = vld [vmem:[%s2946 + $0x30] sm:$0xf]
            %2973 = vst [vmem:[%s2947 + $0x90] sm:$0xf] %v2972
            %v2974 = vld [vmem:[%s2946 + $0x34] sm:$0xf]
            %2975 = vst [vmem:[%s2947 + $0x9c] sm:$0xf] %v2974
            %v2976 = vld [vmem:[%s2946 + $0x38] sm:$0xf]
            %2977 = vst [vmem:[%s2947 + $0xa8] sm:$0xf] %v2976
            %v2978 = vld [vmem:[%s2946 + $0x3c] sm:$0xf]
            %2979 = vst [vmem:[%s2947 + $0xb4] sm:$0xf] %v2978
          $region82: #{graph_encoder_forward.4} parent=76 // loop_footer
            %s2945 = sadd.s32 1, %s2941
          $region83: #{graph_encoder_forward.4} parent=76 // loop_footer_branch
            %2940 = sbr.rel target = $region79
          $region84: #{graph_encoder_forward.4} parent=76 // loop_exit
            _
        $region77: #{graph_encoder_forward.4} parent=68 // pred_fallthru
          _
      $region69: #{graph_encoder_forward.4} parent=64 // pred_fallthru
        _
      %3031 = vnop
    $region65: #{graph_encoder_forward.4} parent=1 // pred_fallthru
      _
    // Predicated region
    $region103: #{graph_encoder_forward.4} parent=1 // pred_check
      _
    $region104: #{graph_encoder_forward.4} parent=1 // pred_check_branch
      %3033 = sbr.rel (0) target = $region106
    $region105: #{graph_encoder_forward.4} parent=1 // pred_region
      _
    $region106: #{graph_encoder_forward.4} parent=1 // pred_fallthru
      _
    // Predicated region
    $region107: #{graph_encoder_forward.4} parent=1 // pred_check
      _
    $region108: #{graph_encoder_forward.4} parent=1 // pred_check_branch
      %3035 = sbr.rel (0) target = $region110
    $region109: #{graph_encoder_forward.4} parent=1 // pred_region
      _
    $region110: #{graph_encoder_forward.4} parent=1 // pred_fallthru
      _
    // Predicated region
    $region111: #{graph_encoder_forward.4} parent=1 // pred_check
      _
    $region112: #{graph_encoder_forward.4} parent=1 // pred_check_branch
      %3037 = sbr.rel (0) target = $region114
    $region113: #{graph_encoder_forward.4} parent=1 // pred_region
      _
    $region114: #{graph_encoder_forward.4} parent=1 // pred_fallthru
      _
    // Predicated region
    $region115: #{graph_encoder_forward.4} parent=1 // pred_check
      _
    $region116: #{graph_encoder_forward.4} parent=1 // pred_check_branch
      %3039 = sbr.rel (0) target = $region118
    $region117: #{graph_encoder_forward.4} parent=1 // pred_region
      _
    $region118: #{graph_encoder_forward.4} parent=1 // pred_fallthru
      _
    // Predicated region
    $region119: #{graph_encoder_forward.4} parent=1 // pred_check
      _
    $region120: #{graph_encoder_forward.4} parent=1 // pred_check_branch
      %3041 = sbr.rel (0) target = $region122
    $region121: #{graph_encoder_forward.4} parent=1 // pred_region
      _
    $region122: #{graph_encoder_forward.4} parent=1 // pred_fallthru
      _

</llo_original>
